<compile_context>
chip_gen: v7x
topology: tpu7x:2x2x1
jax: 0.10.0
libtpu: 0.0.40
codegen_flags: <defaults>
</compile_context>

<pallas_src>
import functools

import jax
import jax.numpy as jnp
from jax.experimental import pallas as pl
from jax.experimental.pallas import tpu as pltpu

_LANE = 128            # N tile (lane width); also gives >1 parallel grid blocks on v7x
_MAX_SINGLE_K = 4096   # single-step full-K up to here (bf16 weight block <= 1 MiB)
_K_TILE = 2048         # K tile when K is larger (fits v5e's 16 MiB scoped-VMEM easily)
_BN_EPS = 1e-5
_LRELU_SLOPE = 0.2


def _round_up(x, m):
    return (x + m - 1) // m * m


def _padded_k(k):
    kp = _round_up(k, _LANE)
    if kp > _MAX_SINGLE_K:
        kp = _round_up(k, _K_TILE)
    return kp


# ---------------------------------------------------------------------------
# Pallas kernel: matmul + bias + activation epilogue.  The output block is
# VMEM-resident across the K grid axis, so we accumulate straight into o_ref.
# ---------------------------------------------------------------------------
def _fused_matmul_kernel(x_ref, w_ref, b_ref, o_ref, *, act, slope):
    k = pl.program_id(1)

    @pl.when(k == 0)
    def _():
        o_ref[...] = jnp.zeros_like(o_ref)

    o_ref[...] += jnp.dot(x_ref[...], w_ref[...],
                          preferred_element_type=jnp.float32)

    @pl.when(k == pl.num_programs(1) - 1)
    def _():
        y = o_ref[...] + b_ref[...]
        if act == "leaky_relu":
            y = jnp.where(y >= 0.0, y, slope * y)
        elif act == "tanh":
            y = jnp.tanh(y)
        o_ref[...] = y


def fused_matmul_bias_act(x, w, b, *, act="none", slope=_LRELU_SLOPE):
    """act(x @ w + b).  x:(M,Kp) bf16, w:(Kp,Np) bf16, b:(1,Np) f32 -> (M,Np) f32."""
    M, Kp = x.shape
    Kp2, Np = w.shape
    assert Kp == Kp2 and b.shape == (1, Np), (x.shape, w.shape, b.shape)
    assert Np % _LANE == 0

    tk = Kp if Kp <= _MAX_SINGLE_K else _K_TILE   # 1 (rarely a few) K steps
    tn = _LANE
    grid = (Np // tn, Kp // tk)                   # N parallel (outer), K reduction (inner)

    kernel = functools.partial(_fused_matmul_kernel, act=act, slope=slope)
    return pl.pallas_call(
        kernel,
        out_shape=jax.ShapeDtypeStruct((M, Np), jnp.float32),
        grid_spec=pltpu.PrefetchScalarGridSpec(
            num_scalar_prefetch=0,
            grid=grid,
            in_specs=[
                # M equals the full array dim, so it is exempt from the 8-row rule.
                pl.BlockSpec((M, tk), lambda j, k: (0, k)),
                pl.BlockSpec((tk, tn), lambda j, k: (k, j)),
                pl.BlockSpec((1, tn), lambda j, k: (0, j)),
            ],
            out_specs=pl.BlockSpec((M, tn), lambda j, k: (0, j)),
        ),
        compiler_params=pltpu.CompilerParams(
            dimension_semantics=("parallel", "arbitrary")),
    )(x, w, b)


# ---------------------------------------------------------------------------
# im2col glue: single concatenate produces the bf16 LHS at the padded K width
# (no concat -> pad -> astype double materialization).
# ---------------------------------------------------------------------------
def _im2col_bf16(x, kh, kw, stride, padding, k_padded):
    B, H, W, C = x.shape
    Ho = (H + 2 * padding - kh) // stride + 1
    Wo = (W + 2 * padding - kw) // stride + 1
    xp = jnp.pad(x.astype(jnp.bfloat16),
                 ((0, 0), (padding, padding), (padding, padding), (0, 0)))
    patches = []
    for ky in range(kh):
        for kx in range(kw):
            patches.append(xp[:, ky:ky + stride * (Ho - 1) + 1:stride,
                               kx:kx + stride * (Wo - 1) + 1:stride, :])
    k = kh * kw * C
    if k_padded > k:
        patches.append(jnp.zeros((B, Ho, Wo, k_padded - k), jnp.bfloat16))
    cols = jnp.concatenate(patches, axis=-1)
    return cols.reshape(B * Ho * Wo, k_padded), Ho, Wo


def _apply_conv(x, layer):
    B = x.shape[0]
    assert layer["k"] == 4 * 4 * x.shape[-1], (layer["k"], x.shape)
    cols, Ho, Wo = _im2col_bf16(x, 4, 4, layer["stride"], layer["padding"],
                                layer["w"].shape[0])
    y = fused_matmul_bias_act(cols, layer["w"], layer["b"], act=layer["act"])
    return y[:, :layer["n"]].reshape(B, Ho, Wo, layer["n"])


def _apply_conv_transpose(x, layer):
    # ConvTranspose2d(k=4,s=2,p=1) == zero-dilate input by the stride, pad by
    # k-1-p=2, then a stride-1 conv with the spatially flipped kernel (the flip
    # is folded into the packed weight at init).
    B, H, W, C = x.shape
    assert layer["k"] == 4 * 4 * C, (layer["k"], x.shape)
    s = layer["stride"]
    if s > 1 and (H > 1 or W > 1):
        up = jnp.zeros((B, (H - 1) * s + 1, (W - 1) * s + 1, C), x.dtype)
        up = up.at[:, ::s, ::s, :].set(x)
    else:
        up = x
    cols, Ho, Wo = _im2col_bf16(up, 4, 4, 1, 4 - 1 - layer["padding"],
                                layer["w"].shape[0])
    y = fused_matmul_bias_act(cols, layer["w"], layer["b"], act=layer["act"])
    return y[:, :layer["n"]].reshape(B, Ho, Wo, layer["n"])


def _apply(x, layer):
    if layer["kind"] == "deconv":
        return _apply_conv_transpose(x, layer)
    return _apply_conv(x, layer)


# ---------------------------------------------------------------------------
# Parameter construction: BN folded, weights reshaped/padded/cast to bf16 once.
# ---------------------------------------------------------------------------
def _fold_bn(w_hwio, bias, gamma, beta):
    scale = gamma / jnp.sqrt(1.0 + _BN_EPS)       # running stats: mean 0, var 1
    return w_hwio * scale, bias * scale + beta


def _pack(w_hwio, bias, *, act, kind="conv", stride=2, padding=1, cat_attrs=False):
    kh, kw, cin, cout = w_hwio.shape
    k, n = kh * kw * cin, cout
    kp, np_ = _padded_k(k), _round_up(n, _LANE)
    w_mat = jnp.pad(w_hwio.reshape(k, n), ((0, kp - k), (0, np_ - n)))
    b_row = jnp.pad(bias, (0, np_ - n)).reshape(1, np_).astype(jnp.float32)
    return dict(w=w_mat.astype(jnp.bfloat16), b=b_row, k=k, n=n, act=act,
                kind=kind, stride=stride, padding=padding, cat_attrs=cat_attrs)


def init_params(key, *, img_dim=3, z_dim=128, layer_size=1, c_dim=3):
    keys = iter(jax.random.split(key, 64))

    def conv_w(cin, cout):                           # weights_init: N(0, 0.02)
        return 0.02 * jax.random.normal(next(keys), (4, 4, cin, cout), jnp.float32)

    def conv_b(cin, cout):                           # default uniform bias init
        bound = (cin * 16) ** -0.5
        return jax.random.uniform(next(keys), (cout,), jnp.float32, -bound, bound)

    def bn(cout):                                    # gamma ~ N(0,0.02), beta = 0
        gamma = 0.02 * jax.random.normal(next(keys), (cout,), jnp.float32)
        return gamma, jnp.zeros((cout,), jnp.float32)

    params = {"enc": [], "dec": []}

    # --- encoder stack ---
    cin = img_dim
    cout = z_dim // (2 ** layer_size)                # intended semantics (see NOTE)
    for _ in range(layer_size + 1):
        w, b = _fold_bn(conv_w(cin, cout), conv_b(cin, cout), *bn(cout))
        params["enc"].append(_pack(w, b, act="leaky_relu"))
        cin, cout = cout, cout * 2

    # --- enc_mu / enc_logvar: fused into ONE matmul (shared input) ---
    z_ch = cout // 2                                 # == z_dim
    wm, bm = _fold_bn(conv_w(cin, z_ch), conv_b(cin, z_ch), *bn(z_ch))
    wl, bl = _fold_bn(conv_w(cin, z_ch), conv_b(cin, z_ch), *bn(z_ch))
    params["enc_mu_logvar"] = _pack(jnp.concatenate([wm, wl], axis=-1),
                                    jnp.concatenate([bm, bl], axis=0),
                                    act="leaky_relu")
    params["z_channels"] = z_ch

    # --- decoder ---
    d_in = z_ch + c_dim
    wt = 0.02 * jax.random.normal(next(keys), (d_in, z_ch, 4, 4), jnp.float32)
    w_eq = jnp.transpose(wt[:, :, ::-1, ::-1], (2, 3, 0, 1))   # flipped, HWIO
    w_eq, bt = _fold_bn(w_eq, conv_b(d_in, z_ch), *bn(z_ch))
    params["dec"].append(_pack(w_eq, bt, act="leaky_relu", kind="deconv",
                               cat_attrs=True))

    cin, cout = d_in, z_ch
    mids = []
    for i in range(layer_size):
        w, b = _fold_bn(conv_w(cin, cout), conv_b(cin, cout), *bn(cout))
        mids.append(_pack(w, b, act="leaky_relu", cat_attrs=(i == 0)))
        cin, cout = cout, cout // 2
    final = _pack(conv_w(cin, img_dim), conv_b(cin, img_dim), act="tanh")
    if mids:
        mids[-1] = final       # reference overwrites dec_{layer_size} with Conv+Tanh
    else:
        mids = [final]
    params["dec"].extend(mids)
    return params


# ---------------------------------------------------------------------------
# Forward pass
# ---------------------------------------------------------------------------
def reparameterize(mu, logvar, eps=None):
    if eps is None:            # inference mode (reference eval path: return mu)
        return mu
    return mu + eps * jnp.exp(0.5 * logvar)


def cvae_forward(params, x_nchw, insert_attrs=None, eps=None, return_enc=False):
    b = x_nchw.shape[0]
    x = jnp.transpose(x_nchw, (0, 2, 3, 1))          # NCHW -> NHWC
    for layer in params["enc"]:
        x = _apply(x, layer)
    ml = _apply(x, params["enc_mu_logvar"])          # (B, 1, 1, 2*z_ch), one fused call
    z_ch = params["z_channels"]
    # torch: mu.view(B,-1).  Spatial is 1x1 here, so NHWC and NCHW flattens agree.
    mu = ml[..., :z_ch].reshape(b, -1)
    logvar = ml[..., z_ch:].reshape(b, -1)
    z = reparameterize(mu, logvar, eps)
    if return_enc:
        return z

    h = z
    for layer in params["dec"]:
        if h.ndim == 2:
            if layer["cat_attrs"] and insert_attrs is not None:
                h = jnp.concatenate([h, insert_attrs.astype(h.dtype)], axis=1)
            h = h.reshape(b, 1, 1, h.shape[1])
        elif layer["cat_attrs"] and insert_attrs is not None:
            a = jnp.broadcast_to(insert_attrs[:, None, None, :].astype(h.dtype),
                                 (b, h.shape[1], h.shape[2], insert_attrs.shape[1]))
            h = jnp.concatenate([h, a], axis=-1)
        h = _apply(h, layer)
    recon = jnp.transpose(h, (0, 3, 1, 2))           # NHWC -> NCHW
    return recon, mu, logvar


if __name__ == "__main__":
    # layer_size=1, z_dim=128: encoder 3 -> 64 -> 128, enc_mu/enc_logvar 128 -> 128.
    # Input 8x8 so the three stride-2 convs reduce spatial to 1x1 at mu/logvar,
    # which the flatten -> unsqueeze round trip in forward/decode requires.
    img_dim, z_dim, layer_size, c_dim = 3, 128, 1, 3

    key = jax.random.PRNGKey(0)
    kx, ka, kp = jax.random.split(key, 3)
    x = jax.random.normal(kx, (2, img_dim, 8, 8), jnp.float32)      # NCHW input
    attrs = jax.random.normal(ka, (2, c_dim), jnp.float32)          # insert_attrs
    params = init_params(kp, img_dim=img_dim, z_dim=z_dim,
                         layer_size=layer_size, c_dim=c_dim)

    fwd = jax.jit(functools.partial(cvae_forward, params))
    recon, mu, logvar = fwd(x, attrs)
    jax.block_until_ready((recon, mu, logvar))

    assert recon.shape == (2, img_dim, 1, 1), recon.shape
    assert mu.shape == (2, z_dim) and logvar.shape == (2, z_dim)
    assert bool(jnp.all(jnp.isfinite(recon)))
    print("KERNEL_OK")
</pallas_src>

<mosaic_0001>
module attributes {stable_mosaic.version = 11 : i64} {
  func.func @_fused_matmul_kernel(%arg0: i32, %arg1: i32, %arg2: memref<32x128xbf16, #tpu.memory_space<vmem>>, %arg3: memref<128x128xbf16, #tpu.memory_space<vmem>>, %arg4: memref<1x128xf32, #tpu.memory_space<vmem>>, %arg5: memref<32x128xf32, #tpu.memory_space<vmem>>) attributes {dimension_semantics = [#tpu.dimension_semantics<parallel>, #tpu.dimension_semantics<arbitrary>], iteration_bounds = array<i64: 1, 1>, scalar_prefetch = 0 : i64, scratch_operands = 0 : i64, tpu.core_type = #tpu.core_type<tc>, window_params = [{transform_indices = @transform_0, window_bounds = array<i64: 32, 128>}, {transform_indices = @transform_1, window_bounds = array<i64: 128, 128>}, {transform_indices = @transform_2, window_bounds = array<i64: 1, 128>}, {transform_indices = @transform_3, window_bounds = array<i64: 32, 128>}]} {
    %c0_i32 = arith.constant 0 : i32
    %0 = arith.cmpi eq, %arg1, %c0_i32 : i32
    %1 = arith.extui %0 : i1 to i32
    %c0_i32_0 = arith.constant 0 : i32
    %2 = arith.cmpi ne, %1, %c0_i32_0 : i32
    scf.if %2 {
      %cst_10 = arith.constant 0.000000e+00 : f32
      %12 = vector.broadcast %cst_10 : f32 to vector<32x128xf32>
      %c0_11 = arith.constant 0 : index
      %c0_12 = arith.constant 0 : index
      %13 = vector.load %arg5[%c0_11, %c0_12] : memref<32x128xf32, #tpu.memory_space<vmem>>, vector<32x128xf32>
      tpu.vector_store %arg5[%c0_11, %c0_12], %12 {strides = array<i32>} : memref<32x128xf32, #tpu.memory_space<vmem>>, vector<32x128xf32>,
    } else {
    }
    %c0 = arith.constant 0 : index
    %c0_1 = arith.constant 0 : index
    %3 = vector.load %arg5[%c0, %c0_1] : memref<32x128xf32, #tpu.memory_space<vmem>>, vector<32x128xf32>
    %c0_2 = arith.constant 0 : index
    %c0_3 = arith.constant 0 : index
    %4 = vector.load %arg2[%c0_2, %c0_3] : memref<32x128xbf16, #tpu.memory_space<vmem>>, vector<32x128xbf16>
    %c0_4 = arith.constant 0 : index
    %c0_5 = arith.constant 0 : index
    %5 = vector.load %arg3[%c0_4, %c0_5] : memref<128x128xbf16, #tpu.memory_space<vmem>>, vector<128x128xbf16>
    %cst = arith.constant dense<0.000000e+00> : vector<32x128xf32>
    %6 = tpu.matmul %4, %5, %cst {dimension_numbers = #tpu.dot_dimension_numbers<[1], [0], [0], [1], [0, 0, 1, 1], [], []>} : vector<32x128xbf16>, vector<128x128xbf16>, vector<32x128xf32> -> vector<32x128xf32>
    %7 = arith.addf %3, %6 : vector<32x128xf32>
    %c0_6 = arith.constant 0 : index
    %c0_7 = arith.constant 0 : index
    %8 = vector.load %arg5[%c0_6, %c0_7] : memref<32x128xf32, #tpu.memory_space<vmem>>, vector<32x128xf32>
    tpu.vector_store %arg5[%c0_6, %c0_7], %7 {strides = array<i32>} : memref<32x128xf32, #tpu.memory_space<vmem>>, vector<32x128xf32>,
    %c0_i32_8 = arith.constant 0 : i32
    %9 = arith.cmpi eq, %arg1, %c0_i32_8 : i32
    %10 = arith.extui %9 : i1 to i32
    %c0_i32_9 = arith.constant 0 : i32
    %11 = arith.cmpi ne, %10, %c0_i32_9 : i32
    scf.if %11 {
      %c0_10 = arith.constant 0 : index
      %c0_11 = arith.constant 0 : index
      %12 = vector.load %arg5[%c0_10, %c0_11] : memref<32x128xf32, #tpu.memory_space<vmem>>, vector<32x128xf32>
      %c0_12 = arith.constant 0 : index
      %c0_13 = arith.constant 0 : index
      %13 = vector.load %arg4[%c0_12, %c0_13] : memref<1x128xf32, #tpu.memory_space<vmem>>, vector<1x128xf32>
      %14 = vector.broadcast %13 : vector<1x128xf32> to vector<32x128xf32>
      %15 = arith.addf %12, %14 : vector<32x128xf32>
      %cst_14 = arith.constant 0.000000e+00 : f32
      %16 = vector.broadcast %cst_14 : f32 to vector<32x128xf32>
      %17 = arith.cmpf oge, %15, %16 : vector<32x128xf32>
      %cst_15 = arith.constant 2.000000e-01 : f32
      %18 = vector.broadcast %cst_15 : f32 to vector<32x128xf32>
      %19 = arith.mulf %18, %15 : vector<32x128xf32>
      %20 = arith.select %17, %15, %19 : vector<32x128xi1>, vector<32x128xf32>
      %c0_16 = arith.constant 0 : index
      %c0_17 = arith.constant 0 : index
      %21 = vector.load %arg5[%c0_16, %c0_17] : memref<32x128xf32, #tpu.memory_space<vmem>>, vector<32x128xf32>
      tpu.vector_store %arg5[%c0_16, %c0_17], %20 {strides = array<i32>} : memref<32x128xf32, #tpu.memory_space<vmem>>, vector<32x128xf32>,
    } else {
    }
    return
  }
  func.func @transform_0(%arg0: i32, %arg1: i32) -> (i32, i32) {
    %c0_i32 = arith.constant 0 : i32
    %c0_i32_0 = arith.constant 0 : i32
    return %c0_i32, %arg1 : i32, i32
  }
  func.func @transform_1(%arg0: i32, %arg1: i32) -> (i32, i32) {
    %c0_i32 = arith.constant 0 : i32
    return %arg1, %arg0 : i32, i32
  }
  func.func @transform_2(%arg0: i32, %arg1: i32) -> (i32, i32) {
    %c0_i32 = arith.constant 0 : i32
    %c0_i32_0 = arith.constant 0 : i32
    return %c0_i32, %arg0 : i32, i32
  }
  func.func @transform_3(%arg0: i32, %arg1: i32) -> (i32, i32) {
    %c0_i32 = arith.constant 0 : i32
    %c0_i32_0 = arith.constant 0 : i32
    return %c0_i32, %arg0 : i32, i32
  }
}

module attributes {stable_mosaic.version = 11 : i64} {
  func.func @_fused_matmul_kernel(%arg0: i32, %arg1: i32, %arg2: memref<8x1024xbf16, #tpu.memory_space<vmem>>, %arg3: memref<1024x128xbf16, #tpu.memory_space<vmem>>, %arg4: memref<1x128xf32, #tpu.memory_space<vmem>>, %arg5: memref<8x128xf32, #tpu.memory_space<vmem>>) attributes {dimension_semantics = [#tpu.dimension_semantics<parallel>, #tpu.dimension_semantics<arbitrary>], iteration_bounds = array<i64: 1, 1>, scalar_prefetch = 0 : i64, scratch_operands = 0 : i64, tpu.core_type = #tpu.core_type<tc>, window_params = [{transform_indices = @transform_0, window_bounds = array<i64: 8, 1024>}, {transform_indices = @transform_1, window_bounds = array<i64: 1024, 128>}, {transform_indices = @transform_2, window_bounds = array<i64: 1, 128>}, {transform_indices = @transform_3, window_bounds = array<i64: 8, 128>}]} {
    %c0_i32 = arith.constant 0 : i32
    %0 = arith.cmpi eq, %arg1, %c0_i32 : i32
    %1 = arith.extui %0 : i1 to i32
    %c0_i32_0 = arith.constant 0 : i32
    %2 = arith.cmpi ne, %1, %c0_i32_0 : i32
    scf.if %2 {
      %cst_10 = arith.constant 0.000000e+00 : f32
      %12 = vector.broadcast %cst_10 : f32 to vector<8x128xf32>
      %c0_11 = arith.constant 0 : index
      %c0_12 = arith.constant 0 : index
      %13 = vector.load %arg5[%c0_11, %c0_12] : memref<8x128xf32, #tpu.memory_space<vmem>>, vector<8x128xf32>
      tpu.vector_store %arg5[%c0_11, %c0_12], %12 {strides = array<i32>} : memref<8x128xf32, #tpu.memory_space<vmem>>, vector<8x128xf32>,
    } else {
    }
    %c0 = arith.constant 0 : index
    %c0_1 = arith.constant 0 : index
    %3 = vector.load %arg5[%c0, %c0_1] : memref<8x128xf32, #tpu.memory_space<vmem>>, vector<8x128xf32>
    %c0_2 = arith.constant 0 : index
    %c0_3 = arith.constant 0 : index
    %4 = vector.load %arg2[%c0_2, %c0_3] : memref<8x1024xbf16, #tpu.memory_space<vmem>>, vector<8x1024xbf16>
    %c0_4 = arith.constant 0 : index
    %c0_5 = arith.constant 0 : index
    %5 = vector.load %arg3[%c0_4, %c0_5] : memref<1024x128xbf16, #tpu.memory_space<vmem>>, vector<1024x128xbf16>
    %cst = arith.constant dense<0.000000e+00> : vector<8x128xf32>
    %6 = tpu.matmul %4, %5, %cst {dimension_numbers = #tpu.dot_dimension_numbers<[1], [0], [0], [1], [0, 0, 1, 1], [], []>} : vector<8x1024xbf16>, vector<1024x128xbf16>, vector<8x128xf32> -> vector<8x128xf32>
    %7 = arith.addf %3, %6 : vector<8x128xf32>
    %c0_6 = arith.constant 0 : index
    %c0_7 = arith.constant 0 : index
    %8 = vector.load %arg5[%c0_6, %c0_7] : memref<8x128xf32, #tpu.memory_space<vmem>>, vector<8x128xf32>
    tpu.vector_store %arg5[%c0_6, %c0_7], %7 {strides = array<i32>} : memref<8x128xf32, #tpu.memory_space<vmem>>, vector<8x128xf32>,
    %c0_i32_8 = arith.constant 0 : i32
    %9 = arith.cmpi eq, %arg1, %c0_i32_8 : i32
    %10 = arith.extui %9 : i1 to i32
    %c0_i32_9 = arith.constant 0 : i32
    %11 = arith.cmpi ne, %10, %c0_i32_9 : i32
    scf.if %11 {
      %c0_10 = arith.constant 0 : index
      %c0_11 = arith.constant 0 : index
      %12 = vector.load %arg5[%c0_10, %c0_11] : memref<8x128xf32, #tpu.memory_space<vmem>>, vector<8x128xf32>
      %c0_12 = arith.constant 0 : index
      %c0_13 = arith.constant 0 : index
      %13 = vector.load %arg4[%c0_12, %c0_13] : memref<1x128xf32, #tpu.memory_space<vmem>>, vector<1x128xf32>
      %14 = vector.broadcast %13 : vector<1x128xf32> to vector<8x128xf32>
      %15 = arith.addf %12, %14 : vector<8x128xf32>
      %cst_14 = arith.constant 0.000000e+00 : f32
      %16 = vector.broadcast %cst_14 : f32 to vector<8x128xf32>
      %17 = arith.cmpf oge, %15, %16 : vector<8x128xf32>
      %cst_15 = arith.constant 2.000000e-01 : f32
      %18 = vector.broadcast %cst_15 : f32 to vector<8x128xf32>
      %19 = arith.mulf %18, %15 : vector<8x128xf32>
      %20 = arith.select %17, %15, %19 : vector<8x128xi1>, vector<8x128xf32>
      %c0_16 = arith.constant 0 : index
      %c0_17 = arith.constant 0 : index
      %21 = vector.load %arg5[%c0_16, %c0_17] : memref<8x128xf32, #tpu.memory_space<vmem>>, vector<8x128xf32>
      tpu.vector_store %arg5[%c0_16, %c0_17], %20 {strides = array<i32>} : memref<8x128xf32, #tpu.memory_space<vmem>>, vector<8x128xf32>,
    } else {
    }
    return
  }
  func.func @transform_0(%arg0: i32, %arg1: i32) -> (i32, i32) {
    %c0_i32 = arith.constant 0 : i32
    %c0_i32_0 = arith.constant 0 : i32
    return %c0_i32, %arg1 : i32, i32
  }
  func.func @transform_1(%arg0: i32, %arg1: i32) -> (i32, i32) {
    %c0_i32 = arith.constant 0 : i32
    return %arg1, %arg0 : i32, i32
  }
  func.func @transform_2(%arg0: i32, %arg1: i32) -> (i32, i32) {
    %c0_i32 = arith.constant 0 : i32
    %c0_i32_0 = arith.constant 0 : i32
    return %c0_i32, %arg0 : i32, i32
  }
  func.func @transform_3(%arg0: i32, %arg1: i32) -> (i32, i32) {
    %c0_i32 = arith.constant 0 : i32
    %c0_i32_0 = arith.constant 0 : i32
    return %c0_i32, %arg0 : i32, i32
  }
}

module attributes {stable_mosaic.version = 11 : i64} {
  func.func @_fused_matmul_kernel(%arg0: i32, %arg1: i32, %arg2: memref<2x2048xbf16, #tpu.memory_space<vmem>>, %arg3: memref<2048x128xbf16, #tpu.memory_space<vmem>>, %arg4: memref<1x128xf32, #tpu.memory_space<vmem>>, %arg5: memref<2x128xf32, #tpu.memory_space<vmem>>) attributes {dimension_semantics = [#tpu.dimension_semantics<parallel>, #tpu.dimension_semantics<arbitrary>], iteration_bounds = array<i64: 2, 1>, scalar_prefetch = 0 : i64, scratch_operands = 0 : i64, tpu.core_type = #tpu.core_type<tc>, window_params = [{transform_indices = @transform_0, window_bounds = array<i64: 2, 2048>}, {transform_indices = @transform_1, window_bounds = array<i64: 2048, 128>}, {transform_indices = @transform_2, window_bounds = array<i64: 1, 128>}, {transform_indices = @transform_3, window_bounds = array<i64: 2, 128>}]} {
    %c0_i32 = arith.constant 0 : i32
    %0 = arith.cmpi eq, %arg1, %c0_i32 : i32
    %1 = arith.extui %0 : i1 to i32
    %c0_i32_0 = arith.constant 0 : i32
    %2 = arith.cmpi ne, %1, %c0_i32_0 : i32
    scf.if %2 {
      %cst_10 = arith.constant 0.000000e+00 : f32
      %12 = vector.broadcast %cst_10 : f32 to vector<2x128xf32>
      %c0_11 = arith.constant 0 : index
      %c0_12 = arith.constant 0 : index
      %13 = vector.load %arg5[%c0_11, %c0_12] : memref<2x128xf32, #tpu.memory_space<vmem>>, vector<2x128xf32>
      tpu.vector_store %arg5[%c0_11, %c0_12], %12 {strides = array<i32>} : memref<2x128xf32, #tpu.memory_space<vmem>>, vector<2x128xf32>,
    } else {
    }
    %c0 = arith.constant 0 : index
    %c0_1 = arith.constant 0 : index
    %3 = vector.load %arg5[%c0, %c0_1] : memref<2x128xf32, #tpu.memory_space<vmem>>, vector<2x128xf32>
    %c0_2 = arith.constant 0 : index
    %c0_3 = arith.constant 0 : index
    %4 = vector.load %arg2[%c0_2, %c0_3] : memref<2x2048xbf16, #tpu.memory_space<vmem>>, vector<2x2048xbf16>
    %c0_4 = arith.constant 0 : index
    %c0_5 = arith.constant 0 : index
    %5 = vector.load %arg3[%c0_4, %c0_5] : memref<2048x128xbf16, #tpu.memory_space<vmem>>, vector<2048x128xbf16>
    %cst = arith.constant dense<0.000000e+00> : vector<2x128xf32>
    %6 = tpu.matmul %4, %5, %cst {dimension_numbers = #tpu.dot_dimension_numbers<[1], [0], [0], [1], [0, 0, 1, 1], [], []>} : vector<2x2048xbf16>, vector<2048x128xbf16>, vector<2x128xf32> -> vector<2x128xf32>
    %7 = arith.addf %3, %6 : vector<2x128xf32>
    %c0_6 = arith.constant 0 : index
    %c0_7 = arith.constant 0 : index
    %8 = vector.load %arg5[%c0_6, %c0_7] : memref<2x128xf32, #tpu.memory_space<vmem>>, vector<2x128xf32>
    tpu.vector_store %arg5[%c0_6, %c0_7], %7 {strides = array<i32>} : memref<2x128xf32, #tpu.memory_space<vmem>>, vector<2x128xf32>,
    %c0_i32_8 = arith.constant 0 : i32
    %9 = arith.cmpi eq, %arg1, %c0_i32_8 : i32
    %10 = arith.extui %9 : i1 to i32
    %c0_i32_9 = arith.constant 0 : i32
    %11 = arith.cmpi ne, %10, %c0_i32_9 : i32
    scf.if %11 {
      %c0_10 = arith.constant 0 : index
      %c0_11 = arith.constant 0 : index
      %12 = vector.load %arg5[%c0_10, %c0_11] : memref<2x128xf32, #tpu.memory_space<vmem>>, vector<2x128xf32>
      %c0_12 = arith.constant 0 : index
      %c0_13 = arith.constant 0 : index
      %13 = vector.load %arg4[%c0_12, %c0_13] : memref<1x128xf32, #tpu.memory_space<vmem>>, vector<1x128xf32>
      %14 = vector.broadcast %13 : vector<1x128xf32> to vector<2x128xf32>
      %15 = arith.addf %12, %14 : vector<2x128xf32>
      %cst_14 = arith.constant 0.000000e+00 : f32
      %16 = vector.broadcast %cst_14 : f32 to vector<2x128xf32>
      %17 = arith.cmpf oge, %15, %16 : vector<2x128xf32>
      %cst_15 = arith.constant 2.000000e-01 : f32
      %18 = vector.broadcast %cst_15 : f32 to vector<2x128xf32>
      %19 = arith.mulf %18, %15 : vector<2x128xf32>
      %20 = arith.select %17, %15, %19 : vector<2x128xi1>, vector<2x128xf32>
      %c0_16 = arith.constant 0 : index
      %c0_17 = arith.constant 0 : index
      %21 = vector.load %arg5[%c0_16, %c0_17] : memref<2x128xf32, #tpu.memory_space<vmem>>, vector<2x128xf32>
      tpu.vector_store %arg5[%c0_16, %c0_17], %20 {strides = array<i32>} : memref<2x128xf32, #tpu.memory_space<vmem>>, vector<2x128xf32>,
    } else {
    }
    return
  }
  func.func @transform_0(%arg0: i32, %arg1: i32) -> (i32, i32) {
    %c0_i32 = arith.constant 0 : i32
    %c0_i32_0 = arith.constant 0 : i32
    return %c0_i32, %arg1 : i32, i32
  }
  func.func @transform_1(%arg0: i32, %arg1: i32) -> (i32, i32) {
    %c0_i32 = arith.constant 0 : i32
    return %arg1, %arg0 : i32, i32
  }
  func.func @transform_2(%arg0: i32, %arg1: i32) -> (i32, i32) {
    %c0_i32 = arith.constant 0 : i32
    %c0_i32_0 = arith.constant 0 : i32
    return %c0_i32, %arg0 : i32, i32
  }
  func.func @transform_3(%arg0: i32, %arg1: i32) -> (i32, i32) {
    %c0_i32 = arith.constant 0 : i32
    %c0_i32_0 = arith.constant 0 : i32
    return %c0_i32, %arg0 : i32, i32
  }
}

module attributes {stable_mosaic.version = 11 : i64} {
  func.func @_fused_matmul_kernel(%arg0: i32, %arg1: i32, %arg2: memref<8x2176xbf16, #tpu.memory_space<vmem>>, %arg3: memref<2176x128xbf16, #tpu.memory_space<vmem>>, %arg4: memref<1x128xf32, #tpu.memory_space<vmem>>, %arg5: memref<8x128xf32, #tpu.memory_space<vmem>>) attributes {dimension_semantics = [#tpu.dimension_semantics<parallel>, #tpu.dimension_semantics<arbitrary>], iteration_bounds = array<i64: 1, 1>, scalar_prefetch = 0 : i64, scratch_operands = 0 : i64, tpu.core_type = #tpu.core_type<tc>, window_params = [{transform_indices = @transform_0, window_bounds = array<i64: 8, 2176>}, {transform_indices = @transform_1, window_bounds = array<i64: 2176, 128>}, {transform_indices = @transform_2, window_bounds = array<i64: 1, 128>}, {transform_indices = @transform_3, window_bounds = array<i64: 8, 128>}]} {
    %c0_i32 = arith.constant 0 : i32
    %0 = arith.cmpi eq, %arg1, %c0_i32 : i32
    %1 = arith.extui %0 : i1 to i32
    %c0_i32_0 = arith.constant 0 : i32
    %2 = arith.cmpi ne, %1, %c0_i32_0 : i32
    scf.if %2 {
      %cst_10 = arith.constant 0.000000e+00 : f32
      %12 = vector.broadcast %cst_10 : f32 to vector<8x128xf32>
      %c0_11 = arith.constant 0 : index
      %c0_12 = arith.constant 0 : index
      %13 = vector.load %arg5[%c0_11, %c0_12] : memref<8x128xf32, #tpu.memory_space<vmem>>, vector<8x128xf32>
      tpu.vector_store %arg5[%c0_11, %c0_12], %12 {strides = array<i32>} : memref<8x128xf32, #tpu.memory_space<vmem>>, vector<8x128xf32>,
    } else {
    }
    %c0 = arith.constant 0 : index
    %c0_1 = arith.constant 0 : index
    %3 = vector.load %arg5[%c0, %c0_1] : memref<8x128xf32, #tpu.memory_space<vmem>>, vector<8x128xf32>
    %c0_2 = arith.constant 0 : index
    %c0_3 = arith.constant 0 : index
    %4 = vector.load %arg2[%c0_2, %c0_3] : memref<8x2176xbf16, #tpu.memory_space<vmem>>, vector<8x2176xbf16>
    %c0_4 = arith.constant 0 : index
    %c0_5 = arith.constant 0 : index
    %5 = vector.load %arg3[%c0_4, %c0_5] : memref<2176x128xbf16, #tpu.memory_space<vmem>>, vector<2176x128xbf16>
    %cst = arith.constant dense<0.000000e+00> : vector<8x128xf32>
    %6 = tpu.matmul %4, %5, %cst {dimension_numbers = #tpu.dot_dimension_numbers<[1], [0], [0], [1], [0, 0, 1, 1], [], []>} : vector<8x2176xbf16>, vector<2176x128xbf16>, vector<8x128xf32> -> vector<8x128xf32>
    %7 = arith.addf %3, %6 : vector<8x128xf32>
    %c0_6 = arith.constant 0 : index
    %c0_7 = arith.constant 0 : index
    %8 = vector.load %arg5[%c0_6, %c0_7] : memref<8x128xf32, #tpu.memory_space<vmem>>, vector<8x128xf32>
    tpu.vector_store %arg5[%c0_6, %c0_7], %7 {strides = array<i32>} : memref<8x128xf32, #tpu.memory_space<vmem>>, vector<8x128xf32>,
    %c0_i32_8 = arith.constant 0 : i32
    %9 = arith.cmpi eq, %arg1, %c0_i32_8 : i32
    %10 = arith.extui %9 : i1 to i32
    %c0_i32_9 = arith.constant 0 : i32
    %11 = arith.cmpi ne, %10, %c0_i32_9 : i32
    scf.if %11 {
      %c0_10 = arith.constant 0 : index
      %c0_11 = arith.constant 0 : index
      %12 = vector.load %arg5[%c0_10, %c0_11] : memref<8x128xf32, #tpu.memory_space<vmem>>, vector<8x128xf32>
      %c0_12 = arith.constant 0 : index
      %c0_13 = arith.constant 0 : index
      %13 = vector.load %arg4[%c0_12, %c0_13] : memref<1x128xf32, #tpu.memory_space<vmem>>, vector<1x128xf32>
      %14 = vector.broadcast %13 : vector<1x128xf32> to vector<8x128xf32>
      %15 = arith.addf %12, %14 : vector<8x128xf32>
      %cst_14 = arith.constant 0.000000e+00 : f32
      %16 = vector.broadcast %cst_14 : f32 to vector<8x128xf32>
      %17 = arith.cmpf oge, %15, %16 : vector<8x128xf32>
      %cst_15 = arith.constant 2.000000e-01 : f32
      %18 = vector.broadcast %cst_15 : f32 to vector<8x128xf32>
      %19 = arith.mulf %18, %15 : vector<8x128xf32>
      %20 = arith.select %17, %15, %19 : vector<8x128xi1>, vector<8x128xf32>
      %c0_16 = arith.constant 0 : index
      %c0_17 = arith.constant 0 : index
      %21 = vector.load %arg5[%c0_16, %c0_17] : memref<8x128xf32, #tpu.memory_space<vmem>>, vector<8x128xf32>
      tpu.vector_store %arg5[%c0_16, %c0_17], %20 {strides = array<i32>} : memref<8x128xf32, #tpu.memory_space<vmem>>, vector<8x128xf32>,
    } else {
    }
    return
  }
  func.func @transform_0(%arg0: i32, %arg1: i32) -> (i32, i32) {
    %c0_i32 = arith.constant 0 : i32
    %c0_i32_0 = arith.constant 0 : i32
    return %c0_i32, %arg1 : i32, i32
  }
  func.func @transform_1(%arg0: i32, %arg1: i32) -> (i32, i32) {
    %c0_i32 = arith.constant 0 : i32
    return %arg1, %arg0 : i32, i32
  }
  func.func @transform_2(%arg0: i32, %arg1: i32) -> (i32, i32) {
    %c0_i32 = arith.constant 0 : i32
    %c0_i32_0 = arith.constant 0 : i32
    return %c0_i32, %arg0 : i32, i32
  }
  func.func @transform_3(%arg0: i32, %arg1: i32) -> (i32, i32) {
    %c0_i32 = arith.constant 0 : i32
    %c0_i32_0 = arith.constant 0 : i32
    return %c0_i32, %arg0 : i32, i32
  }
}

module attributes {stable_mosaic.version = 11 : i64} {
  func.func @_fused_matmul_kernel(%arg0: i32, %arg1: i32, %arg2: memref<2x2048xbf16, #tpu.memory_space<vmem>>, %arg3: memref<2048x128xbf16, #tpu.memory_space<vmem>>, %arg4: memref<1x128xf32, #tpu.memory_space<vmem>>, %arg5: memref<2x128xf32, #tpu.memory_space<vmem>>) attributes {dimension_semantics = [#tpu.dimension_semantics<parallel>, #tpu.dimension_semantics<arbitrary>], iteration_bounds = array<i64: 1, 1>, scalar_prefetch = 0 : i64, scratch_operands = 0 : i64, tpu.core_type = #tpu.core_type<tc>, window_params = [{transform_indices = @transform_0, window_bounds = array<i64: 2, 2048>}, {transform_indices = @transform_1, window_bounds = array<i64: 2048, 128>}, {transform_indices = @transform_2, window_bounds = array<i64: 1, 128>}, {transform_indices = @transform_3, window_bounds = array<i64: 2, 128>}]} {
    %c0_i32 = arith.constant 0 : i32
    %0 = arith.cmpi eq, %arg1, %c0_i32 : i32
    %1 = arith.extui %0 : i1 to i32
    %c0_i32_0 = arith.constant 0 : i32
    %2 = arith.cmpi ne, %1, %c0_i32_0 : i32
    scf.if %2 {
      %cst_10 = arith.constant 0.000000e+00 : f32
      %12 = vector.broadcast %cst_10 : f32 to vector<2x128xf32>
      %c0_11 = arith.constant 0 : index
      %c0_12 = arith.constant 0 : index
      %13 = vector.load %arg5[%c0_11, %c0_12] : memref<2x128xf32, #tpu.memory_space<vmem>>, vector<2x128xf32>
      tpu.vector_store %arg5[%c0_11, %c0_12], %12 {strides = array<i32>} : memref<2x128xf32, #tpu.memory_space<vmem>>, vector<2x128xf32>,
    } else {
    }
    %c0 = arith.constant 0 : index
    %c0_1 = arith.constant 0 : index
    %3 = vector.load %arg5[%c0, %c0_1] : memref<2x128xf32, #tpu.memory_space<vmem>>, vector<2x128xf32>
    %c0_2 = arith.constant 0 : index
    %c0_3 = arith.constant 0 : index
    %4 = vector.load %arg2[%c0_2, %c0_3] : memref<2x2048xbf16, #tpu.memory_space<vmem>>, vector<2x2048xbf16>
    %c0_4 = arith.constant 0 : index
    %c0_5 = arith.constant 0 : index
    %5 = vector.load %arg3[%c0_4, %c0_5] : memref<2048x128xbf16, #tpu.memory_space<vmem>>, vector<2048x128xbf16>
    %cst = arith.constant dense<0.000000e+00> : vector<2x128xf32>
    %6 = tpu.matmul %4, %5, %cst {dimension_numbers = #tpu.dot_dimension_numbers<[1], [0], [0], [1], [0, 0, 1, 1], [], []>} : vector<2x2048xbf16>, vector<2048x128xbf16>, vector<2x128xf32> -> vector<2x128xf32>
    %7 = arith.addf %3, %6 : vector<2x128xf32>
    %c0_6 = arith.constant 0 : index
    %c0_7 = arith.constant 0 : index
    %8 = vector.load %arg5[%c0_6, %c0_7] : memref<2x128xf32, #tpu.memory_space<vmem>>, vector<2x128xf32>
    tpu.vector_store %arg5[%c0_6, %c0_7], %7 {strides = array<i32>} : memref<2x128xf32, #tpu.memory_space<vmem>>, vector<2x128xf32>,
    %c0_i32_8 = arith.constant 0 : i32
    %9 = arith.cmpi eq, %arg1, %c0_i32_8 : i32
    %10 = arith.extui %9 : i1 to i32
    %c0_i32_9 = arith.constant 0 : i32
    %11 = arith.cmpi ne, %10, %c0_i32_9 : i32
    scf.if %11 {
      %c0_10 = arith.constant 0 : index
      %c0_11 = arith.constant 0 : index
      %12 = vector.load %arg5[%c0_10, %c0_11] : memref<2x128xf32, #tpu.memory_space<vmem>>, vector<2x128xf32>
      %c0_12 = arith.constant 0 : index
      %c0_13 = arith.constant 0 : index
      %13 = vector.load %arg4[%c0_12, %c0_13] : memref<1x128xf32, #tpu.memory_space<vmem>>, vector<1x128xf32>
      %14 = vector.broadcast %13 : vector<1x128xf32> to vector<2x128xf32>
      %15 = arith.addf %12, %14 : vector<2x128xf32>
      %16 = math.tanh %15 : vector<2x128xf32>
      %c0_14 = arith.constant 0 : index
      %c0_15 = arith.constant 0 : index
      %17 = vector.load %arg5[%c0_14, %c0_15] : memref<2x128xf32, #tpu.memory_space<vmem>>, vector<2x128xf32>
      tpu.vector_store %arg5[%c0_14, %c0_15], %16 {strides = array<i32>} : memref<2x128xf32, #tpu.memory_space<vmem>>, vector<2x128xf32>,
    } else {
    }
    return
  }
  func.func @transform_0(%arg0: i32, %arg1: i32) -> (i32, i32) {
    %c0_i32 = arith.constant 0 : i32
    %c0_i32_0 = arith.constant 0 : i32
    return %c0_i32, %arg1 : i32, i32
  }
  func.func @transform_1(%arg0: i32, %arg1: i32) -> (i32, i32) {
    %c0_i32 = arith.constant 0 : i32
    return %arg1, %arg0 : i32, i32
  }
  func.func @transform_2(%arg0: i32, %arg1: i32) -> (i32, i32) {
    %c0_i32 = arith.constant 0 : i32
    %c0_i32_0 = arith.constant 0 : i32
    return %c0_i32, %arg0 : i32, i32
  }
  func.func @transform_3(%arg0: i32, %arg1: i32) -> (i32, i32) {
    %c0_i32 = arith.constant 0 : i32
    %c0_i32_0 = arith.constant 0 : i32
    return %c0_i32, %arg0 : i32, i32
  }
}

</mosaic_0001>

<llo_original>
// kernel: cvae_forward.5
$region0: #{cvae_forward.5}
  #allocation0 [shape = 'u32[]', space=smem, size = 0x4, offset = 0x4, fixed_abs, tag = 'smem constant byte address 0x4 - core index']
  #allocation1 [shape = 'u32[144,128]{1,0:T(1,128)}', space=vmem, size = 0x12000, scoped, tag = 'internal scratch']
  %s0 = inlined_call_operand.vmem [shape: bf16[32,128], index: 0, kind: input, shape index: {}]
  %s1 = inlined_call_operand.vmem [shape: bf16[128,128], index: 1, kind: input, shape index: {}]
  %s2 = inlined_call_operand.vmem [shape: f32[1,128], index: 2, kind: input, shape index: {}]
  %s3 = inlined_call_operand.vmem [shape: f32[32,128], index: 3, kind: output, shape index: {}]
  %s4 = sld [smem:[#allocation0]]
  $region30: #{cvae_forward.5} parent=0
    _
  %s6 = ssub.s32 1, %s4
  %s7 = scalar_select 0, %s6, %s4
  // Predicated region
  $region2: #{cvae_forward.5} parent=0 // pred_check
    _
  $region3: #{cvae_forward.5} parent=0 // pred_check_branch
    %9 = sbr.rel (0) target = $region5
  $region4: #{cvae_forward.5} parent=0 // pred_region
    _
  $region5: #{cvae_forward.5} parent=0 // pred_fallthru
    _
  // Predicated region
  $region6: #{cvae_forward.5} parent=0 // pred_check
    _
  $region7: #{cvae_forward.5} parent=0 // pred_check_branch
    %11 = sbr.rel (0) target = $region9
  $region8: #{cvae_forward.5} parent=0 // pred_region
    _
  $region9: #{cvae_forward.5} parent=0 // pred_fallthru
    _
  // Predicated region
  $region10: #{cvae_forward.5} parent=0 // pred_check
    _
  $region11: #{cvae_forward.5} parent=0 // pred_check_branch
    %13 = sbr.rel (0) target = $region13
  $region12: #{cvae_forward.5} parent=0 // pred_region
    _
  $region13: #{cvae_forward.5} parent=0 // pred_fallthru
    _
  %p15 = scmp.eq.s32.totalorder 0, 0
  // Predicated region
  $region14: #{cvae_forward.5} parent=0 // pred_check
    %p16 = pneg %p15
  $region15: #{cvae_forward.5} parent=0 // pred_check_branch
    %18 = sbr.rel (%p16) target = $region17
  $region16: #{cvae_forward.5} parent=0 // pred_region
    %19 = vst [vmem:[%s3] sm:$0xff] 0.0
    %20 = vst [vmem:[%s3 + $0x8] sm:$0xff] 0.0
    %21 = vst [vmem:[%s3 + $0x10] sm:$0xff] 0.0
    %22 = vst [vmem:[%s3 + $0x18] sm:$0xff] 0.0
  $region17: #{cvae_forward.5} parent=0 // pred_fallthru
    _
  %v23 = vld [vmem:[%s3] sm:$0xff]
  %v24 = vld [vmem:[%s3 + $0x8] sm:$0xff]
  %v25 = vld [vmem:[%s3 + $0x10] sm:$0xff]
  %v26 = vld [vmem:[%s3 + $0x18] sm:$0xff]
  %v27 = vld [vmem:[%s0] sm:$0xf]
  %v28 = vld [vmem:[%s0 + $0x4] sm:$0xf]
  %v29 = vld [vmem:[%s0 + $0x8] sm:$0xf]
  %v30 = vld [vmem:[%s0 + $0xc] sm:$0xf]
  %v31 = vld [vmem:[%s1] sm:$0xf]
  %v32 = vld [vmem:[%s1 + $0x4] sm:$0xf]
  %v33 = vld [vmem:[%s1 + $0x8] sm:$0xf]
  %v34 = vld [vmem:[%s1 + $0xc] sm:$0xf]
  %v35 = vld [vmem:[%s1 + $0x10] sm:$0xf]
  %v36 = vld [vmem:[%s1 + $0x14] sm:$0xf]
  %v37 = vld [vmem:[%s1 + $0x18] sm:$0xf]
  %v38 = vld [vmem:[%s1 + $0x1c] sm:$0xf]
  %v39 = vld [vmem:[%s1 + $0x20] sm:$0xf]
  %v40 = vld [vmem:[%s1 + $0x24] sm:$0xf]
  %v41 = vld [vmem:[%s1 + $0x28] sm:$0xf]
  %v42 = vld [vmem:[%s1 + $0x2c] sm:$0xf]
  %v43 = vld [vmem:[%s1 + $0x30] sm:$0xf]
  %v44 = vld [vmem:[%s1 + $0x34] sm:$0xf]
  %v45 = vld [vmem:[%s1 + $0x38] sm:$0xf]
  %v46 = vld [vmem:[%s1 + $0x3c] sm:$0xf]
  %v51 = vunpack.c.l.b16 %v27
  %v52 = vunpack.c.l.b16 %v28
  %v53 = vunpack.c.l.b16 %v29
  %v54 = vunpack.c.l.b16 %v30
  %v55 = vpack.c.b16 %v52, %v51
  %v56 = vpack.c.b16 %v54, %v53
  %v75 = vunpack.c.l.b16 %v31
  %v76 = vunpack.c.l.b16 %v32
  %v77 = vunpack.c.l.b16 %v33
  %v78 = vunpack.c.l.b16 %v34
  %v79 = vunpack.c.l.b16 %v35
  %v80 = vunpack.c.l.b16 %v36
  %v81 = vunpack.c.l.b16 %v37
  %v82 = vunpack.c.l.b16 %v38
  %v83 = vunpack.c.l.b16 %v39
  %v84 = vunpack.c.l.b16 %v40
  %v85 = vunpack.c.l.b16 %v41
  %v86 = vunpack.c.l.b16 %v42
  %v87 = vunpack.c.l.b16 %v43
  %v88 = vunpack.c.l.b16 %v44
  %v89 = vunpack.c.l.b16 %v45
  %v90 = vunpack.c.l.b16 %v46
  %v91 = vpack.c.b16 %v76, %v75
  %v92 = vpack.c.b16 %v78, %v77
  %v93 = vpack.c.b16 %v80, %v79
  %v94 = vpack.c.b16 %v82, %v81
  %v95 = vpack.c.b16 %v84, %v83
  %v96 = vpack.c.b16 %v86, %v85
  %v97 = vpack.c.b16 %v88, %v87
  %v98 = vpack.c.b16 %v90, %v89
  %107 = vmatprep.subr.bf16.mxu0 0
  %108 = vmatpush1.bf16.msra.mxu0 %v91
  %109 = vmatprep.subr.bf16.mxu0 0
  %110 = vmatpush1.bf16.msra.mxu0 %v92
  %111 = vmatprep.subr.bf16.mxu0 0
  %112 = vmatpush1.bf16.msra.mxu0 %v93
  %113 = vmatprep.subr.bf16.mxu0 0
  %114 = vmatpush1.bf16.msra.mxu0 %v94
  %115 = vmatprep.subr.bf16.mxu0 0
  %116 = vmatpush1.bf16.msra.mxu0 %v95
  %117 = vmatprep.subr.bf16.mxu0 0
  %118 = vmatpush1.bf16.msra.mxu0 %v96
  %119 = vmatprep.subr.bf16.mxu0 0
  %120 = vmatpush1.bf16.msra.mxu0 %v97
  %121 = vmatprep.subr.bf16.mxu0 0
  %122 = vmatpush1.bf16.msra.mxu0 %v98
  %123 = vmatprep.subr.bf16.mxu0 0
  %124 = vmatpush1.bf16.msra.mxu0 0
  %125 = vmatprep.subr.bf16.mxu0 0
  %126 = vmatpush1.bf16.msra.mxu0 0
  %127 = vmatprep.subr.bf16.mxu0 0
  %128 = vmatpush1.bf16.msra.mxu0 0
  %129 = vmatprep.subr.bf16.mxu0 0
  %130 = vmatpush1.bf16.msra.mxu0 0
  %131 = vmatprep.subr.bf16.mxu0 0
  %132 = vmatpush1.bf16.msra.mxu0 0
  %133 = vmatprep.subr.bf16.mxu0 0
  %134 = vmatpush1.bf16.msra.mxu0 0
  %135 = vmatprep.subr.bf16.mxu0 0
  %136 = vmatpush1.bf16.msra.mxu0 0
  %137 = vmatprep.subr.bf16.mxu0 0
  %138 = vmatpush1.bf16.msra.mxu0 0
  %139 = vmatprep.mubr.bf16.mxu0 0
  %140 = vmatmul.mubr.bf16.gmra.mrb[0].mxu0 %v55
  %v141 = vpop.f32.mrb[0].mxu0
  %v142 = vadd.f32 0.0, %v141
  %v143 = vpop.f32.mrb[0].mxu0
  %v144 = vpop.f32.mrb[0].mxu0
  %v145 = vadd.f32 0.0, %v144
  %v146 = vpop.f32.mrb[0].mxu0
  %147 = vmatprep.mubr.bf16.mxu0 0
  %148 = vmatmul.mubr.bf16.gmra.mrb[0].mxu0 %v56
  %v149 = vpop.f32.mrb[0].mxu0
  %v150 = vadd.f32 0.0, %v149
  %v151 = vpop.f32.mrb[0].mxu0
  %v152 = vpop.f32.mrb[0].mxu0
  %v153 = vadd.f32 0.0, %v152
  %v154 = vpop.f32.mrb[0].mxu0
  %155 = vdwg.mxu0
  %v156 = vadd.f32 %v23, %v142
  %v157 = vadd.f32 %v24, %v145
  %v158 = vadd.f32 %v25, %v150
  %v159 = vadd.f32 %v26, %v153
  %160 = vst [vmem:[%s3] sm:$0xff] %v156
  %161 = vst [vmem:[%s3 + $0x8] sm:$0xff] %v157
  %162 = vst [vmem:[%s3 + $0x10] sm:$0xff] %v158
  %163 = vst [vmem:[%s3 + $0x18] sm:$0xff] %v159
  // Predicated region
  $region18: #{cvae_forward.5} parent=0 // pred_check
    %p164 = pneg %p15
  $region19: #{cvae_forward.5} parent=0 // pred_check_branch
    %166 = sbr.rel (%p164) target = $region21
  $region20: #{cvae_forward.5} parent=0 // pred_region
    %v167 = vld [vmem:[%s3] sm:$0xff]
    %v168 = vld [vmem:[%s3 + $0x8] sm:$0xff]
    %v169 = vld [vmem:[%s3 + $0x10] sm:$0xff]
    %v170 = vld [vmem:[%s3 + $0x18] sm:$0xff]
    %v171 = vld [vmem:[%s2] sm:$0x1]
    %v173 = vlaneseq
    %v174 = vshrl.u32 %v173, 7
    %v175 = vsub.s32 0, %v174
    %v176 = vrot.slane %v171, %v175
    %v178 = vadd.f32 %v167, %v176
    %v179 = vadd.f32 %v168, %v176
    %v180 = vadd.f32 %v169, %v176
    %v181 = vadd.f32 %v170, %v176
    %vm182 = vcmp.ge.f32.partialorder %v178, 0.0
    %vm183 = vcmp.ge.f32.partialorder %v179, 0.0
    %vm184 = vcmp.ge.f32.partialorder %v180, 0.0
    %vm185 = vcmp.ge.f32.partialorder %v181, 0.0
    %v186 = vmul.f32 %v178, 0.2
    %v187 = vmul.f32 %v179, 0.2
    %v188 = vmul.f32 %v180, 0.2
    %v189 = vmul.f32 %v181, 0.2
    %v190 = vsel %vm182, %v178, %v186
    %v191 = vsel %vm183, %v179, %v187
    %v192 = vsel %vm184, %v180, %v188
    %v193 = vsel %vm185, %v181, %v189
    %194 = vst [vmem:[%s3] sm:$0xff] %v190
    %195 = vst [vmem:[%s3 + $0x8] sm:$0xff] %v191
    %196 = vst [vmem:[%s3 + $0x10] sm:$0xff] %v192
    %197 = vst [vmem:[%s3 + $0x18] sm:$0xff] %v193
  $region21: #{cvae_forward.5} parent=0 // pred_fallthru
    _
  // Predicated region
  $region22: #{cvae_forward.5} parent=0 // pred_check
    _
  $region23: #{cvae_forward.5} parent=0 // pred_check_branch
    %199 = sbr.rel (0) target = $region25
  $region24: #{cvae_forward.5} parent=0 // pred_region
    _
  $region25: #{cvae_forward.5} parent=0 // pred_fallthru
    _
  // Predicated region
  $region26: #{cvae_forward.5} parent=0 // pred_check
    _
  $region27: #{cvae_forward.5} parent=0 // pred_check_branch
    %201 = sbr.rel (0) target = $region29
  $region28: #{cvae_forward.5} parent=0 // pred_region
    _
  $region29: #{cvae_forward.5} parent=0 // pred_fallthru
    _

// kernel: cvae_forward.6
$region0: #{cvae_forward.6}
  #allocation0 [shape = 'u32[]', space=smem, size = 0x4, offset = 0x4, fixed_abs, tag = 'smem constant byte address 0x4 - core index']
  #allocation1 [shape = 'u32[144,128]{1,0:T(1,128)}', space=vmem, size = 0x12000, scoped, tag = 'internal scratch']
  %s0 = inlined_call_operand.vmem [shape: bf16[8,1024], index: 0, kind: input, shape index: {}]
  %s1 = inlined_call_operand.hbm [shape: bf16[1024,128], index: 1, kind: input, shape index: {}]
  %s2 = inlined_call_operand.hbm [shape: f32[1,128], index: 2, kind: input, shape index: {}]
  %s3 = inlined_call_operand.vmem [shape: f32[8,128], index: 3, kind: output, shape index: {}]
  %s4 = sld [smem:[#allocation0]]
  $region38: #{cvae_forward.6} parent=0
    _
  %s6 = ssub.s32 1, %s4
  %s7 = scalar_select 0, %s6, %s4
  $region1: #{cvae_forward.6} parent=0
    #allocation2 [shape = 'u8[262144]{0}', space=vmem, size = 0x40000, scoped, tag = 'input window, operand 1, single buffered']
    #allocation3 [shape = 's32[1]{0}', space=sflag, size = 0x4, scoped, tag = 'scoped memory for cvae_forward.6']
    #allocation4 [shape = 'u8[512]{0}', space=vmem, size = 0x400, scoped, tag = 'input window, operand 2, single buffered']
    #allocation5 [shape = 's32[1]{0}', space=sflag, size = 0x4, scoped, tag = 'scoped memory for cvae_forward.6']
    %8 = vsyncpa [#allocation3], 0
    %9 = vsyncpa [#allocation5], 0
    // Predicated region
    $region2: #{cvae_forward.6} parent=1 // pred_check
      _
    $region3: #{cvae_forward.6} parent=1 // pred_check_branch
      %11 = sbr.rel (0) target = $region5
    $region4: #{cvae_forward.6} parent=1 // pred_region
      _
    $region5: #{cvae_forward.6} parent=1 // pred_fallthru
      _
    // Predicated region
    $region6: #{cvae_forward.6} parent=1 // pred_check
      _
    $region7: #{cvae_forward.6} parent=1 // pred_check_branch
      %13 = sbr.rel (0) target = $region9
    $region8: #{cvae_forward.6} parent=1 // pred_region
      %s15 = ssub.s32 8192, 8192
      %16 = vsyncadd [#allocation3], %s15
      %s17 = sshll.u32 [#allocation2], 4
      %s18 = int_to_ptr.vmem [resolvable:$true] %s17
      %23 = dma.hbm_to_vmem [thread:$0]  %s1, 8192, %s18, [#allocation3], 64, 64, 4
    $region9: #{cvae_forward.6} parent=1 // pred_fallthru
      _
    // Predicated region
    $region10: #{cvae_forward.6} parent=1 // pred_check
      _
    $region11: #{cvae_forward.6} parent=1 // pred_check_branch
      %25 = sbr.rel (0) target = $region13
    $region12: #{cvae_forward.6} parent=1 // pred_region
      %s27 = ssub.s32 16, 16
      %28 = vsyncadd [#allocation5], %s27
      %s30 = sshll.u32 [#allocation4], 4
      %s31 = int_to_ptr.vmem [resolvable:$true] %s30
      %33 = dma.hbm_to_vmem [thread:$0]  %s2, 16, %s31, [#allocation5]
    $region13: #{cvae_forward.6} parent=1 // pred_fallthru
      _
    // Predicated region
    $region14: #{cvae_forward.6} parent=1 // pred_check
      _
    $region15: #{cvae_forward.6} parent=1 // pred_check_branch
      %35 = sbr.rel (0) target = $region17
    $region16: #{cvae_forward.6} parent=1 // pred_region
      %36 = dma.done [#allocation3], 8192
    $region17: #{cvae_forward.6} parent=1 // pred_fallthru
      _
    // Predicated region
    $region18: #{cvae_forward.6} parent=1 // pred_check
      _
    $region19: #{cvae_forward.6} parent=1 // pred_check_branch
      %38 = sbr.rel (0) target = $region21
    $region20: #{cvae_forward.6} parent=1 // pred_region
      %39 = dma.done [#allocation5], 16
    $region21: #{cvae_forward.6} parent=1 // pred_fallthru
      _
    %p41 = scmp.eq.s32.totalorder 0, 0
    // Predicated region
    $region22: #{cvae_forward.6} parent=1 // pred_check
      %p42 = pneg %p41
    $region23: #{cvae_forward.6} parent=1 // pred_check_branch
      %44 = sbr.rel (%p42) target = $region25
    $region24: #{cvae_forward.6} parent=1 // pred_region
      %45 = vst [vmem:[%s3] sm:$0xff] 0.0
    $region25: #{cvae_forward.6} parent=1 // pred_fallthru
      _
    %v46 = vld [vmem:[%s3] sm:$0xff]
    %v47 = vld [vmem:[%s0] sm:$0xff]
    %v48 = vld [vmem:[%s0 + $0x8] sm:$0xff]
    %v49 = vld [vmem:[%s0 + $0x10] sm:$0xff]
    %v50 = vld [vmem:[%s0 + $0x18] sm:$0xff]
    %v51 = vld [vmem:[#allocation2] sm:$0xf]
    %v52 = vld [vmem:[#allocation2 + $0x4] sm:$0xf]
    %v53 = vld [vmem:[#allocation2 + $0x8] sm:$0xf]
    %v54 = vld [vmem:[#allocation2 + $0xc] sm:$0xf]
    %v55 = vld [vmem:[#allocation2 + $0x10] sm:$0xf]
    %v56 = vld [vmem:[#allocation2 + $0x14] sm:$0xf]
    %v57 = vld [vmem:[#allocation2 + $0x18] sm:$0xf]
    %v58 = vld [vmem:[#allocation2 + $0x1c] sm:$0xf]
    %v59 = vld [vmem:[#allocation2 + $0x20] sm:$0xf]
    %v60 = vld [vmem:[#allocation2 + $0x24] sm:$0xf]
    %v61 = vld [vmem:[#allocation2 + $0x28] sm:$0xf]
    %v62 = vld [vmem:[#allocation2 + $0x2c] sm:$0xf]
    %v63 = vld [vmem:[#allocation2 + $0x30] sm:$0xf]
    %v64 = vld [vmem:[#allocation2 + $0x34] sm:$0xf]
    %v65 = vld [vmem:[#allocation2 + $0x38] sm:$0xf]
    %v66 = vld [vmem:[#allocation2 + $0x3c] sm:$0xf]
    %v67 = vld [vmem:[#allocation2 + $0x40] sm:$0xf]
    %v68 = vld [vmem:[#allocation2 + $0x44] sm:$0xf]
    %v69 = vld [vmem:[#allocation2 + $0x48] sm:$0xf]
    %v70 = vld [vmem:[#allocation2 + $0x4c] sm:$0xf]
    %v71 = vld [vmem:[#allocation2 + $0x50] sm:$0xf]
    %v72 = vld [vmem:[#allocation2 + $0x54] sm:$0xf]
    %v73 = vld [vmem:[#allocation2 + $0x58] sm:$0xf]
    %v74 = vld [vmem:[#allocation2 + $0x5c] sm:$0xf]
    %v75 = vld [vmem:[#allocation2 + $0x60] sm:$0xf]
    %v76 = vld [vmem:[#allocation2 + $0x64] sm:$0xf]
    %v77 = vld [vmem:[#allocation2 + $0x68] sm:$0xf]
    %v78 = vld [vmem:[#allocation2 + $0x6c] sm:$0xf]
    %v79 = vld [vmem:[#allocation2 + $0x70] sm:$0xf]
    %v80 = vld [vmem:[#allocation2 + $0x74] sm:$0xf]
    %v81 = vld [vmem:[#allocation2 + $0x78] sm:$0xf]
    %v82 = vld [vmem:[#allocation2 + $0x7c] sm:$0xf]
    %v83 = vld [vmem:[#allocation2 + $0x80] sm:$0xf]
    %v84 = vld [vmem:[#allocation2 + $0x84] sm:$0xf]
    %v85 = vld [vmem:[#allocation2 + $0x88] sm:$0xf]
    %v86 = vld [vmem:[#allocation2 + $0x8c] sm:$0xf]
    %v87 = vld [vmem:[#allocation2 + $0x90] sm:$0xf]
    %v88 = vld [vmem:[#allocation2 + $0x94] sm:$0xf]
    %v89 = vld [vmem:[#allocation2 + $0x98] sm:$0xf]
    %v90 = vld [vmem:[#allocation2 + $0x9c] sm:$0xf]
    %v91 = vld [vmem:[#allocation2 + $0xa0] sm:$0xf]
    %v92 = vld [vmem:[#allocation2 + $0xa4] sm:$0xf]
    %v93 = vld [vmem:[#allocation2 + $0xa8] sm:$0xf]
    %v94 = vld [vmem:[#allocation2 + $0xac] sm:$0xf]
    %v95 = vld [vmem:[#allocation2 + $0xb0] sm:$0xf]
    %v96 = vld [vmem:[#allocation2 + $0xb4] sm:$0xf]
    %v97 = vld [vmem:[#allocation2 + $0xb8] sm:$0xf]
    %v98 = vld [vmem:[#allocation2 + $0xbc] sm:$0xf]
    %v99 = vld [vmem:[#allocation2 + $0xc0] sm:$0xf]
    %v100 = vld [vmem:[#allocation2 + $0xc4] sm:$0xf]
    %v101 = vld [vmem:[#allocation2 + $0xc8] sm:$0xf]
    %v102 = vld [vmem:[#allocation2 + $0xcc] sm:$0xf]
    %v103 = vld [vmem:[#allocation2 + $0xd0] sm:$0xf]
    %v104 = vld [vmem:[#allocation2 + $0xd4] sm:$0xf]
    %v105 = vld [vmem:[#allocation2 + $0xd8] sm:$0xf]
    %v106 = vld [vmem:[#allocation2 + $0xdc] sm:$0xf]
    %v107 = vld [vmem:[#allocation2 + $0xe0] sm:$0xf]
    %v108 = vld [vmem:[#allocation2 + $0xe4] sm:$0xf]
    %v109 = vld [vmem:[#allocation2 + $0xe8] sm:$0xf]
    %v110 = vld [vmem:[#allocation2 + $0xec] sm:$0xf]
    %v111 = vld [vmem:[#allocation2 + $0xf0] sm:$0xf]
    %v112 = vld [vmem:[#allocation2 + $0xf4] sm:$0xf]
    %v113 = vld [vmem:[#allocation2 + $0xf8] sm:$0xf]
    %v114 = vld [vmem:[#allocation2 + $0xfc] sm:$0xf]
    %v115 = vld [vmem:[#allocation2 + $0x100] sm:$0xf]
    %v116 = vld [vmem:[#allocation2 + $0x104] sm:$0xf]
    %v117 = vld [vmem:[#allocation2 + $0x108] sm:$0xf]
    %v118 = vld [vmem:[#allocation2 + $0x10c] sm:$0xf]
    %v119 = vld [vmem:[#allocation2 + $0x110] sm:$0xf]
    %v120 = vld [vmem:[#allocation2 + $0x114] sm:$0xf]
    %v121 = vld [vmem:[#allocation2 + $0x118] sm:$0xf]
    %v122 = vld [vmem:[#allocation2 + $0x11c] sm:$0xf]
    %v123 = vld [vmem:[#allocation2 + $0x120] sm:$0xf]
    %v124 = vld [vmem:[#allocation2 + $0x124] sm:$0xf]
    %v125 = vld [vmem:[#allocation2 + $0x128] sm:$0xf]
    %v126 = vld [vmem:[#allocation2 + $0x12c] sm:$0xf]
    %v127 = vld [vmem:[#allocation2 + $0x130] sm:$0xf]
    %v128 = vld [vmem:[#allocation2 + $0x134] sm:$0xf]
    %v129 = vld [vmem:[#allocation2 + $0x138] sm:$0xf]
    %v130 = vld [vmem:[#allocation2 + $0x13c] sm:$0xf]
    %v131 = vld [vmem:[#allocation2 + $0x140] sm:$0xf]
    %v132 = vld [vmem:[#allocation2 + $0x144] sm:$0xf]
    %v133 = vld [vmem:[#allocation2 + $0x148] sm:$0xf]
    %v134 = vld [vmem:[#allocation2 + $0x14c] sm:$0xf]
    %v135 = vld [vmem:[#allocation2 + $0x150] sm:$0xf]
    %v136 = vld [vmem:[#allocation2 + $0x154] sm:$0xf]
    %v137 = vld [vmem:[#allocation2 + $0x158] sm:$0xf]
    %v138 = vld [vmem:[#allocation2 + $0x15c] sm:$0xf]
    %v139 = vld [vmem:[#allocation2 + $0x160] sm:$0xf]
    %v140 = vld [vmem:[#allocation2 + $0x164] sm:$0xf]
    %v141 = vld [vmem:[#allocation2 + $0x168] sm:$0xf]
    %v142 = vld [vmem:[#allocation2 + $0x16c] sm:$0xf]
    %v143 = vld [vmem:[#allocation2 + $0x170] sm:$0xf]
    %v144 = vld [vmem:[#allocation2 + $0x174] sm:$0xf]
    %v145 = vld [vmem:[#allocation2 + $0x178] sm:$0xf]
    %v146 = vld [vmem:[#allocation2 + $0x17c] sm:$0xf]
    %v147 = vld [vmem:[#allocation2 + $0x180] sm:$0xf]
    %v148 = vld [vmem:[#allocation2 + $0x184] sm:$0xf]
    %v149 = vld [vmem:[#allocation2 + $0x188] sm:$0xf]
    %v150 = vld [vmem:[#allocation2 + $0x18c] sm:$0xf]
    %v151 = vld [vmem:[#allocation2 + $0x190] sm:$0xf]
    %v152 = vld [vmem:[#allocation2 + $0x194] sm:$0xf]
    %v153 = vld [vmem:[#allocation2 + $0x198] sm:$0xf]
    %v154 = vld [vmem:[#allocation2 + $0x19c] sm:$0xf]
    %v155 = vld [vmem:[#allocation2 + $0x1a0] sm:$0xf]
    %v156 = vld [vmem:[#allocation2 + $0x1a4] sm:$0xf]
    %v157 = vld [vmem:[#allocation2 + $0x1a8] sm:$0xf]
    %v158 = vld [vmem:[#allocation2 + $0x1ac] sm:$0xf]
    %v159 = vld [vmem:[#allocation2 + $0x1b0] sm:$0xf]
    %v160 = vld [vmem:[#allocation2 + $0x1b4] sm:$0xf]
    %v161 = vld [vmem:[#allocation2 + $0x1b8] sm:$0xf]
    %v162 = vld [vmem:[#allocation2 + $0x1bc] sm:$0xf]
    %v163 = vld [vmem:[#allocation2 + $0x1c0] sm:$0xf]
    %v164 = vld [vmem:[#allocation2 + $0x1c4] sm:$0xf]
    %v165 = vld [vmem:[#allocation2 + $0x1c8] sm:$0xf]
    %v166 = vld [vmem:[#allocation2 + $0x1cc] sm:$0xf]
    %v167 = vld [vmem:[#allocation2 + $0x1d0] sm:$0xf]
    %v168 = vld [vmem:[#allocation2 + $0x1d4] sm:$0xf]
    %v169 = vld [vmem:[#allocation2 + $0x1d8] sm:$0xf]
    %v170 = vld [vmem:[#allocation2 + $0x1dc] sm:$0xf]
    %v171 = vld [vmem:[#allocation2 + $0x1e0] sm:$0xf]
    %v172 = vld [vmem:[#allocation2 + $0x1e4] sm:$0xf]
    %v173 = vld [vmem:[#allocation2 + $0x1e8] sm:$0xf]
    %v174 = vld [vmem:[#allocation2 + $0x1ec] sm:$0xf]
    %v175 = vld [vmem:[#allocation2 + $0x1f0] sm:$0xf]
    %v176 = vld [vmem:[#allocation2 + $0x1f4] sm:$0xf]
    %v177 = vld [vmem:[#allocation2 + $0x1f8] sm:$0xf]
    %v178 = vld [vmem:[#allocation2 + $0x1fc] sm:$0xf]
    %v183 = vunpack.c.l.b16 %v47
    %v184 = vunpack.c.h.b16 %v47
    %v185 = vunpack.c.l.b16 %v48
    %v186 = vunpack.c.h.b16 %v48
    %v187 = vunpack.c.l.b16 %v49
    %v188 = vunpack.c.h.b16 %v49
    %v189 = vunpack.c.l.b16 %v50
    %v190 = vunpack.c.h.b16 %v50
    %v191 = vpack.c.b16 %v183, %v183
    %v192 = vpack.c.b16 %v184, %v184
    %v193 = vpack.c.b16 %v185, %v185
    %v194 = vpack.c.b16 %v186, %v186
    %v195 = vpack.c.b16 %v187, %v187
    %v196 = vpack.c.b16 %v188, %v188
    %v197 = vpack.c.b16 %v189, %v189
    %v198 = vpack.c.b16 %v190, %v190
    %v335 = vunpack.c.l.b16 %v51
    %v336 = vunpack.c.l.b16 %v52
    %v337 = vunpack.c.l.b16 %v53
    %v338 = vunpack.c.l.b16 %v54
    %v339 = vunpack.c.l.b16 %v55
    %v340 = vunpack.c.l.b16 %v56
    %v341 = vunpack.c.l.b16 %v57
    %v342 = vunpack.c.l.b16 %v58
    %v343 = vunpack.c.l.b16 %v59
    %v344 = vunpack.c.l.b16 %v60
    %v345 = vunpack.c.l.b16 %v61
    %v346 = vunpack.c.l.b16 %v62
    %v347 = vunpack.c.l.b16 %v63
    %v348 = vunpack.c.l.b16 %v64
    %v349 = vunpack.c.l.b16 %v65
    %v350 = vunpack.c.l.b16 %v66
    %v351 = vunpack.c.l.b16 %v67
    %v352 = vunpack.c.l.b16 %v68
    %v353 = vunpack.c.l.b16 %v69
    %v354 = vunpack.c.l.b16 %v70
    %v355 = vunpack.c.l.b16 %v71
    %v356 = vunpack.c.l.b16 %v72
    %v357 = vunpack.c.l.b16 %v73
    %v358 = vunpack.c.l.b16 %v74
    %v359 = vunpack.c.l.b16 %v75
    %v360 = vunpack.c.l.b16 %v76
    %v361 = vunpack.c.l.b16 %v77
    %v362 = vunpack.c.l.b16 %v78
    %v363 = vunpack.c.l.b16 %v79
    %v364 = vunpack.c.l.b16 %v80
    %v365 = vunpack.c.l.b16 %v81
    %v366 = vunpack.c.l.b16 %v82
    %v367 = vunpack.c.l.b16 %v83
    %v368 = vunpack.c.l.b16 %v84
    %v369 = vunpack.c.l.b16 %v85
    %v370 = vunpack.c.l.b16 %v86
    %v371 = vunpack.c.l.b16 %v87
    %v372 = vunpack.c.l.b16 %v88
    %v373 = vunpack.c.l.b16 %v89
    %v374 = vunpack.c.l.b16 %v90
    %v375 = vunpack.c.l.b16 %v91
    %v376 = vunpack.c.l.b16 %v92
    %v377 = vunpack.c.l.b16 %v93
    %v378 = vunpack.c.l.b16 %v94
    %v379 = vunpack.c.l.b16 %v95
    %v380 = vunpack.c.l.b16 %v96
    %v381 = vunpack.c.l.b16 %v97
    %v382 = vunpack.c.l.b16 %v98
    %v383 = vunpack.c.l.b16 %v99
    %v384 = vunpack.c.l.b16 %v100
    %v385 = vunpack.c.l.b16 %v101
    %v386 = vunpack.c.l.b16 %v102
    %v387 = vunpack.c.l.b16 %v103
    %v388 = vunpack.c.l.b16 %v104
    %v389 = vunpack.c.l.b16 %v105
    %v390 = vunpack.c.l.b16 %v106
    %v391 = vunpack.c.l.b16 %v107
    %v392 = vunpack.c.l.b16 %v108
    %v393 = vunpack.c.l.b16 %v109
    %v394 = vunpack.c.l.b16 %v110
    %v395 = vunpack.c.l.b16 %v111
    %v396 = vunpack.c.l.b16 %v112
    %v397 = vunpack.c.l.b16 %v113
    %v398 = vunpack.c.l.b16 %v114
    %v399 = vunpack.c.l.b16 %v115
    %v400 = vunpack.c.l.b16 %v116
    %v401 = vunpack.c.l.b16 %v117
    %v402 = vunpack.c.l.b16 %v118
    %v403 = vunpack.c.l.b16 %v119
    %v404 = vunpack.c.l.b16 %v120
    %v405 = vunpack.c.l.b16 %v121
    %v406 = vunpack.c.l.b16 %v122
    %v407 = vunpack.c.l.b16 %v123
    %v408 = vunpack.c.l.b16 %v124
    %v409 = vunpack.c.l.b16 %v125
    %v410 = vunpack.c.l.b16 %v126
    %v411 = vunpack.c.l.b16 %v127
    %v412 = vunpack.c.l.b16 %v128
    %v413 = vunpack.c.l.b16 %v129
    %v414 = vunpack.c.l.b16 %v130
    %v415 = vunpack.c.l.b16 %v131
    %v416 = vunpack.c.l.b16 %v132
    %v417 = vunpack.c.l.b16 %v133
    %v418 = vunpack.c.l.b16 %v134
    %v419 = vunpack.c.l.b16 %v135
    %v420 = vunpack.c.l.b16 %v136
    %v421 = vunpack.c.l.b16 %v137
    %v422 = vunpack.c.l.b16 %v138
    %v423 = vunpack.c.l.b16 %v139
    %v424 = vunpack.c.l.b16 %v140
    %v425 = vunpack.c.l.b16 %v141
    %v426 = vunpack.c.l.b16 %v142
    %v427 = vunpack.c.l.b16 %v143
    %v428 = vunpack.c.l.b16 %v144
    %v429 = vunpack.c.l.b16 %v145
    %v430 = vunpack.c.l.b16 %v146
    %v431 = vunpack.c.l.b16 %v147
    %v432 = vunpack.c.l.b16 %v148
    %v433 = vunpack.c.l.b16 %v149
    %v434 = vunpack.c.l.b16 %v150
    %v435 = vunpack.c.l.b16 %v151
    %v436 = vunpack.c.l.b16 %v152
    %v437 = vunpack.c.l.b16 %v153
    %v438 = vunpack.c.l.b16 %v154
    %v439 = vunpack.c.l.b16 %v155
    %v440 = vunpack.c.l.b16 %v156
    %v441 = vunpack.c.l.b16 %v157
    %v442 = vunpack.c.l.b16 %v158
    %v443 = vunpack.c.l.b16 %v159
    %v444 = vunpack.c.l.b16 %v160
    %v445 = vunpack.c.l.b16 %v161
    %v446 = vunpack.c.l.b16 %v162
    %v447 = vunpack.c.l.b16 %v163
    %v448 = vunpack.c.l.b16 %v164
    %v449 = vunpack.c.l.b16 %v165
    %v450 = vunpack.c.l.b16 %v166
    %v451 = vunpack.c.l.b16 %v167
    %v452 = vunpack.c.l.b16 %v168
    %v453 = vunpack.c.l.b16 %v169
    %v454 = vunpack.c.l.b16 %v170
    %v455 = vunpack.c.l.b16 %v171
    %v456 = vunpack.c.l.b16 %v172
    %v457 = vunpack.c.l.b16 %v173
    %v458 = vunpack.c.l.b16 %v174
    %v459 = vunpack.c.l.b16 %v175
    %v460 = vunpack.c.l.b16 %v176
    %v461 = vunpack.c.l.b16 %v177
    %v462 = vunpack.c.l.b16 %v178
    %v463 = vpack.c.b16 %v336, %v335
    %v464 = vpack.c.b16 %v338, %v337
    %v465 = vpack.c.b16 %v340, %v339
    %v466 = vpack.c.b16 %v342, %v341
    %v467 = vpack.c.b16 %v344, %v343
    %v468 = vpack.c.b16 %v346, %v345
    %v469 = vpack.c.b16 %v348, %v347
    %v470 = vpack.c.b16 %v350, %v349
    %v471 = vpack.c.b16 %v352, %v351
    %v472 = vpack.c.b16 %v354, %v353
    %v473 = vpack.c.b16 %v356, %v355
    %v474 = vpack.c.b16 %v358, %v357
    %v475 = vpack.c.b16 %v360, %v359
    %v476 = vpack.c.b16 %v362, %v361
    %v477 = vpack.c.b16 %v364, %v363
    %v478 = vpack.c.b16 %v366, %v365
    %v479 = vpack.c.b16 %v368, %v367
    %v480 = vpack.c.b16 %v370, %v369
    %v481 = vpack.c.b16 %v372, %v371
    %v482 = vpack.c.b16 %v374, %v373
    %v483 = vpack.c.b16 %v376, %v375
    %v484 = vpack.c.b16 %v378, %v377
    %v485 = vpack.c.b16 %v380, %v379
    %v486 = vpack.c.b16 %v382, %v381
    %v487 = vpack.c.b16 %v384, %v383
    %v488 = vpack.c.b16 %v386, %v385
    %v489 = vpack.c.b16 %v388, %v387
    %v490 = vpack.c.b16 %v390, %v389
    %v491 = vpack.c.b16 %v392, %v391
    %v492 = vpack.c.b16 %v394, %v393
    %v493 = vpack.c.b16 %v396, %v395
    %v494 = vpack.c.b16 %v398, %v397
    %v495 = vpack.c.b16 %v400, %v399
    %v496 = vpack.c.b16 %v402, %v401
    %v497 = vpack.c.b16 %v404, %v403
    %v498 = vpack.c.b16 %v406, %v405
    %v499 = vpack.c.b16 %v408, %v407
    %v500 = vpack.c.b16 %v410, %v409
    %v501 = vpack.c.b16 %v412, %v411
    %v502 = vpack.c.b16 %v414, %v413
    %v503 = vpack.c.b16 %v416, %v415
    %v504 = vpack.c.b16 %v418, %v417
    %v505 = vpack.c.b16 %v420, %v419
    %v506 = vpack.c.b16 %v422, %v421
    %v507 = vpack.c.b16 %v424, %v423
    %v508 = vpack.c.b16 %v426, %v425
    %v509 = vpack.c.b16 %v428, %v427
    %v510 = vpack.c.b16 %v430, %v429
    %v511 = vpack.c.b16 %v432, %v431
    %v512 = vpack.c.b16 %v434, %v433
    %v513 = vpack.c.b16 %v436, %v435
    %v514 = vpack.c.b16 %v438, %v437
    %v515 = vpack.c.b16 %v440, %v439
    %v516 = vpack.c.b16 %v442, %v441
    %v517 = vpack.c.b16 %v444, %v443
    %v518 = vpack.c.b16 %v446, %v445
    %v519 = vpack.c.b16 %v448, %v447
    %v520 = vpack.c.b16 %v450, %v449
    %v521 = vpack.c.b16 %v452, %v451
    %v522 = vpack.c.b16 %v454, %v453
    %v523 = vpack.c.b16 %v456, %v455
    %v524 = vpack.c.b16 %v458, %v457
    %v525 = vpack.c.b16 %v460, %v459
    %v526 = vpack.c.b16 %v462, %v461
    %591 = vmatprep.subr.bf16.mxu0 0
    %592 = vmatpush1.bf16.msra.mxu0 %v463
    %593 = vmatprep.subr.bf16.mxu0 0
    %594 = vmatpush1.bf16.msra.mxu0 %v464
    %595 = vmatprep.subr.bf16.mxu0 0
    %596 = vmatpush1.bf16.msra.mxu0 %v465
    %597 = vmatprep.subr.bf16.mxu0 0
    %598 = vmatpush1.bf16.msra.mxu0 %v466
    %599 = vmatprep.subr.bf16.mxu0 0
    %600 = vmatpush1.bf16.msra.mxu0 %v467
    %601 = vmatprep.subr.bf16.mxu0 0
    %602 = vmatpush1.bf16.msra.mxu0 %v468
    %603 = vmatprep.subr.bf16.mxu0 0
    %604 = vmatpush1.bf16.msra.mxu0 %v469
    %605 = vmatprep.subr.bf16.mxu0 0
    %606 = vmatpush1.bf16.msra.mxu0 %v470
    %607 = vmatprep.subr.bf16.mxu0 0
    %608 = vmatpush1.bf16.msra.mxu0 %v471
    %609 = vmatprep.subr.bf16.mxu0 0
    %610 = vmatpush1.bf16.msra.mxu0 %v472
    %611 = vmatprep.subr.bf16.mxu0 0
    %612 = vmatpush1.bf16.msra.mxu0 %v473
    %613 = vmatprep.subr.bf16.mxu0 0
    %614 = vmatpush1.bf16.msra.mxu0 %v474
    %615 = vmatprep.subr.bf16.mxu0 0
    %616 = vmatpush1.bf16.msra.mxu0 %v475
    %617 = vmatprep.subr.bf16.mxu0 0
    %618 = vmatpush1.bf16.msra.mxu0 %v476
    %619 = vmatprep.subr.bf16.mxu0 0
    %620 = vmatpush1.bf16.msra.mxu0 %v477
    %621 = vmatprep.subr.bf16.mxu0 0
    %622 = vmatpush1.bf16.msra.mxu0 %v478
    %623 = vmatprep.mubr.bf16.mxu0 %v192
    %624 = vmatmul.mubr.bf16.gmra.mrb[0].mxu0 %v191
    %v625 = vpop.f32.mrb[0].mxu0
    %v626 = vadd.f32 0.0, %v625
    %v627 = vpop.f32.mrb[0].mxu0
    %v628 = vpop.f32.mrb[0].mxu0
    %v629 = vpop.f32.mrb[0].mxu0
    %630 = vdwg.mxu0
    %631 = vmatprep.subr.bf16.mxu0 0
    %632 = vmatpush1.bf16.msra.mxu0 %v479
    %633 = vmatprep.subr.bf16.mxu0 0
    %634 = vmatpush1.bf16.msra.mxu0 %v480
    %635 = vmatprep.subr.bf16.mxu0 0
    %636 = vmatpush1.bf16.msra.mxu0 %v481
    %637 = vmatprep.subr.bf16.mxu0 0
    %638 = vmatpush1.bf16.msra.mxu0 %v482
    %639 = vmatprep.subr.bf16.mxu0 0
    %640 = vmatpush1.bf16.msra.mxu0 %v483
    %641 = vmatprep.subr.bf16.mxu0 0
    %642 = vmatpush1.bf16.msra.mxu0 %v484
    %643 = vmatprep.subr.bf16.mxu0 0
    %644 = vmatpush1.bf16.msra.mxu0 %v485
    %645 = vmatprep.subr.bf16.mxu0 0
    %646 = vmatpush1.bf16.msra.mxu0 %v486
    %647 = vmatprep.subr.bf16.mxu0 0
    %648 = vmatpush1.bf16.msra.mxu0 %v487
    %649 = vmatprep.subr.bf16.mxu0 0
    %650 = vmatpush1.bf16.msra.mxu0 %v488
    %651 = vmatprep.subr.bf16.mxu0 0
    %652 = vmatpush1.bf16.msra.mxu0 %v489
    %653 = vmatprep.subr.bf16.mxu0 0
    %654 = vmatpush1.bf16.msra.mxu0 %v490
    %655 = vmatprep.subr.bf16.mxu0 0
    %656 = vmatpush1.bf16.msra.mxu0 %v491
    %657 = vmatprep.subr.bf16.mxu0 0
    %658 = vmatpush1.bf16.msra.mxu0 %v492
    %659 = vmatprep.subr.bf16.mxu0 0
    %660 = vmatpush1.bf16.msra.mxu0 %v493
    %661 = vmatprep.subr.bf16.mxu0 0
    %662 = vmatpush1.bf16.msra.mxu0 %v494
    %663 = vmatprep.mubr.bf16.mxu0 %v194
    %664 = vmatmul.mubr.bf16.gmra.mrb[0].mxu0 %v193
    %v665 = vpop.f32.mrb[0].mxu0
    %v666 = vadd.f32 %v626, %v665
    %v667 = vpop.f32.mrb[0].mxu0
    %v668 = vpop.f32.mrb[0].mxu0
    %v669 = vpop.f32.mrb[0].mxu0
    %670 = vdwg.mxu0
    %671 = vmatprep.subr.bf16.mxu0 0
    %672 = vmatpush1.bf16.msra.mxu0 %v495
    %673 = vmatprep.subr.bf16.mxu0 0
    %674 = vmatpush1.bf16.msra.mxu0 %v496
    %675 = vmatprep.subr.bf16.mxu0 0
    %676 = vmatpush1.bf16.msra.mxu0 %v497
    %677 = vmatprep.subr.bf16.mxu0 0
    %678 = vmatpush1.bf16.msra.mxu0 %v498
    %679 = vmatprep.subr.bf16.mxu0 0
    %680 = vmatpush1.bf16.msra.mxu0 %v499
    %681 = vmatprep.subr.bf16.mxu0 0
    %682 = vmatpush1.bf16.msra.mxu0 %v500
    %683 = vmatprep.subr.bf16.mxu0 0
    %684 = vmatpush1.bf16.msra.mxu0 %v501
    %685 = vmatprep.subr.bf16.mxu0 0
    %686 = vmatpush1.bf16.msra.mxu0 %v502
    %687 = vmatprep.subr.bf16.mxu0 0
    %688 = vmatpush1.bf16.msra.mxu0 %v503
    %689 = vmatprep.subr.bf16.mxu0 0
    %690 = vmatpush1.bf16.msra.mxu0 %v504
    %691 = vmatprep.subr.bf16.mxu0 0
    %692 = vmatpush1.bf16.msra.mxu0 %v505
    %693 = vmatprep.subr.bf16.mxu0 0
    %694 = vmatpush1.bf16.msra.mxu0 %v506
    %695 = vmatprep.subr.bf16.mxu0 0
    %696 = vmatpush1.bf16.msra.mxu0 %v507
    %697 = vmatprep.subr.bf16.mxu0 0
    %698 = vmatpush1.bf16.msra.mxu0 %v508
    %699 = vmatprep.subr.bf16.mxu0 0
    %700 = vmatpush1.bf16.msra.mxu0 %v509
    %701 = vmatprep.subr.bf16.mxu0 0
    %702 = vmatpush1.bf16.msra.mxu0 %v510
    %703 = vmatprep.mubr.bf16.mxu0 %v196
    %704 = vmatmul.mubr.bf16.gmra.mrb[0].mxu0 %v195
    %v705 = vpop.f32.mrb[0].mxu0
    %v706 = vadd.f32 %v666, %v705
    %v707 = vpop.f32.mrb[0].mxu0
    %v708 = vpop.f32.mrb[0].mxu0
    %v709 = vpop.f32.mrb[0].mxu0
    %710 = vdwg.mxu0
    %711 = vmatprep.subr.bf16.mxu0 0
    %712 = vmatpush1.bf16.msra.mxu0 %v511
    %713 = vmatprep.subr.bf16.mxu0 0
    %714 = vmatpush1.bf16.msra.mxu0 %v512
    %715 = vmatprep.subr.bf16.mxu0 0
    %716 = vmatpush1.bf16.msra.mxu0 %v513
    %717 = vmatprep.subr.bf16.mxu0 0
    %718 = vmatpush1.bf16.msra.mxu0 %v514
    %719 = vmatprep.subr.bf16.mxu0 0
    %720 = vmatpush1.bf16.msra.mxu0 %v515
    %721 = vmatprep.subr.bf16.mxu0 0
    %722 = vmatpush1.bf16.msra.mxu0 %v516
    %723 = vmatprep.subr.bf16.mxu0 0
    %724 = vmatpush1.bf16.msra.mxu0 %v517
    %725 = vmatprep.subr.bf16.mxu0 0
    %726 = vmatpush1.bf16.msra.mxu0 %v518
    %727 = vmatprep.subr.bf16.mxu0 0
    %728 = vmatpush1.bf16.msra.mxu0 %v519
    %729 = vmatprep.subr.bf16.mxu0 0
    %730 = vmatpush1.bf16.msra.mxu0 %v520
    %731 = vmatprep.subr.bf16.mxu0 0
    %732 = vmatpush1.bf16.msra.mxu0 %v521
    %733 = vmatprep.subr.bf16.mxu0 0
    %734 = vmatpush1.bf16.msra.mxu0 %v522
    %735 = vmatprep.subr.bf16.mxu0 0
    %736 = vmatpush1.bf16.msra.mxu0 %v523
    %737 = vmatprep.subr.bf16.mxu0 0
    %738 = vmatpush1.bf16.msra.mxu0 %v524
    %739 = vmatprep.subr.bf16.mxu0 0
    %740 = vmatpush1.bf16.msra.mxu0 %v525
    %741 = vmatprep.subr.bf16.mxu0 0
    %742 = vmatpush1.bf16.msra.mxu0 %v526
    %743 = vmatprep.mubr.bf16.mxu0 %v198
    %744 = vmatmul.mubr.bf16.gmra.mrb[0].mxu0 %v197
    %v745 = vpop.f32.mrb[0].mxu0
    %v746 = vadd.f32 %v706, %v745
    %v747 = vpop.f32.mrb[0].mxu0
    %v748 = vpop.f32.mrb[0].mxu0
    %v749 = vpop.f32.mrb[0].mxu0
    %750 = vdwg.mxu0
    %v751 = vadd.f32 %v46, %v746
    %752 = vst [vmem:[%s3] sm:$0xff] %v751
    // Predicated region
    $region26: #{cvae_forward.6} parent=1 // pred_check
      %p753 = pneg %p41
    $region27: #{cvae_forward.6} parent=1 // pred_check_branch
      %755 = sbr.rel (%p753) target = $region29
    $region28: #{cvae_forward.6} parent=1 // pred_region
      %v756 = vld [vmem:[%s3] sm:$0xff]
      %v757 = vld [vmem:[#allocation4] sm:$0x1]
      %v759 = vlaneseq
      %v760 = vshrl.u32 %v759, 7
      %v761 = vsub.s32 0, %v760
      %v762 = vrot.slane %v757, %v761
      %v764 = vadd.f32 %v756, %v762
      %vm765 = vcmp.ge.f32.partialorder %v764, 0.0
      %v766 = vmul.f32 %v764, 0.2
      %v767 = vsel %vm765, %v764, %v766
      %768 = vst [vmem:[%s3] sm:$0xff] %v767
    $region29: #{cvae_forward.6} parent=1 // pred_fallthru
      _
    // Predicated region
    $region30: #{cvae_forward.6} parent=1 // pred_check
      _
    $region31: #{cvae_forward.6} parent=1 // pred_check_branch
      %770 = sbr.rel (0) target = $region33
    $region32: #{cvae_forward.6} parent=1 // pred_region
      _
    $region33: #{cvae_forward.6} parent=1 // pred_fallthru
      _
    // Predicated region
    $region34: #{cvae_forward.6} parent=1 // pred_check
      _
    $region35: #{cvae_forward.6} parent=1 // pred_check_branch
      %772 = sbr.rel (0) target = $region37
    $region36: #{cvae_forward.6} parent=1 // pred_region
      _
    $region37: #{cvae_forward.6} parent=1 // pred_fallthru
      _
    %773 = vsyncpa [#allocation3], 1
    %774 = vsyncpa [#allocation5], 1

// kernel: cvae_forward.7
$region0: #{cvae_forward.7}
  #allocation0 [shape = 'u32[]', space=smem, size = 0x4, offset = 0x4, fixed_abs, tag = 'smem constant byte address 0x4 - core index']
  #allocation1 [shape = 'u32[144,128]{1,0:T(1,128)}', space=vmem, size = 0x12000, scoped, tag = 'internal scratch']
  %s0 = inlined_call_operand.vmem [shape: bf16[2,2048], index: 0, kind: input, shape index: {}]
  %s1 = inlined_call_operand.vmem [shape: bf16[2048,256], index: 1, kind: input, shape index: {}]
  %s2 = inlined_call_operand.vmem [shape: f32[1,256], index: 2, kind: input, shape index: {}]
  %s3 = inlined_call_operand.vmem [shape: f32[2,256], index: 3, kind: output, shape index: {}]
  %s4 = sld [smem:[#allocation0]]
  $region94: #{cvae_forward.7} parent=0
    _
  %s6 = ssub.s32 1, %s4
  %s7 = scalar_select 0, %s6, %s4
  $region1: #{cvae_forward.7} parent=0
    #allocation2 [shape = 'u8[1048576]{0}', space=vmem, size = 0x100000, scoped, tag = 'input window, operand 1']
    loop: start=0, step=1, limit=4
    $region2: #{cvae_forward.7} parent=1 // loop_pre_header
      _
    $region3: #{cvae_forward.7} parent=1 // loop_header
      %s9 = sphi 0, %s13
      %p10 = scmp.ge.s32.totalorder %s9, 4
      %s16 = sphi 0, %s28
      %s17 = sphi 0, %s24
      %s18 = sphi 0, %s16
      %s19 = sphi 0, %s17
      %s20 = sphi 0, %s18
      %s21 = sphi 0, %s19
      %s31 = sphi 0, %s33
      %s34 = sphi 0, %s31
      %s35 = sphi 0, %s34
      %s51 = sphi 0, %s35
      %s59 = sphi 0, %s61
      %s62 = sphi 0, %s59
      %s63 = sphi 0, %s62
      %s79 = sphi 0, %s63
      %s85 = sphi 0, %s87
      %s88 = sphi 0, %s85
      %s89 = sphi 0, %s88
      %s105 = sphi 0, %s89
      %s111 = sphi 0, %s113
      %s114 = sphi 0, %s111
      %s115 = sphi 0, %s114
      %s131 = sphi 0, %s115
    $region4: #{cvae_forward.7} parent=1 // loop_header_branch
      %12 = sbr.rel (%p10) target = $region8
    $region5: #{cvae_forward.7} parent=1 // loop_body
      %s14 = ssub.s32 %s9, 1
      %s15 = ssub.s32 %s9, 2
      %s22 = sadd.s32 1, %s17
      %p23 = scmp.ge.s32.totalorder %s22, 1
      %s24 = scalar_select %p23, 0, %s22
      %s25 = sadd.s32 1, %s16
      %s26 = scalar_select %p23, %s25, %s16
      %p27 = scmp.ge.s32.totalorder %s26, 2
      %s28 = scalar_select %p27, 0, %s26
      %s29 = ssub.s32 %s17, %s24
      %p30 = scmp.eq.s32.totalorder %s29, 0
      %s32 = sadd.s32 %s31, 1
      %s33 = scalar_select %p30, %s31, %s32
      %p36 = pneg %p30
      %p37 = scmp.eq.s32.totalorder %s9, 1
      %p38 = por %p36, %p37
      %p39 = scmp.ne.s32.totalorder %s31, %s34
      %p40 = scmp.eq.s32.totalorder %s9, 0
      %p41 = por %p39, %p40
      %p42 = scmp.ne.s32.totalorder %s31, %s34
      %p43 = scmp.eq.s32.totalorder %s14, 1
      %p44 = por %p42, %p43
      %p45 = scmp.ne.s32.totalorder %s34, %s35
      %p46 = scmp.eq.s32.totalorder %s14, 0
      %p47 = por %p45, %p46
      %p48 = scmp.ne.s32.totalorder %s34, %s35
      %p49 = scmp.eq.s32.totalorder %s15, 1
      %p50 = por %p48, %p49
      %p52 = scmp.ne.s32.totalorder %s35, %s51
      %p53 = scmp.eq.s32.totalorder %s15, 0
      %p54 = por %p52, %p53
      %s55 = ssub.s32 %s17, %s24
      %s56 = ssub.s32 %s16, %s28
      %s57 = sor.u32 %s55, %s56
      %p58 = scmp.eq.s32.totalorder %s57, 0
      %s60 = sadd.s32 %s59, 1
      %s61 = scalar_select %p58, %s59, %s60
      %p64 = pneg %p58
      %p65 = scmp.eq.s32.totalorder %s9, 1
      %p66 = por %p64, %p65
      %p67 = scmp.ne.s32.totalorder %s59, %s62
      %p68 = scmp.eq.s32.totalorder %s9, 0
      %p69 = por %p67, %p68
      %p70 = scmp.ne.s32.totalorder %s59, %s62
      %p71 = scmp.eq.s32.totalorder %s14, 1
      %p72 = por %p70, %p71
      %p73 = scmp.ne.s32.totalorder %s62, %s63
      %p74 = scmp.eq.s32.totalorder %s14, 0
      %p75 = por %p73, %p74
      %p76 = scmp.ne.s32.totalorder %s62, %s63
      %p77 = scmp.eq.s32.totalorder %s15, 1
      %p78 = por %p76, %p77
      %p80 = scmp.ne.s32.totalorder %s63, %s79
      %p81 = scmp.eq.s32.totalorder %s15, 0
      %p82 = por %p80, %p81
      %s83 = ssub.s32 %s16, %s28
      %p84 = scmp.eq.s32.totalorder %s83, 0
      %s86 = sadd.s32 %s85, 1
      %s87 = scalar_select %p84, %s85, %s86
      %p90 = pneg %p84
      %p91 = scmp.eq.s32.totalorder %s9, 1
      %p92 = por %p90, %p91
      %p93 = scmp.ne.s32.totalorder %s85, %s88
      %p94 = scmp.eq.s32.totalorder %s9, 0
      %p95 = por %p93, %p94
      %p96 = scmp.ne.s32.totalorder %s85, %s88
      %p97 = scmp.eq.s32.totalorder %s14, 1
      %p98 = por %p96, %p97
      %p99 = scmp.ne.s32.totalorder %s88, %s89
      %p100 = scmp.eq.s32.totalorder %s14, 0
      %p101 = por %p99, %p100
      %p102 = scmp.ne.s32.totalorder %s88, %s89
      %p103 = scmp.eq.s32.totalorder %s15, 1
      %p104 = por %p102, %p103
      %p106 = scmp.ne.s32.totalorder %s89, %s105
      %p107 = scmp.eq.s32.totalorder %s15, 0
      %p108 = por %p106, %p107
      %s109 = ssub.s32 %s16, %s28
      %p110 = scmp.eq.s32.totalorder %s109, 0
      %s112 = sadd.s32 %s111, 1
      %s113 = scalar_select %p110, %s111, %s112
      %p116 = pneg %p110
      %p117 = scmp.eq.s32.totalorder %s9, 1
      %p118 = por %p116, %p117
      %p119 = scmp.ne.s32.totalorder %s111, %s114
      %p120 = scmp.eq.s32.totalorder %s9, 0
      %p121 = por %p119, %p120
      %p122 = scmp.ne.s32.totalorder %s111, %s114
      %p123 = scmp.eq.s32.totalorder %s14, 1
      %p124 = por %p122, %p123
      %p125 = scmp.ne.s32.totalorder %s114, %s115
      %p126 = scmp.eq.s32.totalorder %s14, 0
      %p127 = por %p125, %p126
      %p128 = scmp.ne.s32.totalorder %s114, %s115
      %p129 = scmp.eq.s32.totalorder %s15, 1
      %p130 = por %p128, %p129
      %p132 = scmp.ne.s32.totalorder %s115, %s131
      %p133 = scmp.eq.s32.totalorder %s15, 0
      %p134 = por %p132, %p133
      %p135 = scmp.le.s32.totalorder 1, %s9
      %p136 = scmp.lt.s32.totalorder %s9, 3
      %p137 = pnand %p135, %p136
      %p138 = pneg %p137
      // Predicated region
      $region9: #{cvae_forward.7} parent=5 // pred_check
        _
      $region10: #{cvae_forward.7} parent=5 // pred_check_branch
        %140 = sbr.rel (%p137) target = $region12
      $region11: #{cvae_forward.7} parent=5 // pred_region
        %s141 = ssub.s32 %s9, 1
        // Predicated region
        $region13: #{cvae_forward.7} parent=11 // pred_check
          %p142 = pneg %p47
        $region14: #{cvae_forward.7} parent=11 // pred_check_branch
          %144 = sbr.rel (%p142) target = $region16
        $region15: #{cvae_forward.7} parent=11 // pred_region
          %s145 = smul.u32 16, %s19
          %p146 = scmp.lt.s32.totalorder %s145, 15
          %s147 = scalar_select %p146, %s145, 15
          %s148 = scalar_lea.vmem %s0, %s147
          %s149 = smul.u32 16, %s19
        $region16: #{cvae_forward.7} parent=11 // pred_fallthru
          _
      $region12: #{cvae_forward.7} parent=5 // pred_fallthru
        _
      %p150 = scmp.lt.s32.totalorder %s9, 2
      // Predicated region
      $region17: #{cvae_forward.7} parent=5 // pred_check
        %p151 = pneg %p150
      $region18: #{cvae_forward.7} parent=5 // pred_check_branch
        %153 = sbr.rel (%p151) target = $region20
      $region19: #{cvae_forward.7} parent=5 // pred_region
        // Predicated region
        $region21: #{cvae_forward.7} parent=19 // pred_check
          %p154 = pneg %p69
        $region22: #{cvae_forward.7} parent=19 // pred_check_branch
          %156 = sbr.rel (%p154) target = $region24
        $region23: #{cvae_forward.7} parent=19 // pred_region
          %s157 = sand.u32 %s59, 1
          %s158 = sand.u32 %s59, 1
          %s159 = smul.addr %s158, 1024
          %s160 = scalar_lea.vmem [#allocation2], %s159
          %s161 = smul.u32 256, %s17
          %s162 = smul.addr %s161, 2
          %s163 = sadd.s32 %s16, %s162
          %s164 = smul.addr %s163, 4
          %s165 = scalar_lea.vmem %s1, %s164
          // Predicated region
          $region25: #{cvae_forward.7} parent=23 // pred_check
            _
          $region26: #{cvae_forward.7} parent=23 // pred_check_branch
            %167 = sbr.rel (0) target = $region28
          $region27: #{cvae_forward.7} parent=23 // pred_region
            // Predicated region
            $region29: #{cvae_forward.7} parent=27 // pred_check
              _
            $region30: #{cvae_forward.7} parent=27 // pred_check_branch
              %169 = sbr.rel target = $region32
            $region31: #{cvae_forward.7} parent=27 // pred_region
              // Predicated region
              $region44: #{cvae_forward.7} parent=31 // pred_check
                _
              $region45: #{cvae_forward.7} parent=31 // pred_check_branch
                %694 = sbr.rel (0) target = $region47
              $region46: #{cvae_forward.7} parent=31 // pred_region
                loop: start=0, step=1, limit=1
                $region48: #{cvae_forward.7} parent=46 // loop_pre_header
                  _
                $region49: #{cvae_forward.7} parent=46 // loop_header
                  %s696 = sphi 0, %s700
                  %p697 = scmp.ge.s32.totalorder %s696, 1
                  %s701 = sphi %s165, %s165
                  %s702 = sphi %s160, %s160
                $region50: #{cvae_forward.7} parent=46 // loop_header_branch
                  %699 = sbr.rel (%p697) target = $region54
                $region51: #{cvae_forward.7} parent=46 // loop_body
                  _
                $region52: #{cvae_forward.7} parent=46 // loop_footer
                  %s700 = sadd.s32 1, %s696
                $region53: #{cvae_forward.7} parent=46 // loop_footer_branch
                  %695 = sbr.rel target = $region49
                $region54: #{cvae_forward.7} parent=46 // loop_exit
                  _
                loop: start=0, step=1, limit=1
                $region55: #{cvae_forward.7} parent=46 // loop_pre_header
                  _
                $region56: #{cvae_forward.7} parent=46 // loop_header
                  %s705 = sphi 0, %s709
                  %p706 = scmp.ge.s32.totalorder %s705, 1
                  %s710 = sphi %s165, %s165
                  %s711 = sphi %s160, %s160
                $region57: #{cvae_forward.7} parent=46 // loop_header_branch
                  %708 = sbr.rel (%p706) target = $region61
                $region58: #{cvae_forward.7} parent=46 // loop_body
                  %v712 = vld [vmem:[%s710] sm:$0xf]
                  %713 = vst [vmem:[%s711] sm:$0xf] %v712
                  %v714 = vld [vmem:[%s710 + $0x8] sm:$0xf]
                  %715 = vst [vmem:[%s711 + $0x4] sm:$0xf] %v714
                  %v716 = vld [vmem:[%s710 + $0x10] sm:$0xf]
                  %717 = vst [vmem:[%s711 + $0x8] sm:$0xf] %v716
                  %v718 = vld [vmem:[%s710 + $0x18] sm:$0xf]
                  %719 = vst [vmem:[%s711 + $0xc] sm:$0xf] %v718
                  %v720 = vld [vmem:[%s710 + $0x20] sm:$0xf]
                  %721 = vst [vmem:[%s711 + $0x10] sm:$0xf] %v720
                  %v722 = vld [vmem:[%s710 + $0x28] sm:$0xf]
                  %723 = vst [vmem:[%s711 + $0x14] sm:$0xf] %v722
                  %v724 = vld [vmem:[%s710 + $0x30] sm:$0xf]
                  %725 = vst [vmem:[%s711 + $0x18] sm:$0xf] %v724
                  %v726 = vld [vmem:[%s710 + $0x38] sm:$0xf]
                  %727 = vst [vmem:[%s711 + $0x1c] sm:$0xf] %v726
                  %v728 = vld [vmem:[%s710 + $0x40] sm:$0xf]
                  %729 = vst [vmem:[%s711 + $0x20] sm:$0xf] %v728
                  %v730 = vld [vmem:[%s710 + $0x48] sm:$0xf]
                  %731 = vst [vmem:[%s711 + $0x24] sm:$0xf] %v730
                  %v732 = vld [vmem:[%s710 + $0x50] sm:$0xf]
                  %733 = vst [vmem:[%s711 + $0x28] sm:$0xf] %v732
                  %v734 = vld [vmem:[%s710 + $0x58] sm:$0xf]
                  %735 = vst [vmem:[%s711 + $0x2c] sm:$0xf] %v734
                  %v736 = vld [vmem:[%s710 + $0x60] sm:$0xf]
                  %737 = vst [vmem:[%s711 + $0x30] sm:$0xf] %v736
                  %v738 = vld [vmem:[%s710 + $0x68] sm:$0xf]
                  %739 = vst [vmem:[%s711 + $0x34] sm:$0xf] %v738
                  %v740 = vld [vmem:[%s710 + $0x70] sm:$0xf]
                  %741 = vst [vmem:[%s711 + $0x38] sm:$0xf] %v740
                  %v742 = vld [vmem:[%s710 + $0x78] sm:$0xf]
                  %743 = vst [vmem:[%s711 + $0x3c] sm:$0xf] %v742
                  %v744 = vld [vmem:[%s710 + $0x80] sm:$0xf]
                  %745 = vst [vmem:[%s711 + $0x40] sm:$0xf] %v744
                  %v746 = vld [vmem:[%s710 + $0x88] sm:$0xf]
                  %747 = vst [vmem:[%s711 + $0x44] sm:$0xf] %v746
                  %v748 = vld [vmem:[%s710 + $0x90] sm:$0xf]
                  %749 = vst [vmem:[%s711 + $0x48] sm:$0xf] %v748
                  %v750 = vld [vmem:[%s710 + $0x98] sm:$0xf]
                  %751 = vst [vmem:[%s711 + $0x4c] sm:$0xf] %v750
                  %v752 = vld [vmem:[%s710 + $0xa0] sm:$0xf]
                  %753 = vst [vmem:[%s711 + $0x50] sm:$0xf] %v752
                  %v754 = vld [vmem:[%s710 + $0xa8] sm:$0xf]
                  %755 = vst [vmem:[%s711 + $0x54] sm:$0xf] %v754
                  %v756 = vld [vmem:[%s710 + $0xb0] sm:$0xf]
                  %757 = vst [vmem:[%s711 + $0x58] sm:$0xf] %v756
                  %v758 = vld [vmem:[%s710 + $0xb8] sm:$0xf]
                  %759 = vst [vmem:[%s711 + $0x5c] sm:$0xf] %v758
                  %v760 = vld [vmem:[%s710 + $0xc0] sm:$0xf]
                  %761 = vst [vmem:[%s711 + $0x60] sm:$0xf] %v760
                  %v762 = vld [vmem:[%s710 + $0xc8] sm:$0xf]
                  %763 = vst [vmem:[%s711 + $0x64] sm:$0xf] %v762
                  %v764 = vld [vmem:[%s710 + $0xd0] sm:$0xf]
                  %765 = vst [vmem:[%s711 + $0x68] sm:$0xf] %v764
                  %v766 = vld [vmem:[%s710 + $0xd8] sm:$0xf]
                  %767 = vst [vmem:[%s711 + $0x6c] sm:$0xf] %v766
                  %v768 = vld [vmem:[%s710 + $0xe0] sm:$0xf]
                  %769 = vst [vmem:[%s711 + $0x70] sm:$0xf] %v768
                  %v770 = vld [vmem:[%s710 + $0xe8] sm:$0xf]
                  %771 = vst [vmem:[%s711 + $0x74] sm:$0xf] %v770
                  %v772 = vld [vmem:[%s710 + $0xf0] sm:$0xf]
                  %773 = vst [vmem:[%s711 + $0x78] sm:$0xf] %v772
                  %v774 = vld [vmem:[%s710 + $0xf8] sm:$0xf]
                  %775 = vst [vmem:[%s711 + $0x7c] sm:$0xf] %v774
                  %v776 = vld [vmem:[%s710 + $0x100] sm:$0xf]
                  %777 = vst [vmem:[%s711 + $0x80] sm:$0xf] %v776
                  %v778 = vld [vmem:[%s710 + $0x108] sm:$0xf]
                  %779 = vst [vmem:[%s711 + $0x84] sm:$0xf] %v778
                  %v780 = vld [vmem:[%s710 + $0x110] sm:$0xf]
                  %781 = vst [vmem:[%s711 + $0x88] sm:$0xf] %v780
                  %v782 = vld [vmem:[%s710 + $0x118] sm:$0xf]
                  %783 = vst [vmem:[%s711 + $0x8c] sm:$0xf] %v782
                  %v784 = vld [vmem:[%s710 + $0x120] sm:$0xf]
                  %785 = vst [vmem:[%s711 + $0x90] sm:$0xf] %v784
                  %v786 = vld [vmem:[%s710 + $0x128] sm:$0xf]
                  %787 = vst [vmem:[%s711 + $0x94] sm:$0xf] %v786
                  %v788 = vld [vmem:[%s710 + $0x130] sm:$0xf]
                  %789 = vst [vmem:[%s711 + $0x98] sm:$0xf] %v788
                  %v790 = vld [vmem:[%s710 + $0x138] sm:$0xf]
                  %791 = vst [vmem:[%s711 + $0x9c] sm:$0xf] %v790
                  %v792 = vld [vmem:[%s710 + $0x140] sm:$0xf]
                  %793 = vst [vmem:[%s711 + $0xa0] sm:$0xf] %v792
                  %v794 = vld [vmem:[%s710 + $0x148] sm:$0xf]
                  %795 = vst [vmem:[%s711 + $0xa4] sm:$0xf] %v794
                  %v796 = vld [vmem:[%s710 + $0x150] sm:$0xf]
                  %797 = vst [vmem:[%s711 + $0xa8] sm:$0xf] %v796
                  %v798 = vld [vmem:[%s710 + $0x158] sm:$0xf]
                  %799 = vst [vmem:[%s711 + $0xac] sm:$0xf] %v798
                  %v800 = vld [vmem:[%s710 + $0x160] sm:$0xf]
                  %801 = vst [vmem:[%s711 + $0xb0] sm:$0xf] %v800
                  %v802 = vld [vmem:[%s710 + $0x168] sm:$0xf]
                  %803 = vst [vmem:[%s711 + $0xb4] sm:$0xf] %v802
                  %v804 = vld [vmem:[%s710 + $0x170] sm:$0xf]
                  %805 = vst [vmem:[%s711 + $0xb8] sm:$0xf] %v804
                  %v806 = vld [vmem:[%s710 + $0x178] sm:$0xf]
                  %807 = vst [vmem:[%s711 + $0xbc] sm:$0xf] %v806
                  %v808 = vld [vmem:[%s710 + $0x180] sm:$0xf]
                  %809 = vst [vmem:[%s711 + $0xc0] sm:$0xf] %v808
                  %v810 = vld [vmem:[%s710 + $0x188] sm:$0xf]
                  %811 = vst [vmem:[%s711 + $0xc4] sm:$0xf] %v810
                  %v812 = vld [vmem:[%s710 + $0x190] sm:$0xf]
                  %813 = vst [vmem:[%s711 + $0xc8] sm:$0xf] %v812
                  %v814 = vld [vmem:[%s710 + $0x198] sm:$0xf]
                  %815 = vst [vmem:[%s711 + $0xcc] sm:$0xf] %v814
                  %v816 = vld [vmem:[%s710 + $0x1a0] sm:$0xf]
                  %817 = vst [vmem:[%s711 + $0xd0] sm:$0xf] %v816
                  %v818 = vld [vmem:[%s710 + $0x1a8] sm:$0xf]
                  %819 = vst [vmem:[%s711 + $0xd4] sm:$0xf] %v818
                  %v820 = vld [vmem:[%s710 + $0x1b0] sm:$0xf]
                  %821 = vst [vmem:[%s711 + $0xd8] sm:$0xf] %v820
                  %v822 = vld [vmem:[%s710 + $0x1b8] sm:$0xf]
                  %823 = vst [vmem:[%s711 + $0xdc] sm:$0xf] %v822
                  %v824 = vld [vmem:[%s710 + $0x1c0] sm:$0xf]
                  %825 = vst [vmem:[%s711 + $0xe0] sm:$0xf] %v824
                  %v826 = vld [vmem:[%s710 + $0x1c8] sm:$0xf]
                  %827 = vst [vmem:[%s711 + $0xe4] sm:$0xf] %v826
                  %v828 = vld [vmem:[%s710 + $0x1d0] sm:$0xf]
                  %829 = vst [vmem:[%s711 + $0xe8] sm:$0xf] %v828
                  %v830 = vld [vmem:[%s710 + $0x1d8] sm:$0xf]
                  %831 = vst [vmem:[%s711 + $0xec] sm:$0xf] %v830
                  %v832 = vld [vmem:[%s710 + $0x1e0] sm:$0xf]
                  %833 = vst [vmem:[%s711 + $0xf0] sm:$0xf] %v832
                  %v834 = vld [vmem:[%s710 + $0x1e8] sm:$0xf]
                  %835 = vst [vmem:[%s711 + $0xf4] sm:$0xf] %v834
                  %v836 = vld [vmem:[%s710 + $0x1f0] sm:$0xf]
                  %837 = vst [vmem:[%s711 + $0xf8] sm:$0xf] %v836
                  %v838 = vld [vmem:[%s710 + $0x1f8] sm:$0xf]
                  %839 = vst [vmem:[%s711 + $0xfc] sm:$0xf] %v838
                  %v840 = vld [vmem:[%s710 + $0x200] sm:$0xf]
                  %841 = vst [vmem:[%s711 + $0x100] sm:$0xf] %v840
                  %v842 = vld [vmem:[%s710 + $0x208] sm:$0xf]
                  %843 = vst [vmem:[%s711 + $0x104] sm:$0xf] %v842
                  %v844 = vld [vmem:[%s710 + $0x210] sm:$0xf]
                  %845 = vst [vmem:[%s711 + $0x108] sm:$0xf] %v844
                  %v846 = vld [vmem:[%s710 + $0x218] sm:$0xf]
                  %847 = vst [vmem:[%s711 + $0x10c] sm:$0xf] %v846
                  %v848 = vld [vmem:[%s710 + $0x220] sm:$0xf]
                  %849 = vst [vmem:[%s711 + $0x110] sm:$0xf] %v848
                  %v850 = vld [vmem:[%s710 + $0x228] sm:$0xf]
                  %851 = vst [vmem:[%s711 + $0x114] sm:$0xf] %v850
                  %v852 = vld [vmem:[%s710 + $0x230] sm:$0xf]
                  %853 = vst [vmem:[%s711 + $0x118] sm:$0xf] %v852
                  %v854 = vld [vmem:[%s710 + $0x238] sm:$0xf]
                  %855 = vst [vmem:[%s711 + $0x11c] sm:$0xf] %v854
                  %v856 = vld [vmem:[%s710 + $0x240] sm:$0xf]
                  %857 = vst [vmem:[%s711 + $0x120] sm:$0xf] %v856
                  %v858 = vld [vmem:[%s710 + $0x248] sm:$0xf]
                  %859 = vst [vmem:[%s711 + $0x124] sm:$0xf] %v858
                  %v860 = vld [vmem:[%s710 + $0x250] sm:$0xf]
                  %861 = vst [vmem:[%s711 + $0x128] sm:$0xf] %v860
                  %v862 = vld [vmem:[%s710 + $0x258] sm:$0xf]
                  %863 = vst [vmem:[%s711 + $0x12c] sm:$0xf] %v862
                  %v864 = vld [vmem:[%s710 + $0x260] sm:$0xf]
                  %865 = vst [vmem:[%s711 + $0x130] sm:$0xf] %v864
                  %v866 = vld [vmem:[%s710 + $0x268] sm:$0xf]
                  %867 = vst [vmem:[%s711 + $0x134] sm:$0xf] %v866
                  %v868 = vld [vmem:[%s710 + $0x270] sm:$0xf]
                  %869 = vst [vmem:[%s711 + $0x138] sm:$0xf] %v868
                  %v870 = vld [vmem:[%s710 + $0x278] sm:$0xf]
                  %871 = vst [vmem:[%s711 + $0x13c] sm:$0xf] %v870
                  %v872 = vld [vmem:[%s710 + $0x280] sm:$0xf]
                  %873 = vst [vmem:[%s711 + $0x140] sm:$0xf] %v872
                  %v874 = vld [vmem:[%s710 + $0x288] sm:$0xf]
                  %875 = vst [vmem:[%s711 + $0x144] sm:$0xf] %v874
                  %v876 = vld [vmem:[%s710 + $0x290] sm:$0xf]
                  %877 = vst [vmem:[%s711 + $0x148] sm:$0xf] %v876
                  %v878 = vld [vmem:[%s710 + $0x298] sm:$0xf]
                  %879 = vst [vmem:[%s711 + $0x14c] sm:$0xf] %v878
                  %v880 = vld [vmem:[%s710 + $0x2a0] sm:$0xf]
                  %881 = vst [vmem:[%s711 + $0x150] sm:$0xf] %v880
                  %v882 = vld [vmem:[%s710 + $0x2a8] sm:$0xf]
                  %883 = vst [vmem:[%s711 + $0x154] sm:$0xf] %v882
                  %v884 = vld [vmem:[%s710 + $0x2b0] sm:$0xf]
                  %885 = vst [vmem:[%s711 + $0x158] sm:$0xf] %v884
                  %v886 = vld [vmem:[%s710 + $0x2b8] sm:$0xf]
                  %887 = vst [vmem:[%s711 + $0x15c] sm:$0xf] %v886
                  %v888 = vld [vmem:[%s710 + $0x2c0] sm:$0xf]
                  %889 = vst [vmem:[%s711 + $0x160] sm:$0xf] %v888
                  %v890 = vld [vmem:[%s710 + $0x2c8] sm:$0xf]
                  %891 = vst [vmem:[%s711 + $0x164] sm:$0xf] %v890
                  %v892 = vld [vmem:[%s710 + $0x2d0] sm:$0xf]
                  %893 = vst [vmem:[%s711 + $0x168] sm:$0xf] %v892
                  %v894 = vld [vmem:[%s710 + $0x2d8] sm:$0xf]
                  %895 = vst [vmem:[%s711 + $0x16c] sm:$0xf] %v894
                  %v896 = vld [vmem:[%s710 + $0x2e0] sm:$0xf]
                  %897 = vst [vmem:[%s711 + $0x170] sm:$0xf] %v896
                  %v898 = vld [vmem:[%s710 + $0x2e8] sm:$0xf]
                  %899 = vst [vmem:[%s711 + $0x174] sm:$0xf] %v898
                  %v900 = vld [vmem:[%s710 + $0x2f0] sm:$0xf]
                  %901 = vst [vmem:[%s711 + $0x178] sm:$0xf] %v900
                  %v902 = vld [vmem:[%s710 + $0x2f8] sm:$0xf]
                  %903 = vst [vmem:[%s711 + $0x17c] sm:$0xf] %v902
                  %v904 = vld [vmem:[%s710 + $0x300] sm:$0xf]
                  %905 = vst [vmem:[%s711 + $0x180] sm:$0xf] %v904
                  %v906 = vld [vmem:[%s710 + $0x308] sm:$0xf]
                  %907 = vst [vmem:[%s711 + $0x184] sm:$0xf] %v906
                  %v908 = vld [vmem:[%s710 + $0x310] sm:$0xf]
                  %909 = vst [vmem:[%s711 + $0x188] sm:$0xf] %v908
                  %v910 = vld [vmem:[%s710 + $0x318] sm:$0xf]
                  %911 = vst [vmem:[%s711 + $0x18c] sm:$0xf] %v910
                  %v912 = vld [vmem:[%s710 + $0x320] sm:$0xf]
                  %913 = vst [vmem:[%s711 + $0x190] sm:$0xf] %v912
                  %v914 = vld [vmem:[%s710 + $0x328] sm:$0xf]
                  %915 = vst [vmem:[%s711 + $0x194] sm:$0xf] %v914
                  %v916 = vld [vmem:[%s710 + $0x330] sm:$0xf]
                  %917 = vst [vmem:[%s711 + $0x198] sm:$0xf] %v916
                  %v918 = vld [vmem:[%s710 + $0x338] sm:$0xf]
                  %919 = vst [vmem:[%s711 + $0x19c] sm:$0xf] %v918
                  %v920 = vld [vmem:[%s710 + $0x340] sm:$0xf]
                  %921 = vst [vmem:[%s711 + $0x1a0] sm:$0xf] %v920
                  %v922 = vld [vmem:[%s710 + $0x348] sm:$0xf]
                  %923 = vst [vmem:[%s711 + $0x1a4] sm:$0xf] %v922
                  %v924 = vld [vmem:[%s710 + $0x350] sm:$0xf]
                  %925 = vst [vmem:[%s711 + $0x1a8] sm:$0xf] %v924
                  %v926 = vld [vmem:[%s710 + $0x358] sm:$0xf]
                  %927 = vst [vmem:[%s711 + $0x1ac] sm:$0xf] %v926
                  %v928 = vld [vmem:[%s710 + $0x360] sm:$0xf]
                  %929 = vst [vmem:[%s711 + $0x1b0] sm:$0xf] %v928
                  %v930 = vld [vmem:[%s710 + $0x368] sm:$0xf]
                  %931 = vst [vmem:[%s711 + $0x1b4] sm:$0xf] %v930
                  %v932 = vld [vmem:[%s710 + $0x370] sm:$0xf]
                  %933 = vst [vmem:[%s711 + $0x1b8] sm:$0xf] %v932
                  %v934 = vld [vmem:[%s710 + $0x378] sm:$0xf]
                  %935 = vst [vmem:[%s711 + $0x1bc] sm:$0xf] %v934
                  %v936 = vld [vmem:[%s710 + $0x380] sm:$0xf]
                  %937 = vst [vmem:[%s711 + $0x1c0] sm:$0xf] %v936
                  %v938 = vld [vmem:[%s710 + $0x388] sm:$0xf]
                  %939 = vst [vmem:[%s711 + $0x1c4] sm:$0xf] %v938
                  %v940 = vld [vmem:[%s710 + $0x390] sm:$0xf]
                  %941 = vst [vmem:[%s711 + $0x1c8] sm:$0xf] %v940
                  %v942 = vld [vmem:[%s710 + $0x398] sm:$0xf]
                  %943 = vst [vmem:[%s711 + $0x1cc] sm:$0xf] %v942
                  %v944 = vld [vmem:[%s710 + $0x3a0] sm:$0xf]
                  %945 = vst [vmem:[%s711 + $0x1d0] sm:$0xf] %v944
                  %v946 = vld [vmem:[%s710 + $0x3a8] sm:$0xf]
                  %947 = vst [vmem:[%s711 + $0x1d4] sm:$0xf] %v946
                  %v948 = vld [vmem:[%s710 + $0x3b0] sm:$0xf]
                  %949 = vst [vmem:[%s711 + $0x1d8] sm:$0xf] %v948
                  %v950 = vld [vmem:[%s710 + $0x3b8] sm:$0xf]
                  %951 = vst [vmem:[%s711 + $0x1dc] sm:$0xf] %v950
                  %v952 = vld [vmem:[%s710 + $0x3c0] sm:$0xf]
                  %953 = vst [vmem:[%s711 + $0x1e0] sm:$0xf] %v952
                  %v954 = vld [vmem:[%s710 + $0x3c8] sm:$0xf]
                  %955 = vst [vmem:[%s711 + $0x1e4] sm:$0xf] %v954
                  %v956 = vld [vmem:[%s710 + $0x3d0] sm:$0xf]
                  %957 = vst [vmem:[%s711 + $0x1e8] sm:$0xf] %v956
                  %v958 = vld [vmem:[%s710 + $0x3d8] sm:$0xf]
                  %959 = vst [vmem:[%s711 + $0x1ec] sm:$0xf] %v958
                  %v960 = vld [vmem:[%s710 + $0x3e0] sm:$0xf]
                  %961 = vst [vmem:[%s711 + $0x1f0] sm:$0xf] %v960
                  %v962 = vld [vmem:[%s710 + $0x3e8] sm:$0xf]
                  %963 = vst [vmem:[%s711 + $0x1f4] sm:$0xf] %v962
                  %v964 = vld [vmem:[%s710 + $0x3f0] sm:$0xf]
                  %965 = vst [vmem:[%s711 + $0x1f8] sm:$0xf] %v964
                  %v966 = vld [vmem:[%s710 + $0x3f8] sm:$0xf]
                  %967 = vst [vmem:[%s711 + $0x1fc] sm:$0xf] %v966
                  %v968 = vld [vmem:[%s710 + $0x400] sm:$0xf]
                  %969 = vst [vmem:[%s711 + $0x200] sm:$0xf] %v968
                  %v970 = vld [vmem:[%s710 + $0x408] sm:$0xf]
                  %971 = vst [vmem:[%s711 + $0x204] sm:$0xf] %v970
                  %v972 = vld [vmem:[%s710 + $0x410] sm:$0xf]
                  %973 = vst [vmem:[%s711 + $0x208] sm:$0xf] %v972
                  %v974 = vld [vmem:[%s710 + $0x418] sm:$0xf]
                  %975 = vst [vmem:[%s711 + $0x20c] sm:$0xf] %v974
                  %v976 = vld [vmem:[%s710 + $0x420] sm:$0xf]
                  %977 = vst [vmem:[%s711 + $0x210] sm:$0xf] %v976
                  %v978 = vld [vmem:[%s710 + $0x428] sm:$0xf]
                  %979 = vst [vmem:[%s711 + $0x214] sm:$0xf] %v978
                  %v980 = vld [vmem:[%s710 + $0x430] sm:$0xf]
                  %981 = vst [vmem:[%s711 + $0x218] sm:$0xf] %v980
                  %v982 = vld [vmem:[%s710 + $0x438] sm:$0xf]
                  %983 = vst [vmem:[%s711 + $0x21c] sm:$0xf] %v982
                  %v984 = vld [vmem:[%s710 + $0x440] sm:$0xf]
                  %985 = vst [vmem:[%s711 + $0x220] sm:$0xf] %v984
                  %v986 = vld [vmem:[%s710 + $0x448] sm:$0xf]
                  %987 = vst [vmem:[%s711 + $0x224] sm:$0xf] %v986
                  %v988 = vld [vmem:[%s710 + $0x450] sm:$0xf]
                  %989 = vst [vmem:[%s711 + $0x228] sm:$0xf] %v988
                  %v990 = vld [vmem:[%s710 + $0x458] sm:$0xf]
                  %991 = vst [vmem:[%s711 + $0x22c] sm:$0xf] %v990
                  %v992 = vld [vmem:[%s710 + $0x460] sm:$0xf]
                  %993 = vst [vmem:[%s711 + $0x230] sm:$0xf] %v992
                  %v994 = vld [vmem:[%s710 + $0x468] sm:$0xf]
                  %995 = vst [vmem:[%s711 + $0x234] sm:$0xf] %v994
                  %v996 = vld [vmem:[%s710 + $0x470] sm:$0xf]
                  %997 = vst [vmem:[%s711 + $0x238] sm:$0xf] %v996
                  %v998 = vld [vmem:[%s710 + $0x478] sm:$0xf]
                  %999 = vst [vmem:[%s711 + $0x23c] sm:$0xf] %v998
                  %v1000 = vld [vmem:[%s710 + $0x480] sm:$0xf]
                  %1001 = vst [vmem:[%s711 + $0x240] sm:$0xf] %v1000
                  %v1002 = vld [vmem:[%s710 + $0x488] sm:$0xf]
                  %1003 = vst [vmem:[%s711 + $0x244] sm:$0xf] %v1002
                  %v1004 = vld [vmem:[%s710 + $0x490] sm:$0xf]
                  %1005 = vst [vmem:[%s711 + $0x248] sm:$0xf] %v1004
                  %v1006 = vld [vmem:[%s710 + $0x498] sm:$0xf]
                  %1007 = vst [vmem:[%s711 + $0x24c] sm:$0xf] %v1006
                  %v1008 = vld [vmem:[%s710 + $0x4a0] sm:$0xf]
                  %1009 = vst [vmem:[%s711 + $0x250] sm:$0xf] %v1008
                  %v1010 = vld [vmem:[%s710 + $0x4a8] sm:$0xf]
                  %1011 = vst [vmem:[%s711 + $0x254] sm:$0xf] %v1010
                  %v1012 = vld [vmem:[%s710 + $0x4b0] sm:$0xf]
                  %1013 = vst [vmem:[%s711 + $0x258] sm:$0xf] %v1012
                  %v1014 = vld [vmem:[%s710 + $0x4b8] sm:$0xf]
                  %1015 = vst [vmem:[%s711 + $0x25c] sm:$0xf] %v1014
                  %v1016 = vld [vmem:[%s710 + $0x4c0] sm:$0xf]
                  %1017 = vst [vmem:[%s711 + $0x260] sm:$0xf] %v1016
                  %v1018 = vld [vmem:[%s710 + $0x4c8] sm:$0xf]
                  %1019 = vst [vmem:[%s711 + $0x264] sm:$0xf] %v1018
                  %v1020 = vld [vmem:[%s710 + $0x4d0] sm:$0xf]
                  %1021 = vst [vmem:[%s711 + $0x268] sm:$0xf] %v1020
                  %v1022 = vld [vmem:[%s710 + $0x4d8] sm:$0xf]
                  %1023 = vst [vmem:[%s711 + $0x26c] sm:$0xf] %v1022
                  %v1024 = vld [vmem:[%s710 + $0x4e0] sm:$0xf]
                  %1025 = vst [vmem:[%s711 + $0x270] sm:$0xf] %v1024
                  %v1026 = vld [vmem:[%s710 + $0x4e8] sm:$0xf]
                  %1027 = vst [vmem:[%s711 + $0x274] sm:$0xf] %v1026
                  %v1028 = vld [vmem:[%s710 + $0x4f0] sm:$0xf]
                  %1029 = vst [vmem:[%s711 + $0x278] sm:$0xf] %v1028
                  %v1030 = vld [vmem:[%s710 + $0x4f8] sm:$0xf]
                  %1031 = vst [vmem:[%s711 + $0x27c] sm:$0xf] %v1030
                  %v1032 = vld [vmem:[%s710 + $0x500] sm:$0xf]
                  %1033 = vst [vmem:[%s711 + $0x280] sm:$0xf] %v1032
                  %v1034 = vld [vmem:[%s710 + $0x508] sm:$0xf]
                  %1035 = vst [vmem:[%s711 + $0x284] sm:$0xf] %v1034
                  %v1036 = vld [vmem:[%s710 + $0x510] sm:$0xf]
                  %1037 = vst [vmem:[%s711 + $0x288] sm:$0xf] %v1036
                  %v1038 = vld [vmem:[%s710 + $0x518] sm:$0xf]
                  %1039 = vst [vmem:[%s711 + $0x28c] sm:$0xf] %v1038
                  %v1040 = vld [vmem:[%s710 + $0x520] sm:$0xf]
                  %1041 = vst [vmem:[%s711 + $0x290] sm:$0xf] %v1040
                  %v1042 = vld [vmem:[%s710 + $0x528] sm:$0xf]
                  %1043 = vst [vmem:[%s711 + $0x294] sm:$0xf] %v1042
                  %v1044 = vld [vmem:[%s710 + $0x530] sm:$0xf]
                  %1045 = vst [vmem:[%s711 + $0x298] sm:$0xf] %v1044
                  %v1046 = vld [vmem:[%s710 + $0x538] sm:$0xf]
                  %1047 = vst [vmem:[%s711 + $0x29c] sm:$0xf] %v1046
                  %v1048 = vld [vmem:[%s710 + $0x540] sm:$0xf]
                  %1049 = vst [vmem:[%s711 + $0x2a0] sm:$0xf] %v1048
                  %v1050 = vld [vmem:[%s710 + $0x548] sm:$0xf]
                  %1051 = vst [vmem:[%s711 + $0x2a4] sm:$0xf] %v1050
                  %v1052 = vld [vmem:[%s710 + $0x550] sm:$0xf]
                  %1053 = vst [vmem:[%s711 + $0x2a8] sm:$0xf] %v1052
                  %v1054 = vld [vmem:[%s710 + $0x558] sm:$0xf]
                  %1055 = vst [vmem:[%s711 + $0x2ac] sm:$0xf] %v1054
                  %v1056 = vld [vmem:[%s710 + $0x560] sm:$0xf]
                  %1057 = vst [vmem:[%s711 + $0x2b0] sm:$0xf] %v1056
                  %v1058 = vld [vmem:[%s710 + $0x568] sm:$0xf]
                  %1059 = vst [vmem:[%s711 + $0x2b4] sm:$0xf] %v1058
                  %v1060 = vld [vmem:[%s710 + $0x570] sm:$0xf]
                  %1061 = vst [vmem:[%s711 + $0x2b8] sm:$0xf] %v1060
                  %v1062 = vld [vmem:[%s710 + $0x578] sm:$0xf]
                  %1063 = vst [vmem:[%s711 + $0x2bc] sm:$0xf] %v1062
                  %v1064 = vld [vmem:[%s710 + $0x580] sm:$0xf]
                  %1065 = vst [vmem:[%s711 + $0x2c0] sm:$0xf] %v1064
                  %v1066 = vld [vmem:[%s710 + $0x588] sm:$0xf]
                  %1067 = vst [vmem:[%s711 + $0x2c4] sm:$0xf] %v1066
                  %v1068 = vld [vmem:[%s710 + $0x590] sm:$0xf]
                  %1069 = vst [vmem:[%s711 + $0x2c8] sm:$0xf] %v1068
                  %v1070 = vld [vmem:[%s710 + $0x598] sm:$0xf]
                  %1071 = vst [vmem:[%s711 + $0x2cc] sm:$0xf] %v1070
                  %v1072 = vld [vmem:[%s710 + $0x5a0] sm:$0xf]
                  %1073 = vst [vmem:[%s711 + $0x2d0] sm:$0xf] %v1072
                  %v1074 = vld [vmem:[%s710 + $0x5a8] sm:$0xf]
                  %1075 = vst [vmem:[%s711 + $0x2d4] sm:$0xf] %v1074
                  %v1076 = vld [vmem:[%s710 + $0x5b0] sm:$0xf]
                  %1077 = vst [vmem:[%s711 + $0x2d8] sm:$0xf] %v1076
                  %v1078 = vld [vmem:[%s710 + $0x5b8] sm:$0xf]
                  %1079 = vst [vmem:[%s711 + $0x2dc] sm:$0xf] %v1078
                  %v1080 = vld [vmem:[%s710 + $0x5c0] sm:$0xf]
                  %1081 = vst [vmem:[%s711 + $0x2e0] sm:$0xf] %v1080
                  %v1082 = vld [vmem:[%s710 + $0x5c8] sm:$0xf]
                  %1083 = vst [vmem:[%s711 + $0x2e4] sm:$0xf] %v1082
                  %v1084 = vld [vmem:[%s710 + $0x5d0] sm:$0xf]
                  %1085 = vst [vmem:[%s711 + $0x2e8] sm:$0xf] %v1084
                  %v1086 = vld [vmem:[%s710 + $0x5d8] sm:$0xf]
                  %1087 = vst [vmem:[%s711 + $0x2ec] sm:$0xf] %v1086
                  %v1088 = vld [vmem:[%s710 + $0x5e0] sm:$0xf]
                  %1089 = vst [vmem:[%s711 + $0x2f0] sm:$0xf] %v1088
                  %v1090 = vld [vmem:[%s710 + $0x5e8] sm:$0xf]
                  %1091 = vst [vmem:[%s711 + $0x2f4] sm:$0xf] %v1090
                  %v1092 = vld [vmem:[%s710 + $0x5f0] sm:$0xf]
                  %1093 = vst [vmem:[%s711 + $0x2f8] sm:$0xf] %v1092
                  %v1094 = vld [vmem:[%s710 + $0x5f8] sm:$0xf]
                  %1095 = vst [vmem:[%s711 + $0x2fc] sm:$0xf] %v1094
                  %v1096 = vld [vmem:[%s710 + $0x600] sm:$0xf]
                  %1097 = vst [vmem:[%s711 + $0x300] sm:$0xf] %v1096
                  %v1098 = vld [vmem:[%s710 + $0x608] sm:$0xf]
                  %1099 = vst [vmem:[%s711 + $0x304] sm:$0xf] %v1098
                  %v1100 = vld [vmem:[%s710 + $0x610] sm:$0xf]
                  %1101 = vst [vmem:[%s711 + $0x308] sm:$0xf] %v1100
                  %v1102 = vld [vmem:[%s710 + $0x618] sm:$0xf]
                  %1103 = vst [vmem:[%s711 + $0x30c] sm:$0xf] %v1102
                  %v1104 = vld [vmem:[%s710 + $0x620] sm:$0xf]
                  %1105 = vst [vmem:[%s711 + $0x310] sm:$0xf] %v1104
                  %v1106 = vld [vmem:[%s710 + $0x628] sm:$0xf]
                  %1107 = vst [vmem:[%s711 + $0x314] sm:$0xf] %v1106
                  %v1108 = vld [vmem:[%s710 + $0x630] sm:$0xf]
                  %1109 = vst [vmem:[%s711 + $0x318] sm:$0xf] %v1108
                  %v1110 = vld [vmem:[%s710 + $0x638] sm:$0xf]
                  %1111 = vst [vmem:[%s711 + $0x31c] sm:$0xf] %v1110
                  %v1112 = vld [vmem:[%s710 + $0x640] sm:$0xf]
                  %1113 = vst [vmem:[%s711 + $0x320] sm:$0xf] %v1112
                  %v1114 = vld [vmem:[%s710 + $0x648] sm:$0xf]
                  %1115 = vst [vmem:[%s711 + $0x324] sm:$0xf] %v1114
                  %v1116 = vld [vmem:[%s710 + $0x650] sm:$0xf]
                  %1117 = vst [vmem:[%s711 + $0x328] sm:$0xf] %v1116
                  %v1118 = vld [vmem:[%s710 + $0x658] sm:$0xf]
                  %1119 = vst [vmem:[%s711 + $0x32c] sm:$0xf] %v1118
                  %v1120 = vld [vmem:[%s710 + $0x660] sm:$0xf]
                  %1121 = vst [vmem:[%s711 + $0x330] sm:$0xf] %v1120
                  %v1122 = vld [vmem:[%s710 + $0x668] sm:$0xf]
                  %1123 = vst [vmem:[%s711 + $0x334] sm:$0xf] %v1122
                  %v1124 = vld [vmem:[%s710 + $0x670] sm:$0xf]
                  %1125 = vst [vmem:[%s711 + $0x338] sm:$0xf] %v1124
                  %v1126 = vld [vmem:[%s710 + $0x678] sm:$0xf]
                  %1127 = vst [vmem:[%s711 + $0x33c] sm:$0xf] %v1126
                  %v1128 = vld [vmem:[%s710 + $0x680] sm:$0xf]
                  %1129 = vst [vmem:[%s711 + $0x340] sm:$0xf] %v1128
                  %v1130 = vld [vmem:[%s710 + $0x688] sm:$0xf]
                  %1131 = vst [vmem:[%s711 + $0x344] sm:$0xf] %v1130
                  %v1132 = vld [vmem:[%s710 + $0x690] sm:$0xf]
                  %1133 = vst [vmem:[%s711 + $0x348] sm:$0xf] %v1132
                  %v1134 = vld [vmem:[%s710 + $0x698] sm:$0xf]
                  %1135 = vst [vmem:[%s711 + $0x34c] sm:$0xf] %v1134
                  %v1136 = vld [vmem:[%s710 + $0x6a0] sm:$0xf]
                  %1137 = vst [vmem:[%s711 + $0x350] sm:$0xf] %v1136
                  %v1138 = vld [vmem:[%s710 + $0x6a8] sm:$0xf]
                  %1139 = vst [vmem:[%s711 + $0x354] sm:$0xf] %v1138
                  %v1140 = vld [vmem:[%s710 + $0x6b0] sm:$0xf]
                  %1141 = vst [vmem:[%s711 + $0x358] sm:$0xf] %v1140
                  %v1142 = vld [vmem:[%s710 + $0x6b8] sm:$0xf]
                  %1143 = vst [vmem:[%s711 + $0x35c] sm:$0xf] %v1142
                  %v1144 = vld [vmem:[%s710 + $0x6c0] sm:$0xf]
                  %1145 = vst [vmem:[%s711 + $0x360] sm:$0xf] %v1144
                  %v1146 = vld [vmem:[%s710 + $0x6c8] sm:$0xf]
                  %1147 = vst [vmem:[%s711 + $0x364] sm:$0xf] %v1146
                  %v1148 = vld [vmem:[%s710 + $0x6d0] sm:$0xf]
                  %1149 = vst [vmem:[%s711 + $0x368] sm:$0xf] %v1148
                  %v1150 = vld [vmem:[%s710 + $0x6d8] sm:$0xf]
                  %1151 = vst [vmem:[%s711 + $0x36c] sm:$0xf] %v1150
                  %v1152 = vld [vmem:[%s710 + $0x6e0] sm:$0xf]
                  %1153 = vst [vmem:[%s711 + $0x370] sm:$0xf] %v1152
                  %v1154 = vld [vmem:[%s710 + $0x6e8] sm:$0xf]
                  %1155 = vst [vmem:[%s711 + $0x374] sm:$0xf] %v1154
                  %v1156 = vld [vmem:[%s710 + $0x6f0] sm:$0xf]
                  %1157 = vst [vmem:[%s711 + $0x378] sm:$0xf] %v1156
                  %v1158 = vld [vmem:[%s710 + $0x6f8] sm:$0xf]
                  %1159 = vst [vmem:[%s711 + $0x37c] sm:$0xf] %v1158
                  %v1160 = vld [vmem:[%s710 + $0x700] sm:$0xf]
                  %1161 = vst [vmem:[%s711 + $0x380] sm:$0xf] %v1160
                  %v1162 = vld [vmem:[%s710 + $0x708] sm:$0xf]
                  %1163 = vst [vmem:[%s711 + $0x384] sm:$0xf] %v1162
                  %v1164 = vld [vmem:[%s710 + $0x710] sm:$0xf]
                  %1165 = vst [vmem:[%s711 + $0x388] sm:$0xf] %v1164
                  %v1166 = vld [vmem:[%s710 + $0x718] sm:$0xf]
                  %1167 = vst [vmem:[%s711 + $0x38c] sm:$0xf] %v1166
                  %v1168 = vld [vmem:[%s710 + $0x720] sm:$0xf]
                  %1169 = vst [vmem:[%s711 + $0x390] sm:$0xf] %v1168
                  %v1170 = vld [vmem:[%s710 + $0x728] sm:$0xf]
                  %1171 = vst [vmem:[%s711 + $0x394] sm:$0xf] %v1170
                  %v1172 = vld [vmem:[%s710 + $0x730] sm:$0xf]
                  %1173 = vst [vmem:[%s711 + $0x398] sm:$0xf] %v1172
                  %v1174 = vld [vmem:[%s710 + $0x738] sm:$0xf]
                  %1175 = vst [vmem:[%s711 + $0x39c] sm:$0xf] %v1174
                  %v1176 = vld [vmem:[%s710 + $0x740] sm:$0xf]
                  %1177 = vst [vmem:[%s711 + $0x3a0] sm:$0xf] %v1176
                  %v1178 = vld [vmem:[%s710 + $0x748] sm:$0xf]
                  %1179 = vst [vmem:[%s711 + $0x3a4] sm:$0xf] %v1178
                  %v1180 = vld [vmem:[%s710 + $0x750] sm:$0xf]
                  %1181 = vst [vmem:[%s711 + $0x3a8] sm:$0xf] %v1180
                  %v1182 = vld [vmem:[%s710 + $0x758] sm:$0xf]
                  %1183 = vst [vmem:[%s711 + $0x3ac] sm:$0xf] %v1182
                  %v1184 = vld [vmem:[%s710 + $0x760] sm:$0xf]
                  %1185 = vst [vmem:[%s711 + $0x3b0] sm:$0xf] %v1184
                  %v1186 = vld [vmem:[%s710 + $0x768] sm:$0xf]
                  %1187 = vst [vmem:[%s711 + $0x3b4] sm:$0xf] %v1186
                  %v1188 = vld [vmem:[%s710 + $0x770] sm:$0xf]
                  %1189 = vst [vmem:[%s711 + $0x3b8] sm:$0xf] %v1188
                  %v1190 = vld [vmem:[%s710 + $0x778] sm:$0xf]
                  %1191 = vst [vmem:[%s711 + $0x3bc] sm:$0xf] %v1190
                  %v1192 = vld [vmem:[%s710 + $0x780] sm:$0xf]
                  %1193 = vst [vmem:[%s711 + $0x3c0] sm:$0xf] %v1192
                  %v1194 = vld [vmem:[%s710 + $0x788] sm:$0xf]
                  %1195 = vst [vmem:[%s711 + $0x3c4] sm:$0xf] %v1194
                  %v1196 = vld [vmem:[%s710 + $0x790] sm:$0xf]
                  %1197 = vst [vmem:[%s711 + $0x3c8] sm:$0xf] %v1196
                  %v1198 = vld [vmem:[%s710 + $0x798] sm:$0xf]
                  %1199 = vst [vmem:[%s711 + $0x3cc] sm:$0xf] %v1198
                  %v1200 = vld [vmem:[%s710 + $0x7a0] sm:$0xf]
                  %1201 = vst [vmem:[%s711 + $0x3d0] sm:$0xf] %v1200
                  %v1202 = vld [vmem:[%s710 + $0x7a8] sm:$0xf]
                  %1203 = vst [vmem:[%s711 + $0x3d4] sm:$0xf] %v1202
                  %v1204 = vld [vmem:[%s710 + $0x7b0] sm:$0xf]
                  %1205 = vst [vmem:[%s711 + $0x3d8] sm:$0xf] %v1204
                  %v1206 = vld [vmem:[%s710 + $0x7b8] sm:$0xf]
                  %1207 = vst [vmem:[%s711 + $0x3dc] sm:$0xf] %v1206
                  %v1208 = vld [vmem:[%s710 + $0x7c0] sm:$0xf]
                  %1209 = vst [vmem:[%s711 + $0x3e0] sm:$0xf] %v1208
                  %v1210 = vld [vmem:[%s710 + $0x7c8] sm:$0xf]
                  %1211 = vst [vmem:[%s711 + $0x3e4] sm:$0xf] %v1210
                  %v1212 = vld [vmem:[%s710 + $0x7d0] sm:$0xf]
                  %1213 = vst [vmem:[%s711 + $0x3e8] sm:$0xf] %v1212
                  %v1214 = vld [vmem:[%s710 + $0x7d8] sm:$0xf]
                  %1215 = vst [vmem:[%s711 + $0x3ec] sm:$0xf] %v1214
                  %v1216 = vld [vmem:[%s710 + $0x7e0] sm:$0xf]
                  %1217 = vst [vmem:[%s711 + $0x3f0] sm:$0xf] %v1216
                  %v1218 = vld [vmem:[%s710 + $0x7e8] sm:$0xf]
                  %1219 = vst [vmem:[%s711 + $0x3f4] sm:$0xf] %v1218
                  %v1220 = vld [vmem:[%s710 + $0x7f0] sm:$0xf]
                  %1221 = vst [vmem:[%s711 + $0x3f8] sm:$0xf] %v1220
                  %v1222 = vld [vmem:[%s710 + $0x7f8] sm:$0xf]
                  %1223 = vst [vmem:[%s711 + $0x3fc] sm:$0xf] %v1222
                $region59: #{cvae_forward.7} parent=46 // loop_footer
                  %s709 = sadd.s32 1, %s705
                $region60: #{cvae_forward.7} parent=46 // loop_footer_branch
                  %704 = sbr.rel target = $region56
                $region61: #{cvae_forward.7} parent=46 // loop_exit
                  _
              $region47: #{cvae_forward.7} parent=31 // pred_fallthru
                _
            $region32: #{cvae_forward.7} parent=27 // pred_fallthru
              _
            // Predicated region
            $region33: #{cvae_forward.7} parent=27 // pred_check
              _
            $region34: #{cvae_forward.7} parent=27 // pred_check_branch
              %171 = sbr.rel (0) target = $region36
            $region35: #{cvae_forward.7} parent=27 // pred_region
              loop: start=0, step=1, limit=1
              $region37: #{cvae_forward.7} parent=35 // loop_pre_header
                _
              $region38: #{cvae_forward.7} parent=35 // loop_header
                %s174 = sphi 0, %s178
                %p175 = scmp.ge.s32.totalorder %s174, 1
                %s179 = sphi %s165, %s165
                %s180 = sphi %s160, %s160
              $region39: #{cvae_forward.7} parent=35 // loop_header_branch
                %177 = sbr.rel (%p175) target = $region43
              $region40: #{cvae_forward.7} parent=35 // loop_body
                %v181 = vld [vmem:[%s179] sm:$0xf]
                %182 = vst [vmem:[%s180] sm:$0xf] %v181
                %v183 = vld [vmem:[%s179 + $0x8] sm:$0xf]
                %184 = vst [vmem:[%s180 + $0x4] sm:$0xf] %v183
                %v185 = vld [vmem:[%s179 + $0x10] sm:$0xf]
                %186 = vst [vmem:[%s180 + $0x8] sm:$0xf] %v185
                %v187 = vld [vmem:[%s179 + $0x18] sm:$0xf]
                %188 = vst [vmem:[%s180 + $0xc] sm:$0xf] %v187
                %v189 = vld [vmem:[%s179 + $0x20] sm:$0xf]
                %190 = vst [vmem:[%s180 + $0x10] sm:$0xf] %v189
                %v191 = vld [vmem:[%s179 + $0x28] sm:$0xf]
                %192 = vst [vmem:[%s180 + $0x14] sm:$0xf] %v191
                %v193 = vld [vmem:[%s179 + $0x30] sm:$0xf]
                %194 = vst [vmem:[%s180 + $0x18] sm:$0xf] %v193
                %v195 = vld [vmem:[%s179 + $0x38] sm:$0xf]
                %196 = vst [vmem:[%s180 + $0x1c] sm:$0xf] %v195
                %v197 = vld [vmem:[%s179 + $0x40] sm:$0xf]
                %198 = vst [vmem:[%s180 + $0x20] sm:$0xf] %v197
                %v199 = vld [vmem:[%s179 + $0x48] sm:$0xf]
                %200 = vst [vmem:[%s180 + $0x24] sm:$0xf] %v199
                %v201 = vld [vmem:[%s179 + $0x50] sm:$0xf]
                %202 = vst [vmem:[%s180 + $0x28] sm:$0xf] %v201
                %v203 = vld [vmem:[%s179 + $0x58] sm:$0xf]
                %204 = vst [vmem:[%s180 + $0x2c] sm:$0xf] %v203
                %v205 = vld [vmem:[%s179 + $0x60] sm:$0xf]
                %206 = vst [vmem:[%s180 + $0x30] sm:$0xf] %v205
                %v207 = vld [vmem:[%s179 + $0x68] sm:$0xf]
                %208 = vst [vmem:[%s180 + $0x34] sm:$0xf] %v207
                %v209 = vld [vmem:[%s179 + $0x70] sm:$0xf]
                %210 = vst [vmem:[%s180 + $0x38] sm:$0xf] %v209
                %v211 = vld [vmem:[%s179 + $0x78] sm:$0xf]
                %212 = vst [vmem:[%s180 + $0x3c] sm:$0xf] %v211
                %v213 = vld [vmem:[%s179 + $0x80] sm:$0xf]
                %214 = vst [vmem:[%s180 + $0x40] sm:$0xf] %v213
                %v215 = vld [vmem:[%s179 + $0x88] sm:$0xf]
                %216 = vst [vmem:[%s180 + $0x44] sm:$0xf] %v215
                %v217 = vld [vmem:[%s179 + $0x90] sm:$0xf]
                %218 = vst [vmem:[%s180 + $0x48] sm:$0xf] %v217
                %v219 = vld [vmem:[%s179 + $0x98] sm:$0xf]
                %220 = vst [vmem:[%s180 + $0x4c] sm:$0xf] %v219
                %v221 = vld [vmem:[%s179 + $0xa0] sm:$0xf]
                %222 = vst [vmem:[%s180 + $0x50] sm:$0xf] %v221
                %v223 = vld [vmem:[%s179 + $0xa8] sm:$0xf]
                %224 = vst [vmem:[%s180 + $0x54] sm:$0xf] %v223
                %v225 = vld [vmem:[%s179 + $0xb0] sm:$0xf]
                %226 = vst [vmem:[%s180 + $0x58] sm:$0xf] %v225
                %v227 = vld [vmem:[%s179 + $0xb8] sm:$0xf]
                %228 = vst [vmem:[%s180 + $0x5c] sm:$0xf] %v227
                %v229 = vld [vmem:[%s179 + $0xc0] sm:$0xf]
                %230 = vst [vmem:[%s180 + $0x60] sm:$0xf] %v229
                %v231 = vld [vmem:[%s179 + $0xc8] sm:$0xf]
                %232 = vst [vmem:[%s180 + $0x64] sm:$0xf] %v231
                %v233 = vld [vmem:[%s179 + $0xd0] sm:$0xf]
                %234 = vst [vmem:[%s180 + $0x68] sm:$0xf] %v233
                %v235 = vld [vmem:[%s179 + $0xd8] sm:$0xf]
                %236 = vst [vmem:[%s180 + $0x6c] sm:$0xf] %v235
                %v237 = vld [vmem:[%s179 + $0xe0] sm:$0xf]
                %238 = vst [vmem:[%s180 + $0x70] sm:$0xf] %v237
                %v239 = vld [vmem:[%s179 + $0xe8] sm:$0xf]
                %240 = vst [vmem:[%s180 + $0x74] sm:$0xf] %v239
                %v241 = vld [vmem:[%s179 + $0xf0] sm:$0xf]
                %242 = vst [vmem:[%s180 + $0x78] sm:$0xf] %v241
                %v243 = vld [vmem:[%s179 + $0xf8] sm:$0xf]
                %244 = vst [vmem:[%s180 + $0x7c] sm:$0xf] %v243
                %v245 = vld [vmem:[%s179 + $0x100] sm:$0xf]
                %246 = vst [vmem:[%s180 + $0x80] sm:$0xf] %v245
                %v247 = vld [vmem:[%s179 + $0x108] sm:$0xf]
                %248 = vst [vmem:[%s180 + $0x84] sm:$0xf] %v247
                %v249 = vld [vmem:[%s179 + $0x110] sm:$0xf]
                %250 = vst [vmem:[%s180 + $0x88] sm:$0xf] %v249
                %v251 = vld [vmem:[%s179 + $0x118] sm:$0xf]
                %252 = vst [vmem:[%s180 + $0x8c] sm:$0xf] %v251
                %v253 = vld [vmem:[%s179 + $0x120] sm:$0xf]
                %254 = vst [vmem:[%s180 + $0x90] sm:$0xf] %v253
                %v255 = vld [vmem:[%s179 + $0x128] sm:$0xf]
                %256 = vst [vmem:[%s180 + $0x94] sm:$0xf] %v255
                %v257 = vld [vmem:[%s179 + $0x130] sm:$0xf]
                %258 = vst [vmem:[%s180 + $0x98] sm:$0xf] %v257
                %v259 = vld [vmem:[%s179 + $0x138] sm:$0xf]
                %260 = vst [vmem:[%s180 + $0x9c] sm:$0xf] %v259
                %v261 = vld [vmem:[%s179 + $0x140] sm:$0xf]
                %262 = vst [vmem:[%s180 + $0xa0] sm:$0xf] %v261
                %v263 = vld [vmem:[%s179 + $0x148] sm:$0xf]
                %264 = vst [vmem:[%s180 + $0xa4] sm:$0xf] %v263
                %v265 = vld [vmem:[%s179 + $0x150] sm:$0xf]
                %266 = vst [vmem:[%s180 + $0xa8] sm:$0xf] %v265
                %v267 = vld [vmem:[%s179 + $0x158] sm:$0xf]
                %268 = vst [vmem:[%s180 + $0xac] sm:$0xf] %v267
                %v269 = vld [vmem:[%s179 + $0x160] sm:$0xf]
                %270 = vst [vmem:[%s180 + $0xb0] sm:$0xf] %v269
                %v271 = vld [vmem:[%s179 + $0x168] sm:$0xf]
                %272 = vst [vmem:[%s180 + $0xb4] sm:$0xf] %v271
                %v273 = vld [vmem:[%s179 + $0x170] sm:$0xf]
                %274 = vst [vmem:[%s180 + $0xb8] sm:$0xf] %v273
                %v275 = vld [vmem:[%s179 + $0x178] sm:$0xf]
                %276 = vst [vmem:[%s180 + $0xbc] sm:$0xf] %v275
                %v277 = vld [vmem:[%s179 + $0x180] sm:$0xf]
                %278 = vst [vmem:[%s180 + $0xc0] sm:$0xf] %v277
                %v279 = vld [vmem:[%s179 + $0x188] sm:$0xf]
                %280 = vst [vmem:[%s180 + $0xc4] sm:$0xf] %v279
                %v281 = vld [vmem:[%s179 + $0x190] sm:$0xf]
                %282 = vst [vmem:[%s180 + $0xc8] sm:$0xf] %v281
                %v283 = vld [vmem:[%s179 + $0x198] sm:$0xf]
                %284 = vst [vmem:[%s180 + $0xcc] sm:$0xf] %v283
                %v285 = vld [vmem:[%s179 + $0x1a0] sm:$0xf]
                %286 = vst [vmem:[%s180 + $0xd0] sm:$0xf] %v285
                %v287 = vld [vmem:[%s179 + $0x1a8] sm:$0xf]
                %288 = vst [vmem:[%s180 + $0xd4] sm:$0xf] %v287
                %v289 = vld [vmem:[%s179 + $0x1b0] sm:$0xf]
                %290 = vst [vmem:[%s180 + $0xd8] sm:$0xf] %v289
                %v291 = vld [vmem:[%s179 + $0x1b8] sm:$0xf]
                %292 = vst [vmem:[%s180 + $0xdc] sm:$0xf] %v291
                %v293 = vld [vmem:[%s179 + $0x1c0] sm:$0xf]
                %294 = vst [vmem:[%s180 + $0xe0] sm:$0xf] %v293
                %v295 = vld [vmem:[%s179 + $0x1c8] sm:$0xf]
                %296 = vst [vmem:[%s180 + $0xe4] sm:$0xf] %v295
                %v297 = vld [vmem:[%s179 + $0x1d0] sm:$0xf]
                %298 = vst [vmem:[%s180 + $0xe8] sm:$0xf] %v297
                %v299 = vld [vmem:[%s179 + $0x1d8] sm:$0xf]
                %300 = vst [vmem:[%s180 + $0xec] sm:$0xf] %v299
                %v301 = vld [vmem:[%s179 + $0x1e0] sm:$0xf]
                %302 = vst [vmem:[%s180 + $0xf0] sm:$0xf] %v301
                %v303 = vld [vmem:[%s179 + $0x1e8] sm:$0xf]
                %304 = vst [vmem:[%s180 + $0xf4] sm:$0xf] %v303
                %v305 = vld [vmem:[%s179 + $0x1f0] sm:$0xf]
                %306 = vst [vmem:[%s180 + $0xf8] sm:$0xf] %v305
                %v307 = vld [vmem:[%s179 + $0x1f8] sm:$0xf]
                %308 = vst [vmem:[%s180 + $0xfc] sm:$0xf] %v307
                %v309 = vld [vmem:[%s179 + $0x200] sm:$0xf]
                %310 = vst [vmem:[%s180 + $0x100] sm:$0xf] %v309
                %v311 = vld [vmem:[%s179 + $0x208] sm:$0xf]
                %312 = vst [vmem:[%s180 + $0x104] sm:$0xf] %v311
                %v313 = vld [vmem:[%s179 + $0x210] sm:$0xf]
                %314 = vst [vmem:[%s180 + $0x108] sm:$0xf] %v313
                %v315 = vld [vmem:[%s179 + $0x218] sm:$0xf]
                %316 = vst [vmem:[%s180 + $0x10c] sm:$0xf] %v315
                %v317 = vld [vmem:[%s179 + $0x220] sm:$0xf]
                %318 = vst [vmem:[%s180 + $0x110] sm:$0xf] %v317
                %v319 = vld [vmem:[%s179 + $0x228] sm:$0xf]
                %320 = vst [vmem:[%s180 + $0x114] sm:$0xf] %v319
                %v321 = vld [vmem:[%s179 + $0x230] sm:$0xf]
                %322 = vst [vmem:[%s180 + $0x118] sm:$0xf] %v321
                %v323 = vld [vmem:[%s179 + $0x238] sm:$0xf]
                %324 = vst [vmem:[%s180 + $0x11c] sm:$0xf] %v323
                %v325 = vld [vmem:[%s179 + $0x240] sm:$0xf]
                %326 = vst [vmem:[%s180 + $0x120] sm:$0xf] %v325
                %v327 = vld [vmem:[%s179 + $0x248] sm:$0xf]
                %328 = vst [vmem:[%s180 + $0x124] sm:$0xf] %v327
                %v329 = vld [vmem:[%s179 + $0x250] sm:$0xf]
                %330 = vst [vmem:[%s180 + $0x128] sm:$0xf] %v329
                %v331 = vld [vmem:[%s179 + $0x258] sm:$0xf]
                %332 = vst [vmem:[%s180 + $0x12c] sm:$0xf] %v331
                %v333 = vld [vmem:[%s179 + $0x260] sm:$0xf]
                %334 = vst [vmem:[%s180 + $0x130] sm:$0xf] %v333
                %v335 = vld [vmem:[%s179 + $0x268] sm:$0xf]
                %336 = vst [vmem:[%s180 + $0x134] sm:$0xf] %v335
                %v337 = vld [vmem:[%s179 + $0x270] sm:$0xf]
                %338 = vst [vmem:[%s180 + $0x138] sm:$0xf] %v337
                %v339 = vld [vmem:[%s179 + $0x278] sm:$0xf]
                %340 = vst [vmem:[%s180 + $0x13c] sm:$0xf] %v339
                %v341 = vld [vmem:[%s179 + $0x280] sm:$0xf]
                %342 = vst [vmem:[%s180 + $0x140] sm:$0xf] %v341
                %v343 = vld [vmem:[%s179 + $0x288] sm:$0xf]
                %344 = vst [vmem:[%s180 + $0x144] sm:$0xf] %v343
                %v345 = vld [vmem:[%s179 + $0x290] sm:$0xf]
                %346 = vst [vmem:[%s180 + $0x148] sm:$0xf] %v345
                %v347 = vld [vmem:[%s179 + $0x298] sm:$0xf]
                %348 = vst [vmem:[%s180 + $0x14c] sm:$0xf] %v347
                %v349 = vld [vmem:[%s179 + $0x2a0] sm:$0xf]
                %350 = vst [vmem:[%s180 + $0x150] sm:$0xf] %v349
                %v351 = vld [vmem:[%s179 + $0x2a8] sm:$0xf]
                %352 = vst [vmem:[%s180 + $0x154] sm:$0xf] %v351
                %v353 = vld [vmem:[%s179 + $0x2b0] sm:$0xf]
                %354 = vst [vmem:[%s180 + $0x158] sm:$0xf] %v353
                %v355 = vld [vmem:[%s179 + $0x2b8] sm:$0xf]
                %356 = vst [vmem:[%s180 + $0x15c] sm:$0xf] %v355
                %v357 = vld [vmem:[%s179 + $0x2c0] sm:$0xf]
                %358 = vst [vmem:[%s180 + $0x160] sm:$0xf] %v357
                %v359 = vld [vmem:[%s179 + $0x2c8] sm:$0xf]
                %360 = vst [vmem:[%s180 + $0x164] sm:$0xf] %v359
                %v361 = vld [vmem:[%s179 + $0x2d0] sm:$0xf]
                %362 = vst [vmem:[%s180 + $0x168] sm:$0xf] %v361
                %v363 = vld [vmem:[%s179 + $0x2d8] sm:$0xf]
                %364 = vst [vmem:[%s180 + $0x16c] sm:$0xf] %v363
                %v365 = vld [vmem:[%s179 + $0x2e0] sm:$0xf]
                %366 = vst [vmem:[%s180 + $0x170] sm:$0xf] %v365
                %v367 = vld [vmem:[%s179 + $0x2e8] sm:$0xf]
                %368 = vst [vmem:[%s180 + $0x174] sm:$0xf] %v367
                %v369 = vld [vmem:[%s179 + $0x2f0] sm:$0xf]
                %370 = vst [vmem:[%s180 + $0x178] sm:$0xf] %v369
                %v371 = vld [vmem:[%s179 + $0x2f8] sm:$0xf]
                %372 = vst [vmem:[%s180 + $0x17c] sm:$0xf] %v371
                %v373 = vld [vmem:[%s179 + $0x300] sm:$0xf]
                %374 = vst [vmem:[%s180 + $0x180] sm:$0xf] %v373
                %v375 = vld [vmem:[%s179 + $0x308] sm:$0xf]
                %376 = vst [vmem:[%s180 + $0x184] sm:$0xf] %v375
                %v377 = vld [vmem:[%s179 + $0x310] sm:$0xf]
                %378 = vst [vmem:[%s180 + $0x188] sm:$0xf] %v377
                %v379 = vld [vmem:[%s179 + $0x318] sm:$0xf]
                %380 = vst [vmem:[%s180 + $0x18c] sm:$0xf] %v379
                %v381 = vld [vmem:[%s179 + $0x320] sm:$0xf]
                %382 = vst [vmem:[%s180 + $0x190] sm:$0xf] %v381
                %v383 = vld [vmem:[%s179 + $0x328] sm:$0xf]
                %384 = vst [vmem:[%s180 + $0x194] sm:$0xf] %v383
                %v385 = vld [vmem:[%s179 + $0x330] sm:$0xf]
                %386 = vst [vmem:[%s180 + $0x198] sm:$0xf] %v385
                %v387 = vld [vmem:[%s179 + $0x338] sm:$0xf]
                %388 = vst [vmem:[%s180 + $0x19c] sm:$0xf] %v387
                %v389 = vld [vmem:[%s179 + $0x340] sm:$0xf]
                %390 = vst [vmem:[%s180 + $0x1a0] sm:$0xf] %v389
                %v391 = vld [vmem:[%s179 + $0x348] sm:$0xf]
                %392 = vst [vmem:[%s180 + $0x1a4] sm:$0xf] %v391
                %v393 = vld [vmem:[%s179 + $0x350] sm:$0xf]
                %394 = vst [vmem:[%s180 + $0x1a8] sm:$0xf] %v393
                %v395 = vld [vmem:[%s179 + $0x358] sm:$0xf]
                %396 = vst [vmem:[%s180 + $0x1ac] sm:$0xf] %v395
                %v397 = vld [vmem:[%s179 + $0x360] sm:$0xf]
                %398 = vst [vmem:[%s180 + $0x1b0] sm:$0xf] %v397
                %v399 = vld [vmem:[%s179 + $0x368] sm:$0xf]
                %400 = vst [vmem:[%s180 + $0x1b4] sm:$0xf] %v399
                %v401 = vld [vmem:[%s179 + $0x370] sm:$0xf]
                %402 = vst [vmem:[%s180 + $0x1b8] sm:$0xf] %v401
                %v403 = vld [vmem:[%s179 + $0x378] sm:$0xf]
                %404 = vst [vmem:[%s180 + $0x1bc] sm:$0xf] %v403
                %v405 = vld [vmem:[%s179 + $0x380] sm:$0xf]
                %406 = vst [vmem:[%s180 + $0x1c0] sm:$0xf] %v405
                %v407 = vld [vmem:[%s179 + $0x388] sm:$0xf]
                %408 = vst [vmem:[%s180 + $0x1c4] sm:$0xf] %v407
                %v409 = vld [vmem:[%s179 + $0x390] sm:$0xf]
                %410 = vst [vmem:[%s180 + $0x1c8] sm:$0xf] %v409
                %v411 = vld [vmem:[%s179 + $0x398] sm:$0xf]
                %412 = vst [vmem:[%s180 + $0x1cc] sm:$0xf] %v411
                %v413 = vld [vmem:[%s179 + $0x3a0] sm:$0xf]
                %414 = vst [vmem:[%s180 + $0x1d0] sm:$0xf] %v413
                %v415 = vld [vmem:[%s179 + $0x3a8] sm:$0xf]
                %416 = vst [vmem:[%s180 + $0x1d4] sm:$0xf] %v415
                %v417 = vld [vmem:[%s179 + $0x3b0] sm:$0xf]
                %418 = vst [vmem:[%s180 + $0x1d8] sm:$0xf] %v417
                %v419 = vld [vmem:[%s179 + $0x3b8] sm:$0xf]
                %420 = vst [vmem:[%s180 + $0x1dc] sm:$0xf] %v419
                %v421 = vld [vmem:[%s179 + $0x3c0] sm:$0xf]
                %422 = vst [vmem:[%s180 + $0x1e0] sm:$0xf] %v421
                %v423 = vld [vmem:[%s179 + $0x3c8] sm:$0xf]
                %424 = vst [vmem:[%s180 + $0x1e4] sm:$0xf] %v423
                %v425 = vld [vmem:[%s179 + $0x3d0] sm:$0xf]
                %426 = vst [vmem:[%s180 + $0x1e8] sm:$0xf] %v425
                %v427 = vld [vmem:[%s179 + $0x3d8] sm:$0xf]
                %428 = vst [vmem:[%s180 + $0x1ec] sm:$0xf] %v427
                %v429 = vld [vmem:[%s179 + $0x3e0] sm:$0xf]
                %430 = vst [vmem:[%s180 + $0x1f0] sm:$0xf] %v429
                %v431 = vld [vmem:[%s179 + $0x3e8] sm:$0xf]
                %432 = vst [vmem:[%s180 + $0x1f4] sm:$0xf] %v431
                %v433 = vld [vmem:[%s179 + $0x3f0] sm:$0xf]
                %434 = vst [vmem:[%s180 + $0x1f8] sm:$0xf] %v433
                %v435 = vld [vmem:[%s179 + $0x3f8] sm:$0xf]
                %436 = vst [vmem:[%s180 + $0x1fc] sm:$0xf] %v435
                %v437 = vld [vmem:[%s179 + $0x400] sm:$0xf]
                %438 = vst [vmem:[%s180 + $0x200] sm:$0xf] %v437
                %v439 = vld [vmem:[%s179 + $0x408] sm:$0xf]
                %440 = vst [vmem:[%s180 + $0x204] sm:$0xf] %v439
                %v441 = vld [vmem:[%s179 + $0x410] sm:$0xf]
                %442 = vst [vmem:[%s180 + $0x208] sm:$0xf] %v441
                %v443 = vld [vmem:[%s179 + $0x418] sm:$0xf]
                %444 = vst [vmem:[%s180 + $0x20c] sm:$0xf] %v443
                %v445 = vld [vmem:[%s179 + $0x420] sm:$0xf]
                %446 = vst [vmem:[%s180 + $0x210] sm:$0xf] %v445
                %v447 = vld [vmem:[%s179 + $0x428] sm:$0xf]
                %448 = vst [vmem:[%s180 + $0x214] sm:$0xf] %v447
                %v449 = vld [vmem:[%s179 + $0x430] sm:$0xf]
                %450 = vst [vmem:[%s180 + $0x218] sm:$0xf] %v449
                %v451 = vld [vmem:[%s179 + $0x438] sm:$0xf]
                %452 = vst [vmem:[%s180 + $0x21c] sm:$0xf] %v451
                %v453 = vld [vmem:[%s179 + $0x440] sm:$0xf]
                %454 = vst [vmem:[%s180 + $0x220] sm:$0xf] %v453
                %v455 = vld [vmem:[%s179 + $0x448] sm:$0xf]
                %456 = vst [vmem:[%s180 + $0x224] sm:$0xf] %v455
                %v457 = vld [vmem:[%s179 + $0x450] sm:$0xf]
                %458 = vst [vmem:[%s180 + $0x228] sm:$0xf] %v457
                %v459 = vld [vmem:[%s179 + $0x458] sm:$0xf]
                %460 = vst [vmem:[%s180 + $0x22c] sm:$0xf] %v459
                %v461 = vld [vmem:[%s179 + $0x460] sm:$0xf]
                %462 = vst [vmem:[%s180 + $0x230] sm:$0xf] %v461
                %v463 = vld [vmem:[%s179 + $0x468] sm:$0xf]
                %464 = vst [vmem:[%s180 + $0x234] sm:$0xf] %v463
                %v465 = vld [vmem:[%s179 + $0x470] sm:$0xf]
                %466 = vst [vmem:[%s180 + $0x238] sm:$0xf] %v465
                %v467 = vld [vmem:[%s179 + $0x478] sm:$0xf]
                %468 = vst [vmem:[%s180 + $0x23c] sm:$0xf] %v467
                %v469 = vld [vmem:[%s179 + $0x480] sm:$0xf]
                %470 = vst [vmem:[%s180 + $0x240] sm:$0xf] %v469
                %v471 = vld [vmem:[%s179 + $0x488] sm:$0xf]
                %472 = vst [vmem:[%s180 + $0x244] sm:$0xf] %v471
                %v473 = vld [vmem:[%s179 + $0x490] sm:$0xf]
                %474 = vst [vmem:[%s180 + $0x248] sm:$0xf] %v473
                %v475 = vld [vmem:[%s179 + $0x498] sm:$0xf]
                %476 = vst [vmem:[%s180 + $0x24c] sm:$0xf] %v475
                %v477 = vld [vmem:[%s179 + $0x4a0] sm:$0xf]
                %478 = vst [vmem:[%s180 + $0x250] sm:$0xf] %v477
                %v479 = vld [vmem:[%s179 + $0x4a8] sm:$0xf]
                %480 = vst [vmem:[%s180 + $0x254] sm:$0xf] %v479
                %v481 = vld [vmem:[%s179 + $0x4b0] sm:$0xf]
                %482 = vst [vmem:[%s180 + $0x258] sm:$0xf] %v481
                %v483 = vld [vmem:[%s179 + $0x4b8] sm:$0xf]
                %484 = vst [vmem:[%s180 + $0x25c] sm:$0xf] %v483
                %v485 = vld [vmem:[%s179 + $0x4c0] sm:$0xf]
                %486 = vst [vmem:[%s180 + $0x260] sm:$0xf] %v485
                %v487 = vld [vmem:[%s179 + $0x4c8] sm:$0xf]
                %488 = vst [vmem:[%s180 + $0x264] sm:$0xf] %v487
                %v489 = vld [vmem:[%s179 + $0x4d0] sm:$0xf]
                %490 = vst [vmem:[%s180 + $0x268] sm:$0xf] %v489
                %v491 = vld [vmem:[%s179 + $0x4d8] sm:$0xf]
                %492 = vst [vmem:[%s180 + $0x26c] sm:$0xf] %v491
                %v493 = vld [vmem:[%s179 + $0x4e0] sm:$0xf]
                %494 = vst [vmem:[%s180 + $0x270] sm:$0xf] %v493
                %v495 = vld [vmem:[%s179 + $0x4e8] sm:$0xf]
                %496 = vst [vmem:[%s180 + $0x274] sm:$0xf] %v495
                %v497 = vld [vmem:[%s179 + $0x4f0] sm:$0xf]
                %498 = vst [vmem:[%s180 + $0x278] sm:$0xf] %v497
                %v499 = vld [vmem:[%s179 + $0x4f8] sm:$0xf]
                %500 = vst [vmem:[%s180 + $0x27c] sm:$0xf] %v499
                %v501 = vld [vmem:[%s179 + $0x500] sm:$0xf]
                %502 = vst [vmem:[%s180 + $0x280] sm:$0xf] %v501
                %v503 = vld [vmem:[%s179 + $0x508] sm:$0xf]
                %504 = vst [vmem:[%s180 + $0x284] sm:$0xf] %v503
                %v505 = vld [vmem:[%s179 + $0x510] sm:$0xf]
                %506 = vst [vmem:[%s180 + $0x288] sm:$0xf] %v505
                %v507 = vld [vmem:[%s179 + $0x518] sm:$0xf]
                %508 = vst [vmem:[%s180 + $0x28c] sm:$0xf] %v507
                %v509 = vld [vmem:[%s179 + $0x520] sm:$0xf]
                %510 = vst [vmem:[%s180 + $0x290] sm:$0xf] %v509
                %v511 = vld [vmem:[%s179 + $0x528] sm:$0xf]
                %512 = vst [vmem:[%s180 + $0x294] sm:$0xf] %v511
                %v513 = vld [vmem:[%s179 + $0x530] sm:$0xf]
                %514 = vst [vmem:[%s180 + $0x298] sm:$0xf] %v513
                %v515 = vld [vmem:[%s179 + $0x538] sm:$0xf]
                %516 = vst [vmem:[%s180 + $0x29c] sm:$0xf] %v515
                %v517 = vld [vmem:[%s179 + $0x540] sm:$0xf]
                %518 = vst [vmem:[%s180 + $0x2a0] sm:$0xf] %v517
                %v519 = vld [vmem:[%s179 + $0x548] sm:$0xf]
                %520 = vst [vmem:[%s180 + $0x2a4] sm:$0xf] %v519
                %v521 = vld [vmem:[%s179 + $0x550] sm:$0xf]
                %522 = vst [vmem:[%s180 + $0x2a8] sm:$0xf] %v521
                %v523 = vld [vmem:[%s179 + $0x558] sm:$0xf]
                %524 = vst [vmem:[%s180 + $0x2ac] sm:$0xf] %v523
                %v525 = vld [vmem:[%s179 + $0x560] sm:$0xf]
                %526 = vst [vmem:[%s180 + $0x2b0] sm:$0xf] %v525
                %v527 = vld [vmem:[%s179 + $0x568] sm:$0xf]
                %528 = vst [vmem:[%s180 + $0x2b4] sm:$0xf] %v527
                %v529 = vld [vmem:[%s179 + $0x570] sm:$0xf]
                %530 = vst [vmem:[%s180 + $0x2b8] sm:$0xf] %v529
                %v531 = vld [vmem:[%s179 + $0x578] sm:$0xf]
                %532 = vst [vmem:[%s180 + $0x2bc] sm:$0xf] %v531
                %v533 = vld [vmem:[%s179 + $0x580] sm:$0xf]
                %534 = vst [vmem:[%s180 + $0x2c0] sm:$0xf] %v533
                %v535 = vld [vmem:[%s179 + $0x588] sm:$0xf]
                %536 = vst [vmem:[%s180 + $0x2c4] sm:$0xf] %v535
                %v537 = vld [vmem:[%s179 + $0x590] sm:$0xf]
                %538 = vst [vmem:[%s180 + $0x2c8] sm:$0xf] %v537
                %v539 = vld [vmem:[%s179 + $0x598] sm:$0xf]
                %540 = vst [vmem:[%s180 + $0x2cc] sm:$0xf] %v539
                %v541 = vld [vmem:[%s179 + $0x5a0] sm:$0xf]
                %542 = vst [vmem:[%s180 + $0x2d0] sm:$0xf] %v541
                %v543 = vld [vmem:[%s179 + $0x5a8] sm:$0xf]
                %544 = vst [vmem:[%s180 + $0x2d4] sm:$0xf] %v543
                %v545 = vld [vmem:[%s179 + $0x5b0] sm:$0xf]
                %546 = vst [vmem:[%s180 + $0x2d8] sm:$0xf] %v545
                %v547 = vld [vmem:[%s179 + $0x5b8] sm:$0xf]
                %548 = vst [vmem:[%s180 + $0x2dc] sm:$0xf] %v547
                %v549 = vld [vmem:[%s179 + $0x5c0] sm:$0xf]
                %550 = vst [vmem:[%s180 + $0x2e0] sm:$0xf] %v549
                %v551 = vld [vmem:[%s179 + $0x5c8] sm:$0xf]
                %552 = vst [vmem:[%s180 + $0x2e4] sm:$0xf] %v551
                %v553 = vld [vmem:[%s179 + $0x5d0] sm:$0xf]
                %554 = vst [vmem:[%s180 + $0x2e8] sm:$0xf] %v553
                %v555 = vld [vmem:[%s179 + $0x5d8] sm:$0xf]
                %556 = vst [vmem:[%s180 + $0x2ec] sm:$0xf] %v555
                %v557 = vld [vmem:[%s179 + $0x5e0] sm:$0xf]
                %558 = vst [vmem:[%s180 + $0x2f0] sm:$0xf] %v557
                %v559 = vld [vmem:[%s179 + $0x5e8] sm:$0xf]
                %560 = vst [vmem:[%s180 + $0x2f4] sm:$0xf] %v559
                %v561 = vld [vmem:[%s179 + $0x5f0] sm:$0xf]
                %562 = vst [vmem:[%s180 + $0x2f8] sm:$0xf] %v561
                %v563 = vld [vmem:[%s179 + $0x5f8] sm:$0xf]
                %564 = vst [vmem:[%s180 + $0x2fc] sm:$0xf] %v563
                %v565 = vld [vmem:[%s179 + $0x600] sm:$0xf]
                %566 = vst [vmem:[%s180 + $0x300] sm:$0xf] %v565
                %v567 = vld [vmem:[%s179 + $0x608] sm:$0xf]
                %568 = vst [vmem:[%s180 + $0x304] sm:$0xf] %v567
                %v569 = vld [vmem:[%s179 + $0x610] sm:$0xf]
                %570 = vst [vmem:[%s180 + $0x308] sm:$0xf] %v569
                %v571 = vld [vmem:[%s179 + $0x618] sm:$0xf]
                %572 = vst [vmem:[%s180 + $0x30c] sm:$0xf] %v571
                %v573 = vld [vmem:[%s179 + $0x620] sm:$0xf]
                %574 = vst [vmem:[%s180 + $0x310] sm:$0xf] %v573
                %v575 = vld [vmem:[%s179 + $0x628] sm:$0xf]
                %576 = vst [vmem:[%s180 + $0x314] sm:$0xf] %v575
                %v577 = vld [vmem:[%s179 + $0x630] sm:$0xf]
                %578 = vst [vmem:[%s180 + $0x318] sm:$0xf] %v577
                %v579 = vld [vmem:[%s179 + $0x638] sm:$0xf]
                %580 = vst [vmem:[%s180 + $0x31c] sm:$0xf] %v579
                %v581 = vld [vmem:[%s179 + $0x640] sm:$0xf]
                %582 = vst [vmem:[%s180 + $0x320] sm:$0xf] %v581
                %v583 = vld [vmem:[%s179 + $0x648] sm:$0xf]
                %584 = vst [vmem:[%s180 + $0x324] sm:$0xf] %v583
                %v585 = vld [vmem:[%s179 + $0x650] sm:$0xf]
                %586 = vst [vmem:[%s180 + $0x328] sm:$0xf] %v585
                %v587 = vld [vmem:[%s179 + $0x658] sm:$0xf]
                %588 = vst [vmem:[%s180 + $0x32c] sm:$0xf] %v587
                %v589 = vld [vmem:[%s179 + $0x660] sm:$0xf]
                %590 = vst [vmem:[%s180 + $0x330] sm:$0xf] %v589
                %v591 = vld [vmem:[%s179 + $0x668] sm:$0xf]
                %592 = vst [vmem:[%s180 + $0x334] sm:$0xf] %v591
                %v593 = vld [vmem:[%s179 + $0x670] sm:$0xf]
                %594 = vst [vmem:[%s180 + $0x338] sm:$0xf] %v593
                %v595 = vld [vmem:[%s179 + $0x678] sm:$0xf]
                %596 = vst [vmem:[%s180 + $0x33c] sm:$0xf] %v595
                %v597 = vld [vmem:[%s179 + $0x680] sm:$0xf]
                %598 = vst [vmem:[%s180 + $0x340] sm:$0xf] %v597
                %v599 = vld [vmem:[%s179 + $0x688] sm:$0xf]
                %600 = vst [vmem:[%s180 + $0x344] sm:$0xf] %v599
                %v601 = vld [vmem:[%s179 + $0x690] sm:$0xf]
                %602 = vst [vmem:[%s180 + $0x348] sm:$0xf] %v601
                %v603 = vld [vmem:[%s179 + $0x698] sm:$0xf]
                %604 = vst [vmem:[%s180 + $0x34c] sm:$0xf] %v603
                %v605 = vld [vmem:[%s179 + $0x6a0] sm:$0xf]
                %606 = vst [vmem:[%s180 + $0x350] sm:$0xf] %v605
                %v607 = vld [vmem:[%s179 + $0x6a8] sm:$0xf]
                %608 = vst [vmem:[%s180 + $0x354] sm:$0xf] %v607
                %v609 = vld [vmem:[%s179 + $0x6b0] sm:$0xf]
                %610 = vst [vmem:[%s180 + $0x358] sm:$0xf] %v609
                %v611 = vld [vmem:[%s179 + $0x6b8] sm:$0xf]
                %612 = vst [vmem:[%s180 + $0x35c] sm:$0xf] %v611
                %v613 = vld [vmem:[%s179 + $0x6c0] sm:$0xf]
                %614 = vst [vmem:[%s180 + $0x360] sm:$0xf] %v613
                %v615 = vld [vmem:[%s179 + $0x6c8] sm:$0xf]
                %616 = vst [vmem:[%s180 + $0x364] sm:$0xf] %v615
                %v617 = vld [vmem:[%s179 + $0x6d0] sm:$0xf]
                %618 = vst [vmem:[%s180 + $0x368] sm:$0xf] %v617
                %v619 = vld [vmem:[%s179 + $0x6d8] sm:$0xf]
                %620 = vst [vmem:[%s180 + $0x36c] sm:$0xf] %v619
                %v621 = vld [vmem:[%s179 + $0x6e0] sm:$0xf]
                %622 = vst [vmem:[%s180 + $0x370] sm:$0xf] %v621
                %v623 = vld [vmem:[%s179 + $0x6e8] sm:$0xf]
                %624 = vst [vmem:[%s180 + $0x374] sm:$0xf] %v623
                %v625 = vld [vmem:[%s179 + $0x6f0] sm:$0xf]
                %626 = vst [vmem:[%s180 + $0x378] sm:$0xf] %v625
                %v627 = vld [vmem:[%s179 + $0x6f8] sm:$0xf]
                %628 = vst [vmem:[%s180 + $0x37c] sm:$0xf] %v627
                %v629 = vld [vmem:[%s179 + $0x700] sm:$0xf]
                %630 = vst [vmem:[%s180 + $0x380] sm:$0xf] %v629
                %v631 = vld [vmem:[%s179 + $0x708] sm:$0xf]
                %632 = vst [vmem:[%s180 + $0x384] sm:$0xf] %v631
                %v633 = vld [vmem:[%s179 + $0x710] sm:$0xf]
                %634 = vst [vmem:[%s180 + $0x388] sm:$0xf] %v633
                %v635 = vld [vmem:[%s179 + $0x718] sm:$0xf]
                %636 = vst [vmem:[%s180 + $0x38c] sm:$0xf] %v635
                %v637 = vld [vmem:[%s179 + $0x720] sm:$0xf]
                %638 = vst [vmem:[%s180 + $0x390] sm:$0xf] %v637
                %v639 = vld [vmem:[%s179 + $0x728] sm:$0xf]
                %640 = vst [vmem:[%s180 + $0x394] sm:$0xf] %v639
                %v641 = vld [vmem:[%s179 + $0x730] sm:$0xf]
                %642 = vst [vmem:[%s180 + $0x398] sm:$0xf] %v641
                %v643 = vld [vmem:[%s179 + $0x738] sm:$0xf]
                %644 = vst [vmem:[%s180 + $0x39c] sm:$0xf] %v643
                %v645 = vld [vmem:[%s179 + $0x740] sm:$0xf]
                %646 = vst [vmem:[%s180 + $0x3a0] sm:$0xf] %v645
                %v647 = vld [vmem:[%s179 + $0x748] sm:$0xf]
                %648 = vst [vmem:[%s180 + $0x3a4] sm:$0xf] %v647
                %v649 = vld [vmem:[%s179 + $0x750] sm:$0xf]
                %650 = vst [vmem:[%s180 + $0x3a8] sm:$0xf] %v649
                %v651 = vld [vmem:[%s179 + $0x758] sm:$0xf]
                %652 = vst [vmem:[%s180 + $0x3ac] sm:$0xf] %v651
                %v653 = vld [vmem:[%s179 + $0x760] sm:$0xf]
                %654 = vst [vmem:[%s180 + $0x3b0] sm:$0xf] %v653
                %v655 = vld [vmem:[%s179 + $0x768] sm:$0xf]
                %656 = vst [vmem:[%s180 + $0x3b4] sm:$0xf] %v655
                %v657 = vld [vmem:[%s179 + $0x770] sm:$0xf]
                %658 = vst [vmem:[%s180 + $0x3b8] sm:$0xf] %v657
                %v659 = vld [vmem:[%s179 + $0x778] sm:$0xf]
                %660 = vst [vmem:[%s180 + $0x3bc] sm:$0xf] %v659
                %v661 = vld [vmem:[%s179 + $0x780] sm:$0xf]
                %662 = vst [vmem:[%s180 + $0x3c0] sm:$0xf] %v661
                %v663 = vld [vmem:[%s179 + $0x788] sm:$0xf]
                %664 = vst [vmem:[%s180 + $0x3c4] sm:$0xf] %v663
                %v665 = vld [vmem:[%s179 + $0x790] sm:$0xf]
                %666 = vst [vmem:[%s180 + $0x3c8] sm:$0xf] %v665
                %v667 = vld [vmem:[%s179 + $0x798] sm:$0xf]
                %668 = vst [vmem:[%s180 + $0x3cc] sm:$0xf] %v667
                %v669 = vld [vmem:[%s179 + $0x7a0] sm:$0xf]
                %670 = vst [vmem:[%s180 + $0x3d0] sm:$0xf] %v669
                %v671 = vld [vmem:[%s179 + $0x7a8] sm:$0xf]
                %672 = vst [vmem:[%s180 + $0x3d4] sm:$0xf] %v671
                %v673 = vld [vmem:[%s179 + $0x7b0] sm:$0xf]
                %674 = vst [vmem:[%s180 + $0x3d8] sm:$0xf] %v673
                %v675 = vld [vmem:[%s179 + $0x7b8] sm:$0xf]
                %676 = vst [vmem:[%s180 + $0x3dc] sm:$0xf] %v675
                %v677 = vld [vmem:[%s179 + $0x7c0] sm:$0xf]
                %678 = vst [vmem:[%s180 + $0x3e0] sm:$0xf] %v677
                %v679 = vld [vmem:[%s179 + $0x7c8] sm:$0xf]
                %680 = vst [vmem:[%s180 + $0x3e4] sm:$0xf] %v679
                %v681 = vld [vmem:[%s179 + $0x7d0] sm:$0xf]
                %682 = vst [vmem:[%s180 + $0x3e8] sm:$0xf] %v681
                %v683 = vld [vmem:[%s179 + $0x7d8] sm:$0xf]
                %684 = vst [vmem:[%s180 + $0x3ec] sm:$0xf] %v683
                %v685 = vld [vmem:[%s179 + $0x7e0] sm:$0xf]
                %686 = vst [vmem:[%s180 + $0x3f0] sm:$0xf] %v685
                %v687 = vld [vmem:[%s179 + $0x7e8] sm:$0xf]
                %688 = vst [vmem:[%s180 + $0x3f4] sm:$0xf] %v687
                %v689 = vld [vmem:[%s179 + $0x7f0] sm:$0xf]
                %690 = vst [vmem:[%s180 + $0x3f8] sm:$0xf] %v689
                %v691 = vld [vmem:[%s179 + $0x7f8] sm:$0xf]
                %692 = vst [vmem:[%s180 + $0x3fc] sm:$0xf] %v691
              $region41: #{cvae_forward.7} parent=35 // loop_footer
                %s178 = sadd.s32 1, %s174
              $region42: #{cvae_forward.7} parent=35 // loop_footer_branch
                %173 = sbr.rel target = $region38
              $region43: #{cvae_forward.7} parent=35 // loop_exit
                _
            $region36: #{cvae_forward.7} parent=27 // pred_fallthru
              _
          $region28: #{cvae_forward.7} parent=23 // pred_fallthru
            _
          %1224 = vnop
        $region24: #{cvae_forward.7} parent=19 // pred_fallthru
          _
        // Predicated region
        $region62: #{cvae_forward.7} parent=19 // pred_check
          %p1225 = pneg %p95
        $region63: #{cvae_forward.7} parent=19 // pred_check_branch
          %1227 = sbr.rel (%p1225) target = $region65
        $region64: #{cvae_forward.7} parent=19 // pred_region
          %p1228 = scmp.lt.s32.totalorder %s16, 1
          %s1229 = scalar_select %p1228, %s16, 1
          %s1230 = scalar_lea.vmem %s2, %s1229
        $region65: #{cvae_forward.7} parent=19 // pred_fallthru
          _
      $region20: #{cvae_forward.7} parent=5 // pred_fallthru
        _
      %p1231 = scmp.le.s32.totalorder 1, %s9
      %p1232 = scmp.lt.s32.totalorder %s9, 3
      %p1233 = pnand %p1231, %p1232
      %p1234 = pneg %p1233
      // Predicated region
      $region66: #{cvae_forward.7} parent=5 // pred_check
        _
      $region67: #{cvae_forward.7} parent=5 // pred_check_branch
        %1236 = sbr.rel (%p1233) target = $region69
      $region68: #{cvae_forward.7} parent=5 // pred_region
        %s1237 = ssub.s32 %s9, 1
        %s1238 = sand.u32 %s62, 1
        %s1239 = sand.u32 %s62, 1
        %s1240 = smul.addr %s1239, 1024
        %s1241 = scalar_lea.vmem [#allocation2], %s1240
        // Predicated region
        $region70: #{cvae_forward.7} parent=68 // pred_check
          %p1242 = pneg %p75
        $region71: #{cvae_forward.7} parent=68 // pred_check_branch
          %1244 = sbr.rel (%p1242) target = $region73
        $region72: #{cvae_forward.7} parent=68 // pred_region
          _
        $region73: #{cvae_forward.7} parent=68 // pred_fallthru
          _
        %s1245 = smul.u32 16, %s19
        %p1246 = scmp.lt.s32.totalorder %s1245, 15
        %s1247 = scalar_select %p1246, %s1245, 15
        %s1248 = scalar_lea.vmem %s0, %s1247
        %p1249 = pneg %p47
        %p1250 = pneg %p44
        %s1251 = sand.u32 %s62, 1
        %s1252 = sand.u32 %s62, 1
        %s1253 = smul.addr %s1252, 1024
        %s1254 = scalar_lea.vmem [#allocation2], %s1253
        %p1255 = pneg %p75
        %p1256 = pneg %p72
        %p1257 = scmp.lt.s32.totalorder %s18, 1
        %s1258 = scalar_select %p1257, %s18, 1
        %s1259 = scalar_lea.vmem %s2, %s1258
        %p1260 = pneg %p101
        %p1261 = pneg %p98
        %p1262 = pneg %p127
        %p1263 = pneg %p124
        %p1264 = scmp.lt.s32.totalorder %s18, 1
        %s1265 = scalar_select %p1264, %s18, 1
        %s1266 = smul.addr %s1265, 2
        %s1267 = scalar_lea.vmem %s3, %s1266
        %s1268 = smul.u32 16, %s19
        %p1269 = scmp.lt.s32.totalorder %s1268, 15
        %s1270 = scalar_select %p1269, %s1268, 15
        %s1271 = scalar_lea.vmem %s0, %s1270
        %s1272 = smul.u32 16, %s19
        %s1273 = smul.u32 256, %s19
        %p1274 = scmp.lt.s32.totalorder %s18, 1
        %s1275 = scalar_select %p1274, %s18, 1
        %s1276 = scalar_lea.vmem %s2, %s1275
        %p1277 = scmp.lt.s32.totalorder %s18, 1
        %s1278 = scalar_select %p1277, %s18, 1
        %s1279 = smul.addr %s1278, 2
        %s1280 = scalar_lea.vmem %s3, %s1279
        %p1282 = scmp.eq.s32.totalorder %s19, 0
        // Predicated region
        $region74: #{cvae_forward.7} parent=68 // pred_check
          %p1283 = pneg %p1282
        $region75: #{cvae_forward.7} parent=68 // pred_check_branch
          %1285 = sbr.rel (%p1283) target = $region77
        $region76: #{cvae_forward.7} parent=68 // pred_region
          %1286 = vst [vmem:[%s1280] sm:$0x3] 0.0
        $region77: #{cvae_forward.7} parent=68 // pred_fallthru
          _
        %v1287 = vld [vmem:[%s1280] sm:$0x3]
        %v1288 = vld [vmem:[%s1271] sm:$0xff]
        %v1289 = vld [vmem:[%s1271 + $0x8] sm:$0xff]
        %v1290 = vld [vmem:[%s1241] sm:$0xf]
        %v1291 = vld [vmem:[%s1241 + $0x4] sm:$0xf]
        %v1292 = vld [vmem:[%s1241 + $0x8] sm:$0xf]
        %v1293 = vld [vmem:[%s1241 + $0xc] sm:$0xf]
        %v1294 = vld [vmem:[%s1241 + $0x10] sm:$0xf]
        %v1295 = vld [vmem:[%s1241 + $0x14] sm:$0xf]
        %v1296 = vld [vmem:[%s1241 + $0x18] sm:$0xf]
        %v1297 = vld [vmem:[%s1241 + $0x1c] sm:$0xf]
        %v1298 = vld [vmem:[%s1241 + $0x20] sm:$0xf]
        %v1299 = vld [vmem:[%s1241 + $0x24] sm:$0xf]
        %v1300 = vld [vmem:[%s1241 + $0x28] sm:$0xf]
        %v1301 = vld [vmem:[%s1241 + $0x2c] sm:$0xf]
        %v1302 = vld [vmem:[%s1241 + $0x30] sm:$0xf]
        %v1303 = vld [vmem:[%s1241 + $0x34] sm:$0xf]
        %v1304 = vld [vmem:[%s1241 + $0x38] sm:$0xf]
        %v1305 = vld [vmem:[%s1241 + $0x3c] sm:$0xf]
        %v1306 = vld [vmem:[%s1241 + $0x40] sm:$0xf]
        %v1307 = vld [vmem:[%s1241 + $0x44] sm:$0xf]
        %v1308 = vld [vmem:[%s1241 + $0x48] sm:$0xf]
        %v1309 = vld [vmem:[%s1241 + $0x4c] sm:$0xf]
        %v1310 = vld [vmem:[%s1241 + $0x50] sm:$0xf]
        %v1311 = vld [vmem:[%s1241 + $0x54] sm:$0xf]
        %v1312 = vld [vmem:[%s1241 + $0x58] sm:$0xf]
        %v1313 = vld [vmem:[%s1241 + $0x5c] sm:$0xf]
        %v1314 = vld [vmem:[%s1241 + $0x60] sm:$0xf]
        %v1315 = vld [vmem:[%s1241 + $0x64] sm:$0xf]
        %v1316 = vld [vmem:[%s1241 + $0x68] sm:$0xf]
        %v1317 = vld [vmem:[%s1241 + $0x6c] sm:$0xf]
        %v1318 = vld [vmem:[%s1241 + $0x70] sm:$0xf]
        %v1319 = vld [vmem:[%s1241 + $0x74] sm:$0xf]
        %v1320 = vld [vmem:[%s1241 + $0x78] sm:$0xf]
        %v1321 = vld [vmem:[%s1241 + $0x7c] sm:$0xf]
        %v1322 = vld [vmem:[%s1241 + $0x80] sm:$0xf]
        %v1323 = vld [vmem:[%s1241 + $0x84] sm:$0xf]
        %v1324 = vld [vmem:[%s1241 + $0x88] sm:$0xf]
        %v1325 = vld [vmem:[%s1241 + $0x8c] sm:$0xf]
        %v1326 = vld [vmem:[%s1241 + $0x90] sm:$0xf]
        %v1327 = vld [vmem:[%s1241 + $0x94] sm:$0xf]
        %v1328 = vld [vmem:[%s1241 + $0x98] sm:$0xf]
        %v1329 = vld [vmem:[%s1241 + $0x9c] sm:$0xf]
        %v1330 = vld [vmem:[%s1241 + $0xa0] sm:$0xf]
        %v1331 = vld [vmem:[%s1241 + $0xa4] sm:$0xf]
        %v1332 = vld [vmem:[%s1241 + $0xa8] sm:$0xf]
        %v1333 = vld [vmem:[%s1241 + $0xac] sm:$0xf]
        %v1334 = vld [vmem:[%s1241 + $0xb0] sm:$0xf]
        %v1335 = vld [vmem:[%s1241 + $0xb4] sm:$0xf]
        %v1336 = vld [vmem:[%s1241 + $0xb8] sm:$0xf]
        %v1337 = vld [vmem:[%s1241 + $0xbc] sm:$0xf]
        %v1338 = vld [vmem:[%s1241 + $0xc0] sm:$0xf]
        %v1339 = vld [vmem:[%s1241 + $0xc4] sm:$0xf]
        %v1340 = vld [vmem:[%s1241 + $0xc8] sm:$0xf]
        %v1341 = vld [vmem:[%s1241 + $0xcc] sm:$0xf]
        %v1342 = vld [vmem:[%s1241 + $0xd0] sm:$0xf]
        %v1343 = vld [vmem:[%s1241 + $0xd4] sm:$0xf]
        %v1344 = vld [vmem:[%s1241 + $0xd8] sm:$0xf]
        %v1345 = vld [vmem:[%s1241 + $0xdc] sm:$0xf]
        %v1346 = vld [vmem:[%s1241 + $0xe0] sm:$0xf]
        %v1347 = vld [vmem:[%s1241 + $0xe4] sm:$0xf]
        %v1348 = vld [vmem:[%s1241 + $0xe8] sm:$0xf]
        %v1349 = vld [vmem:[%s1241 + $0xec] sm:$0xf]
        %v1350 = vld [vmem:[%s1241 + $0xf0] sm:$0xf]
        %v1351 = vld [vmem:[%s1241 + $0xf4] sm:$0xf]
        %v1352 = vld [vmem:[%s1241 + $0xf8] sm:$0xf]
        %v1353 = vld [vmem:[%s1241 + $0xfc] sm:$0xf]
        %v1354 = vld [vmem:[%s1241 + $0x100] sm:$0xf]
        %v1355 = vld [vmem:[%s1241 + $0x104] sm:$0xf]
        %v1356 = vld [vmem:[%s1241 + $0x108] sm:$0xf]
        %v1357 = vld [vmem:[%s1241 + $0x10c] sm:$0xf]
        %v1358 = vld [vmem:[%s1241 + $0x110] sm:$0xf]
        %v1359 = vld [vmem:[%s1241 + $0x114] sm:$0xf]
        %v1360 = vld [vmem:[%s1241 + $0x118] sm:$0xf]
        %v1361 = vld [vmem:[%s1241 + $0x11c] sm:$0xf]
        %v1362 = vld [vmem:[%s1241 + $0x120] sm:$0xf]
        %v1363 = vld [vmem:[%s1241 + $0x124] sm:$0xf]
        %v1364 = vld [vmem:[%s1241 + $0x128] sm:$0xf]
        %v1365 = vld [vmem:[%s1241 + $0x12c] sm:$0xf]
        %v1366 = vld [vmem:[%s1241 + $0x130] sm:$0xf]
        %v1367 = vld [vmem:[%s1241 + $0x134] sm:$0xf]
        %v1368 = vld [vmem:[%s1241 + $0x138] sm:$0xf]
        %v1369 = vld [vmem:[%s1241 + $0x13c] sm:$0xf]
        %v1370 = vld [vmem:[%s1241 + $0x140] sm:$0xf]
        %v1371 = vld [vmem:[%s1241 + $0x144] sm:$0xf]
        %v1372 = vld [vmem:[%s1241 + $0x148] sm:$0xf]
        %v1373 = vld [vmem:[%s1241 + $0x14c] sm:$0xf]
        %v1374 = vld [vmem:[%s1241 + $0x150] sm:$0xf]
        %v1375 = vld [vmem:[%s1241 + $0x154] sm:$0xf]
        %v1376 = vld [vmem:[%s1241 + $0x158] sm:$0xf]
        %v1377 = vld [vmem:[%s1241 + $0x15c] sm:$0xf]
        %v1378 = vld [vmem:[%s1241 + $0x160] sm:$0xf]
        %v1379 = vld [vmem:[%s1241 + $0x164] sm:$0xf]
        %v1380 = vld [vmem:[%s1241 + $0x168] sm:$0xf]
        %v1381 = vld [vmem:[%s1241 + $0x16c] sm:$0xf]
        %v1382 = vld [vmem:[%s1241 + $0x170] sm:$0xf]
        %v1383 = vld [vmem:[%s1241 + $0x174] sm:$0xf]
        %v1384 = vld [vmem:[%s1241 + $0x178] sm:$0xf]
        %v1385 = vld [vmem:[%s1241 + $0x17c] sm:$0xf]
        %v1386 = vld [vmem:[%s1241 + $0x180] sm:$0xf]
        %v1387 = vld [vmem:[%s1241 + $0x184] sm:$0xf]
        %v1388 = vld [vmem:[%s1241 + $0x188] sm:$0xf]
        %v1389 = vld [vmem:[%s1241 + $0x18c] sm:$0xf]
        %v1390 = vld [vmem:[%s1241 + $0x190] sm:$0xf]
        %v1391 = vld [vmem:[%s1241 + $0x194] sm:$0xf]
        %v1392 = vld [vmem:[%s1241 + $0x198] sm:$0xf]
        %v1393 = vld [vmem:[%s1241 + $0x19c] sm:$0xf]
        %v1394 = vld [vmem:[%s1241 + $0x1a0] sm:$0xf]
        %v1395 = vld [vmem:[%s1241 + $0x1a4] sm:$0xf]
        %v1396 = vld [vmem:[%s1241 + $0x1a8] sm:$0xf]
        %v1397 = vld [vmem:[%s1241 + $0x1ac] sm:$0xf]
        %v1398 = vld [vmem:[%s1241 + $0x1b0] sm:$0xf]
        %v1399 = vld [vmem:[%s1241 + $0x1b4] sm:$0xf]
        %v1400 = vld [vmem:[%s1241 + $0x1b8] sm:$0xf]
        %v1401 = vld [vmem:[%s1241 + $0x1bc] sm:$0xf]
        %v1402 = vld [vmem:[%s1241 + $0x1c0] sm:$0xf]
        %v1403 = vld [vmem:[%s1241 + $0x1c4] sm:$0xf]
        %v1404 = vld [vmem:[%s1241 + $0x1c8] sm:$0xf]
        %v1405 = vld [vmem:[%s1241 + $0x1cc] sm:$0xf]
        %v1406 = vld [vmem:[%s1241 + $0x1d0] sm:$0xf]
        %v1407 = vld [vmem:[%s1241 + $0x1d4] sm:$0xf]
        %v1408 = vld [vmem:[%s1241 + $0x1d8] sm:$0xf]
        %v1409 = vld [vmem:[%s1241 + $0x1dc] sm:$0xf]
        %v1410 = vld [vmem:[%s1241 + $0x1e0] sm:$0xf]
        %v1411 = vld [vmem:[%s1241 + $0x1e4] sm:$0xf]
        %v1412 = vld [vmem:[%s1241 + $0x1e8] sm:$0xf]
        %v1413 = vld [vmem:[%s1241 + $0x1ec] sm:$0xf]
        %v1414 = vld [vmem:[%s1241 + $0x1f0] sm:$0xf]
        %v1415 = vld [vmem:[%s1241 + $0x1f4] sm:$0xf]
        %v1416 = vld [vmem:[%s1241 + $0x1f8] sm:$0xf]
        %v1417 = vld [vmem:[%s1241 + $0x1fc] sm:$0xf]
        %v1418 = vld [vmem:[%s1241 + $0x200] sm:$0xf]
        %v1419 = vld [vmem:[%s1241 + $0x204] sm:$0xf]
        %v1420 = vld [vmem:[%s1241 + $0x208] sm:$0xf]
        %v1421 = vld [vmem:[%s1241 + $0x20c] sm:$0xf]
        %v1422 = vld [vmem:[%s1241 + $0x210] sm:$0xf]
        %v1423 = vld [vmem:[%s1241 + $0x214] sm:$0xf]
        %v1424 = vld [vmem:[%s1241 + $0x218] sm:$0xf]
        %v1425 = vld [vmem:[%s1241 + $0x21c] sm:$0xf]
        %v1426 = vld [vmem:[%s1241 + $0x220] sm:$0xf]
        %v1427 = vld [vmem:[%s1241 + $0x224] sm:$0xf]
        %v1428 = vld [vmem:[%s1241 + $0x228] sm:$0xf]
        %v1429 = vld [vmem:[%s1241 + $0x22c] sm:$0xf]
        %v1430 = vld [vmem:[%s1241 + $0x230] sm:$0xf]
        %v1431 = vld [vmem:[%s1241 + $0x234] sm:$0xf]
        %v1432 = vld [vmem:[%s1241 + $0x238] sm:$0xf]
        %v1433 = vld [vmem:[%s1241 + $0x23c] sm:$0xf]
        %v1434 = vld [vmem:[%s1241 + $0x240] sm:$0xf]
        %v1435 = vld [vmem:[%s1241 + $0x244] sm:$0xf]
        %v1436 = vld [vmem:[%s1241 + $0x248] sm:$0xf]
        %v1437 = vld [vmem:[%s1241 + $0x24c] sm:$0xf]
        %v1438 = vld [vmem:[%s1241 + $0x250] sm:$0xf]
        %v1439 = vld [vmem:[%s1241 + $0x254] sm:$0xf]
        %v1440 = vld [vmem:[%s1241 + $0x258] sm:$0xf]
        %v1441 = vld [vmem:[%s1241 + $0x25c] sm:$0xf]
        %v1442 = vld [vmem:[%s1241 + $0x260] sm:$0xf]
        %v1443 = vld [vmem:[%s1241 + $0x264] sm:$0xf]
        %v1444 = vld [vmem:[%s1241 + $0x268] sm:$0xf]
        %v1445 = vld [vmem:[%s1241 + $0x26c] sm:$0xf]
        %v1446 = vld [vmem:[%s1241 + $0x270] sm:$0xf]
        %v1447 = vld [vmem:[%s1241 + $0x274] sm:$0xf]
        %v1448 = vld [vmem:[%s1241 + $0x278] sm:$0xf]
        %v1449 = vld [vmem:[%s1241 + $0x27c] sm:$0xf]
        %v1450 = vld [vmem:[%s1241 + $0x280] sm:$0xf]
        %v1451 = vld [vmem:[%s1241 + $0x284] sm:$0xf]
        %v1452 = vld [vmem:[%s1241 + $0x288] sm:$0xf]
        %v1453 = vld [vmem:[%s1241 + $0x28c] sm:$0xf]
        %v1454 = vld [vmem:[%s1241 + $0x290] sm:$0xf]
        %v1455 = vld [vmem:[%s1241 + $0x294] sm:$0xf]
        %v1456 = vld [vmem:[%s1241 + $0x298] sm:$0xf]
        %v1457 = vld [vmem:[%s1241 + $0x29c] sm:$0xf]
        %v1458 = vld [vmem:[%s1241 + $0x2a0] sm:$0xf]
        %v1459 = vld [vmem:[%s1241 + $0x2a4] sm:$0xf]
        %v1460 = vld [vmem:[%s1241 + $0x2a8] sm:$0xf]
        %v1461 = vld [vmem:[%s1241 + $0x2ac] sm:$0xf]
        %v1462 = vld [vmem:[%s1241 + $0x2b0] sm:$0xf]
        %v1463 = vld [vmem:[%s1241 + $0x2b4] sm:$0xf]
        %v1464 = vld [vmem:[%s1241 + $0x2b8] sm:$0xf]
        %v1465 = vld [vmem:[%s1241 + $0x2bc] sm:$0xf]
        %v1466 = vld [vmem:[%s1241 + $0x2c0] sm:$0xf]
        %v1467 = vld [vmem:[%s1241 + $0x2c4] sm:$0xf]
        %v1468 = vld [vmem:[%s1241 + $0x2c8] sm:$0xf]
        %v1469 = vld [vmem:[%s1241 + $0x2cc] sm:$0xf]
        %v1470 = vld [vmem:[%s1241 + $0x2d0] sm:$0xf]
        %v1471 = vld [vmem:[%s1241 + $0x2d4] sm:$0xf]
        %v1472 = vld [vmem:[%s1241 + $0x2d8] sm:$0xf]
        %v1473 = vld [vmem:[%s1241 + $0x2dc] sm:$0xf]
        %v1474 = vld [vmem:[%s1241 + $0x2e0] sm:$0xf]
        %v1475 = vld [vmem:[%s1241 + $0x2e4] sm:$0xf]
        %v1476 = vld [vmem:[%s1241 + $0x2e8] sm:$0xf]
        %v1477 = vld [vmem:[%s1241 + $0x2ec] sm:$0xf]
        %v1478 = vld [vmem:[%s1241 + $0x2f0] sm:$0xf]
        %v1479 = vld [vmem:[%s1241 + $0x2f4] sm:$0xf]
        %v1480 = vld [vmem:[%s1241 + $0x2f8] sm:$0xf]
        %v1481 = vld [vmem:[%s1241 + $0x2fc] sm:$0xf]
        %v1482 = vld [vmem:[%s1241 + $0x300] sm:$0xf]
        %v1483 = vld [vmem:[%s1241 + $0x304] sm:$0xf]
        %v1484 = vld [vmem:[%s1241 + $0x308] sm:$0xf]
        %v1485 = vld [vmem:[%s1241 + $0x30c] sm:$0xf]
        %v1486 = vld [vmem:[%s1241 + $0x310] sm:$0xf]
        %v1487 = vld [vmem:[%s1241 + $0x314] sm:$0xf]
        %v1488 = vld [vmem:[%s1241 + $0x318] sm:$0xf]
        %v1489 = vld [vmem:[%s1241 + $0x31c] sm:$0xf]
        %v1490 = vld [vmem:[%s1241 + $0x320] sm:$0xf]
        %v1491 = vld [vmem:[%s1241 + $0x324] sm:$0xf]
        %v1492 = vld [vmem:[%s1241 + $0x328] sm:$0xf]
        %v1493 = vld [vmem:[%s1241 + $0x32c] sm:$0xf]
        %v1494 = vld [vmem:[%s1241 + $0x330] sm:$0xf]
        %v1495 = vld [vmem:[%s1241 + $0x334] sm:$0xf]
        %v1496 = vld [vmem:[%s1241 + $0x338] sm:$0xf]
        %v1497 = vld [vmem:[%s1241 + $0x33c] sm:$0xf]
        %v1498 = vld [vmem:[%s1241 + $0x340] sm:$0xf]
        %v1499 = vld [vmem:[%s1241 + $0x344] sm:$0xf]
        %v1500 = vld [vmem:[%s1241 + $0x348] sm:$0xf]
        %v1501 = vld [vmem:[%s1241 + $0x34c] sm:$0xf]
        %v1502 = vld [vmem:[%s1241 + $0x350] sm:$0xf]
        %v1503 = vld [vmem:[%s1241 + $0x354] sm:$0xf]
        %v1504 = vld [vmem:[%s1241 + $0x358] sm:$0xf]
        %v1505 = vld [vmem:[%s1241 + $0x35c] sm:$0xf]
        %v1506 = vld [vmem:[%s1241 + $0x360] sm:$0xf]
        %v1507 = vld [vmem:[%s1241 + $0x364] sm:$0xf]
        %v1508 = vld [vmem:[%s1241 + $0x368] sm:$0xf]
        %v1509 = vld [vmem:[%s1241 + $0x36c] sm:$0xf]
        %v1510 = vld [vmem:[%s1241 + $0x370] sm:$0xf]
        %v1511 = vld [vmem:[%s1241 + $0x374] sm:$0xf]
        %v1512 = vld [vmem:[%s1241 + $0x378] sm:$0xf]
        %v1513 = vld [vmem:[%s1241 + $0x37c] sm:$0xf]
        %v1514 = vld [vmem:[%s1241 + $0x380] sm:$0xf]
        %v1515 = vld [vmem:[%s1241 + $0x384] sm:$0xf]
        %v1516 = vld [vmem:[%s1241 + $0x388] sm:$0xf]
        %v1517 = vld [vmem:[%s1241 + $0x38c] sm:$0xf]
        %v1518 = vld [vmem:[%s1241 + $0x390] sm:$0xf]
        %v1519 = vld [vmem:[%s1241 + $0x394] sm:$0xf]
        %v1520 = vld [vmem:[%s1241 + $0x398] sm:$0xf]
        %v1521 = vld [vmem:[%s1241 + $0x39c] sm:$0xf]
        %v1522 = vld [vmem:[%s1241 + $0x3a0] sm:$0xf]
        %v1523 = vld [vmem:[%s1241 + $0x3a4] sm:$0xf]
        %v1524 = vld [vmem:[%s1241 + $0x3a8] sm:$0xf]
        %v1525 = vld [vmem:[%s1241 + $0x3ac] sm:$0xf]
        %v1526 = vld [vmem:[%s1241 + $0x3b0] sm:$0xf]
        %v1527 = vld [vmem:[%s1241 + $0x3b4] sm:$0xf]
        %v1528 = vld [vmem:[%s1241 + $0x3b8] sm:$0xf]
        %v1529 = vld [vmem:[%s1241 + $0x3bc] sm:$0xf]
        %v1530 = vld [vmem:[%s1241 + $0x3c0] sm:$0xf]
        %v1531 = vld [vmem:[%s1241 + $0x3c4] sm:$0xf]
        %v1532 = vld [vmem:[%s1241 + $0x3c8] sm:$0xf]
        %v1533 = vld [vmem:[%s1241 + $0x3cc] sm:$0xf]
        %v1534 = vld [vmem:[%s1241 + $0x3d0] sm:$0xf]
        %v1535 = vld [vmem:[%s1241 + $0x3d4] sm:$0xf]
        %v1536 = vld [vmem:[%s1241 + $0x3d8] sm:$0xf]
        %v1537 = vld [vmem:[%s1241 + $0x3dc] sm:$0xf]
        %v1538 = vld [vmem:[%s1241 + $0x3e0] sm:$0xf]
        %v1539 = vld [vmem:[%s1241 + $0x3e4] sm:$0xf]
        %v1540 = vld [vmem:[%s1241 + $0x3e8] sm:$0xf]
        %v1541 = vld [vmem:[%s1241 + $0x3ec] sm:$0xf]
        %v1542 = vld [vmem:[%s1241 + $0x3f0] sm:$0xf]
        %v1543 = vld [vmem:[%s1241 + $0x3f4] sm:$0xf]
        %v1544 = vld [vmem:[%s1241 + $0x3f8] sm:$0xf]
        %v1545 = vld [vmem:[%s1241 + $0x3fc] sm:$0xf]
        %v1548 = vcombine.high %v1288, %v1288
        %v1550 = vunpack.c.l.s4 1966171168
        %v1551 = vunpack.c.0.s8 %v1550
        %v1552 = vlaneseq
        %v1553 = vshrl.u32 %v1552, 7
        %v1554 = vsub.s32 %v1551, %v1553
        %v1555 = vrot.slane %v1288, %v1554
        %v1557 = vunpack.c.l.s4 1966171168
        %v1558 = vunpack.c.0.s8 %v1557
        %v1559 = vlaneseq
        %v1560 = vshrl.u32 %v1559, 7
        %v1561 = vsub.s32 %v1558, %v1560
        %v1562 = vrot.slane %v1548, %v1561
        %v1563 = vcombine.high %v1555, %v1555
        %v1564 = vcombine.high %v1562, %v1562
        %v1566 = vunpack.c.l.s4 1966171168
        %v1567 = vunpack.c.0.s8 %v1566
        %v1568 = vlaneseq
        %v1569 = vshrl.u32 %v1568, 7
        %v1570 = vsub.s32 %v1567, %v1569
        %v1571 = vrot.slane %v1555, %v1570
        %v1573 = vunpack.c.l.s4 1966171168
        %v1574 = vunpack.c.0.s8 %v1573
        %v1575 = vlaneseq
        %v1576 = vshrl.u32 %v1575, 7
        %v1577 = vsub.s32 %v1574, %v1576
        %v1578 = vrot.slane %v1562, %v1577
        %v1580 = vunpack.c.l.s4 1966171168
        %v1581 = vunpack.c.0.s8 %v1580
        %v1582 = vlaneseq
        %v1583 = vshrl.u32 %v1582, 7
        %v1584 = vsub.s32 %v1581, %v1583
        %v1585 = vrot.slane %v1563, %v1584
        %v1587 = vunpack.c.l.s4 1966171168
        %v1588 = vunpack.c.0.s8 %v1587
        %v1589 = vlaneseq
        %v1590 = vshrl.u32 %v1589, 7
        %v1591 = vsub.s32 %v1588, %v1590
        %v1592 = vrot.slane %v1564, %v1591
        %v1593 = vcombine.high %v1571, %v1571
        %v1594 = vcombine.high %v1578, %v1578
        %v1595 = vcombine.high %v1585, %v1585
        %v1596 = vcombine.high %v1592, %v1592
        %v1597 = vcombine.high %v1289, %v1289
        %v1599 = vunpack.c.l.s4 1966171168
        %v1600 = vunpack.c.0.s8 %v1599
        %v1601 = vlaneseq
        %v1602 = vshrl.u32 %v1601, 7
        %v1603 = vsub.s32 %v1600, %v1602
        %v1604 = vrot.slane %v1289, %v1603
        %v1606 = vunpack.c.l.s4 1966171168
        %v1607 = vunpack.c.0.s8 %v1606
        %v1608 = vlaneseq
        %v1609 = vshrl.u32 %v1608, 7
        %v1610 = vsub.s32 %v1607, %v1609
        %v1611 = vrot.slane %v1597, %v1610
        %v1612 = vcombine.high %v1604, %v1604
        %v1613 = vcombine.high %v1611, %v1611
        %v1615 = vunpack.c.l.s4 1966171168
        %v1616 = vunpack.c.0.s8 %v1615
        %v1617 = vlaneseq
        %v1618 = vshrl.u32 %v1617, 7
        %v1619 = vsub.s32 %v1616, %v1618
        %v1620 = vrot.slane %v1604, %v1619
        %v1622 = vunpack.c.l.s4 1966171168
        %v1623 = vunpack.c.0.s8 %v1622
        %v1624 = vlaneseq
        %v1625 = vshrl.u32 %v1624, 7
        %v1626 = vsub.s32 %v1623, %v1625
        %v1627 = vrot.slane %v1611, %v1626
        %v1629 = vunpack.c.l.s4 1966171168
        %v1630 = vunpack.c.0.s8 %v1629
        %v1631 = vlaneseq
        %v1632 = vshrl.u32 %v1631, 7
        %v1633 = vsub.s32 %v1630, %v1632
        %v1634 = vrot.slane %v1612, %v1633
        %v1636 = vunpack.c.l.s4 1966171168
        %v1637 = vunpack.c.0.s8 %v1636
        %v1638 = vlaneseq
        %v1639 = vshrl.u32 %v1638, 7
        %v1640 = vsub.s32 %v1637, %v1639
        %v1641 = vrot.slane %v1613, %v1640
        %v1642 = vcombine.high %v1620, %v1620
        %v1643 = vcombine.high %v1627, %v1627
        %v1644 = vcombine.high %v1634, %v1634
        %v1645 = vcombine.high %v1641, %v1641
        %v1918 = vunpack.c.l.b16 %v1290
        %v1919 = vunpack.c.l.b16 %v1291
        %v1920 = vunpack.c.l.b16 %v1292
        %v1921 = vunpack.c.l.b16 %v1293
        %v1922 = vunpack.c.l.b16 %v1294
        %v1923 = vunpack.c.l.b16 %v1295
        %v1924 = vunpack.c.l.b16 %v1296
        %v1925 = vunpack.c.l.b16 %v1297
        %v1926 = vunpack.c.l.b16 %v1298
        %v1927 = vunpack.c.l.b16 %v1299
        %v1928 = vunpack.c.l.b16 %v1300
        %v1929 = vunpack.c.l.b16 %v1301
        %v1930 = vunpack.c.l.b16 %v1302
        %v1931 = vunpack.c.l.b16 %v1303
        %v1932 = vunpack.c.l.b16 %v1304
        %v1933 = vunpack.c.l.b16 %v1305
        %v1934 = vunpack.c.l.b16 %v1306
        %v1935 = vunpack.c.l.b16 %v1307
        %v1936 = vunpack.c.l.b16 %v1308
        %v1937 = vunpack.c.l.b16 %v1309
        %v1938 = vunpack.c.l.b16 %v1310
        %v1939 = vunpack.c.l.b16 %v1311
        %v1940 = vunpack.c.l.b16 %v1312
        %v1941 = vunpack.c.l.b16 %v1313
        %v1942 = vunpack.c.l.b16 %v1314
        %v1943 = vunpack.c.l.b16 %v1315
        %v1944 = vunpack.c.l.b16 %v1316
        %v1945 = vunpack.c.l.b16 %v1317
        %v1946 = vunpack.c.l.b16 %v1318
        %v1947 = vunpack.c.l.b16 %v1319
        %v1948 = vunpack.c.l.b16 %v1320
        %v1949 = vunpack.c.l.b16 %v1321
        %v1950 = vunpack.c.l.b16 %v1322
        %v1951 = vunpack.c.l.b16 %v1323
        %v1952 = vunpack.c.l.b16 %v1324
        %v1953 = vunpack.c.l.b16 %v1325
        %v1954 = vunpack.c.l.b16 %v1326
        %v1955 = vunpack.c.l.b16 %v1327
        %v1956 = vunpack.c.l.b16 %v1328
        %v1957 = vunpack.c.l.b16 %v1329
        %v1958 = vunpack.c.l.b16 %v1330
        %v1959 = vunpack.c.l.b16 %v1331
        %v1960 = vunpack.c.l.b16 %v1332
        %v1961 = vunpack.c.l.b16 %v1333
        %v1962 = vunpack.c.l.b16 %v1334
        %v1963 = vunpack.c.l.b16 %v1335
        %v1964 = vunpack.c.l.b16 %v1336
        %v1965 = vunpack.c.l.b16 %v1337
        %v1966 = vunpack.c.l.b16 %v1338
        %v1967 = vunpack.c.l.b16 %v1339
        %v1968 = vunpack.c.l.b16 %v1340
        %v1969 = vunpack.c.l.b16 %v1341
        %v1970 = vunpack.c.l.b16 %v1342
        %v1971 = vunpack.c.l.b16 %v1343
        %v1972 = vunpack.c.l.b16 %v1344
        %v1973 = vunpack.c.l.b16 %v1345
        %v1974 = vunpack.c.l.b16 %v1346
        %v1975 = vunpack.c.l.b16 %v1347
        %v1976 = vunpack.c.l.b16 %v1348
        %v1977 = vunpack.c.l.b16 %v1349
        %v1978 = vunpack.c.l.b16 %v1350
        %v1979 = vunpack.c.l.b16 %v1351
        %v1980 = vunpack.c.l.b16 %v1352
        %v1981 = vunpack.c.l.b16 %v1353
        %v1982 = vunpack.c.l.b16 %v1354
        %v1983 = vunpack.c.l.b16 %v1355
        %v1984 = vunpack.c.l.b16 %v1356
        %v1985 = vunpack.c.l.b16 %v1357
        %v1986 = vunpack.c.l.b16 %v1358
        %v1987 = vunpack.c.l.b16 %v1359
        %v1988 = vunpack.c.l.b16 %v1360
        %v1989 = vunpack.c.l.b16 %v1361
        %v1990 = vunpack.c.l.b16 %v1362
        %v1991 = vunpack.c.l.b16 %v1363
        %v1992 = vunpack.c.l.b16 %v1364
        %v1993 = vunpack.c.l.b16 %v1365
        %v1994 = vunpack.c.l.b16 %v1366
        %v1995 = vunpack.c.l.b16 %v1367
        %v1996 = vunpack.c.l.b16 %v1368
        %v1997 = vunpack.c.l.b16 %v1369
        %v1998 = vunpack.c.l.b16 %v1370
        %v1999 = vunpack.c.l.b16 %v1371
        %v2000 = vunpack.c.l.b16 %v1372
        %v2001 = vunpack.c.l.b16 %v1373
        %v2002 = vunpack.c.l.b16 %v1374
        %v2003 = vunpack.c.l.b16 %v1375
        %v2004 = vunpack.c.l.b16 %v1376
        %v2005 = vunpack.c.l.b16 %v1377
        %v2006 = vunpack.c.l.b16 %v1378
        %v2007 = vunpack.c.l.b16 %v1379
        %v2008 = vunpack.c.l.b16 %v1380
        %v2009 = vunpack.c.l.b16 %v1381
        %v2010 = vunpack.c.l.b16 %v1382
        %v2011 = vunpack.c.l.b16 %v1383
        %v2012 = vunpack.c.l.b16 %v1384
        %v2013 = vunpack.c.l.b16 %v1385
        %v2014 = vunpack.c.l.b16 %v1386
        %v2015 = vunpack.c.l.b16 %v1387
        %v2016 = vunpack.c.l.b16 %v1388
        %v2017 = vunpack.c.l.b16 %v1389
        %v2018 = vunpack.c.l.b16 %v1390
        %v2019 = vunpack.c.l.b16 %v1391
        %v2020 = vunpack.c.l.b16 %v1392
        %v2021 = vunpack.c.l.b16 %v1393
        %v2022 = vunpack.c.l.b16 %v1394
        %v2023 = vunpack.c.l.b16 %v1395
        %v2024 = vunpack.c.l.b16 %v1396
        %v2025 = vunpack.c.l.b16 %v1397
        %v2026 = vunpack.c.l.b16 %v1398
        %v2027 = vunpack.c.l.b16 %v1399
        %v2028 = vunpack.c.l.b16 %v1400
        %v2029 = vunpack.c.l.b16 %v1401
        %v2030 = vunpack.c.l.b16 %v1402
        %v2031 = vunpack.c.l.b16 %v1403
        %v2032 = vunpack.c.l.b16 %v1404
        %v2033 = vunpack.c.l.b16 %v1405
        %v2034 = vunpack.c.l.b16 %v1406
        %v2035 = vunpack.c.l.b16 %v1407
        %v2036 = vunpack.c.l.b16 %v1408
        %v2037 = vunpack.c.l.b16 %v1409
        %v2038 = vunpack.c.l.b16 %v1410
        %v2039 = vunpack.c.l.b16 %v1411
        %v2040 = vunpack.c.l.b16 %v1412
        %v2041 = vunpack.c.l.b16 %v1413
        %v2042 = vunpack.c.l.b16 %v1414
        %v2043 = vunpack.c.l.b16 %v1415
        %v2044 = vunpack.c.l.b16 %v1416
        %v2045 = vunpack.c.l.b16 %v1417
        %v2046 = vunpack.c.l.b16 %v1418
        %v2047 = vunpack.c.l.b16 %v1419
        %v2048 = vunpack.c.l.b16 %v1420
        %v2049 = vunpack.c.l.b16 %v1421
        %v2050 = vunpack.c.l.b16 %v1422
        %v2051 = vunpack.c.l.b16 %v1423
        %v2052 = vunpack.c.l.b16 %v1424
        %v2053 = vunpack.c.l.b16 %v1425
        %v2054 = vunpack.c.l.b16 %v1426
        %v2055 = vunpack.c.l.b16 %v1427
        %v2056 = vunpack.c.l.b16 %v1428
        %v2057 = vunpack.c.l.b16 %v1429
        %v2058 = vunpack.c.l.b16 %v1430
        %v2059 = vunpack.c.l.b16 %v1431
        %v2060 = vunpack.c.l.b16 %v1432
        %v2061 = vunpack.c.l.b16 %v1433
        %v2062 = vunpack.c.l.b16 %v1434
        %v2063 = vunpack.c.l.b16 %v1435
        %v2064 = vunpack.c.l.b16 %v1436
        %v2065 = vunpack.c.l.b16 %v1437
        %v2066 = vunpack.c.l.b16 %v1438
        %v2067 = vunpack.c.l.b16 %v1439
        %v2068 = vunpack.c.l.b16 %v1440
        %v2069 = vunpack.c.l.b16 %v1441
        %v2070 = vunpack.c.l.b16 %v1442
        %v2071 = vunpack.c.l.b16 %v1443
        %v2072 = vunpack.c.l.b16 %v1444
        %v2073 = vunpack.c.l.b16 %v1445
        %v2074 = vunpack.c.l.b16 %v1446
        %v2075 = vunpack.c.l.b16 %v1447
        %v2076 = vunpack.c.l.b16 %v1448
        %v2077 = vunpack.c.l.b16 %v1449
        %v2078 = vunpack.c.l.b16 %v1450
        %v2079 = vunpack.c.l.b16 %v1451
        %v2080 = vunpack.c.l.b16 %v1452
        %v2081 = vunpack.c.l.b16 %v1453
        %v2082 = vunpack.c.l.b16 %v1454
        %v2083 = vunpack.c.l.b16 %v1455
        %v2084 = vunpack.c.l.b16 %v1456
        %v2085 = vunpack.c.l.b16 %v1457
        %v2086 = vunpack.c.l.b16 %v1458
        %v2087 = vunpack.c.l.b16 %v1459
        %v2088 = vunpack.c.l.b16 %v1460
        %v2089 = vunpack.c.l.b16 %v1461
        %v2090 = vunpack.c.l.b16 %v1462
        %v2091 = vunpack.c.l.b16 %v1463
        %v2092 = vunpack.c.l.b16 %v1464
        %v2093 = vunpack.c.l.b16 %v1465
        %v2094 = vunpack.c.l.b16 %v1466
        %v2095 = vunpack.c.l.b16 %v1467
        %v2096 = vunpack.c.l.b16 %v1468
        %v2097 = vunpack.c.l.b16 %v1469
        %v2098 = vunpack.c.l.b16 %v1470
        %v2099 = vunpack.c.l.b16 %v1471
        %v2100 = vunpack.c.l.b16 %v1472
        %v2101 = vunpack.c.l.b16 %v1473
        %v2102 = vunpack.c.l.b16 %v1474
        %v2103 = vunpack.c.l.b16 %v1475
        %v2104 = vunpack.c.l.b16 %v1476
        %v2105 = vunpack.c.l.b16 %v1477
        %v2106 = vunpack.c.l.b16 %v1478
        %v2107 = vunpack.c.l.b16 %v1479
        %v2108 = vunpack.c.l.b16 %v1480
        %v2109 = vunpack.c.l.b16 %v1481
        %v2110 = vunpack.c.l.b16 %v1482
        %v2111 = vunpack.c.l.b16 %v1483
        %v2112 = vunpack.c.l.b16 %v1484
        %v2113 = vunpack.c.l.b16 %v1485
        %v2114 = vunpack.c.l.b16 %v1486
        %v2115 = vunpack.c.l.b16 %v1487
        %v2116 = vunpack.c.l.b16 %v1488
        %v2117 = vunpack.c.l.b16 %v1489
        %v2118 = vunpack.c.l.b16 %v1490
        %v2119 = vunpack.c.l.b16 %v1491
        %v2120 = vunpack.c.l.b16 %v1492
        %v2121 = vunpack.c.l.b16 %v1493
        %v2122 = vunpack.c.l.b16 %v1494
        %v2123 = vunpack.c.l.b16 %v1495
        %v2124 = vunpack.c.l.b16 %v1496
        %v2125 = vunpack.c.l.b16 %v1497
        %v2126 = vunpack.c.l.b16 %v1498
        %v2127 = vunpack.c.l.b16 %v1499
        %v2128 = vunpack.c.l.b16 %v1500
        %v2129 = vunpack.c.l.b16 %v1501
        %v2130 = vunpack.c.l.b16 %v1502
        %v2131 = vunpack.c.l.b16 %v1503
        %v2132 = vunpack.c.l.b16 %v1504
        %v2133 = vunpack.c.l.b16 %v1505
        %v2134 = vunpack.c.l.b16 %v1506
        %v2135 = vunpack.c.l.b16 %v1507
        %v2136 = vunpack.c.l.b16 %v1508
        %v2137 = vunpack.c.l.b16 %v1509
        %v2138 = vunpack.c.l.b16 %v1510
        %v2139 = vunpack.c.l.b16 %v1511
        %v2140 = vunpack.c.l.b16 %v1512
        %v2141 = vunpack.c.l.b16 %v1513
        %v2142 = vunpack.c.l.b16 %v1514
        %v2143 = vunpack.c.l.b16 %v1515
        %v2144 = vunpack.c.l.b16 %v1516
        %v2145 = vunpack.c.l.b16 %v1517
        %v2146 = vunpack.c.l.b16 %v1518
        %v2147 = vunpack.c.l.b16 %v1519
        %v2148 = vunpack.c.l.b16 %v1520
        %v2149 = vunpack.c.l.b16 %v1521
        %v2150 = vunpack.c.l.b16 %v1522
        %v2151 = vunpack.c.l.b16 %v1523
        %v2152 = vunpack.c.l.b16 %v1524
        %v2153 = vunpack.c.l.b16 %v1525
        %v2154 = vunpack.c.l.b16 %v1526
        %v2155 = vunpack.c.l.b16 %v1527
        %v2156 = vunpack.c.l.b16 %v1528
        %v2157 = vunpack.c.l.b16 %v1529
        %v2158 = vunpack.c.l.b16 %v1530
        %v2159 = vunpack.c.l.b16 %v1531
        %v2160 = vunpack.c.l.b16 %v1532
        %v2161 = vunpack.c.l.b16 %v1533
        %v2162 = vunpack.c.l.b16 %v1534
        %v2163 = vunpack.c.l.b16 %v1535
        %v2164 = vunpack.c.l.b16 %v1536
        %v2165 = vunpack.c.l.b16 %v1537
        %v2166 = vunpack.c.l.b16 %v1538
        %v2167 = vunpack.c.l.b16 %v1539
        %v2168 = vunpack.c.l.b16 %v1540
        %v2169 = vunpack.c.l.b16 %v1541
        %v2170 = vunpack.c.l.b16 %v1542
        %v2171 = vunpack.c.l.b16 %v1543
        %v2172 = vunpack.c.l.b16 %v1544
        %v2173 = vunpack.c.l.b16 %v1545
        %v2174 = vpack.c.b16 %v1919, %v1918
        %v2175 = vpack.c.b16 %v1921, %v1920
        %v2176 = vpack.c.b16 %v1923, %v1922
        %v2177 = vpack.c.b16 %v1925, %v1924
        %v2178 = vpack.c.b16 %v1927, %v1926
        %v2179 = vpack.c.b16 %v1929, %v1928
        %v2180 = vpack.c.b16 %v1931, %v1930
        %v2181 = vpack.c.b16 %v1933, %v1932
        %v2182 = vpack.c.b16 %v1935, %v1934
        %v2183 = vpack.c.b16 %v1937, %v1936
        %v2184 = vpack.c.b16 %v1939, %v1938
        %v2185 = vpack.c.b16 %v1941, %v1940
        %v2186 = vpack.c.b16 %v1943, %v1942
        %v2187 = vpack.c.b16 %v1945, %v1944
        %v2188 = vpack.c.b16 %v1947, %v1946
        %v2189 = vpack.c.b16 %v1949, %v1948
        %v2190 = vpack.c.b16 %v1951, %v1950
        %v2191 = vpack.c.b16 %v1953, %v1952
        %v2192 = vpack.c.b16 %v1955, %v1954
        %v2193 = vpack.c.b16 %v1957, %v1956
        %v2194 = vpack.c.b16 %v1959, %v1958
        %v2195 = vpack.c.b16 %v1961, %v1960
        %v2196 = vpack.c.b16 %v1963, %v1962
        %v2197 = vpack.c.b16 %v1965, %v1964
        %v2198 = vpack.c.b16 %v1967, %v1966
        %v2199 = vpack.c.b16 %v1969, %v1968
        %v2200 = vpack.c.b16 %v1971, %v1970
        %v2201 = vpack.c.b16 %v1973, %v1972
        %v2202 = vpack.c.b16 %v1975, %v1974
        %v2203 = vpack.c.b16 %v1977, %v1976
        %v2204 = vpack.c.b16 %v1979, %v1978
        %v2205 = vpack.c.b16 %v1981, %v1980
        %v2206 = vpack.c.b16 %v1983, %v1982
        %v2207 = vpack.c.b16 %v1985, %v1984
        %v2208 = vpack.c.b16 %v1987, %v1986
        %v2209 = vpack.c.b16 %v1989, %v1988
        %v2210 = vpack.c.b16 %v1991, %v1990
        %v2211 = vpack.c.b16 %v1993, %v1992
        %v2212 = vpack.c.b16 %v1995, %v1994
        %v2213 = vpack.c.b16 %v1997, %v1996
        %v2214 = vpack.c.b16 %v1999, %v1998
        %v2215 = vpack.c.b16 %v2001, %v2000
        %v2216 = vpack.c.b16 %v2003, %v2002
        %v2217 = vpack.c.b16 %v2005, %v2004
        %v2218 = vpack.c.b16 %v2007, %v2006
        %v2219 = vpack.c.b16 %v2009, %v2008
        %v2220 = vpack.c.b16 %v2011, %v2010
        %v2221 = vpack.c.b16 %v2013, %v2012
        %v2222 = vpack.c.b16 %v2015, %v2014
        %v2223 = vpack.c.b16 %v2017, %v2016
        %v2224 = vpack.c.b16 %v2019, %v2018
        %v2225 = vpack.c.b16 %v2021, %v2020
        %v2226 = vpack.c.b16 %v2023, %v2022
        %v2227 = vpack.c.b16 %v2025, %v2024
        %v2228 = vpack.c.b16 %v2027, %v2026
        %v2229 = vpack.c.b16 %v2029, %v2028
        %v2230 = vpack.c.b16 %v2031, %v2030
        %v2231 = vpack.c.b16 %v2033, %v2032
        %v2232 = vpack.c.b16 %v2035, %v2034
        %v2233 = vpack.c.b16 %v2037, %v2036
        %v2234 = vpack.c.b16 %v2039, %v2038
        %v2235 = vpack.c.b16 %v2041, %v2040
        %v2236 = vpack.c.b16 %v2043, %v2042
        %v2237 = vpack.c.b16 %v2045, %v2044
        %v2238 = vpack.c.b16 %v2047, %v2046
        %v2239 = vpack.c.b16 %v2049, %v2048
        %v2240 = vpack.c.b16 %v2051, %v2050
        %v2241 = vpack.c.b16 %v2053, %v2052
        %v2242 = vpack.c.b16 %v2055, %v2054
        %v2243 = vpack.c.b16 %v2057, %v2056
        %v2244 = vpack.c.b16 %v2059, %v2058
        %v2245 = vpack.c.b16 %v2061, %v2060
        %v2246 = vpack.c.b16 %v2063, %v2062
        %v2247 = vpack.c.b16 %v2065, %v2064
        %v2248 = vpack.c.b16 %v2067, %v2066
        %v2249 = vpack.c.b16 %v2069, %v2068
        %v2250 = vpack.c.b16 %v2071, %v2070
        %v2251 = vpack.c.b16 %v2073, %v2072
        %v2252 = vpack.c.b16 %v2075, %v2074
        %v2253 = vpack.c.b16 %v2077, %v2076
        %v2254 = vpack.c.b16 %v2079, %v2078
        %v2255 = vpack.c.b16 %v2081, %v2080
        %v2256 = vpack.c.b16 %v2083, %v2082
        %v2257 = vpack.c.b16 %v2085, %v2084
        %v2258 = vpack.c.b16 %v2087, %v2086
        %v2259 = vpack.c.b16 %v2089, %v2088
        %v2260 = vpack.c.b16 %v2091, %v2090
        %v2261 = vpack.c.b16 %v2093, %v2092
        %v2262 = vpack.c.b16 %v2095, %v2094
        %v2263 = vpack.c.b16 %v2097, %v2096
        %v2264 = vpack.c.b16 %v2099, %v2098
        %v2265 = vpack.c.b16 %v2101, %v2100
        %v2266 = vpack.c.b16 %v2103, %v2102
        %v2267 = vpack.c.b16 %v2105, %v2104
        %v2268 = vpack.c.b16 %v2107, %v2106
        %v2269 = vpack.c.b16 %v2109, %v2108
        %v2270 = vpack.c.b16 %v2111, %v2110
        %v2271 = vpack.c.b16 %v2113, %v2112
        %v2272 = vpack.c.b16 %v2115, %v2114
        %v2273 = vpack.c.b16 %v2117, %v2116
        %v2274 = vpack.c.b16 %v2119, %v2118
        %v2275 = vpack.c.b16 %v2121, %v2120
        %v2276 = vpack.c.b16 %v2123, %v2122
        %v2277 = vpack.c.b16 %v2125, %v2124
        %v2278 = vpack.c.b16 %v2127, %v2126
        %v2279 = vpack.c.b16 %v2129, %v2128
        %v2280 = vpack.c.b16 %v2131, %v2130
        %v2281 = vpack.c.b16 %v2133, %v2132
        %v2282 = vpack.c.b16 %v2135, %v2134
        %v2283 = vpack.c.b16 %v2137, %v2136
        %v2284 = vpack.c.b16 %v2139, %v2138
        %v2285 = vpack.c.b16 %v2141, %v2140
        %v2286 = vpack.c.b16 %v2143, %v2142
        %v2287 = vpack.c.b16 %v2145, %v2144
        %v2288 = vpack.c.b16 %v2147, %v2146
        %v2289 = vpack.c.b16 %v2149, %v2148
        %v2290 = vpack.c.b16 %v2151, %v2150
        %v2291 = vpack.c.b16 %v2153, %v2152
        %v2292 = vpack.c.b16 %v2155, %v2154
        %v2293 = vpack.c.b16 %v2157, %v2156
        %v2294 = vpack.c.b16 %v2159, %v2158
        %v2295 = vpack.c.b16 %v2161, %v2160
        %v2296 = vpack.c.b16 %v2163, %v2162
        %v2297 = vpack.c.b16 %v2165, %v2164
        %v2298 = vpack.c.b16 %v2167, %v2166
        %v2299 = vpack.c.b16 %v2169, %v2168
        %v2300 = vpack.c.b16 %v2171, %v2170
        %v2301 = vpack.c.b16 %v2173, %v2172
        %2430 = vmatprep.subr.bf16.mxu0 0
        %2431 = vmatpush1.bf16.msra.mxu0 %v2174
        %2432 = vmatprep.subr.bf16.mxu0 0
        %2433 = vmatpush1.bf16.msra.mxu0 %v2175
        %2434 = vmatprep.subr.bf16.mxu0 0
        %2435 = vmatpush1.bf16.msra.mxu0 %v2176
        %2436 = vmatprep.subr.bf16.mxu0 0
        %2437 = vmatpush1.bf16.msra.mxu0 %v2177
        %2438 = vmatprep.subr.bf16.mxu0 0
        %2439 = vmatpush1.bf16.msra.mxu0 %v2178
        %2440 = vmatprep.subr.bf16.mxu0 0
        %2441 = vmatpush1.bf16.msra.mxu0 %v2179
        %2442 = vmatprep.subr.bf16.mxu0 0
        %2443 = vmatpush1.bf16.msra.mxu0 %v2180
        %2444 = vmatprep.subr.bf16.mxu0 0
        %2445 = vmatpush1.bf16.msra.mxu0 %v2181
        %2446 = vmatprep.subr.bf16.mxu0 0
        %2447 = vmatpush1.bf16.msra.mxu0 %v2182
        %2448 = vmatprep.subr.bf16.mxu0 0
        %2449 = vmatpush1.bf16.msra.mxu0 %v2183
        %2450 = vmatprep.subr.bf16.mxu0 0
        %2451 = vmatpush1.bf16.msra.mxu0 %v2184
        %2452 = vmatprep.subr.bf16.mxu0 0
        %2453 = vmatpush1.bf16.msra.mxu0 %v2185
        %2454 = vmatprep.subr.bf16.mxu0 0
        %2455 = vmatpush1.bf16.msra.mxu0 %v2186
        %2456 = vmatprep.subr.bf16.mxu0 0
        %2457 = vmatpush1.bf16.msra.mxu0 %v2187
        %2458 = vmatprep.subr.bf16.mxu0 0
        %2459 = vmatpush1.bf16.msra.mxu0 %v2188
        %2460 = vmatprep.subr.bf16.mxu0 0
        %2461 = vmatpush1.bf16.msra.mxu0 %v2189
        %2462 = vmatprep.mubr.bf16.mxu0 %v1585
        %2463 = vmatmul.mubr.bf16.gmra.mrb[0].mxu0 %v1571
        %v2464 = vpop.f32.mrb[0].mxu0
        %v2465 = vadd.f32 0.0, %v2464
        %v2466 = vpop.f32.mrb[0].mxu0
        %v2467 = vpop.f32.mrb[0].mxu0
        %v2468 = vpop.f32.mrb[0].mxu0
        %2469 = vdwg.mxu0
        %2470 = vmatprep.subr.bf16.mxu0 0
        %2471 = vmatpush1.bf16.msra.mxu0 %v2190
        %2472 = vmatprep.subr.bf16.mxu0 0
        %2473 = vmatpush1.bf16.msra.mxu0 %v2191
        %2474 = vmatprep.subr.bf16.mxu0 0
        %2475 = vmatpush1.bf16.msra.mxu0 %v2192
        %2476 = vmatprep.subr.bf16.mxu0 0
        %2477 = vmatpush1.bf16.msra.mxu0 %v2193
        %2478 = vmatprep.subr.bf16.mxu0 0
        %2479 = vmatpush1.bf16.msra.mxu0 %v2194
        %2480 = vmatprep.subr.bf16.mxu0 0
        %2481 = vmatpush1.bf16.msra.mxu0 %v2195
        %2482 = vmatprep.subr.bf16.mxu0 0
        %2483 = vmatpush1.bf16.msra.mxu0 %v2196
        %2484 = vmatprep.subr.bf16.mxu0 0
        %2485 = vmatpush1.bf16.msra.mxu0 %v2197
        %2486 = vmatprep.subr.bf16.mxu0 0
        %2487 = vmatpush1.bf16.msra.mxu0 %v2198
        %2488 = vmatprep.subr.bf16.mxu0 0
        %2489 = vmatpush1.bf16.msra.mxu0 %v2199
        %2490 = vmatprep.subr.bf16.mxu0 0
        %2491 = vmatpush1.bf16.msra.mxu0 %v2200
        %2492 = vmatprep.subr.bf16.mxu0 0
        %2493 = vmatpush1.bf16.msra.mxu0 %v2201
        %2494 = vmatprep.subr.bf16.mxu0 0
        %2495 = vmatpush1.bf16.msra.mxu0 %v2202
        %2496 = vmatprep.subr.bf16.mxu0 0
        %2497 = vmatpush1.bf16.msra.mxu0 %v2203
        %2498 = vmatprep.subr.bf16.mxu0 0
        %2499 = vmatpush1.bf16.msra.mxu0 %v2204
        %2500 = vmatprep.subr.bf16.mxu0 0
        %2501 = vmatpush1.bf16.msra.mxu0 %v2205
        %2502 = vmatprep.mubr.bf16.mxu0 %v1595
        %2503 = vmatmul.mubr.bf16.gmra.mrb[0].mxu0 %v1593
        %v2504 = vpop.f32.mrb[0].mxu0
        %v2505 = vadd.f32 %v2465, %v2504
        %v2506 = vpop.f32.mrb[0].mxu0
        %v2507 = vpop.f32.mrb[0].mxu0
        %v2508 = vpop.f32.mrb[0].mxu0
        %2509 = vdwg.mxu0
        %2510 = vmatprep.subr.bf16.mxu0 0
        %2511 = vmatpush1.bf16.msra.mxu0 %v2206
        %2512 = vmatprep.subr.bf16.mxu0 0
        %2513 = vmatpush1.bf16.msra.mxu0 %v2207
        %2514 = vmatprep.subr.bf16.mxu0 0
        %2515 = vmatpush1.bf16.msra.mxu0 %v2208
        %2516 = vmatprep.subr.bf16.mxu0 0
        %2517 = vmatpush1.bf16.msra.mxu0 %v2209
        %2518 = vmatprep.subr.bf16.mxu0 0
        %2519 = vmatpush1.bf16.msra.mxu0 %v2210
        %2520 = vmatprep.subr.bf16.mxu0 0
        %2521 = vmatpush1.bf16.msra.mxu0 %v2211
        %2522 = vmatprep.subr.bf16.mxu0 0
        %2523 = vmatpush1.bf16.msra.mxu0 %v2212
        %2524 = vmatprep.subr.bf16.mxu0 0
        %2525 = vmatpush1.bf16.msra.mxu0 %v2213
        %2526 = vmatprep.subr.bf16.mxu0 0
        %2527 = vmatpush1.bf16.msra.mxu0 %v2214
        %2528 = vmatprep.subr.bf16.mxu0 0
        %2529 = vmatpush1.bf16.msra.mxu0 %v2215
        %2530 = vmatprep.subr.bf16.mxu0 0
        %2531 = vmatpush1.bf16.msra.mxu0 %v2216
        %2532 = vmatprep.subr.bf16.mxu0 0
        %2533 = vmatpush1.bf16.msra.mxu0 %v2217
        %2534 = vmatprep.subr.bf16.mxu0 0
        %2535 = vmatpush1.bf16.msra.mxu0 %v2218
        %2536 = vmatprep.subr.bf16.mxu0 0
        %2537 = vmatpush1.bf16.msra.mxu0 %v2219
        %2538 = vmatprep.subr.bf16.mxu0 0
        %2539 = vmatpush1.bf16.msra.mxu0 %v2220
        %2540 = vmatprep.subr.bf16.mxu0 0
        %2541 = vmatpush1.bf16.msra.mxu0 %v2221
        %2542 = vmatprep.mubr.bf16.mxu0 %v1592
        %2543 = vmatmul.mubr.bf16.gmra.mrb[0].mxu0 %v1578
        %v2544 = vpop.f32.mrb[0].mxu0
        %v2545 = vadd.f32 %v2505, %v2544
        %v2546 = vpop.f32.mrb[0].mxu0
        %v2547 = vpop.f32.mrb[0].mxu0
        %v2548 = vpop.f32.mrb[0].mxu0
        %2549 = vdwg.mxu0
        %2550 = vmatprep.subr.bf16.mxu0 0
        %2551 = vmatpush1.bf16.msra.mxu0 %v2222
        %2552 = vmatprep.subr.bf16.mxu0 0
        %2553 = vmatpush1.bf16.msra.mxu0 %v2223
        %2554 = vmatprep.subr.bf16.mxu0 0
        %2555 = vmatpush1.bf16.msra.mxu0 %v2224
        %2556 = vmatprep.subr.bf16.mxu0 0
        %2557 = vmatpush1.bf16.msra.mxu0 %v2225
        %2558 = vmatprep.subr.bf16.mxu0 0
        %2559 = vmatpush1.bf16.msra.mxu0 %v2226
        %2560 = vmatprep.subr.bf16.mxu0 0
        %2561 = vmatpush1.bf16.msra.mxu0 %v2227
        %2562 = vmatprep.subr.bf16.mxu0 0
        %2563 = vmatpush1.bf16.msra.mxu0 %v2228
        %2564 = vmatprep.subr.bf16.mxu0 0
        %2565 = vmatpush1.bf16.msra.mxu0 %v2229
        %2566 = vmatprep.subr.bf16.mxu0 0
        %2567 = vmatpush1.bf16.msra.mxu0 %v2230
        %2568 = vmatprep.subr.bf16.mxu0 0
        %2569 = vmatpush1.bf16.msra.mxu0 %v2231
        %2570 = vmatprep.subr.bf16.mxu0 0
        %2571 = vmatpush1.bf16.msra.mxu0 %v2232
        %2572 = vmatprep.subr.bf16.mxu0 0
        %2573 = vmatpush1.bf16.msra.mxu0 %v2233
        %2574 = vmatprep.subr.bf16.mxu0 0
        %2575 = vmatpush1.bf16.msra.mxu0 %v2234
        %2576 = vmatprep.subr.bf16.mxu0 0
        %2577 = vmatpush1.bf16.msra.mxu0 %v2235
        %2578 = vmatprep.subr.bf16.mxu0 0
        %2579 = vmatpush1.bf16.msra.mxu0 %v2236
        %2580 = vmatprep.subr.bf16.mxu0 0
        %2581 = vmatpush1.bf16.msra.mxu0 %v2237
        %2582 = vmatprep.mubr.bf16.mxu0 %v1596
        %2583 = vmatmul.mubr.bf16.gmra.mrb[0].mxu0 %v1594
        %v2584 = vpop.f32.mrb[0].mxu0
        %v2585 = vadd.f32 %v2545, %v2584
        %v2586 = vpop.f32.mrb[0].mxu0
        %v2587 = vpop.f32.mrb[0].mxu0
        %v2588 = vpop.f32.mrb[0].mxu0
        %2589 = vdwg.mxu0
        %2590 = vmatprep.subr.bf16.mxu0 0
        %2591 = vmatpush1.bf16.msra.mxu0 %v2238
        %2592 = vmatprep.subr.bf16.mxu0 0
        %2593 = vmatpush1.bf16.msra.mxu0 %v2239
        %2594 = vmatprep.subr.bf16.mxu0 0
        %2595 = vmatpush1.bf16.msra.mxu0 %v2240
        %2596 = vmatprep.subr.bf16.mxu0 0
        %2597 = vmatpush1.bf16.msra.mxu0 %v2241
        %2598 = vmatprep.subr.bf16.mxu0 0
        %2599 = vmatpush1.bf16.msra.mxu0 %v2242
        %2600 = vmatprep.subr.bf16.mxu0 0
        %2601 = vmatpush1.bf16.msra.mxu0 %v2243
        %2602 = vmatprep.subr.bf16.mxu0 0
        %2603 = vmatpush1.bf16.msra.mxu0 %v2244
        %2604 = vmatprep.subr.bf16.mxu0 0
        %2605 = vmatpush1.bf16.msra.mxu0 %v2245
        %2606 = vmatprep.subr.bf16.mxu0 0
        %2607 = vmatpush1.bf16.msra.mxu0 %v2246
        %2608 = vmatprep.subr.bf16.mxu0 0
        %2609 = vmatpush1.bf16.msra.mxu0 %v2247
        %2610 = vmatprep.subr.bf16.mxu0 0
        %2611 = vmatpush1.bf16.msra.mxu0 %v2248
        %2612 = vmatprep.subr.bf16.mxu0 0
        %2613 = vmatpush1.bf16.msra.mxu0 %v2249
        %2614 = vmatprep.subr.bf16.mxu0 0
        %2615 = vmatpush1.bf16.msra.mxu0 %v2250
        %2616 = vmatprep.subr.bf16.mxu0 0
        %2617 = vmatpush1.bf16.msra.mxu0 %v2251
        %2618 = vmatprep.subr.bf16.mxu0 0
        %2619 = vmatpush1.bf16.msra.mxu0 %v2252
        %2620 = vmatprep.subr.bf16.mxu0 0
        %2621 = vmatpush1.bf16.msra.mxu0 %v2253
        %2622 = vmatprep.mubr.bf16.mxu0 %v1634
        %2623 = vmatmul.mubr.bf16.gmra.mrb[0].mxu0 %v1620
        %v2624 = vpop.f32.mrb[0].mxu0
        %v2625 = vadd.f32 %v2585, %v2624
        %v2626 = vpop.f32.mrb[0].mxu0
        %v2627 = vpop.f32.mrb[0].mxu0
        %v2628 = vpop.f32.mrb[0].mxu0
        %2629 = vdwg.mxu0
        %2630 = vmatprep.subr.bf16.mxu0 0
        %2631 = vmatpush1.bf16.msra.mxu0 %v2254
        %2632 = vmatprep.subr.bf16.mxu0 0
        %2633 = vmatpush1.bf16.msra.mxu0 %v2255
        %2634 = vmatprep.subr.bf16.mxu0 0
        %2635 = vmatpush1.bf16.msra.mxu0 %v2256
        %2636 = vmatprep.subr.bf16.mxu0 0
        %2637 = vmatpush1.bf16.msra.mxu0 %v2257
        %2638 = vmatprep.subr.bf16.mxu0 0
        %2639 = vmatpush1.bf16.msra.mxu0 %v2258
        %2640 = vmatprep.subr.bf16.mxu0 0
        %2641 = vmatpush1.bf16.msra.mxu0 %v2259
        %2642 = vmatprep.subr.bf16.mxu0 0
        %2643 = vmatpush1.bf16.msra.mxu0 %v2260
        %2644 = vmatprep.subr.bf16.mxu0 0
        %2645 = vmatpush1.bf16.msra.mxu0 %v2261
        %2646 = vmatprep.subr.bf16.mxu0 0
        %2647 = vmatpush1.bf16.msra.mxu0 %v2262
        %2648 = vmatprep.subr.bf16.mxu0 0
        %2649 = vmatpush1.bf16.msra.mxu0 %v2263
        %2650 = vmatprep.subr.bf16.mxu0 0
        %2651 = vmatpush1.bf16.msra.mxu0 %v2264
        %2652 = vmatprep.subr.bf16.mxu0 0
        %2653 = vmatpush1.bf16.msra.mxu0 %v2265
        %2654 = vmatprep.subr.bf16.mxu0 0
        %2655 = vmatpush1.bf16.msra.mxu0 %v2266
        %2656 = vmatprep.subr.bf16.mxu0 0
        %2657 = vmatpush1.bf16.msra.mxu0 %v2267
        %2658 = vmatprep.subr.bf16.mxu0 0
        %2659 = vmatpush1.bf16.msra.mxu0 %v2268
        %2660 = vmatprep.subr.bf16.mxu0 0
        %2661 = vmatpush1.bf16.msra.mxu0 %v2269
        %2662 = vmatprep.mubr.bf16.mxu0 %v1644
        %2663 = vmatmul.mubr.bf16.gmra.mrb[0].mxu0 %v1642
        %v2664 = vpop.f32.mrb[0].mxu0
        %v2665 = vadd.f32 %v2625, %v2664
        %v2666 = vpop.f32.mrb[0].mxu0
        %v2667 = vpop.f32.mrb[0].mxu0
        %v2668 = vpop.f32.mrb[0].mxu0
        %2669 = vdwg.mxu0
        %2670 = vmatprep.subr.bf16.mxu0 0
        %2671 = vmatpush1.bf16.msra.mxu0 %v2270
        %2672 = vmatprep.subr.bf16.mxu0 0
        %2673 = vmatpush1.bf16.msra.mxu0 %v2271
        %2674 = vmatprep.subr.bf16.mxu0 0
        %2675 = vmatpush1.bf16.msra.mxu0 %v2272
        %2676 = vmatprep.subr.bf16.mxu0 0
        %2677 = vmatpush1.bf16.msra.mxu0 %v2273
        %2678 = vmatprep.subr.bf16.mxu0 0
        %2679 = vmatpush1.bf16.msra.mxu0 %v2274
        %2680 = vmatprep.subr.bf16.mxu0 0
        %2681 = vmatpush1.bf16.msra.mxu0 %v2275
        %2682 = vmatprep.subr.bf16.mxu0 0
        %2683 = vmatpush1.bf16.msra.mxu0 %v2276
        %2684 = vmatprep.subr.bf16.mxu0 0
        %2685 = vmatpush1.bf16.msra.mxu0 %v2277
        %2686 = vmatprep.subr.bf16.mxu0 0
        %2687 = vmatpush1.bf16.msra.mxu0 %v2278
        %2688 = vmatprep.subr.bf16.mxu0 0
        %2689 = vmatpush1.bf16.msra.mxu0 %v2279
        %2690 = vmatprep.subr.bf16.mxu0 0
        %2691 = vmatpush1.bf16.msra.mxu0 %v2280
        %2692 = vmatprep.subr.bf16.mxu0 0
        %2693 = vmatpush1.bf16.msra.mxu0 %v2281
        %2694 = vmatprep.subr.bf16.mxu0 0
        %2695 = vmatpush1.bf16.msra.mxu0 %v2282
        %2696 = vmatprep.subr.bf16.mxu0 0
        %2697 = vmatpush1.bf16.msra.mxu0 %v2283
        %2698 = vmatprep.subr.bf16.mxu0 0
        %2699 = vmatpush1.bf16.msra.mxu0 %v2284
        %2700 = vmatprep.subr.bf16.mxu0 0
        %2701 = vmatpush1.bf16.msra.mxu0 %v2285
        %2702 = vmatprep.mubr.bf16.mxu0 %v1641
        %2703 = vmatmul.mubr.bf16.gmra.mrb[0].mxu0 %v1627
        %v2704 = vpop.f32.mrb[0].mxu0
        %v2705 = vadd.f32 %v2665, %v2704
        %v2706 = vpop.f32.mrb[0].mxu0
        %v2707 = vpop.f32.mrb[0].mxu0
        %v2708 = vpop.f32.mrb[0].mxu0
        %2709 = vdwg.mxu0
        %2710 = vmatprep.subr.bf16.mxu0 0
        %2711 = vmatpush1.bf16.msra.mxu0 %v2286
        %2712 = vmatprep.subr.bf16.mxu0 0
        %2713 = vmatpush1.bf16.msra.mxu0 %v2287
        %2714 = vmatprep.subr.bf16.mxu0 0
        %2715 = vmatpush1.bf16.msra.mxu0 %v2288
        %2716 = vmatprep.subr.bf16.mxu0 0
        %2717 = vmatpush1.bf16.msra.mxu0 %v2289
        %2718 = vmatprep.subr.bf16.mxu0 0
        %2719 = vmatpush1.bf16.msra.mxu0 %v2290
        %2720 = vmatprep.subr.bf16.mxu0 0
        %2721 = vmatpush1.bf16.msra.mxu0 %v2291
        %2722 = vmatprep.subr.bf16.mxu0 0
        %2723 = vmatpush1.bf16.msra.mxu0 %v2292
        %2724 = vmatprep.subr.bf16.mxu0 0
        %2725 = vmatpush1.bf16.msra.mxu0 %v2293
        %2726 = vmatprep.subr.bf16.mxu0 0
        %2727 = vmatpush1.bf16.msra.mxu0 %v2294
        %2728 = vmatprep.subr.bf16.mxu0 0
        %2729 = vmatpush1.bf16.msra.mxu0 %v2295
        %2730 = vmatprep.subr.bf16.mxu0 0
        %2731 = vmatpush1.bf16.msra.mxu0 %v2296
        %2732 = vmatprep.subr.bf16.mxu0 0
        %2733 = vmatpush1.bf16.msra.mxu0 %v2297
        %2734 = vmatprep.subr.bf16.mxu0 0
        %2735 = vmatpush1.bf16.msra.mxu0 %v2298
        %2736 = vmatprep.subr.bf16.mxu0 0
        %2737 = vmatpush1.bf16.msra.mxu0 %v2299
        %2738 = vmatprep.subr.bf16.mxu0 0
        %2739 = vmatpush1.bf16.msra.mxu0 %v2300
        %2740 = vmatprep.subr.bf16.mxu0 0
        %2741 = vmatpush1.bf16.msra.mxu0 %v2301
        %2742 = vmatprep.mubr.bf16.mxu0 %v1645
        %2743 = vmatmul.mubr.bf16.gmra.mrb[0].mxu0 %v1643
        %v2744 = vpop.f32.mrb[0].mxu0
        %v2745 = vadd.f32 %v2705, %v2744
        %v2746 = vpop.f32.mrb[0].mxu0
        %v2747 = vpop.f32.mrb[0].mxu0
        %v2748 = vpop.f32.mrb[0].mxu0
        %2749 = vdwg.mxu0
        %v2750 = vadd.f32 %v1287, %v2745
        %2751 = vst [vmem:[%s1280] sm:$0x3] %v2750
        // Predicated region
        $region78: #{cvae_forward.7} parent=68 // pred_check
          %p2752 = pneg %p1282
        $region79: #{cvae_forward.7} parent=68 // pred_check_branch
          %2754 = sbr.rel (%p2752) target = $region81
        $region80: #{cvae_forward.7} parent=68 // pred_region
          %v2755 = vld [vmem:[%s1280] sm:$0x3]
          %v2756 = vld [vmem:[%s1276] sm:$0x1]
          %v2758 = vlaneseq
          %v2759 = vshrl.u32 %v2758, 7
          %v2760 = vsub.s32 0, %v2759
          %v2761 = vrot.slane %v2756, %v2760
          %v2763 = vadd.f32 %v2755, %v2761
          %vm2764 = vcmp.ge.f32.partialorder %v2763, 0.0
          %v2765 = vmul.f32 %v2763, 0.2
          %v2766 = vsel %vm2764, %v2763, %v2765
          %2767 = vst [vmem:[%s1280] sm:$0x3] %v2766
        $region81: #{cvae_forward.7} parent=68 // pred_fallthru
          _
        %p2768 = scmp.lt.s32.totalorder %s18, 1
        %s2769 = scalar_select %p2768, %s18, 1
        %s2770 = smul.addr %s2769, 2
        %s2771 = scalar_lea.vmem %s3, %s2770
        // Predicated region
        $region82: #{cvae_forward.7} parent=68 // pred_check
          %p2772 = pneg %p124
        $region83: #{cvae_forward.7} parent=68 // pred_check_branch
          %2774 = sbr.rel (%p2772) target = $region85
        $region84: #{cvae_forward.7} parent=68 // pred_region
          _
        $region85: #{cvae_forward.7} parent=68 // pred_fallthru
          _
      $region69: #{cvae_forward.7} parent=5 // pred_fallthru
        _
      %p2775 = scmp.le.s32.totalorder 2, %s9
      // Predicated region
      $region86: #{cvae_forward.7} parent=5 // pred_check
        %p2776 = pneg %p2775
      $region87: #{cvae_forward.7} parent=5 // pred_check_branch
        %2778 = sbr.rel (%p2776) target = $region89
      $region88: #{cvae_forward.7} parent=5 // pred_region
        %s2779 = ssub.s32 %s9, 2
        // Predicated region
        $region90: #{cvae_forward.7} parent=88 // pred_check
          %p2780 = pneg %p130
        $region91: #{cvae_forward.7} parent=88 // pred_check_branch
          %2782 = sbr.rel (%p2780) target = $region93
        $region92: #{cvae_forward.7} parent=88 // pred_region
          %p2783 = scmp.lt.s32.totalorder %s20, 1
          %s2784 = scalar_select %p2783, %s20, 1
          %s2785 = smul.addr %s2784, 2
          %s2786 = scalar_lea.vmem %s3, %s2785
        $region93: #{cvae_forward.7} parent=88 // pred_fallthru
          _
      $region89: #{cvae_forward.7} parent=5 // pred_fallthru
        _
    $region6: #{cvae_forward.7} parent=1 // loop_footer
      %s13 = sadd.s32 1, %s9
    $region7: #{cvae_forward.7} parent=1 // loop_footer_branch
      %8 = sbr.rel target = $region3
    $region8: #{cvae_forward.7} parent=1 // loop_exit
      _

// kernel: cvae_forward.8
$region0: #{cvae_forward.8}
  #allocation0 [shape = 'u32[]', space=smem, size = 0x4, offset = 0x4, fixed_abs, tag = 'smem constant byte address 0x4 - core index']
  #allocation1 [shape = 'u32[144,128]{1,0:T(1,128)}', space=vmem, size = 0x12000, scoped, tag = 'internal scratch']
  %s0 = inlined_call_operand.vmem [shape: bf16[8,2176], index: 0, kind: input, shape index: {}]
  %s1 = inlined_call_operand.vmem [shape: bf16[2176,128], index: 1, kind: input, shape index: {}]
  %s2 = inlined_call_operand.vmem [shape: f32[1,128], index: 2, kind: input, shape index: {}]
  %s3 = inlined_call_operand.vmem [shape: f32[8,128], index: 3, kind: output, shape index: {}]
  %s4 = sld [smem:[#allocation0]]
  $region30: #{cvae_forward.8} parent=0
    _
  %s6 = ssub.s32 1, %s4
  %s7 = scalar_select 0, %s6, %s4
  // Predicated region
  $region2: #{cvae_forward.8} parent=0 // pred_check
    _
  $region3: #{cvae_forward.8} parent=0 // pred_check_branch
    %9 = sbr.rel (0) target = $region5
  $region4: #{cvae_forward.8} parent=0 // pred_region
    _
  $region5: #{cvae_forward.8} parent=0 // pred_fallthru
    _
  // Predicated region
  $region6: #{cvae_forward.8} parent=0 // pred_check
    _
  $region7: #{cvae_forward.8} parent=0 // pred_check_branch
    %11 = sbr.rel (0) target = $region9
  $region8: #{cvae_forward.8} parent=0 // pred_region
    _
  $region9: #{cvae_forward.8} parent=0 // pred_fallthru
    _
  // Predicated region
  $region10: #{cvae_forward.8} parent=0 // pred_check
    _
  $region11: #{cvae_forward.8} parent=0 // pred_check_branch
    %13 = sbr.rel (0) target = $region13
  $region12: #{cvae_forward.8} parent=0 // pred_region
    _
  $region13: #{cvae_forward.8} parent=0 // pred_fallthru
    _
  %p15 = scmp.eq.s32.totalorder 0, 0
  // Predicated region
  $region14: #{cvae_forward.8} parent=0 // pred_check
    %p16 = pneg %p15
  $region15: #{cvae_forward.8} parent=0 // pred_check_branch
    %18 = sbr.rel (%p16) target = $region17
  $region16: #{cvae_forward.8} parent=0 // pred_region
    %19 = vst [vmem:[%s3] sm:$0xff] 0.0
  $region17: #{cvae_forward.8} parent=0 // pred_fallthru
    _
  %v20 = vld [vmem:[%s3] sm:$0xff]
  %v21 = vld [vmem:[%s0] sm:$0xff]
  %v22 = vld [vmem:[%s0 + $0x8] sm:$0xff]
  %v23 = vld [vmem:[%s0 + $0x10] sm:$0xff]
  %v24 = vld [vmem:[%s0 + $0x18] sm:$0xff]
  %v25 = vld [vmem:[%s0 + $0x20] sm:$0xff]
  %v26 = vld [vmem:[%s0 + $0x28] sm:$0xff]
  %v27 = vld [vmem:[%s0 + $0x30] sm:$0xff]
  %v28 = vld [vmem:[%s0 + $0x38] sm:$0xff]
  %v29 = vld [vmem:[%s0 + $0x40] sm:$0xf]
  %v30 = vld [vmem:[%s1] sm:$0xf]
  %v31 = vld [vmem:[%s1 + $0x4] sm:$0xf]
  %v32 = vld [vmem:[%s1 + $0x8] sm:$0xf]
  %v33 = vld [vmem:[%s1 + $0xc] sm:$0xf]
  %v34 = vld [vmem:[%s1 + $0x10] sm:$0xf]
  %v35 = vld [vmem:[%s1 + $0x14] sm:$0xf]
  %v36 = vld [vmem:[%s1 + $0x18] sm:$0xf]
  %v37 = vld [vmem:[%s1 + $0x1c] sm:$0xf]
  %v38 = vld [vmem:[%s1 + $0x20] sm:$0xf]
  %v39 = vld [vmem:[%s1 + $0x24] sm:$0xf]
  %v40 = vld [vmem:[%s1 + $0x28] sm:$0xf]
  %v41 = vld [vmem:[%s1 + $0x2c] sm:$0xf]
  %v42 = vld [vmem:[%s1 + $0x30] sm:$0xf]
  %v43 = vld [vmem:[%s1 + $0x34] sm:$0xf]
  %v44 = vld [vmem:[%s1 + $0x38] sm:$0xf]
  %v45 = vld [vmem:[%s1 + $0x3c] sm:$0xf]
  %v46 = vld [vmem:[%s1 + $0x40] sm:$0xf]
  %v47 = vld [vmem:[%s1 + $0x44] sm:$0xf]
  %v48 = vld [vmem:[%s1 + $0x48] sm:$0xf]
  %v49 = vld [vmem:[%s1 + $0x4c] sm:$0xf]
  %v50 = vld [vmem:[%s1 + $0x50] sm:$0xf]
  %v51 = vld [vmem:[%s1 + $0x54] sm:$0xf]
  %v52 = vld [vmem:[%s1 + $0x58] sm:$0xf]
  %v53 = vld [vmem:[%s1 + $0x5c] sm:$0xf]
  %v54 = vld [vmem:[%s1 + $0x60] sm:$0xf]
  %v55 = vld [vmem:[%s1 + $0x64] sm:$0xf]
  %v56 = vld [vmem:[%s1 + $0x68] sm:$0xf]
  %v57 = vld [vmem:[%s1 + $0x6c] sm:$0xf]
  %v58 = vld [vmem:[%s1 + $0x70] sm:$0xf]
  %v59 = vld [vmem:[%s1 + $0x74] sm:$0xf]
  %v60 = vld [vmem:[%s1 + $0x78] sm:$0xf]
  %v61 = vld [vmem:[%s1 + $0x7c] sm:$0xf]
  %v62 = vld [vmem:[%s1 + $0x80] sm:$0xf]
  %v63 = vld [vmem:[%s1 + $0x84] sm:$0xf]
  %v64 = vld [vmem:[%s1 + $0x88] sm:$0xf]
  %v65 = vld [vmem:[%s1 + $0x8c] sm:$0xf]
  %v66 = vld [vmem:[%s1 + $0x90] sm:$0xf]
  %v67 = vld [vmem:[%s1 + $0x94] sm:$0xf]
  %v68 = vld [vmem:[%s1 + $0x98] sm:$0xf]
  %v69 = vld [vmem:[%s1 + $0x9c] sm:$0xf]
  %v70 = vld [vmem:[%s1 + $0xa0] sm:$0xf]
  %v71 = vld [vmem:[%s1 + $0xa4] sm:$0xf]
  %v72 = vld [vmem:[%s1 + $0xa8] sm:$0xf]
  %v73 = vld [vmem:[%s1 + $0xac] sm:$0xf]
  %v74 = vld [vmem:[%s1 + $0xb0] sm:$0xf]
  %v75 = vld [vmem:[%s1 + $0xb4] sm:$0xf]
  %v76 = vld [vmem:[%s1 + $0xb8] sm:$0xf]
  %v77 = vld [vmem:[%s1 + $0xbc] sm:$0xf]
  %v78 = vld [vmem:[%s1 + $0xc0] sm:$0xf]
  %v79 = vld [vmem:[%s1 + $0xc4] sm:$0xf]
  %v80 = vld [vmem:[%s1 + $0xc8] sm:$0xf]
  %v81 = vld [vmem:[%s1 + $0xcc] sm:$0xf]
  %v82 = vld [vmem:[%s1 + $0xd0] sm:$0xf]
  %v83 = vld [vmem:[%s1 + $0xd4] sm:$0xf]
  %v84 = vld [vmem:[%s1 + $0xd8] sm:$0xf]
  %v85 = vld [vmem:[%s1 + $0xdc] sm:$0xf]
  %v86 = vld [vmem:[%s1 + $0xe0] sm:$0xf]
  %v87 = vld [vmem:[%s1 + $0xe4] sm:$0xf]
  %v88 = vld [vmem:[%s1 + $0xe8] sm:$0xf]
  %v89 = vld [vmem:[%s1 + $0xec] sm:$0xf]
  %v90 = vld [vmem:[%s1 + $0xf0] sm:$0xf]
  %v91 = vld [vmem:[%s1 + $0xf4] sm:$0xf]
  %v92 = vld [vmem:[%s1 + $0xf8] sm:$0xf]
  %v93 = vld [vmem:[%s1 + $0xfc] sm:$0xf]
  %v94 = vld [vmem:[%s1 + $0x100] sm:$0xf]
  %v95 = vld [vmem:[%s1 + $0x104] sm:$0xf]
  %v96 = vld [vmem:[%s1 + $0x108] sm:$0xf]
  %v97 = vld [vmem:[%s1 + $0x10c] sm:$0xf]
  %v98 = vld [vmem:[%s1 + $0x110] sm:$0xf]
  %v99 = vld [vmem:[%s1 + $0x114] sm:$0xf]
  %v100 = vld [vmem:[%s1 + $0x118] sm:$0xf]
  %v101 = vld [vmem:[%s1 + $0x11c] sm:$0xf]
  %v102 = vld [vmem:[%s1 + $0x120] sm:$0xf]
  %v103 = vld [vmem:[%s1 + $0x124] sm:$0xf]
  %v104 = vld [vmem:[%s1 + $0x128] sm:$0xf]
  %v105 = vld [vmem:[%s1 + $0x12c] sm:$0xf]
  %v106 = vld [vmem:[%s1 + $0x130] sm:$0xf]
  %v107 = vld [vmem:[%s1 + $0x134] sm:$0xf]
  %v108 = vld [vmem:[%s1 + $0x138] sm:$0xf]
  %v109 = vld [vmem:[%s1 + $0x13c] sm:$0xf]
  %v110 = vld [vmem:[%s1 + $0x140] sm:$0xf]
  %v111 = vld [vmem:[%s1 + $0x144] sm:$0xf]
  %v112 = vld [vmem:[%s1 + $0x148] sm:$0xf]
  %v113 = vld [vmem:[%s1 + $0x14c] sm:$0xf]
  %v114 = vld [vmem:[%s1 + $0x150] sm:$0xf]
  %v115 = vld [vmem:[%s1 + $0x154] sm:$0xf]
  %v116 = vld [vmem:[%s1 + $0x158] sm:$0xf]
  %v117 = vld [vmem:[%s1 + $0x15c] sm:$0xf]
  %v118 = vld [vmem:[%s1 + $0x160] sm:$0xf]
  %v119 = vld [vmem:[%s1 + $0x164] sm:$0xf]
  %v120 = vld [vmem:[%s1 + $0x168] sm:$0xf]
  %v121 = vld [vmem:[%s1 + $0x16c] sm:$0xf]
  %v122 = vld [vmem:[%s1 + $0x170] sm:$0xf]
  %v123 = vld [vmem:[%s1 + $0x174] sm:$0xf]
  %v124 = vld [vmem:[%s1 + $0x178] sm:$0xf]
  %v125 = vld [vmem:[%s1 + $0x17c] sm:$0xf]
  %v126 = vld [vmem:[%s1 + $0x180] sm:$0xf]
  %v127 = vld [vmem:[%s1 + $0x184] sm:$0xf]
  %v128 = vld [vmem:[%s1 + $0x188] sm:$0xf]
  %v129 = vld [vmem:[%s1 + $0x18c] sm:$0xf]
  %v130 = vld [vmem:[%s1 + $0x190] sm:$0xf]
  %v131 = vld [vmem:[%s1 + $0x194] sm:$0xf]
  %v132 = vld [vmem:[%s1 + $0x198] sm:$0xf]
  %v133 = vld [vmem:[%s1 + $0x19c] sm:$0xf]
  %v134 = vld [vmem:[%s1 + $0x1a0] sm:$0xf]
  %v135 = vld [vmem:[%s1 + $0x1a4] sm:$0xf]
  %v136 = vld [vmem:[%s1 + $0x1a8] sm:$0xf]
  %v137 = vld [vmem:[%s1 + $0x1ac] sm:$0xf]
  %v138 = vld [vmem:[%s1 + $0x1b0] sm:$0xf]
  %v139 = vld [vmem:[%s1 + $0x1b4] sm:$0xf]
  %v140 = vld [vmem:[%s1 + $0x1b8] sm:$0xf]
  %v141 = vld [vmem:[%s1 + $0x1bc] sm:$0xf]
  %v142 = vld [vmem:[%s1 + $0x1c0] sm:$0xf]
  %v143 = vld [vmem:[%s1 + $0x1c4] sm:$0xf]
  %v144 = vld [vmem:[%s1 + $0x1c8] sm:$0xf]
  %v145 = vld [vmem:[%s1 + $0x1cc] sm:$0xf]
  %v146 = vld [vmem:[%s1 + $0x1d0] sm:$0xf]
  %v147 = vld [vmem:[%s1 + $0x1d4] sm:$0xf]
  %v148 = vld [vmem:[%s1 + $0x1d8] sm:$0xf]
  %v149 = vld [vmem:[%s1 + $0x1dc] sm:$0xf]
  %v150 = vld [vmem:[%s1 + $0x1e0] sm:$0xf]
  %v151 = vld [vmem:[%s1 + $0x1e4] sm:$0xf]
  %v152 = vld [vmem:[%s1 + $0x1e8] sm:$0xf]
  %v153 = vld [vmem:[%s1 + $0x1ec] sm:$0xf]
  %v154 = vld [vmem:[%s1 + $0x1f0] sm:$0xf]
  %v155 = vld [vmem:[%s1 + $0x1f4] sm:$0xf]
  %v156 = vld [vmem:[%s1 + $0x1f8] sm:$0xf]
  %v157 = vld [vmem:[%s1 + $0x1fc] sm:$0xf]
  %v158 = vld [vmem:[%s1 + $0x200] sm:$0xf]
  %v159 = vld [vmem:[%s1 + $0x204] sm:$0xf]
  %v160 = vld [vmem:[%s1 + $0x208] sm:$0xf]
  %v161 = vld [vmem:[%s1 + $0x20c] sm:$0xf]
  %v162 = vld [vmem:[%s1 + $0x210] sm:$0xf]
  %v163 = vld [vmem:[%s1 + $0x214] sm:$0xf]
  %v164 = vld [vmem:[%s1 + $0x218] sm:$0xf]
  %v165 = vld [vmem:[%s1 + $0x21c] sm:$0xf]
  %v166 = vld [vmem:[%s1 + $0x220] sm:$0xf]
  %v167 = vld [vmem:[%s1 + $0x224] sm:$0xf]
  %v168 = vld [vmem:[%s1 + $0x228] sm:$0xf]
  %v169 = vld [vmem:[%s1 + $0x22c] sm:$0xf]
  %v170 = vld [vmem:[%s1 + $0x230] sm:$0xf]
  %v171 = vld [vmem:[%s1 + $0x234] sm:$0xf]
  %v172 = vld [vmem:[%s1 + $0x238] sm:$0xf]
  %v173 = vld [vmem:[%s1 + $0x23c] sm:$0xf]
  %v174 = vld [vmem:[%s1 + $0x240] sm:$0xf]
  %v175 = vld [vmem:[%s1 + $0x244] sm:$0xf]
  %v176 = vld [vmem:[%s1 + $0x248] sm:$0xf]
  %v177 = vld [vmem:[%s1 + $0x24c] sm:$0xf]
  %v178 = vld [vmem:[%s1 + $0x250] sm:$0xf]
  %v179 = vld [vmem:[%s1 + $0x254] sm:$0xf]
  %v180 = vld [vmem:[%s1 + $0x258] sm:$0xf]
  %v181 = vld [vmem:[%s1 + $0x25c] sm:$0xf]
  %v182 = vld [vmem:[%s1 + $0x260] sm:$0xf]
  %v183 = vld [vmem:[%s1 + $0x264] sm:$0xf]
  %v184 = vld [vmem:[%s1 + $0x268] sm:$0xf]
  %v185 = vld [vmem:[%s1 + $0x26c] sm:$0xf]
  %v186 = vld [vmem:[%s1 + $0x270] sm:$0xf]
  %v187 = vld [vmem:[%s1 + $0x274] sm:$0xf]
  %v188 = vld [vmem:[%s1 + $0x278] sm:$0xf]
  %v189 = vld [vmem:[%s1 + $0x27c] sm:$0xf]
  %v190 = vld [vmem:[%s1 + $0x280] sm:$0xf]
  %v191 = vld [vmem:[%s1 + $0x284] sm:$0xf]
  %v192 = vld [vmem:[%s1 + $0x288] sm:$0xf]
  %v193 = vld [vmem:[%s1 + $0x28c] sm:$0xf]
  %v194 = vld [vmem:[%s1 + $0x290] sm:$0xf]
  %v195 = vld [vmem:[%s1 + $0x294] sm:$0xf]
  %v196 = vld [vmem:[%s1 + $0x298] sm:$0xf]
  %v197 = vld [vmem:[%s1 + $0x29c] sm:$0xf]
  %v198 = vld [vmem:[%s1 + $0x2a0] sm:$0xf]
  %v199 = vld [vmem:[%s1 + $0x2a4] sm:$0xf]
  %v200 = vld [vmem:[%s1 + $0x2a8] sm:$0xf]
  %v201 = vld [vmem:[%s1 + $0x2ac] sm:$0xf]
  %v202 = vld [vmem:[%s1 + $0x2b0] sm:$0xf]
  %v203 = vld [vmem:[%s1 + $0x2b4] sm:$0xf]
  %v204 = vld [vmem:[%s1 + $0x2b8] sm:$0xf]
  %v205 = vld [vmem:[%s1 + $0x2bc] sm:$0xf]
  %v206 = vld [vmem:[%s1 + $0x2c0] sm:$0xf]
  %v207 = vld [vmem:[%s1 + $0x2c4] sm:$0xf]
  %v208 = vld [vmem:[%s1 + $0x2c8] sm:$0xf]
  %v209 = vld [vmem:[%s1 + $0x2cc] sm:$0xf]
  %v210 = vld [vmem:[%s1 + $0x2d0] sm:$0xf]
  %v211 = vld [vmem:[%s1 + $0x2d4] sm:$0xf]
  %v212 = vld [vmem:[%s1 + $0x2d8] sm:$0xf]
  %v213 = vld [vmem:[%s1 + $0x2dc] sm:$0xf]
  %v214 = vld [vmem:[%s1 + $0x2e0] sm:$0xf]
  %v215 = vld [vmem:[%s1 + $0x2e4] sm:$0xf]
  %v216 = vld [vmem:[%s1 + $0x2e8] sm:$0xf]
  %v217 = vld [vmem:[%s1 + $0x2ec] sm:$0xf]
  %v218 = vld [vmem:[%s1 + $0x2f0] sm:$0xf]
  %v219 = vld [vmem:[%s1 + $0x2f4] sm:$0xf]
  %v220 = vld [vmem:[%s1 + $0x2f8] sm:$0xf]
  %v221 = vld [vmem:[%s1 + $0x2fc] sm:$0xf]
  %v222 = vld [vmem:[%s1 + $0x300] sm:$0xf]
  %v223 = vld [vmem:[%s1 + $0x304] sm:$0xf]
  %v224 = vld [vmem:[%s1 + $0x308] sm:$0xf]
  %v225 = vld [vmem:[%s1 + $0x30c] sm:$0xf]
  %v226 = vld [vmem:[%s1 + $0x310] sm:$0xf]
  %v227 = vld [vmem:[%s1 + $0x314] sm:$0xf]
  %v228 = vld [vmem:[%s1 + $0x318] sm:$0xf]
  %v229 = vld [vmem:[%s1 + $0x31c] sm:$0xf]
  %v230 = vld [vmem:[%s1 + $0x320] sm:$0xf]
  %v231 = vld [vmem:[%s1 + $0x324] sm:$0xf]
  %v232 = vld [vmem:[%s1 + $0x328] sm:$0xf]
  %v233 = vld [vmem:[%s1 + $0x32c] sm:$0xf]
  %v234 = vld [vmem:[%s1 + $0x330] sm:$0xf]
  %v235 = vld [vmem:[%s1 + $0x334] sm:$0xf]
  %v236 = vld [vmem:[%s1 + $0x338] sm:$0xf]
  %v237 = vld [vmem:[%s1 + $0x33c] sm:$0xf]
  %v238 = vld [vmem:[%s1 + $0x340] sm:$0xf]
  %v239 = vld [vmem:[%s1 + $0x344] sm:$0xf]
  %v240 = vld [vmem:[%s1 + $0x348] sm:$0xf]
  %v241 = vld [vmem:[%s1 + $0x34c] sm:$0xf]
  %v242 = vld [vmem:[%s1 + $0x350] sm:$0xf]
  %v243 = vld [vmem:[%s1 + $0x354] sm:$0xf]
  %v244 = vld [vmem:[%s1 + $0x358] sm:$0xf]
  %v245 = vld [vmem:[%s1 + $0x35c] sm:$0xf]
  %v246 = vld [vmem:[%s1 + $0x360] sm:$0xf]
  %v247 = vld [vmem:[%s1 + $0x364] sm:$0xf]
  %v248 = vld [vmem:[%s1 + $0x368] sm:$0xf]
  %v249 = vld [vmem:[%s1 + $0x36c] sm:$0xf]
  %v250 = vld [vmem:[%s1 + $0x370] sm:$0xf]
  %v251 = vld [vmem:[%s1 + $0x374] sm:$0xf]
  %v252 = vld [vmem:[%s1 + $0x378] sm:$0xf]
  %v253 = vld [vmem:[%s1 + $0x37c] sm:$0xf]
  %v254 = vld [vmem:[%s1 + $0x380] sm:$0xf]
  %v255 = vld [vmem:[%s1 + $0x384] sm:$0xf]
  %v256 = vld [vmem:[%s1 + $0x388] sm:$0xf]
  %v257 = vld [vmem:[%s1 + $0x38c] sm:$0xf]
  %v258 = vld [vmem:[%s1 + $0x390] sm:$0xf]
  %v259 = vld [vmem:[%s1 + $0x394] sm:$0xf]
  %v260 = vld [vmem:[%s1 + $0x398] sm:$0xf]
  %v261 = vld [vmem:[%s1 + $0x39c] sm:$0xf]
  %v262 = vld [vmem:[%s1 + $0x3a0] sm:$0xf]
  %v263 = vld [vmem:[%s1 + $0x3a4] sm:$0xf]
  %v264 = vld [vmem:[%s1 + $0x3a8] sm:$0xf]
  %v265 = vld [vmem:[%s1 + $0x3ac] sm:$0xf]
  %v266 = vld [vmem:[%s1 + $0x3b0] sm:$0xf]
  %v267 = vld [vmem:[%s1 + $0x3b4] sm:$0xf]
  %v268 = vld [vmem:[%s1 + $0x3b8] sm:$0xf]
  %v269 = vld [vmem:[%s1 + $0x3bc] sm:$0xf]
  %v270 = vld [vmem:[%s1 + $0x3c0] sm:$0xf]
  %v271 = vld [vmem:[%s1 + $0x3c4] sm:$0xf]
  %v272 = vld [vmem:[%s1 + $0x3c8] sm:$0xf]
  %v273 = vld [vmem:[%s1 + $0x3cc] sm:$0xf]
  %v274 = vld [vmem:[%s1 + $0x3d0] sm:$0xf]
  %v275 = vld [vmem:[%s1 + $0x3d4] sm:$0xf]
  %v276 = vld [vmem:[%s1 + $0x3d8] sm:$0xf]
  %v277 = vld [vmem:[%s1 + $0x3dc] sm:$0xf]
  %v278 = vld [vmem:[%s1 + $0x3e0] sm:$0xf]
  %v279 = vld [vmem:[%s1 + $0x3e4] sm:$0xf]
  %v280 = vld [vmem:[%s1 + $0x3e8] sm:$0xf]
  %v281 = vld [vmem:[%s1 + $0x3ec] sm:$0xf]
  %v282 = vld [vmem:[%s1 + $0x3f0] sm:$0xf]
  %v283 = vld [vmem:[%s1 + $0x3f4] sm:$0xf]
  %v284 = vld [vmem:[%s1 + $0x3f8] sm:$0xf]
  %v285 = vld [vmem:[%s1 + $0x3fc] sm:$0xf]
  %v286 = vld [vmem:[%s1 + $0x400] sm:$0xf]
  %v287 = vld [vmem:[%s1 + $0x404] sm:$0xf]
  %v288 = vld [vmem:[%s1 + $0x408] sm:$0xf]
  %v289 = vld [vmem:[%s1 + $0x40c] sm:$0xf]
  %v290 = vld [vmem:[%s1 + $0x410] sm:$0xf]
  %v291 = vld [vmem:[%s1 + $0x414] sm:$0xf]
  %v292 = vld [vmem:[%s1 + $0x418] sm:$0xf]
  %v293 = vld [vmem:[%s1 + $0x41c] sm:$0xf]
  %v294 = vld [vmem:[%s1 + $0x420] sm:$0xf]
  %v295 = vld [vmem:[%s1 + $0x424] sm:$0xf]
  %v296 = vld [vmem:[%s1 + $0x428] sm:$0xf]
  %v297 = vld [vmem:[%s1 + $0x42c] sm:$0xf]
  %v298 = vld [vmem:[%s1 + $0x430] sm:$0xf]
  %v299 = vld [vmem:[%s1 + $0x434] sm:$0xf]
  %v300 = vld [vmem:[%s1 + $0x438] sm:$0xf]
  %v301 = vld [vmem:[%s1 + $0x43c] sm:$0xf]
  %v311 = vunpack.c.l.b16 %v21
  %v312 = vunpack.c.h.b16 %v21
  %v313 = vunpack.c.l.b16 %v22
  %v314 = vunpack.c.h.b16 %v22
  %v315 = vunpack.c.l.b16 %v23
  %v316 = vunpack.c.h.b16 %v23
  %v317 = vunpack.c.l.b16 %v24
  %v318 = vunpack.c.h.b16 %v24
  %v319 = vunpack.c.l.b16 %v25
  %v320 = vunpack.c.h.b16 %v25
  %v321 = vunpack.c.l.b16 %v26
  %v322 = vunpack.c.h.b16 %v26
  %v323 = vunpack.c.l.b16 %v27
  %v324 = vunpack.c.h.b16 %v27
  %v325 = vunpack.c.l.b16 %v28
  %v326 = vunpack.c.h.b16 %v28
  %v327 = vunpack.c.l.b16 %v29
  %v328 = vpack.c.b16 %v311, %v311
  %v329 = vpack.c.b16 %v312, %v312
  %v330 = vpack.c.b16 %v313, %v313
  %v331 = vpack.c.b16 %v314, %v314
  %v332 = vpack.c.b16 %v315, %v315
  %v333 = vpack.c.b16 %v316, %v316
  %v334 = vpack.c.b16 %v317, %v317
  %v335 = vpack.c.b16 %v318, %v318
  %v336 = vpack.c.b16 %v319, %v319
  %v337 = vpack.c.b16 %v320, %v320
  %v338 = vpack.c.b16 %v321, %v321
  %v339 = vpack.c.b16 %v322, %v322
  %v340 = vpack.c.b16 %v323, %v323
  %v341 = vpack.c.b16 %v324, %v324
  %v342 = vpack.c.b16 %v325, %v325
  %v343 = vpack.c.b16 %v326, %v326
  %v344 = vpack.c.b16 %v327, %v327
  %v634 = vunpack.c.l.b16 %v30
  %v635 = vunpack.c.l.b16 %v31
  %v636 = vunpack.c.l.b16 %v32
  %v637 = vunpack.c.l.b16 %v33
  %v638 = vunpack.c.l.b16 %v34
  %v639 = vunpack.c.l.b16 %v35
  %v640 = vunpack.c.l.b16 %v36
  %v641 = vunpack.c.l.b16 %v37
  %v642 = vunpack.c.l.b16 %v38
  %v643 = vunpack.c.l.b16 %v39
  %v644 = vunpack.c.l.b16 %v40
  %v645 = vunpack.c.l.b16 %v41
  %v646 = vunpack.c.l.b16 %v42
  %v647 = vunpack.c.l.b16 %v43
  %v648 = vunpack.c.l.b16 %v44
  %v649 = vunpack.c.l.b16 %v45
  %v650 = vunpack.c.l.b16 %v46
  %v651 = vunpack.c.l.b16 %v47
  %v652 = vunpack.c.l.b16 %v48
  %v653 = vunpack.c.l.b16 %v49
  %v654 = vunpack.c.l.b16 %v50
  %v655 = vunpack.c.l.b16 %v51
  %v656 = vunpack.c.l.b16 %v52
  %v657 = vunpack.c.l.b16 %v53
  %v658 = vunpack.c.l.b16 %v54
  %v659 = vunpack.c.l.b16 %v55
  %v660 = vunpack.c.l.b16 %v56
  %v661 = vunpack.c.l.b16 %v57
  %v662 = vunpack.c.l.b16 %v58
  %v663 = vunpack.c.l.b16 %v59
  %v664 = vunpack.c.l.b16 %v60
  %v665 = vunpack.c.l.b16 %v61
  %v666 = vunpack.c.l.b16 %v62
  %v667 = vunpack.c.l.b16 %v63
  %v668 = vunpack.c.l.b16 %v64
  %v669 = vunpack.c.l.b16 %v65
  %v670 = vunpack.c.l.b16 %v66
  %v671 = vunpack.c.l.b16 %v67
  %v672 = vunpack.c.l.b16 %v68
  %v673 = vunpack.c.l.b16 %v69
  %v674 = vunpack.c.l.b16 %v70
  %v675 = vunpack.c.l.b16 %v71
  %v676 = vunpack.c.l.b16 %v72
  %v677 = vunpack.c.l.b16 %v73
  %v678 = vunpack.c.l.b16 %v74
  %v679 = vunpack.c.l.b16 %v75
  %v680 = vunpack.c.l.b16 %v76
  %v681 = vunpack.c.l.b16 %v77
  %v682 = vunpack.c.l.b16 %v78
  %v683 = vunpack.c.l.b16 %v79
  %v684 = vunpack.c.l.b16 %v80
  %v685 = vunpack.c.l.b16 %v81
  %v686 = vunpack.c.l.b16 %v82
  %v687 = vunpack.c.l.b16 %v83
  %v688 = vunpack.c.l.b16 %v84
  %v689 = vunpack.c.l.b16 %v85
  %v690 = vunpack.c.l.b16 %v86
  %v691 = vunpack.c.l.b16 %v87
  %v692 = vunpack.c.l.b16 %v88
  %v693 = vunpack.c.l.b16 %v89
  %v694 = vunpack.c.l.b16 %v90
  %v695 = vunpack.c.l.b16 %v91
  %v696 = vunpack.c.l.b16 %v92
  %v697 = vunpack.c.l.b16 %v93
  %v698 = vunpack.c.l.b16 %v94
  %v699 = vunpack.c.l.b16 %v95
  %v700 = vunpack.c.l.b16 %v96
  %v701 = vunpack.c.l.b16 %v97
  %v702 = vunpack.c.l.b16 %v98
  %v703 = vunpack.c.l.b16 %v99
  %v704 = vunpack.c.l.b16 %v100
  %v705 = vunpack.c.l.b16 %v101
  %v706 = vunpack.c.l.b16 %v102
  %v707 = vunpack.c.l.b16 %v103
  %v708 = vunpack.c.l.b16 %v104
  %v709 = vunpack.c.l.b16 %v105
  %v710 = vunpack.c.l.b16 %v106
  %v711 = vunpack.c.l.b16 %v107
  %v712 = vunpack.c.l.b16 %v108
  %v713 = vunpack.c.l.b16 %v109
  %v714 = vunpack.c.l.b16 %v110
  %v715 = vunpack.c.l.b16 %v111
  %v716 = vunpack.c.l.b16 %v112
  %v717 = vunpack.c.l.b16 %v113
  %v718 = vunpack.c.l.b16 %v114
  %v719 = vunpack.c.l.b16 %v115
  %v720 = vunpack.c.l.b16 %v116
  %v721 = vunpack.c.l.b16 %v117
  %v722 = vunpack.c.l.b16 %v118
  %v723 = vunpack.c.l.b16 %v119
  %v724 = vunpack.c.l.b16 %v120
  %v725 = vunpack.c.l.b16 %v121
  %v726 = vunpack.c.l.b16 %v122
  %v727 = vunpack.c.l.b16 %v123
  %v728 = vunpack.c.l.b16 %v124
  %v729 = vunpack.c.l.b16 %v125
  %v730 = vunpack.c.l.b16 %v126
  %v731 = vunpack.c.l.b16 %v127
  %v732 = vunpack.c.l.b16 %v128
  %v733 = vunpack.c.l.b16 %v129
  %v734 = vunpack.c.l.b16 %v130
  %v735 = vunpack.c.l.b16 %v131
  %v736 = vunpack.c.l.b16 %v132
  %v737 = vunpack.c.l.b16 %v133
  %v738 = vunpack.c.l.b16 %v134
  %v739 = vunpack.c.l.b16 %v135
  %v740 = vunpack.c.l.b16 %v136
  %v741 = vunpack.c.l.b16 %v137
  %v742 = vunpack.c.l.b16 %v138
  %v743 = vunpack.c.l.b16 %v139
  %v744 = vunpack.c.l.b16 %v140
  %v745 = vunpack.c.l.b16 %v141
  %v746 = vunpack.c.l.b16 %v142
  %v747 = vunpack.c.l.b16 %v143
  %v748 = vunpack.c.l.b16 %v144
  %v749 = vunpack.c.l.b16 %v145
  %v750 = vunpack.c.l.b16 %v146
  %v751 = vunpack.c.l.b16 %v147
  %v752 = vunpack.c.l.b16 %v148
  %v753 = vunpack.c.l.b16 %v149
  %v754 = vunpack.c.l.b16 %v150
  %v755 = vunpack.c.l.b16 %v151
  %v756 = vunpack.c.l.b16 %v152
  %v757 = vunpack.c.l.b16 %v153
  %v758 = vunpack.c.l.b16 %v154
  %v759 = vunpack.c.l.b16 %v155
  %v760 = vunpack.c.l.b16 %v156
  %v761 = vunpack.c.l.b16 %v157
  %v762 = vunpack.c.l.b16 %v158
  %v763 = vunpack.c.l.b16 %v159
  %v764 = vunpack.c.l.b16 %v160
  %v765 = vunpack.c.l.b16 %v161
  %v766 = vunpack.c.l.b16 %v162
  %v767 = vunpack.c.l.b16 %v163
  %v768 = vunpack.c.l.b16 %v164
  %v769 = vunpack.c.l.b16 %v165
  %v770 = vunpack.c.l.b16 %v166
  %v771 = vunpack.c.l.b16 %v167
  %v772 = vunpack.c.l.b16 %v168
  %v773 = vunpack.c.l.b16 %v169
  %v774 = vunpack.c.l.b16 %v170
  %v775 = vunpack.c.l.b16 %v171
  %v776 = vunpack.c.l.b16 %v172
  %v777 = vunpack.c.l.b16 %v173
  %v778 = vunpack.c.l.b16 %v174
  %v779 = vunpack.c.l.b16 %v175
  %v780 = vunpack.c.l.b16 %v176
  %v781 = vunpack.c.l.b16 %v177
  %v782 = vunpack.c.l.b16 %v178
  %v783 = vunpack.c.l.b16 %v179
  %v784 = vunpack.c.l.b16 %v180
  %v785 = vunpack.c.l.b16 %v181
  %v786 = vunpack.c.l.b16 %v182
  %v787 = vunpack.c.l.b16 %v183
  %v788 = vunpack.c.l.b16 %v184
  %v789 = vunpack.c.l.b16 %v185
  %v790 = vunpack.c.l.b16 %v186
  %v791 = vunpack.c.l.b16 %v187
  %v792 = vunpack.c.l.b16 %v188
  %v793 = vunpack.c.l.b16 %v189
  %v794 = vunpack.c.l.b16 %v190
  %v795 = vunpack.c.l.b16 %v191
  %v796 = vunpack.c.l.b16 %v192
  %v797 = vunpack.c.l.b16 %v193
  %v798 = vunpack.c.l.b16 %v194
  %v799 = vunpack.c.l.b16 %v195
  %v800 = vunpack.c.l.b16 %v196
  %v801 = vunpack.c.l.b16 %v197
  %v802 = vunpack.c.l.b16 %v198
  %v803 = vunpack.c.l.b16 %v199
  %v804 = vunpack.c.l.b16 %v200
  %v805 = vunpack.c.l.b16 %v201
  %v806 = vunpack.c.l.b16 %v202
  %v807 = vunpack.c.l.b16 %v203
  %v808 = vunpack.c.l.b16 %v204
  %v809 = vunpack.c.l.b16 %v205
  %v810 = vunpack.c.l.b16 %v206
  %v811 = vunpack.c.l.b16 %v207
  %v812 = vunpack.c.l.b16 %v208
  %v813 = vunpack.c.l.b16 %v209
  %v814 = vunpack.c.l.b16 %v210
  %v815 = vunpack.c.l.b16 %v211
  %v816 = vunpack.c.l.b16 %v212
  %v817 = vunpack.c.l.b16 %v213
  %v818 = vunpack.c.l.b16 %v214
  %v819 = vunpack.c.l.b16 %v215
  %v820 = vunpack.c.l.b16 %v216
  %v821 = vunpack.c.l.b16 %v217
  %v822 = vunpack.c.l.b16 %v218
  %v823 = vunpack.c.l.b16 %v219
  %v824 = vunpack.c.l.b16 %v220
  %v825 = vunpack.c.l.b16 %v221
  %v826 = vunpack.c.l.b16 %v222
  %v827 = vunpack.c.l.b16 %v223
  %v828 = vunpack.c.l.b16 %v224
  %v829 = vunpack.c.l.b16 %v225
  %v830 = vunpack.c.l.b16 %v226
  %v831 = vunpack.c.l.b16 %v227
  %v832 = vunpack.c.l.b16 %v228
  %v833 = vunpack.c.l.b16 %v229
  %v834 = vunpack.c.l.b16 %v230
  %v835 = vunpack.c.l.b16 %v231
  %v836 = vunpack.c.l.b16 %v232
  %v837 = vunpack.c.l.b16 %v233
  %v838 = vunpack.c.l.b16 %v234
  %v839 = vunpack.c.l.b16 %v235
  %v840 = vunpack.c.l.b16 %v236
  %v841 = vunpack.c.l.b16 %v237
  %v842 = vunpack.c.l.b16 %v238
  %v843 = vunpack.c.l.b16 %v239
  %v844 = vunpack.c.l.b16 %v240
  %v845 = vunpack.c.l.b16 %v241
  %v846 = vunpack.c.l.b16 %v242
  %v847 = vunpack.c.l.b16 %v243
  %v848 = vunpack.c.l.b16 %v244
  %v849 = vunpack.c.l.b16 %v245
  %v850 = vunpack.c.l.b16 %v246
  %v851 = vunpack.c.l.b16 %v247
  %v852 = vunpack.c.l.b16 %v248
  %v853 = vunpack.c.l.b16 %v249
  %v854 = vunpack.c.l.b16 %v250
  %v855 = vunpack.c.l.b16 %v251
  %v856 = vunpack.c.l.b16 %v252
  %v857 = vunpack.c.l.b16 %v253
  %v858 = vunpack.c.l.b16 %v254
  %v859 = vunpack.c.l.b16 %v255
  %v860 = vunpack.c.l.b16 %v256
  %v861 = vunpack.c.l.b16 %v257
  %v862 = vunpack.c.l.b16 %v258
  %v863 = vunpack.c.l.b16 %v259
  %v864 = vunpack.c.l.b16 %v260
  %v865 = vunpack.c.l.b16 %v261
  %v866 = vunpack.c.l.b16 %v262
  %v867 = vunpack.c.l.b16 %v263
  %v868 = vunpack.c.l.b16 %v264
  %v869 = vunpack.c.l.b16 %v265
  %v870 = vunpack.c.l.b16 %v266
  %v871 = vunpack.c.l.b16 %v267
  %v872 = vunpack.c.l.b16 %v268
  %v873 = vunpack.c.l.b16 %v269
  %v874 = vunpack.c.l.b16 %v270
  %v875 = vunpack.c.l.b16 %v271
  %v876 = vunpack.c.l.b16 %v272
  %v877 = vunpack.c.l.b16 %v273
  %v878 = vunpack.c.l.b16 %v274
  %v879 = vunpack.c.l.b16 %v275
  %v880 = vunpack.c.l.b16 %v276
  %v881 = vunpack.c.l.b16 %v277
  %v882 = vunpack.c.l.b16 %v278
  %v883 = vunpack.c.l.b16 %v279
  %v884 = vunpack.c.l.b16 %v280
  %v885 = vunpack.c.l.b16 %v281
  %v886 = vunpack.c.l.b16 %v282
  %v887 = vunpack.c.l.b16 %v283
  %v888 = vunpack.c.l.b16 %v284
  %v889 = vunpack.c.l.b16 %v285
  %v890 = vunpack.c.l.b16 %v286
  %v891 = vunpack.c.l.b16 %v287
  %v892 = vunpack.c.l.b16 %v288
  %v893 = vunpack.c.l.b16 %v289
  %v894 = vunpack.c.l.b16 %v290
  %v895 = vunpack.c.l.b16 %v291
  %v896 = vunpack.c.l.b16 %v292
  %v897 = vunpack.c.l.b16 %v293
  %v898 = vunpack.c.l.b16 %v294
  %v899 = vunpack.c.l.b16 %v295
  %v900 = vunpack.c.l.b16 %v296
  %v901 = vunpack.c.l.b16 %v297
  %v902 = vunpack.c.l.b16 %v298
  %v903 = vunpack.c.l.b16 %v299
  %v904 = vunpack.c.l.b16 %v300
  %v905 = vunpack.c.l.b16 %v301
  %v906 = vpack.c.b16 %v635, %v634
  %v907 = vpack.c.b16 %v637, %v636
  %v908 = vpack.c.b16 %v639, %v638
  %v909 = vpack.c.b16 %v641, %v640
  %v910 = vpack.c.b16 %v643, %v642
  %v911 = vpack.c.b16 %v645, %v644
  %v912 = vpack.c.b16 %v647, %v646
  %v913 = vpack.c.b16 %v649, %v648
  %v914 = vpack.c.b16 %v651, %v650
  %v915 = vpack.c.b16 %v653, %v652
  %v916 = vpack.c.b16 %v655, %v654
  %v917 = vpack.c.b16 %v657, %v656
  %v918 = vpack.c.b16 %v659, %v658
  %v919 = vpack.c.b16 %v661, %v660
  %v920 = vpack.c.b16 %v663, %v662
  %v921 = vpack.c.b16 %v665, %v664
  %v922 = vpack.c.b16 %v667, %v666
  %v923 = vpack.c.b16 %v669, %v668
  %v924 = vpack.c.b16 %v671, %v670
  %v925 = vpack.c.b16 %v673, %v672
  %v926 = vpack.c.b16 %v675, %v674
  %v927 = vpack.c.b16 %v677, %v676
  %v928 = vpack.c.b16 %v679, %v678
  %v929 = vpack.c.b16 %v681, %v680
  %v930 = vpack.c.b16 %v683, %v682
  %v931 = vpack.c.b16 %v685, %v684
  %v932 = vpack.c.b16 %v687, %v686
  %v933 = vpack.c.b16 %v689, %v688
  %v934 = vpack.c.b16 %v691, %v690
  %v935 = vpack.c.b16 %v693, %v692
  %v936 = vpack.c.b16 %v695, %v694
  %v937 = vpack.c.b16 %v697, %v696
  %v938 = vpack.c.b16 %v699, %v698
  %v939 = vpack.c.b16 %v701, %v700
  %v940 = vpack.c.b16 %v703, %v702
  %v941 = vpack.c.b16 %v705, %v704
  %v942 = vpack.c.b16 %v707, %v706
  %v943 = vpack.c.b16 %v709, %v708
  %v944 = vpack.c.b16 %v711, %v710
  %v945 = vpack.c.b16 %v713, %v712
  %v946 = vpack.c.b16 %v715, %v714
  %v947 = vpack.c.b16 %v717, %v716
  %v948 = vpack.c.b16 %v719, %v718
  %v949 = vpack.c.b16 %v721, %v720
  %v950 = vpack.c.b16 %v723, %v722
  %v951 = vpack.c.b16 %v725, %v724
  %v952 = vpack.c.b16 %v727, %v726
  %v953 = vpack.c.b16 %v729, %v728
  %v954 = vpack.c.b16 %v731, %v730
  %v955 = vpack.c.b16 %v733, %v732
  %v956 = vpack.c.b16 %v735, %v734
  %v957 = vpack.c.b16 %v737, %v736
  %v958 = vpack.c.b16 %v739, %v738
  %v959 = vpack.c.b16 %v741, %v740
  %v960 = vpack.c.b16 %v743, %v742
  %v961 = vpack.c.b16 %v745, %v744
  %v962 = vpack.c.b16 %v747, %v746
  %v963 = vpack.c.b16 %v749, %v748
  %v964 = vpack.c.b16 %v751, %v750
  %v965 = vpack.c.b16 %v753, %v752
  %v966 = vpack.c.b16 %v755, %v754
  %v967 = vpack.c.b16 %v757, %v756
  %v968 = vpack.c.b16 %v759, %v758
  %v969 = vpack.c.b16 %v761, %v760
  %v970 = vpack.c.b16 %v763, %v762
  %v971 = vpack.c.b16 %v765, %v764
  %v972 = vpack.c.b16 %v767, %v766
  %v973 = vpack.c.b16 %v769, %v768
  %v974 = vpack.c.b16 %v771, %v770
  %v975 = vpack.c.b16 %v773, %v772
  %v976 = vpack.c.b16 %v775, %v774
  %v977 = vpack.c.b16 %v777, %v776
  %v978 = vpack.c.b16 %v779, %v778
  %v979 = vpack.c.b16 %v781, %v780
  %v980 = vpack.c.b16 %v783, %v782
  %v981 = vpack.c.b16 %v785, %v784
  %v982 = vpack.c.b16 %v787, %v786
  %v983 = vpack.c.b16 %v789, %v788
  %v984 = vpack.c.b16 %v791, %v790
  %v985 = vpack.c.b16 %v793, %v792
  %v986 = vpack.c.b16 %v795, %v794
  %v987 = vpack.c.b16 %v797, %v796
  %v988 = vpack.c.b16 %v799, %v798
  %v989 = vpack.c.b16 %v801, %v800
  %v990 = vpack.c.b16 %v803, %v802
  %v991 = vpack.c.b16 %v805, %v804
  %v992 = vpack.c.b16 %v807, %v806
  %v993 = vpack.c.b16 %v809, %v808
  %v994 = vpack.c.b16 %v811, %v810
  %v995 = vpack.c.b16 %v813, %v812
  %v996 = vpack.c.b16 %v815, %v814
  %v997 = vpack.c.b16 %v817, %v816
  %v998 = vpack.c.b16 %v819, %v818
  %v999 = vpack.c.b16 %v821, %v820
  %v1000 = vpack.c.b16 %v823, %v822
  %v1001 = vpack.c.b16 %v825, %v824
  %v1002 = vpack.c.b16 %v827, %v826
  %v1003 = vpack.c.b16 %v829, %v828
  %v1004 = vpack.c.b16 %v831, %v830
  %v1005 = vpack.c.b16 %v833, %v832
  %v1006 = vpack.c.b16 %v835, %v834
  %v1007 = vpack.c.b16 %v837, %v836
  %v1008 = vpack.c.b16 %v839, %v838
  %v1009 = vpack.c.b16 %v841, %v840
  %v1010 = vpack.c.b16 %v843, %v842
  %v1011 = vpack.c.b16 %v845, %v844
  %v1012 = vpack.c.b16 %v847, %v846
  %v1013 = vpack.c.b16 %v849, %v848
  %v1014 = vpack.c.b16 %v851, %v850
  %v1015 = vpack.c.b16 %v853, %v852
  %v1016 = vpack.c.b16 %v855, %v854
  %v1017 = vpack.c.b16 %v857, %v856
  %v1018 = vpack.c.b16 %v859, %v858
  %v1019 = vpack.c.b16 %v861, %v860
  %v1020 = vpack.c.b16 %v863, %v862
  %v1021 = vpack.c.b16 %v865, %v864
  %v1022 = vpack.c.b16 %v867, %v866
  %v1023 = vpack.c.b16 %v869, %v868
  %v1024 = vpack.c.b16 %v871, %v870
  %v1025 = vpack.c.b16 %v873, %v872
  %v1026 = vpack.c.b16 %v875, %v874
  %v1027 = vpack.c.b16 %v877, %v876
  %v1028 = vpack.c.b16 %v879, %v878
  %v1029 = vpack.c.b16 %v881, %v880
  %v1030 = vpack.c.b16 %v883, %v882
  %v1031 = vpack.c.b16 %v885, %v884
  %v1032 = vpack.c.b16 %v887, %v886
  %v1033 = vpack.c.b16 %v889, %v888
  %v1034 = vpack.c.b16 %v891, %v890
  %v1035 = vpack.c.b16 %v893, %v892
  %v1036 = vpack.c.b16 %v895, %v894
  %v1037 = vpack.c.b16 %v897, %v896
  %v1038 = vpack.c.b16 %v899, %v898
  %v1039 = vpack.c.b16 %v901, %v900
  %v1040 = vpack.c.b16 %v903, %v902
  %v1041 = vpack.c.b16 %v905, %v904
  %1178 = vmatprep.subr.bf16.mxu0 0
  %1179 = vmatpush1.bf16.msra.mxu0 %v906
  %1180 = vmatprep.subr.bf16.mxu0 0
  %1181 = vmatpush1.bf16.msra.mxu0 %v907
  %1182 = vmatprep.subr.bf16.mxu0 0
  %1183 = vmatpush1.bf16.msra.mxu0 %v908
  %1184 = vmatprep.subr.bf16.mxu0 0
  %1185 = vmatpush1.bf16.msra.mxu0 %v909
  %1186 = vmatprep.subr.bf16.mxu0 0
  %1187 = vmatpush1.bf16.msra.mxu0 %v910
  %1188 = vmatprep.subr.bf16.mxu0 0
  %1189 = vmatpush1.bf16.msra.mxu0 %v911
  %1190 = vmatprep.subr.bf16.mxu0 0
  %1191 = vmatpush1.bf16.msra.mxu0 %v912
  %1192 = vmatprep.subr.bf16.mxu0 0
  %1193 = vmatpush1.bf16.msra.mxu0 %v913
  %1194 = vmatprep.subr.bf16.mxu0 0
  %1195 = vmatpush1.bf16.msra.mxu0 %v914
  %1196 = vmatprep.subr.bf16.mxu0 0
  %1197 = vmatpush1.bf16.msra.mxu0 %v915
  %1198 = vmatprep.subr.bf16.mxu0 0
  %1199 = vmatpush1.bf16.msra.mxu0 %v916
  %1200 = vmatprep.subr.bf16.mxu0 0
  %1201 = vmatpush1.bf16.msra.mxu0 %v917
  %1202 = vmatprep.subr.bf16.mxu0 0
  %1203 = vmatpush1.bf16.msra.mxu0 %v918
  %1204 = vmatprep.subr.bf16.mxu0 0
  %1205 = vmatpush1.bf16.msra.mxu0 %v919
  %1206 = vmatprep.subr.bf16.mxu0 0
  %1207 = vmatpush1.bf16.msra.mxu0 %v920
  %1208 = vmatprep.subr.bf16.mxu0 0
  %1209 = vmatpush1.bf16.msra.mxu0 %v921
  %1210 = vmatprep.mubr.bf16.mxu0 %v329
  %1211 = vmatmul.mubr.bf16.gmra.mrb[0].mxu0 %v328
  %v1212 = vpop.f32.mrb[0].mxu0
  %v1213 = vadd.f32 0.0, %v1212
  %v1214 = vpop.f32.mrb[0].mxu0
  %v1215 = vpop.f32.mrb[0].mxu0
  %v1216 = vpop.f32.mrb[0].mxu0
  %1217 = vdwg.mxu0
  %1218 = vmatprep.subr.bf16.mxu0 0
  %1219 = vmatpush1.bf16.msra.mxu0 %v922
  %1220 = vmatprep.subr.bf16.mxu0 0
  %1221 = vmatpush1.bf16.msra.mxu0 %v923
  %1222 = vmatprep.subr.bf16.mxu0 0
  %1223 = vmatpush1.bf16.msra.mxu0 %v924
  %1224 = vmatprep.subr.bf16.mxu0 0
  %1225 = vmatpush1.bf16.msra.mxu0 %v925
  %1226 = vmatprep.subr.bf16.mxu0 0
  %1227 = vmatpush1.bf16.msra.mxu0 %v926
  %1228 = vmatprep.subr.bf16.mxu0 0
  %1229 = vmatpush1.bf16.msra.mxu0 %v927
  %1230 = vmatprep.subr.bf16.mxu0 0
  %1231 = vmatpush1.bf16.msra.mxu0 %v928
  %1232 = vmatprep.subr.bf16.mxu0 0
  %1233 = vmatpush1.bf16.msra.mxu0 %v929
  %1234 = vmatprep.subr.bf16.mxu0 0
  %1235 = vmatpush1.bf16.msra.mxu0 %v930
  %1236 = vmatprep.subr.bf16.mxu0 0
  %1237 = vmatpush1.bf16.msra.mxu0 %v931
  %1238 = vmatprep.subr.bf16.mxu0 0
  %1239 = vmatpush1.bf16.msra.mxu0 %v932
  %1240 = vmatprep.subr.bf16.mxu0 0
  %1241 = vmatpush1.bf16.msra.mxu0 %v933
  %1242 = vmatprep.subr.bf16.mxu0 0
  %1243 = vmatpush1.bf16.msra.mxu0 %v934
  %1244 = vmatprep.subr.bf16.mxu0 0
  %1245 = vmatpush1.bf16.msra.mxu0 %v935
  %1246 = vmatprep.subr.bf16.mxu0 0
  %1247 = vmatpush1.bf16.msra.mxu0 %v936
  %1248 = vmatprep.subr.bf16.mxu0 0
  %1249 = vmatpush1.bf16.msra.mxu0 %v937
  %1250 = vmatprep.mubr.bf16.mxu0 %v331
  %1251 = vmatmul.mubr.bf16.gmra.mrb[0].mxu0 %v330
  %v1252 = vpop.f32.mrb[0].mxu0
  %v1253 = vadd.f32 %v1213, %v1252
  %v1254 = vpop.f32.mrb[0].mxu0
  %v1255 = vpop.f32.mrb[0].mxu0
  %v1256 = vpop.f32.mrb[0].mxu0
  %1257 = vdwg.mxu0
  %1258 = vmatprep.subr.bf16.mxu0 0
  %1259 = vmatpush1.bf16.msra.mxu0 %v938
  %1260 = vmatprep.subr.bf16.mxu0 0
  %1261 = vmatpush1.bf16.msra.mxu0 %v939
  %1262 = vmatprep.subr.bf16.mxu0 0
  %1263 = vmatpush1.bf16.msra.mxu0 %v940
  %1264 = vmatprep.subr.bf16.mxu0 0
  %1265 = vmatpush1.bf16.msra.mxu0 %v941
  %1266 = vmatprep.subr.bf16.mxu0 0
  %1267 = vmatpush1.bf16.msra.mxu0 %v942
  %1268 = vmatprep.subr.bf16.mxu0 0
  %1269 = vmatpush1.bf16.msra.mxu0 %v943
  %1270 = vmatprep.subr.bf16.mxu0 0
  %1271 = vmatpush1.bf16.msra.mxu0 %v944
  %1272 = vmatprep.subr.bf16.mxu0 0
  %1273 = vmatpush1.bf16.msra.mxu0 %v945
  %1274 = vmatprep.subr.bf16.mxu0 0
  %1275 = vmatpush1.bf16.msra.mxu0 %v946
  %1276 = vmatprep.subr.bf16.mxu0 0
  %1277 = vmatpush1.bf16.msra.mxu0 %v947
  %1278 = vmatprep.subr.bf16.mxu0 0
  %1279 = vmatpush1.bf16.msra.mxu0 %v948
  %1280 = vmatprep.subr.bf16.mxu0 0
  %1281 = vmatpush1.bf16.msra.mxu0 %v949
  %1282 = vmatprep.subr.bf16.mxu0 0
  %1283 = vmatpush1.bf16.msra.mxu0 %v950
  %1284 = vmatprep.subr.bf16.mxu0 0
  %1285 = vmatpush1.bf16.msra.mxu0 %v951
  %1286 = vmatprep.subr.bf16.mxu0 0
  %1287 = vmatpush1.bf16.msra.mxu0 %v952
  %1288 = vmatprep.subr.bf16.mxu0 0
  %1289 = vmatpush1.bf16.msra.mxu0 %v953
  %1290 = vmatprep.mubr.bf16.mxu0 %v333
  %1291 = vmatmul.mubr.bf16.gmra.mrb[0].mxu0 %v332
  %v1292 = vpop.f32.mrb[0].mxu0
  %v1293 = vadd.f32 %v1253, %v1292
  %v1294 = vpop.f32.mrb[0].mxu0
  %v1295 = vpop.f32.mrb[0].mxu0
  %v1296 = vpop.f32.mrb[0].mxu0
  %1297 = vdwg.mxu0
  %1298 = vmatprep.subr.bf16.mxu0 0
  %1299 = vmatpush1.bf16.msra.mxu0 %v954
  %1300 = vmatprep.subr.bf16.mxu0 0
  %1301 = vmatpush1.bf16.msra.mxu0 %v955
  %1302 = vmatprep.subr.bf16.mxu0 0
  %1303 = vmatpush1.bf16.msra.mxu0 %v956
  %1304 = vmatprep.subr.bf16.mxu0 0
  %1305 = vmatpush1.bf16.msra.mxu0 %v957
  %1306 = vmatprep.subr.bf16.mxu0 0
  %1307 = vmatpush1.bf16.msra.mxu0 %v958
  %1308 = vmatprep.subr.bf16.mxu0 0
  %1309 = vmatpush1.bf16.msra.mxu0 %v959
  %1310 = vmatprep.subr.bf16.mxu0 0
  %1311 = vmatpush1.bf16.msra.mxu0 %v960
  %1312 = vmatprep.subr.bf16.mxu0 0
  %1313 = vmatpush1.bf16.msra.mxu0 %v961
  %1314 = vmatprep.subr.bf16.mxu0 0
  %1315 = vmatpush1.bf16.msra.mxu0 %v962
  %1316 = vmatprep.subr.bf16.mxu0 0
  %1317 = vmatpush1.bf16.msra.mxu0 %v963
  %1318 = vmatprep.subr.bf16.mxu0 0
  %1319 = vmatpush1.bf16.msra.mxu0 %v964
  %1320 = vmatprep.subr.bf16.mxu0 0
  %1321 = vmatpush1.bf16.msra.mxu0 %v965
  %1322 = vmatprep.subr.bf16.mxu0 0
  %1323 = vmatpush1.bf16.msra.mxu0 %v966
  %1324 = vmatprep.subr.bf16.mxu0 0
  %1325 = vmatpush1.bf16.msra.mxu0 %v967
  %1326 = vmatprep.subr.bf16.mxu0 0
  %1327 = vmatpush1.bf16.msra.mxu0 %v968
  %1328 = vmatprep.subr.bf16.mxu0 0
  %1329 = vmatpush1.bf16.msra.mxu0 %v969
  %1330 = vmatprep.mubr.bf16.mxu0 %v335
  %1331 = vmatmul.mubr.bf16.gmra.mrb[0].mxu0 %v334
  %v1332 = vpop.f32.mrb[0].mxu0
  %v1333 = vadd.f32 %v1293, %v1332
  %v1334 = vpop.f32.mrb[0].mxu0
  %v1335 = vpop.f32.mrb[0].mxu0
  %v1336 = vpop.f32.mrb[0].mxu0
  %1337 = vdwg.mxu0
  %1338 = vmatprep.subr.bf16.mxu0 0
  %1339 = vmatpush1.bf16.msra.mxu0 %v970
  %1340 = vmatprep.subr.bf16.mxu0 0
  %1341 = vmatpush1.bf16.msra.mxu0 %v971
  %1342 = vmatprep.subr.bf16.mxu0 0
  %1343 = vmatpush1.bf16.msra.mxu0 %v972
  %1344 = vmatprep.subr.bf16.mxu0 0
  %1345 = vmatpush1.bf16.msra.mxu0 %v973
  %1346 = vmatprep.subr.bf16.mxu0 0
  %1347 = vmatpush1.bf16.msra.mxu0 %v974
  %1348 = vmatprep.subr.bf16.mxu0 0
  %1349 = vmatpush1.bf16.msra.mxu0 %v975
  %1350 = vmatprep.subr.bf16.mxu0 0
  %1351 = vmatpush1.bf16.msra.mxu0 %v976
  %1352 = vmatprep.subr.bf16.mxu0 0
  %1353 = vmatpush1.bf16.msra.mxu0 %v977
  %1354 = vmatprep.subr.bf16.mxu0 0
  %1355 = vmatpush1.bf16.msra.mxu0 %v978
  %1356 = vmatprep.subr.bf16.mxu0 0
  %1357 = vmatpush1.bf16.msra.mxu0 %v979
  %1358 = vmatprep.subr.bf16.mxu0 0
  %1359 = vmatpush1.bf16.msra.mxu0 %v980
  %1360 = vmatprep.subr.bf16.mxu0 0
  %1361 = vmatpush1.bf16.msra.mxu0 %v981
  %1362 = vmatprep.subr.bf16.mxu0 0
  %1363 = vmatpush1.bf16.msra.mxu0 %v982
  %1364 = vmatprep.subr.bf16.mxu0 0
  %1365 = vmatpush1.bf16.msra.mxu0 %v983
  %1366 = vmatprep.subr.bf16.mxu0 0
  %1367 = vmatpush1.bf16.msra.mxu0 %v984
  %1368 = vmatprep.subr.bf16.mxu0 0
  %1369 = vmatpush1.bf16.msra.mxu0 %v985
  %1370 = vmatprep.mubr.bf16.mxu0 %v337
  %1371 = vmatmul.mubr.bf16.gmra.mrb[0].mxu0 %v336
  %v1372 = vpop.f32.mrb[0].mxu0
  %v1373 = vadd.f32 %v1333, %v1372
  %v1374 = vpop.f32.mrb[0].mxu0
  %v1375 = vpop.f32.mrb[0].mxu0
  %v1376 = vpop.f32.mrb[0].mxu0
  %1377 = vdwg.mxu0
  %1378 = vmatprep.subr.bf16.mxu0 0
  %1379 = vmatpush1.bf16.msra.mxu0 %v986
  %1380 = vmatprep.subr.bf16.mxu0 0
  %1381 = vmatpush1.bf16.msra.mxu0 %v987
  %1382 = vmatprep.subr.bf16.mxu0 0
  %1383 = vmatpush1.bf16.msra.mxu0 %v988
  %1384 = vmatprep.subr.bf16.mxu0 0
  %1385 = vmatpush1.bf16.msra.mxu0 %v989
  %1386 = vmatprep.subr.bf16.mxu0 0
  %1387 = vmatpush1.bf16.msra.mxu0 %v990
  %1388 = vmatprep.subr.bf16.mxu0 0
  %1389 = vmatpush1.bf16.msra.mxu0 %v991
  %1390 = vmatprep.subr.bf16.mxu0 0
  %1391 = vmatpush1.bf16.msra.mxu0 %v992
  %1392 = vmatprep.subr.bf16.mxu0 0
  %1393 = vmatpush1.bf16.msra.mxu0 %v993
  %1394 = vmatprep.subr.bf16.mxu0 0
  %1395 = vmatpush1.bf16.msra.mxu0 %v994
  %1396 = vmatprep.subr.bf16.mxu0 0
  %1397 = vmatpush1.bf16.msra.mxu0 %v995
  %1398 = vmatprep.subr.bf16.mxu0 0
  %1399 = vmatpush1.bf16.msra.mxu0 %v996
  %1400 = vmatprep.subr.bf16.mxu0 0
  %1401 = vmatpush1.bf16.msra.mxu0 %v997
  %1402 = vmatprep.subr.bf16.mxu0 0
  %1403 = vmatpush1.bf16.msra.mxu0 %v998
  %1404 = vmatprep.subr.bf16.mxu0 0
  %1405 = vmatpush1.bf16.msra.mxu0 %v999
  %1406 = vmatprep.subr.bf16.mxu0 0
  %1407 = vmatpush1.bf16.msra.mxu0 %v1000
  %1408 = vmatprep.subr.bf16.mxu0 0
  %1409 = vmatpush1.bf16.msra.mxu0 %v1001
  %1410 = vmatprep.mubr.bf16.mxu0 %v339
  %1411 = vmatmul.mubr.bf16.gmra.mrb[0].mxu0 %v338
  %v1412 = vpop.f32.mrb[0].mxu0
  %v1413 = vadd.f32 %v1373, %v1412
  %v1414 = vpop.f32.mrb[0].mxu0
  %v1415 = vpop.f32.mrb[0].mxu0
  %v1416 = vpop.f32.mrb[0].mxu0
  %1417 = vdwg.mxu0
  %1418 = vmatprep.subr.bf16.mxu0 0
  %1419 = vmatpush1.bf16.msra.mxu0 %v1002
  %1420 = vmatprep.subr.bf16.mxu0 0
  %1421 = vmatpush1.bf16.msra.mxu0 %v1003
  %1422 = vmatprep.subr.bf16.mxu0 0
  %1423 = vmatpush1.bf16.msra.mxu0 %v1004
  %1424 = vmatprep.subr.bf16.mxu0 0
  %1425 = vmatpush1.bf16.msra.mxu0 %v1005
  %1426 = vmatprep.subr.bf16.mxu0 0
  %1427 = vmatpush1.bf16.msra.mxu0 %v1006
  %1428 = vmatprep.subr.bf16.mxu0 0
  %1429 = vmatpush1.bf16.msra.mxu0 %v1007
  %1430 = vmatprep.subr.bf16.mxu0 0
  %1431 = vmatpush1.bf16.msra.mxu0 %v1008
  %1432 = vmatprep.subr.bf16.mxu0 0
  %1433 = vmatpush1.bf16.msra.mxu0 %v1009
  %1434 = vmatprep.subr.bf16.mxu0 0
  %1435 = vmatpush1.bf16.msra.mxu0 %v1010
  %1436 = vmatprep.subr.bf16.mxu0 0
  %1437 = vmatpush1.bf16.msra.mxu0 %v1011
  %1438 = vmatprep.subr.bf16.mxu0 0
  %1439 = vmatpush1.bf16.msra.mxu0 %v1012
  %1440 = vmatprep.subr.bf16.mxu0 0
  %1441 = vmatpush1.bf16.msra.mxu0 %v1013
  %1442 = vmatprep.subr.bf16.mxu0 0
  %1443 = vmatpush1.bf16.msra.mxu0 %v1014
  %1444 = vmatprep.subr.bf16.mxu0 0
  %1445 = vmatpush1.bf16.msra.mxu0 %v1015
  %1446 = vmatprep.subr.bf16.mxu0 0
  %1447 = vmatpush1.bf16.msra.mxu0 %v1016
  %1448 = vmatprep.subr.bf16.mxu0 0
  %1449 = vmatpush1.bf16.msra.mxu0 %v1017
  %1450 = vmatprep.mubr.bf16.mxu0 %v341
  %1451 = vmatmul.mubr.bf16.gmra.mrb[0].mxu0 %v340
  %v1452 = vpop.f32.mrb[0].mxu0
  %v1453 = vadd.f32 %v1413, %v1452
  %v1454 = vpop.f32.mrb[0].mxu0
  %v1455 = vpop.f32.mrb[0].mxu0
  %v1456 = vpop.f32.mrb[0].mxu0
  %1457 = vdwg.mxu0
  %1458 = vmatprep.subr.bf16.mxu0 0
  %1459 = vmatpush1.bf16.msra.mxu0 %v1018
  %1460 = vmatprep.subr.bf16.mxu0 0
  %1461 = vmatpush1.bf16.msra.mxu0 %v1019
  %1462 = vmatprep.subr.bf16.mxu0 0
  %1463 = vmatpush1.bf16.msra.mxu0 %v1020
  %1464 = vmatprep.subr.bf16.mxu0 0
  %1465 = vmatpush1.bf16.msra.mxu0 %v1021
  %1466 = vmatprep.subr.bf16.mxu0 0
  %1467 = vmatpush1.bf16.msra.mxu0 %v1022
  %1468 = vmatprep.subr.bf16.mxu0 0
  %1469 = vmatpush1.bf16.msra.mxu0 %v1023
  %1470 = vmatprep.subr.bf16.mxu0 0
  %1471 = vmatpush1.bf16.msra.mxu0 %v1024
  %1472 = vmatprep.subr.bf16.mxu0 0
  %1473 = vmatpush1.bf16.msra.mxu0 %v1025
  %1474 = vmatprep.subr.bf16.mxu0 0
  %1475 = vmatpush1.bf16.msra.mxu0 %v1026
  %1476 = vmatprep.subr.bf16.mxu0 0
  %1477 = vmatpush1.bf16.msra.mxu0 %v1027
  %1478 = vmatprep.subr.bf16.mxu0 0
  %1479 = vmatpush1.bf16.msra.mxu0 %v1028
  %1480 = vmatprep.subr.bf16.mxu0 0
  %1481 = vmatpush1.bf16.msra.mxu0 %v1029
  %1482 = vmatprep.subr.bf16.mxu0 0
  %1483 = vmatpush1.bf16.msra.mxu0 %v1030
  %1484 = vmatprep.subr.bf16.mxu0 0
  %1485 = vmatpush1.bf16.msra.mxu0 %v1031
  %1486 = vmatprep.subr.bf16.mxu0 0
  %1487 = vmatpush1.bf16.msra.mxu0 %v1032
  %1488 = vmatprep.subr.bf16.mxu0 0
  %1489 = vmatpush1.bf16.msra.mxu0 %v1033
  %1490 = vmatprep.mubr.bf16.mxu0 %v343
  %1491 = vmatmul.mubr.bf16.gmra.mrb[0].mxu0 %v342
  %v1492 = vpop.f32.mrb[0].mxu0
  %v1493 = vadd.f32 %v1453, %v1492
  %v1494 = vpop.f32.mrb[0].mxu0
  %v1495 = vpop.f32.mrb[0].mxu0
  %v1496 = vpop.f32.mrb[0].mxu0
  %1497 = vdwg.mxu0
  %1498 = vmatprep.subr.bf16.mxu0 0
  %1499 = vmatpush1.bf16.msra.mxu0 %v1034
  %1500 = vmatprep.subr.bf16.mxu0 0
  %1501 = vmatpush1.bf16.msra.mxu0 %v1035
  %1502 = vmatprep.subr.bf16.mxu0 0
  %1503 = vmatpush1.bf16.msra.mxu0 %v1036
  %1504 = vmatprep.subr.bf16.mxu0 0
  %1505 = vmatpush1.bf16.msra.mxu0 %v1037
  %1506 = vmatprep.subr.bf16.mxu0 0
  %1507 = vmatpush1.bf16.msra.mxu0 %v1038
  %1508 = vmatprep.subr.bf16.mxu0 0
  %1509 = vmatpush1.bf16.msra.mxu0 %v1039
  %1510 = vmatprep.subr.bf16.mxu0 0
  %1511 = vmatpush1.bf16.msra.mxu0 %v1040
  %1512 = vmatprep.subr.bf16.mxu0 0
  %1513 = vmatpush1.bf16.msra.mxu0 %v1041
  %1514 = vmatprep.subr.bf16.mxu0 0
  %1515 = vmatpush1.bf16.msra.mxu0 0
  %1516 = vmatprep.subr.bf16.mxu0 0
  %1517 = vmatpush1.bf16.msra.mxu0 0
  %1518 = vmatprep.subr.bf16.mxu0 0
  %1519 = vmatpush1.bf16.msra.mxu0 0
  %1520 = vmatprep.subr.bf16.mxu0 0
  %1521 = vmatpush1.bf16.msra.mxu0 0
  %1522 = vmatprep.subr.bf16.mxu0 0
  %1523 = vmatpush1.bf16.msra.mxu0 0
  %1524 = vmatprep.subr.bf16.mxu0 0
  %1525 = vmatpush1.bf16.msra.mxu0 0
  %1526 = vmatprep.subr.bf16.mxu0 0
  %1527 = vmatpush1.bf16.msra.mxu0 0
  %1528 = vmatprep.subr.bf16.mxu0 0
  %1529 = vmatpush1.bf16.msra.mxu0 0
  %1530 = vmatprep.mubr.bf16.mxu0 0
  %1531 = vmatmul.mubr.bf16.gmra.mrb[0].mxu0 %v344
  %v1532 = vpop.f32.mrb[0].mxu0
  %v1533 = vadd.f32 %v1493, %v1532
  %v1534 = vpop.f32.mrb[0].mxu0
  %v1535 = vpop.f32.mrb[0].mxu0
  %v1536 = vpop.f32.mrb[0].mxu0
  %1537 = vdwg.mxu0
  %v1538 = vadd.f32 %v20, %v1533
  %1539 = vst [vmem:[%s3] sm:$0xff] %v1538
  // Predicated region
  $region18: #{cvae_forward.8} parent=0 // pred_check
    %p1540 = pneg %p15
  $region19: #{cvae_forward.8} parent=0 // pred_check_branch
    %1542 = sbr.rel (%p1540) target = $region21
  $region20: #{cvae_forward.8} parent=0 // pred_region
    %v1543 = vld [vmem:[%s3] sm:$0xff]
    %v1544 = vld [vmem:[%s2] sm:$0x1]
    %v1546 = vlaneseq
    %v1547 = vshrl.u32 %v1546, 7
    %v1548 = vsub.s32 0, %v1547
    %v1549 = vrot.slane %v1544, %v1548
    %v1551 = vadd.f32 %v1543, %v1549
    %vm1552 = vcmp.ge.f32.partialorder %v1551, 0.0
    %v1553 = vmul.f32 %v1551, 0.2
    %v1554 = vsel %vm1552, %v1551, %v1553
    %1555 = vst [vmem:[%s3] sm:$0xff] %v1554
  $region21: #{cvae_forward.8} parent=0 // pred_fallthru
    _
  // Predicated region
  $region22: #{cvae_forward.8} parent=0 // pred_check
    _
  $region23: #{cvae_forward.8} parent=0 // pred_check_branch
    %1557 = sbr.rel (0) target = $region25
  $region24: #{cvae_forward.8} parent=0 // pred_region
    _
  $region25: #{cvae_forward.8} parent=0 // pred_fallthru
    _
  // Predicated region
  $region26: #{cvae_forward.8} parent=0 // pred_check
    _
  $region27: #{cvae_forward.8} parent=0 // pred_check_branch
    %1559 = sbr.rel (0) target = $region29
  $region28: #{cvae_forward.8} parent=0 // pred_region
    _
  $region29: #{cvae_forward.8} parent=0 // pred_fallthru
    _

// kernel: cvae_forward.9
$region0: #{cvae_forward.9}
  #allocation0 [shape = 'u32[]', space=smem, size = 0x4, offset = 0x4, fixed_abs, tag = 'smem constant byte address 0x4 - core index']
  #allocation1 [shape = 'u32[144,128]{1,0:T(1,128)}', space=vmem, size = 0x12000, scoped, tag = 'internal scratch']
  %s0 = inlined_call_operand.vmem [shape: bf16[2,2048], index: 0, kind: input, shape index: {}]
  %s1 = inlined_call_operand.vmem [shape: bf16[2048,128], index: 1, kind: input, shape index: {}]
  %s2 = inlined_call_operand.vmem [shape: f32[1,128], index: 2, kind: input, shape index: {}]
  %s3 = inlined_call_operand.hbm [shape: f32[2,128], index: 3, kind: output, shape index: {}]
  %s4 = sld [smem:[#allocation0]]
  $region30: #{cvae_forward.9} parent=0
    _
  %s6 = ssub.s32 1, %s4
  %s7 = scalar_select 0, %s6, %s4
  $region1: #{cvae_forward.9} parent=0
    #allocation2 [shape = 'u8[1024]{0}', space=vmem, size = 0x400, scoped, tag = 'output window, operand 0, single buffered']
    #allocation3 [shape = 's32[1]{0}', space=sflag, size = 0x4, scoped, tag = 'scoped memory for cvae_forward.9']
    %8 = vsyncpa [#allocation3], 0
    // Predicated region
    $region2: #{cvae_forward.9} parent=1 // pred_check
      _
    $region3: #{cvae_forward.9} parent=1 // pred_check_branch
      %10 = sbr.rel (0) target = $region5
    $region4: #{cvae_forward.9} parent=1 // pred_region
      _
    $region5: #{cvae_forward.9} parent=1 // pred_fallthru
      _
    // Predicated region
    $region6: #{cvae_forward.9} parent=1 // pred_check
      _
    $region7: #{cvae_forward.9} parent=1 // pred_check_branch
      %12 = sbr.rel (0) target = $region9
    $region8: #{cvae_forward.9} parent=1 // pred_region
      _
    $region9: #{cvae_forward.9} parent=1 // pred_fallthru
      _
    // Predicated region
    $region10: #{cvae_forward.9} parent=1 // pred_check
      _
    $region11: #{cvae_forward.9} parent=1 // pred_check_branch
      %14 = sbr.rel (0) target = $region13
    $region12: #{cvae_forward.9} parent=1 // pred_region
      _
    $region13: #{cvae_forward.9} parent=1 // pred_fallthru
      _
    %p16 = scmp.eq.s32.totalorder 0, 0
    // Predicated region
    $region14: #{cvae_forward.9} parent=1 // pred_check
      %p17 = pneg %p16
    $region15: #{cvae_forward.9} parent=1 // pred_check_branch
      %19 = sbr.rel (%p17) target = $region17
    $region16: #{cvae_forward.9} parent=1 // pred_region
      %20 = vst [vmem:[#allocation2] sm:$0x3] 0.0
    $region17: #{cvae_forward.9} parent=1 // pred_fallthru
      _
    %v21 = vld [vmem:[#allocation2] sm:$0x3]
    %v22 = vld [vmem:[%s0] sm:$0xff]
    %v23 = vld [vmem:[%s0 + $0x8] sm:$0xff]
    %v24 = vld [vmem:[%s1] sm:$0xf]
    %v25 = vld [vmem:[%s1 + $0x4] sm:$0xf]
    %v26 = vld [vmem:[%s1 + $0x8] sm:$0xf]
    %v27 = vld [vmem:[%s1 + $0xc] sm:$0xf]
    %v28 = vld [vmem:[%s1 + $0x10] sm:$0xf]
    %v29 = vld [vmem:[%s1 + $0x14] sm:$0xf]
    %v30 = vld [vmem:[%s1 + $0x18] sm:$0xf]
    %v31 = vld [vmem:[%s1 + $0x1c] sm:$0xf]
    %v32 = vld [vmem:[%s1 + $0x20] sm:$0xf]
    %v33 = vld [vmem:[%s1 + $0x24] sm:$0xf]
    %v34 = vld [vmem:[%s1 + $0x28] sm:$0xf]
    %v35 = vld [vmem:[%s1 + $0x2c] sm:$0xf]
    %v36 = vld [vmem:[%s1 + $0x30] sm:$0xf]
    %v37 = vld [vmem:[%s1 + $0x34] sm:$0xf]
    %v38 = vld [vmem:[%s1 + $0x38] sm:$0xf]
    %v39 = vld [vmem:[%s1 + $0x3c] sm:$0xf]
    %v40 = vld [vmem:[%s1 + $0x40] sm:$0xf]
    %v41 = vld [vmem:[%s1 + $0x44] sm:$0xf]
    %v42 = vld [vmem:[%s1 + $0x48] sm:$0xf]
    %v43 = vld [vmem:[%s1 + $0x4c] sm:$0xf]
    %v44 = vld [vmem:[%s1 + $0x50] sm:$0xf]
    %v45 = vld [vmem:[%s1 + $0x54] sm:$0xf]
    %v46 = vld [vmem:[%s1 + $0x58] sm:$0xf]
    %v47 = vld [vmem:[%s1 + $0x5c] sm:$0xf]
    %v48 = vld [vmem:[%s1 + $0x60] sm:$0xf]
    %v49 = vld [vmem:[%s1 + $0x64] sm:$0xf]
    %v50 = vld [vmem:[%s1 + $0x68] sm:$0xf]
    %v51 = vld [vmem:[%s1 + $0x6c] sm:$0xf]
    %v52 = vld [vmem:[%s1 + $0x70] sm:$0xf]
    %v53 = vld [vmem:[%s1 + $0x74] sm:$0xf]
    %v54 = vld [vmem:[%s1 + $0x78] sm:$0xf]
    %v55 = vld [vmem:[%s1 + $0x7c] sm:$0xf]
    %v56 = vld [vmem:[%s1 + $0x80] sm:$0xf]
    %v57 = vld [vmem:[%s1 + $0x84] sm:$0xf]
    %v58 = vld [vmem:[%s1 + $0x88] sm:$0xf]
    %v59 = vld [vmem:[%s1 + $0x8c] sm:$0xf]
    %v60 = vld [vmem:[%s1 + $0x90] sm:$0xf]
    %v61 = vld [vmem:[%s1 + $0x94] sm:$0xf]
    %v62 = vld [vmem:[%s1 + $0x98] sm:$0xf]
    %v63 = vld [vmem:[%s1 + $0x9c] sm:$0xf]
    %v64 = vld [vmem:[%s1 + $0xa0] sm:$0xf]
    %v65 = vld [vmem:[%s1 + $0xa4] sm:$0xf]
    %v66 = vld [vmem:[%s1 + $0xa8] sm:$0xf]
    %v67 = vld [vmem:[%s1 + $0xac] sm:$0xf]
    %v68 = vld [vmem:[%s1 + $0xb0] sm:$0xf]
    %v69 = vld [vmem:[%s1 + $0xb4] sm:$0xf]
    %v70 = vld [vmem:[%s1 + $0xb8] sm:$0xf]
    %v71 = vld [vmem:[%s1 + $0xbc] sm:$0xf]
    %v72 = vld [vmem:[%s1 + $0xc0] sm:$0xf]
    %v73 = vld [vmem:[%s1 + $0xc4] sm:$0xf]
    %v74 = vld [vmem:[%s1 + $0xc8] sm:$0xf]
    %v75 = vld [vmem:[%s1 + $0xcc] sm:$0xf]
    %v76 = vld [vmem:[%s1 + $0xd0] sm:$0xf]
    %v77 = vld [vmem:[%s1 + $0xd4] sm:$0xf]
    %v78 = vld [vmem:[%s1 + $0xd8] sm:$0xf]
    %v79 = vld [vmem:[%s1 + $0xdc] sm:$0xf]
    %v80 = vld [vmem:[%s1 + $0xe0] sm:$0xf]
    %v81 = vld [vmem:[%s1 + $0xe4] sm:$0xf]
    %v82 = vld [vmem:[%s1 + $0xe8] sm:$0xf]
    %v83 = vld [vmem:[%s1 + $0xec] sm:$0xf]
    %v84 = vld [vmem:[%s1 + $0xf0] sm:$0xf]
    %v85 = vld [vmem:[%s1 + $0xf4] sm:$0xf]
    %v86 = vld [vmem:[%s1 + $0xf8] sm:$0xf]
    %v87 = vld [vmem:[%s1 + $0xfc] sm:$0xf]
    %v88 = vld [vmem:[%s1 + $0x100] sm:$0xf]
    %v89 = vld [vmem:[%s1 + $0x104] sm:$0xf]
    %v90 = vld [vmem:[%s1 + $0x108] sm:$0xf]
    %v91 = vld [vmem:[%s1 + $0x10c] sm:$0xf]
    %v92 = vld [vmem:[%s1 + $0x110] sm:$0xf]
    %v93 = vld [vmem:[%s1 + $0x114] sm:$0xf]
    %v94 = vld [vmem:[%s1 + $0x118] sm:$0xf]
    %v95 = vld [vmem:[%s1 + $0x11c] sm:$0xf]
    %v96 = vld [vmem:[%s1 + $0x120] sm:$0xf]
    %v97 = vld [vmem:[%s1 + $0x124] sm:$0xf]
    %v98 = vld [vmem:[%s1 + $0x128] sm:$0xf]
    %v99 = vld [vmem:[%s1 + $0x12c] sm:$0xf]
    %v100 = vld [vmem:[%s1 + $0x130] sm:$0xf]
    %v101 = vld [vmem:[%s1 + $0x134] sm:$0xf]
    %v102 = vld [vmem:[%s1 + $0x138] sm:$0xf]
    %v103 = vld [vmem:[%s1 + $0x13c] sm:$0xf]
    %v104 = vld [vmem:[%s1 + $0x140] sm:$0xf]
    %v105 = vld [vmem:[%s1 + $0x144] sm:$0xf]
    %v106 = vld [vmem:[%s1 + $0x148] sm:$0xf]
    %v107 = vld [vmem:[%s1 + $0x14c] sm:$0xf]
    %v108 = vld [vmem:[%s1 + $0x150] sm:$0xf]
    %v109 = vld [vmem:[%s1 + $0x154] sm:$0xf]
    %v110 = vld [vmem:[%s1 + $0x158] sm:$0xf]
    %v111 = vld [vmem:[%s1 + $0x15c] sm:$0xf]
    %v112 = vld [vmem:[%s1 + $0x160] sm:$0xf]
    %v113 = vld [vmem:[%s1 + $0x164] sm:$0xf]
    %v114 = vld [vmem:[%s1 + $0x168] sm:$0xf]
    %v115 = vld [vmem:[%s1 + $0x16c] sm:$0xf]
    %v116 = vld [vmem:[%s1 + $0x170] sm:$0xf]
    %v117 = vld [vmem:[%s1 + $0x174] sm:$0xf]
    %v118 = vld [vmem:[%s1 + $0x178] sm:$0xf]
    %v119 = vld [vmem:[%s1 + $0x17c] sm:$0xf]
    %v120 = vld [vmem:[%s1 + $0x180] sm:$0xf]
    %v121 = vld [vmem:[%s1 + $0x184] sm:$0xf]
    %v122 = vld [vmem:[%s1 + $0x188] sm:$0xf]
    %v123 = vld [vmem:[%s1 + $0x18c] sm:$0xf]
    %v124 = vld [vmem:[%s1 + $0x190] sm:$0xf]
    %v125 = vld [vmem:[%s1 + $0x194] sm:$0xf]
    %v126 = vld [vmem:[%s1 + $0x198] sm:$0xf]
    %v127 = vld [vmem:[%s1 + $0x19c] sm:$0xf]
    %v128 = vld [vmem:[%s1 + $0x1a0] sm:$0xf]
    %v129 = vld [vmem:[%s1 + $0x1a4] sm:$0xf]
    %v130 = vld [vmem:[%s1 + $0x1a8] sm:$0xf]
    %v131 = vld [vmem:[%s1 + $0x1ac] sm:$0xf]
    %v132 = vld [vmem:[%s1 + $0x1b0] sm:$0xf]
    %v133 = vld [vmem:[%s1 + $0x1b4] sm:$0xf]
    %v134 = vld [vmem:[%s1 + $0x1b8] sm:$0xf]
    %v135 = vld [vmem:[%s1 + $0x1bc] sm:$0xf]
    %v136 = vld [vmem:[%s1 + $0x1c0] sm:$0xf]
    %v137 = vld [vmem:[%s1 + $0x1c4] sm:$0xf]
    %v138 = vld [vmem:[%s1 + $0x1c8] sm:$0xf]
    %v139 = vld [vmem:[%s1 + $0x1cc] sm:$0xf]
    %v140 = vld [vmem:[%s1 + $0x1d0] sm:$0xf]
    %v141 = vld [vmem:[%s1 + $0x1d4] sm:$0xf]
    %v142 = vld [vmem:[%s1 + $0x1d8] sm:$0xf]
    %v143 = vld [vmem:[%s1 + $0x1dc] sm:$0xf]
    %v144 = vld [vmem:[%s1 + $0x1e0] sm:$0xf]
    %v145 = vld [vmem:[%s1 + $0x1e4] sm:$0xf]
    %v146 = vld [vmem:[%s1 + $0x1e8] sm:$0xf]
    %v147 = vld [vmem:[%s1 + $0x1ec] sm:$0xf]
    %v148 = vld [vmem:[%s1 + $0x1f0] sm:$0xf]
    %v149 = vld [vmem:[%s1 + $0x1f4] sm:$0xf]
    %v150 = vld [vmem:[%s1 + $0x1f8] sm:$0xf]
    %v151 = vld [vmem:[%s1 + $0x1fc] sm:$0xf]
    %v152 = vld [vmem:[%s1 + $0x200] sm:$0xf]
    %v153 = vld [vmem:[%s1 + $0x204] sm:$0xf]
    %v154 = vld [vmem:[%s1 + $0x208] sm:$0xf]
    %v155 = vld [vmem:[%s1 + $0x20c] sm:$0xf]
    %v156 = vld [vmem:[%s1 + $0x210] sm:$0xf]
    %v157 = vld [vmem:[%s1 + $0x214] sm:$0xf]
    %v158 = vld [vmem:[%s1 + $0x218] sm:$0xf]
    %v159 = vld [vmem:[%s1 + $0x21c] sm:$0xf]
    %v160 = vld [vmem:[%s1 + $0x220] sm:$0xf]
    %v161 = vld [vmem:[%s1 + $0x224] sm:$0xf]
    %v162 = vld [vmem:[%s1 + $0x228] sm:$0xf]
    %v163 = vld [vmem:[%s1 + $0x22c] sm:$0xf]
    %v164 = vld [vmem:[%s1 + $0x230] sm:$0xf]
    %v165 = vld [vmem:[%s1 + $0x234] sm:$0xf]
    %v166 = vld [vmem:[%s1 + $0x238] sm:$0xf]
    %v167 = vld [vmem:[%s1 + $0x23c] sm:$0xf]
    %v168 = vld [vmem:[%s1 + $0x240] sm:$0xf]
    %v169 = vld [vmem:[%s1 + $0x244] sm:$0xf]
    %v170 = vld [vmem:[%s1 + $0x248] sm:$0xf]
    %v171 = vld [vmem:[%s1 + $0x24c] sm:$0xf]
    %v172 = vld [vmem:[%s1 + $0x250] sm:$0xf]
    %v173 = vld [vmem:[%s1 + $0x254] sm:$0xf]
    %v174 = vld [vmem:[%s1 + $0x258] sm:$0xf]
    %v175 = vld [vmem:[%s1 + $0x25c] sm:$0xf]
    %v176 = vld [vmem:[%s1 + $0x260] sm:$0xf]
    %v177 = vld [vmem:[%s1 + $0x264] sm:$0xf]
    %v178 = vld [vmem:[%s1 + $0x268] sm:$0xf]
    %v179 = vld [vmem:[%s1 + $0x26c] sm:$0xf]
    %v180 = vld [vmem:[%s1 + $0x270] sm:$0xf]
    %v181 = vld [vmem:[%s1 + $0x274] sm:$0xf]
    %v182 = vld [vmem:[%s1 + $0x278] sm:$0xf]
    %v183 = vld [vmem:[%s1 + $0x27c] sm:$0xf]
    %v184 = vld [vmem:[%s1 + $0x280] sm:$0xf]
    %v185 = vld [vmem:[%s1 + $0x284] sm:$0xf]
    %v186 = vld [vmem:[%s1 + $0x288] sm:$0xf]
    %v187 = vld [vmem:[%s1 + $0x28c] sm:$0xf]
    %v188 = vld [vmem:[%s1 + $0x290] sm:$0xf]
    %v189 = vld [vmem:[%s1 + $0x294] sm:$0xf]
    %v190 = vld [vmem:[%s1 + $0x298] sm:$0xf]
    %v191 = vld [vmem:[%s1 + $0x29c] sm:$0xf]
    %v192 = vld [vmem:[%s1 + $0x2a0] sm:$0xf]
    %v193 = vld [vmem:[%s1 + $0x2a4] sm:$0xf]
    %v194 = vld [vmem:[%s1 + $0x2a8] sm:$0xf]
    %v195 = vld [vmem:[%s1 + $0x2ac] sm:$0xf]
    %v196 = vld [vmem:[%s1 + $0x2b0] sm:$0xf]
    %v197 = vld [vmem:[%s1 + $0x2b4] sm:$0xf]
    %v198 = vld [vmem:[%s1 + $0x2b8] sm:$0xf]
    %v199 = vld [vmem:[%s1 + $0x2bc] sm:$0xf]
    %v200 = vld [vmem:[%s1 + $0x2c0] sm:$0xf]
    %v201 = vld [vmem:[%s1 + $0x2c4] sm:$0xf]
    %v202 = vld [vmem:[%s1 + $0x2c8] sm:$0xf]
    %v203 = vld [vmem:[%s1 + $0x2cc] sm:$0xf]
    %v204 = vld [vmem:[%s1 + $0x2d0] sm:$0xf]
    %v205 = vld [vmem:[%s1 + $0x2d4] sm:$0xf]
    %v206 = vld [vmem:[%s1 + $0x2d8] sm:$0xf]
    %v207 = vld [vmem:[%s1 + $0x2dc] sm:$0xf]
    %v208 = vld [vmem:[%s1 + $0x2e0] sm:$0xf]
    %v209 = vld [vmem:[%s1 + $0x2e4] sm:$0xf]
    %v210 = vld [vmem:[%s1 + $0x2e8] sm:$0xf]
    %v211 = vld [vmem:[%s1 + $0x2ec] sm:$0xf]
    %v212 = vld [vmem:[%s1 + $0x2f0] sm:$0xf]
    %v213 = vld [vmem:[%s1 + $0x2f4] sm:$0xf]
    %v214 = vld [vmem:[%s1 + $0x2f8] sm:$0xf]
    %v215 = vld [vmem:[%s1 + $0x2fc] sm:$0xf]
    %v216 = vld [vmem:[%s1 + $0x300] sm:$0xf]
    %v217 = vld [vmem:[%s1 + $0x304] sm:$0xf]
    %v218 = vld [vmem:[%s1 + $0x308] sm:$0xf]
    %v219 = vld [vmem:[%s1 + $0x30c] sm:$0xf]
    %v220 = vld [vmem:[%s1 + $0x310] sm:$0xf]
    %v221 = vld [vmem:[%s1 + $0x314] sm:$0xf]
    %v222 = vld [vmem:[%s1 + $0x318] sm:$0xf]
    %v223 = vld [vmem:[%s1 + $0x31c] sm:$0xf]
    %v224 = vld [vmem:[%s1 + $0x320] sm:$0xf]
    %v225 = vld [vmem:[%s1 + $0x324] sm:$0xf]
    %v226 = vld [vmem:[%s1 + $0x328] sm:$0xf]
    %v227 = vld [vmem:[%s1 + $0x32c] sm:$0xf]
    %v228 = vld [vmem:[%s1 + $0x330] sm:$0xf]
    %v229 = vld [vmem:[%s1 + $0x334] sm:$0xf]
    %v230 = vld [vmem:[%s1 + $0x338] sm:$0xf]
    %v231 = vld [vmem:[%s1 + $0x33c] sm:$0xf]
    %v232 = vld [vmem:[%s1 + $0x340] sm:$0xf]
    %v233 = vld [vmem:[%s1 + $0x344] sm:$0xf]
    %v234 = vld [vmem:[%s1 + $0x348] sm:$0xf]
    %v235 = vld [vmem:[%s1 + $0x34c] sm:$0xf]
    %v236 = vld [vmem:[%s1 + $0x350] sm:$0xf]
    %v237 = vld [vmem:[%s1 + $0x354] sm:$0xf]
    %v238 = vld [vmem:[%s1 + $0x358] sm:$0xf]
    %v239 = vld [vmem:[%s1 + $0x35c] sm:$0xf]
    %v240 = vld [vmem:[%s1 + $0x360] sm:$0xf]
    %v241 = vld [vmem:[%s1 + $0x364] sm:$0xf]
    %v242 = vld [vmem:[%s1 + $0x368] sm:$0xf]
    %v243 = vld [vmem:[%s1 + $0x36c] sm:$0xf]
    %v244 = vld [vmem:[%s1 + $0x370] sm:$0xf]
    %v245 = vld [vmem:[%s1 + $0x374] sm:$0xf]
    %v246 = vld [vmem:[%s1 + $0x378] sm:$0xf]
    %v247 = vld [vmem:[%s1 + $0x37c] sm:$0xf]
    %v248 = vld [vmem:[%s1 + $0x380] sm:$0xf]
    %v249 = vld [vmem:[%s1 + $0x384] sm:$0xf]
    %v250 = vld [vmem:[%s1 + $0x388] sm:$0xf]
    %v251 = vld [vmem:[%s1 + $0x38c] sm:$0xf]
    %v252 = vld [vmem:[%s1 + $0x390] sm:$0xf]
    %v253 = vld [vmem:[%s1 + $0x394] sm:$0xf]
    %v254 = vld [vmem:[%s1 + $0x398] sm:$0xf]
    %v255 = vld [vmem:[%s1 + $0x39c] sm:$0xf]
    %v256 = vld [vmem:[%s1 + $0x3a0] sm:$0xf]
    %v257 = vld [vmem:[%s1 + $0x3a4] sm:$0xf]
    %v258 = vld [vmem:[%s1 + $0x3a8] sm:$0xf]
    %v259 = vld [vmem:[%s1 + $0x3ac] sm:$0xf]
    %v260 = vld [vmem:[%s1 + $0x3b0] sm:$0xf]
    %v261 = vld [vmem:[%s1 + $0x3b4] sm:$0xf]
    %v262 = vld [vmem:[%s1 + $0x3b8] sm:$0xf]
    %v263 = vld [vmem:[%s1 + $0x3bc] sm:$0xf]
    %v264 = vld [vmem:[%s1 + $0x3c0] sm:$0xf]
    %v265 = vld [vmem:[%s1 + $0x3c4] sm:$0xf]
    %v266 = vld [vmem:[%s1 + $0x3c8] sm:$0xf]
    %v267 = vld [vmem:[%s1 + $0x3cc] sm:$0xf]
    %v268 = vld [vmem:[%s1 + $0x3d0] sm:$0xf]
    %v269 = vld [vmem:[%s1 + $0x3d4] sm:$0xf]
    %v270 = vld [vmem:[%s1 + $0x3d8] sm:$0xf]
    %v271 = vld [vmem:[%s1 + $0x3dc] sm:$0xf]
    %v272 = vld [vmem:[%s1 + $0x3e0] sm:$0xf]
    %v273 = vld [vmem:[%s1 + $0x3e4] sm:$0xf]
    %v274 = vld [vmem:[%s1 + $0x3e8] sm:$0xf]
    %v275 = vld [vmem:[%s1 + $0x3ec] sm:$0xf]
    %v276 = vld [vmem:[%s1 + $0x3f0] sm:$0xf]
    %v277 = vld [vmem:[%s1 + $0x3f4] sm:$0xf]
    %v278 = vld [vmem:[%s1 + $0x3f8] sm:$0xf]
    %v279 = vld [vmem:[%s1 + $0x3fc] sm:$0xf]
    %v282 = vcombine.high %v22, %v22
    %v284 = vunpack.c.l.s4 1966171168
    %v285 = vunpack.c.0.s8 %v284
    %v286 = vlaneseq
    %v287 = vshrl.u32 %v286, 7
    %v288 = vsub.s32 %v285, %v287
    %v289 = vrot.slane %v22, %v288
    %v291 = vunpack.c.l.s4 1966171168
    %v292 = vunpack.c.0.s8 %v291
    %v293 = vlaneseq
    %v294 = vshrl.u32 %v293, 7
    %v295 = vsub.s32 %v292, %v294
    %v296 = vrot.slane %v282, %v295
    %v297 = vcombine.high %v289, %v289
    %v298 = vcombine.high %v296, %v296
    %v300 = vunpack.c.l.s4 1966171168
    %v301 = vunpack.c.0.s8 %v300
    %v302 = vlaneseq
    %v303 = vshrl.u32 %v302, 7
    %v304 = vsub.s32 %v301, %v303
    %v305 = vrot.slane %v289, %v304
    %v307 = vunpack.c.l.s4 1966171168
    %v308 = vunpack.c.0.s8 %v307
    %v309 = vlaneseq
    %v310 = vshrl.u32 %v309, 7
    %v311 = vsub.s32 %v308, %v310
    %v312 = vrot.slane %v296, %v311
    %v314 = vunpack.c.l.s4 1966171168
    %v315 = vunpack.c.0.s8 %v314
    %v316 = vlaneseq
    %v317 = vshrl.u32 %v316, 7
    %v318 = vsub.s32 %v315, %v317
    %v319 = vrot.slane %v297, %v318
    %v321 = vunpack.c.l.s4 1966171168
    %v322 = vunpack.c.0.s8 %v321
    %v323 = vlaneseq
    %v324 = vshrl.u32 %v323, 7
    %v325 = vsub.s32 %v322, %v324
    %v326 = vrot.slane %v298, %v325
    %v327 = vcombine.high %v305, %v305
    %v328 = vcombine.high %v312, %v312
    %v329 = vcombine.high %v319, %v319
    %v330 = vcombine.high %v326, %v326
    %v331 = vcombine.high %v23, %v23
    %v333 = vunpack.c.l.s4 1966171168
    %v334 = vunpack.c.0.s8 %v333
    %v335 = vlaneseq
    %v336 = vshrl.u32 %v335, 7
    %v337 = vsub.s32 %v334, %v336
    %v338 = vrot.slane %v23, %v337
    %v340 = vunpack.c.l.s4 1966171168
    %v341 = vunpack.c.0.s8 %v340
    %v342 = vlaneseq
    %v343 = vshrl.u32 %v342, 7
    %v344 = vsub.s32 %v341, %v343
    %v345 = vrot.slane %v331, %v344
    %v346 = vcombine.high %v338, %v338
    %v347 = vcombine.high %v345, %v345
    %v349 = vunpack.c.l.s4 1966171168
    %v350 = vunpack.c.0.s8 %v349
    %v351 = vlaneseq
    %v352 = vshrl.u32 %v351, 7
    %v353 = vsub.s32 %v350, %v352
    %v354 = vrot.slane %v338, %v353
    %v356 = vunpack.c.l.s4 1966171168
    %v357 = vunpack.c.0.s8 %v356
    %v358 = vlaneseq
    %v359 = vshrl.u32 %v358, 7
    %v360 = vsub.s32 %v357, %v359
    %v361 = vrot.slane %v345, %v360
    %v363 = vunpack.c.l.s4 1966171168
    %v364 = vunpack.c.0.s8 %v363
    %v365 = vlaneseq
    %v366 = vshrl.u32 %v365, 7
    %v367 = vsub.s32 %v364, %v366
    %v368 = vrot.slane %v346, %v367
    %v370 = vunpack.c.l.s4 1966171168
    %v371 = vunpack.c.0.s8 %v370
    %v372 = vlaneseq
    %v373 = vshrl.u32 %v372, 7
    %v374 = vsub.s32 %v371, %v373
    %v375 = vrot.slane %v347, %v374
    %v376 = vcombine.high %v354, %v354
    %v377 = vcombine.high %v361, %v361
    %v378 = vcombine.high %v368, %v368
    %v379 = vcombine.high %v375, %v375
    %v652 = vunpack.c.l.b16 %v24
    %v653 = vunpack.c.l.b16 %v25
    %v654 = vunpack.c.l.b16 %v26
    %v655 = vunpack.c.l.b16 %v27
    %v656 = vunpack.c.l.b16 %v28
    %v657 = vunpack.c.l.b16 %v29
    %v658 = vunpack.c.l.b16 %v30
    %v659 = vunpack.c.l.b16 %v31
    %v660 = vunpack.c.l.b16 %v32
    %v661 = vunpack.c.l.b16 %v33
    %v662 = vunpack.c.l.b16 %v34
    %v663 = vunpack.c.l.b16 %v35
    %v664 = vunpack.c.l.b16 %v36
    %v665 = vunpack.c.l.b16 %v37
    %v666 = vunpack.c.l.b16 %v38
    %v667 = vunpack.c.l.b16 %v39
    %v668 = vunpack.c.l.b16 %v40
    %v669 = vunpack.c.l.b16 %v41
    %v670 = vunpack.c.l.b16 %v42
    %v671 = vunpack.c.l.b16 %v43
    %v672 = vunpack.c.l.b16 %v44
    %v673 = vunpack.c.l.b16 %v45
    %v674 = vunpack.c.l.b16 %v46
    %v675 = vunpack.c.l.b16 %v47
    %v676 = vunpack.c.l.b16 %v48
    %v677 = vunpack.c.l.b16 %v49
    %v678 = vunpack.c.l.b16 %v50
    %v679 = vunpack.c.l.b16 %v51
    %v680 = vunpack.c.l.b16 %v52
    %v681 = vunpack.c.l.b16 %v53
    %v682 = vunpack.c.l.b16 %v54
    %v683 = vunpack.c.l.b16 %v55
    %v684 = vunpack.c.l.b16 %v56
    %v685 = vunpack.c.l.b16 %v57
    %v686 = vunpack.c.l.b16 %v58
    %v687 = vunpack.c.l.b16 %v59
    %v688 = vunpack.c.l.b16 %v60
    %v689 = vunpack.c.l.b16 %v61
    %v690 = vunpack.c.l.b16 %v62
    %v691 = vunpack.c.l.b16 %v63
    %v692 = vunpack.c.l.b16 %v64
    %v693 = vunpack.c.l.b16 %v65
    %v694 = vunpack.c.l.b16 %v66
    %v695 = vunpack.c.l.b16 %v67
    %v696 = vunpack.c.l.b16 %v68
    %v697 = vunpack.c.l.b16 %v69
    %v698 = vunpack.c.l.b16 %v70
    %v699 = vunpack.c.l.b16 %v71
    %v700 = vunpack.c.l.b16 %v72
    %v701 = vunpack.c.l.b16 %v73
    %v702 = vunpack.c.l.b16 %v74
    %v703 = vunpack.c.l.b16 %v75
    %v704 = vunpack.c.l.b16 %v76
    %v705 = vunpack.c.l.b16 %v77
    %v706 = vunpack.c.l.b16 %v78
    %v707 = vunpack.c.l.b16 %v79
    %v708 = vunpack.c.l.b16 %v80
    %v709 = vunpack.c.l.b16 %v81
    %v710 = vunpack.c.l.b16 %v82
    %v711 = vunpack.c.l.b16 %v83
    %v712 = vunpack.c.l.b16 %v84
    %v713 = vunpack.c.l.b16 %v85
    %v714 = vunpack.c.l.b16 %v86
    %v715 = vunpack.c.l.b16 %v87
    %v716 = vunpack.c.l.b16 %v88
    %v717 = vunpack.c.l.b16 %v89
    %v718 = vunpack.c.l.b16 %v90
    %v719 = vunpack.c.l.b16 %v91
    %v720 = vunpack.c.l.b16 %v92
    %v721 = vunpack.c.l.b16 %v93
    %v722 = vunpack.c.l.b16 %v94
    %v723 = vunpack.c.l.b16 %v95
    %v724 = vunpack.c.l.b16 %v96
    %v725 = vunpack.c.l.b16 %v97
    %v726 = vunpack.c.l.b16 %v98
    %v727 = vunpack.c.l.b16 %v99
    %v728 = vunpack.c.l.b16 %v100
    %v729 = vunpack.c.l.b16 %v101
    %v730 = vunpack.c.l.b16 %v102
    %v731 = vunpack.c.l.b16 %v103
    %v732 = vunpack.c.l.b16 %v104
    %v733 = vunpack.c.l.b16 %v105
    %v734 = vunpack.c.l.b16 %v106
    %v735 = vunpack.c.l.b16 %v107
    %v736 = vunpack.c.l.b16 %v108
    %v737 = vunpack.c.l.b16 %v109
    %v738 = vunpack.c.l.b16 %v110
    %v739 = vunpack.c.l.b16 %v111
    %v740 = vunpack.c.l.b16 %v112
    %v741 = vunpack.c.l.b16 %v113
    %v742 = vunpack.c.l.b16 %v114
    %v743 = vunpack.c.l.b16 %v115
    %v744 = vunpack.c.l.b16 %v116
    %v745 = vunpack.c.l.b16 %v117
    %v746 = vunpack.c.l.b16 %v118
    %v747 = vunpack.c.l.b16 %v119
    %v748 = vunpack.c.l.b16 %v120
    %v749 = vunpack.c.l.b16 %v121
    %v750 = vunpack.c.l.b16 %v122
    %v751 = vunpack.c.l.b16 %v123
    %v752 = vunpack.c.l.b16 %v124
    %v753 = vunpack.c.l.b16 %v125
    %v754 = vunpack.c.l.b16 %v126
    %v755 = vunpack.c.l.b16 %v127
    %v756 = vunpack.c.l.b16 %v128
    %v757 = vunpack.c.l.b16 %v129
    %v758 = vunpack.c.l.b16 %v130
    %v759 = vunpack.c.l.b16 %v131
    %v760 = vunpack.c.l.b16 %v132
    %v761 = vunpack.c.l.b16 %v133
    %v762 = vunpack.c.l.b16 %v134
    %v763 = vunpack.c.l.b16 %v135
    %v764 = vunpack.c.l.b16 %v136
    %v765 = vunpack.c.l.b16 %v137
    %v766 = vunpack.c.l.b16 %v138
    %v767 = vunpack.c.l.b16 %v139
    %v768 = vunpack.c.l.b16 %v140
    %v769 = vunpack.c.l.b16 %v141
    %v770 = vunpack.c.l.b16 %v142
    %v771 = vunpack.c.l.b16 %v143
    %v772 = vunpack.c.l.b16 %v144
    %v773 = vunpack.c.l.b16 %v145
    %v774 = vunpack.c.l.b16 %v146
    %v775 = vunpack.c.l.b16 %v147
    %v776 = vunpack.c.l.b16 %v148
    %v777 = vunpack.c.l.b16 %v149
    %v778 = vunpack.c.l.b16 %v150
    %v779 = vunpack.c.l.b16 %v151
    %v780 = vunpack.c.l.b16 %v152
    %v781 = vunpack.c.l.b16 %v153
    %v782 = vunpack.c.l.b16 %v154
    %v783 = vunpack.c.l.b16 %v155
    %v784 = vunpack.c.l.b16 %v156
    %v785 = vunpack.c.l.b16 %v157
    %v786 = vunpack.c.l.b16 %v158
    %v787 = vunpack.c.l.b16 %v159
    %v788 = vunpack.c.l.b16 %v160
    %v789 = vunpack.c.l.b16 %v161
    %v790 = vunpack.c.l.b16 %v162
    %v791 = vunpack.c.l.b16 %v163
    %v792 = vunpack.c.l.b16 %v164
    %v793 = vunpack.c.l.b16 %v165
    %v794 = vunpack.c.l.b16 %v166
    %v795 = vunpack.c.l.b16 %v167
    %v796 = vunpack.c.l.b16 %v168
    %v797 = vunpack.c.l.b16 %v169
    %v798 = vunpack.c.l.b16 %v170
    %v799 = vunpack.c.l.b16 %v171
    %v800 = vunpack.c.l.b16 %v172
    %v801 = vunpack.c.l.b16 %v173
    %v802 = vunpack.c.l.b16 %v174
    %v803 = vunpack.c.l.b16 %v175
    %v804 = vunpack.c.l.b16 %v176
    %v805 = vunpack.c.l.b16 %v177
    %v806 = vunpack.c.l.b16 %v178
    %v807 = vunpack.c.l.b16 %v179
    %v808 = vunpack.c.l.b16 %v180
    %v809 = vunpack.c.l.b16 %v181
    %v810 = vunpack.c.l.b16 %v182
    %v811 = vunpack.c.l.b16 %v183
    %v812 = vunpack.c.l.b16 %v184
    %v813 = vunpack.c.l.b16 %v185
    %v814 = vunpack.c.l.b16 %v186
    %v815 = vunpack.c.l.b16 %v187
    %v816 = vunpack.c.l.b16 %v188
    %v817 = vunpack.c.l.b16 %v189
    %v818 = vunpack.c.l.b16 %v190
    %v819 = vunpack.c.l.b16 %v191
    %v820 = vunpack.c.l.b16 %v192
    %v821 = vunpack.c.l.b16 %v193
    %v822 = vunpack.c.l.b16 %v194
    %v823 = vunpack.c.l.b16 %v195
    %v824 = vunpack.c.l.b16 %v196
    %v825 = vunpack.c.l.b16 %v197
    %v826 = vunpack.c.l.b16 %v198
    %v827 = vunpack.c.l.b16 %v199
    %v828 = vunpack.c.l.b16 %v200
    %v829 = vunpack.c.l.b16 %v201
    %v830 = vunpack.c.l.b16 %v202
    %v831 = vunpack.c.l.b16 %v203
    %v832 = vunpack.c.l.b16 %v204
    %v833 = vunpack.c.l.b16 %v205
    %v834 = vunpack.c.l.b16 %v206
    %v835 = vunpack.c.l.b16 %v207
    %v836 = vunpack.c.l.b16 %v208
    %v837 = vunpack.c.l.b16 %v209
    %v838 = vunpack.c.l.b16 %v210
    %v839 = vunpack.c.l.b16 %v211
    %v840 = vunpack.c.l.b16 %v212
    %v841 = vunpack.c.l.b16 %v213
    %v842 = vunpack.c.l.b16 %v214
    %v843 = vunpack.c.l.b16 %v215
    %v844 = vunpack.c.l.b16 %v216
    %v845 = vunpack.c.l.b16 %v217
    %v846 = vunpack.c.l.b16 %v218
    %v847 = vunpack.c.l.b16 %v219
    %v848 = vunpack.c.l.b16 %v220
    %v849 = vunpack.c.l.b16 %v221
    %v850 = vunpack.c.l.b16 %v222
    %v851 = vunpack.c.l.b16 %v223
    %v852 = vunpack.c.l.b16 %v224
    %v853 = vunpack.c.l.b16 %v225
    %v854 = vunpack.c.l.b16 %v226
    %v855 = vunpack.c.l.b16 %v227
    %v856 = vunpack.c.l.b16 %v228
    %v857 = vunpack.c.l.b16 %v229
    %v858 = vunpack.c.l.b16 %v230
    %v859 = vunpack.c.l.b16 %v231
    %v860 = vunpack.c.l.b16 %v232
    %v861 = vunpack.c.l.b16 %v233
    %v862 = vunpack.c.l.b16 %v234
    %v863 = vunpack.c.l.b16 %v235
    %v864 = vunpack.c.l.b16 %v236
    %v865 = vunpack.c.l.b16 %v237
    %v866 = vunpack.c.l.b16 %v238
    %v867 = vunpack.c.l.b16 %v239
    %v868 = vunpack.c.l.b16 %v240
    %v869 = vunpack.c.l.b16 %v241
    %v870 = vunpack.c.l.b16 %v242
    %v871 = vunpack.c.l.b16 %v243
    %v872 = vunpack.c.l.b16 %v244
    %v873 = vunpack.c.l.b16 %v245
    %v874 = vunpack.c.l.b16 %v246
    %v875 = vunpack.c.l.b16 %v247
    %v876 = vunpack.c.l.b16 %v248
    %v877 = vunpack.c.l.b16 %v249
    %v878 = vunpack.c.l.b16 %v250
    %v879 = vunpack.c.l.b16 %v251
    %v880 = vunpack.c.l.b16 %v252
    %v881 = vunpack.c.l.b16 %v253
    %v882 = vunpack.c.l.b16 %v254
    %v883 = vunpack.c.l.b16 %v255
    %v884 = vunpack.c.l.b16 %v256
    %v885 = vunpack.c.l.b16 %v257
    %v886 = vunpack.c.l.b16 %v258
    %v887 = vunpack.c.l.b16 %v259
    %v888 = vunpack.c.l.b16 %v260
    %v889 = vunpack.c.l.b16 %v261
    %v890 = vunpack.c.l.b16 %v262
    %v891 = vunpack.c.l.b16 %v263
    %v892 = vunpack.c.l.b16 %v264
    %v893 = vunpack.c.l.b16 %v265
    %v894 = vunpack.c.l.b16 %v266
    %v895 = vunpack.c.l.b16 %v267
    %v896 = vunpack.c.l.b16 %v268
    %v897 = vunpack.c.l.b16 %v269
    %v898 = vunpack.c.l.b16 %v270
    %v899 = vunpack.c.l.b16 %v271
    %v900 = vunpack.c.l.b16 %v272
    %v901 = vunpack.c.l.b16 %v273
    %v902 = vunpack.c.l.b16 %v274
    %v903 = vunpack.c.l.b16 %v275
    %v904 = vunpack.c.l.b16 %v276
    %v905 = vunpack.c.l.b16 %v277
    %v906 = vunpack.c.l.b16 %v278
    %v907 = vunpack.c.l.b16 %v279
    %v908 = vpack.c.b16 %v653, %v652
    %v909 = vpack.c.b16 %v655, %v654
    %v910 = vpack.c.b16 %v657, %v656
    %v911 = vpack.c.b16 %v659, %v658
    %v912 = vpack.c.b16 %v661, %v660
    %v913 = vpack.c.b16 %v663, %v662
    %v914 = vpack.c.b16 %v665, %v664
    %v915 = vpack.c.b16 %v667, %v666
    %v916 = vpack.c.b16 %v669, %v668
    %v917 = vpack.c.b16 %v671, %v670
    %v918 = vpack.c.b16 %v673, %v672
    %v919 = vpack.c.b16 %v675, %v674
    %v920 = vpack.c.b16 %v677, %v676
    %v921 = vpack.c.b16 %v679, %v678
    %v922 = vpack.c.b16 %v681, %v680
    %v923 = vpack.c.b16 %v683, %v682
    %v924 = vpack.c.b16 %v685, %v684
    %v925 = vpack.c.b16 %v687, %v686
    %v926 = vpack.c.b16 %v689, %v688
    %v927 = vpack.c.b16 %v691, %v690
    %v928 = vpack.c.b16 %v693, %v692
    %v929 = vpack.c.b16 %v695, %v694
    %v930 = vpack.c.b16 %v697, %v696
    %v931 = vpack.c.b16 %v699, %v698
    %v932 = vpack.c.b16 %v701, %v700
    %v933 = vpack.c.b16 %v703, %v702
    %v934 = vpack.c.b16 %v705, %v704
    %v935 = vpack.c.b16 %v707, %v706
    %v936 = vpack.c.b16 %v709, %v708
    %v937 = vpack.c.b16 %v711, %v710
    %v938 = vpack.c.b16 %v713, %v712
    %v939 = vpack.c.b16 %v715, %v714
    %v940 = vpack.c.b16 %v717, %v716
    %v941 = vpack.c.b16 %v719, %v718
    %v942 = vpack.c.b16 %v721, %v720
    %v943 = vpack.c.b16 %v723, %v722
    %v944 = vpack.c.b16 %v725, %v724
    %v945 = vpack.c.b16 %v727, %v726
    %v946 = vpack.c.b16 %v729, %v728
    %v947 = vpack.c.b16 %v731, %v730
    %v948 = vpack.c.b16 %v733, %v732
    %v949 = vpack.c.b16 %v735, %v734
    %v950 = vpack.c.b16 %v737, %v736
    %v951 = vpack.c.b16 %v739, %v738
    %v952 = vpack.c.b16 %v741, %v740
    %v953 = vpack.c.b16 %v743, %v742
    %v954 = vpack.c.b16 %v745, %v744
    %v955 = vpack.c.b16 %v747, %v746
    %v956 = vpack.c.b16 %v749, %v748
    %v957 = vpack.c.b16 %v751, %v750
    %v958 = vpack.c.b16 %v753, %v752
    %v959 = vpack.c.b16 %v755, %v754
    %v960 = vpack.c.b16 %v757, %v756
    %v961 = vpack.c.b16 %v759, %v758
    %v962 = vpack.c.b16 %v761, %v760
    %v963 = vpack.c.b16 %v763, %v762
    %v964 = vpack.c.b16 %v765, %v764
    %v965 = vpack.c.b16 %v767, %v766
    %v966 = vpack.c.b16 %v769, %v768
    %v967 = vpack.c.b16 %v771, %v770
    %v968 = vpack.c.b16 %v773, %v772
    %v969 = vpack.c.b16 %v775, %v774
    %v970 = vpack.c.b16 %v777, %v776
    %v971 = vpack.c.b16 %v779, %v778
    %v972 = vpack.c.b16 %v781, %v780
    %v973 = vpack.c.b16 %v783, %v782
    %v974 = vpack.c.b16 %v785, %v784
    %v975 = vpack.c.b16 %v787, %v786
    %v976 = vpack.c.b16 %v789, %v788
    %v977 = vpack.c.b16 %v791, %v790
    %v978 = vpack.c.b16 %v793, %v792
    %v979 = vpack.c.b16 %v795, %v794
    %v980 = vpack.c.b16 %v797, %v796
    %v981 = vpack.c.b16 %v799, %v798
    %v982 = vpack.c.b16 %v801, %v800
    %v983 = vpack.c.b16 %v803, %v802
    %v984 = vpack.c.b16 %v805, %v804
    %v985 = vpack.c.b16 %v807, %v806
    %v986 = vpack.c.b16 %v809, %v808
    %v987 = vpack.c.b16 %v811, %v810
    %v988 = vpack.c.b16 %v813, %v812
    %v989 = vpack.c.b16 %v815, %v814
    %v990 = vpack.c.b16 %v817, %v816
    %v991 = vpack.c.b16 %v819, %v818
    %v992 = vpack.c.b16 %v821, %v820
    %v993 = vpack.c.b16 %v823, %v822
    %v994 = vpack.c.b16 %v825, %v824
    %v995 = vpack.c.b16 %v827, %v826
    %v996 = vpack.c.b16 %v829, %v828
    %v997 = vpack.c.b16 %v831, %v830
    %v998 = vpack.c.b16 %v833, %v832
    %v999 = vpack.c.b16 %v835, %v834
    %v1000 = vpack.c.b16 %v837, %v836
    %v1001 = vpack.c.b16 %v839, %v838
    %v1002 = vpack.c.b16 %v841, %v840
    %v1003 = vpack.c.b16 %v843, %v842
    %v1004 = vpack.c.b16 %v845, %v844
    %v1005 = vpack.c.b16 %v847, %v846
    %v1006 = vpack.c.b16 %v849, %v848
    %v1007 = vpack.c.b16 %v851, %v850
    %v1008 = vpack.c.b16 %v853, %v852
    %v1009 = vpack.c.b16 %v855, %v854
    %v1010 = vpack.c.b16 %v857, %v856
    %v1011 = vpack.c.b16 %v859, %v858
    %v1012 = vpack.c.b16 %v861, %v860
    %v1013 = vpack.c.b16 %v863, %v862
    %v1014 = vpack.c.b16 %v865, %v864
    %v1015 = vpack.c.b16 %v867, %v866
    %v1016 = vpack.c.b16 %v869, %v868
    %v1017 = vpack.c.b16 %v871, %v870
    %v1018 = vpack.c.b16 %v873, %v872
    %v1019 = vpack.c.b16 %v875, %v874
    %v1020 = vpack.c.b16 %v877, %v876
    %v1021 = vpack.c.b16 %v879, %v878
    %v1022 = vpack.c.b16 %v881, %v880
    %v1023 = vpack.c.b16 %v883, %v882
    %v1024 = vpack.c.b16 %v885, %v884
    %v1025 = vpack.c.b16 %v887, %v886
    %v1026 = vpack.c.b16 %v889, %v888
    %v1027 = vpack.c.b16 %v891, %v890
    %v1028 = vpack.c.b16 %v893, %v892
    %v1029 = vpack.c.b16 %v895, %v894
    %v1030 = vpack.c.b16 %v897, %v896
    %v1031 = vpack.c.b16 %v899, %v898
    %v1032 = vpack.c.b16 %v901, %v900
    %v1033 = vpack.c.b16 %v903, %v902
    %v1034 = vpack.c.b16 %v905, %v904
    %v1035 = vpack.c.b16 %v907, %v906
    %1164 = vmatprep.subr.bf16.mxu0 0
    %1165 = vmatpush1.bf16.msra.mxu0 %v908
    %1166 = vmatprep.subr.bf16.mxu0 0
    %1167 = vmatpush1.bf16.msra.mxu0 %v909
    %1168 = vmatprep.subr.bf16.mxu0 0
    %1169 = vmatpush1.bf16.msra.mxu0 %v910
    %1170 = vmatprep.subr.bf16.mxu0 0
    %1171 = vmatpush1.bf16.msra.mxu0 %v911
    %1172 = vmatprep.subr.bf16.mxu0 0
    %1173 = vmatpush1.bf16.msra.mxu0 %v912
    %1174 = vmatprep.subr.bf16.mxu0 0
    %1175 = vmatpush1.bf16.msra.mxu0 %v913
    %1176 = vmatprep.subr.bf16.mxu0 0
    %1177 = vmatpush1.bf16.msra.mxu0 %v914
    %1178 = vmatprep.subr.bf16.mxu0 0
    %1179 = vmatpush1.bf16.msra.mxu0 %v915
    %1180 = vmatprep.subr.bf16.mxu0 0
    %1181 = vmatpush1.bf16.msra.mxu0 %v916
    %1182 = vmatprep.subr.bf16.mxu0 0
    %1183 = vmatpush1.bf16.msra.mxu0 %v917
    %1184 = vmatprep.subr.bf16.mxu0 0
    %1185 = vmatpush1.bf16.msra.mxu0 %v918
    %1186 = vmatprep.subr.bf16.mxu0 0
    %1187 = vmatpush1.bf16.msra.mxu0 %v919
    %1188 = vmatprep.subr.bf16.mxu0 0
    %1189 = vmatpush1.bf16.msra.mxu0 %v920
    %1190 = vmatprep.subr.bf16.mxu0 0
    %1191 = vmatpush1.bf16.msra.mxu0 %v921
    %1192 = vmatprep.subr.bf16.mxu0 0
    %1193 = vmatpush1.bf16.msra.mxu0 %v922
    %1194 = vmatprep.subr.bf16.mxu0 0
    %1195 = vmatpush1.bf16.msra.mxu0 %v923
    %1196 = vmatprep.mubr.bf16.mxu0 %v319
    %1197 = vmatmul.mubr.bf16.gmra.mrb[0].mxu0 %v305
    %v1198 = vpop.f32.mrb[0].mxu0
    %v1199 = vadd.f32 0.0, %v1198
    %v1200 = vpop.f32.mrb[0].mxu0
    %v1201 = vpop.f32.mrb[0].mxu0
    %v1202 = vpop.f32.mrb[0].mxu0
    %1203 = vdwg.mxu0
    %1204 = vmatprep.subr.bf16.mxu0 0
    %1205 = vmatpush1.bf16.msra.mxu0 %v924
    %1206 = vmatprep.subr.bf16.mxu0 0
    %1207 = vmatpush1.bf16.msra.mxu0 %v925
    %1208 = vmatprep.subr.bf16.mxu0 0
    %1209 = vmatpush1.bf16.msra.mxu0 %v926
    %1210 = vmatprep.subr.bf16.mxu0 0
    %1211 = vmatpush1.bf16.msra.mxu0 %v927
    %1212 = vmatprep.subr.bf16.mxu0 0
    %1213 = vmatpush1.bf16.msra.mxu0 %v928
    %1214 = vmatprep.subr.bf16.mxu0 0
    %1215 = vmatpush1.bf16.msra.mxu0 %v929
    %1216 = vmatprep.subr.bf16.mxu0 0
    %1217 = vmatpush1.bf16.msra.mxu0 %v930
    %1218 = vmatprep.subr.bf16.mxu0 0
    %1219 = vmatpush1.bf16.msra.mxu0 %v931
    %1220 = vmatprep.subr.bf16.mxu0 0
    %1221 = vmatpush1.bf16.msra.mxu0 %v932
    %1222 = vmatprep.subr.bf16.mxu0 0
    %1223 = vmatpush1.bf16.msra.mxu0 %v933
    %1224 = vmatprep.subr.bf16.mxu0 0
    %1225 = vmatpush1.bf16.msra.mxu0 %v934
    %1226 = vmatprep.subr.bf16.mxu0 0
    %1227 = vmatpush1.bf16.msra.mxu0 %v935
    %1228 = vmatprep.subr.bf16.mxu0 0
    %1229 = vmatpush1.bf16.msra.mxu0 %v936
    %1230 = vmatprep.subr.bf16.mxu0 0
    %1231 = vmatpush1.bf16.msra.mxu0 %v937
    %1232 = vmatprep.subr.bf16.mxu0 0
    %1233 = vmatpush1.bf16.msra.mxu0 %v938
    %1234 = vmatprep.subr.bf16.mxu0 0
    %1235 = vmatpush1.bf16.msra.mxu0 %v939
    %1236 = vmatprep.mubr.bf16.mxu0 %v329
    %1237 = vmatmul.mubr.bf16.gmra.mrb[0].mxu0 %v327
    %v1238 = vpop.f32.mrb[0].mxu0
    %v1239 = vadd.f32 %v1199, %v1238
    %v1240 = vpop.f32.mrb[0].mxu0
    %v1241 = vpop.f32.mrb[0].mxu0
    %v1242 = vpop.f32.mrb[0].mxu0
    %1243 = vdwg.mxu0
    %1244 = vmatprep.subr.bf16.mxu0 0
    %1245 = vmatpush1.bf16.msra.mxu0 %v940
    %1246 = vmatprep.subr.bf16.mxu0 0
    %1247 = vmatpush1.bf16.msra.mxu0 %v941
    %1248 = vmatprep.subr.bf16.mxu0 0
    %1249 = vmatpush1.bf16.msra.mxu0 %v942
    %1250 = vmatprep.subr.bf16.mxu0 0
    %1251 = vmatpush1.bf16.msra.mxu0 %v943
    %1252 = vmatprep.subr.bf16.mxu0 0
    %1253 = vmatpush1.bf16.msra.mxu0 %v944
    %1254 = vmatprep.subr.bf16.mxu0 0
    %1255 = vmatpush1.bf16.msra.mxu0 %v945
    %1256 = vmatprep.subr.bf16.mxu0 0
    %1257 = vmatpush1.bf16.msra.mxu0 %v946
    %1258 = vmatprep.subr.bf16.mxu0 0
    %1259 = vmatpush1.bf16.msra.mxu0 %v947
    %1260 = vmatprep.subr.bf16.mxu0 0
    %1261 = vmatpush1.bf16.msra.mxu0 %v948
    %1262 = vmatprep.subr.bf16.mxu0 0
    %1263 = vmatpush1.bf16.msra.mxu0 %v949
    %1264 = vmatprep.subr.bf16.mxu0 0
    %1265 = vmatpush1.bf16.msra.mxu0 %v950
    %1266 = vmatprep.subr.bf16.mxu0 0
    %1267 = vmatpush1.bf16.msra.mxu0 %v951
    %1268 = vmatprep.subr.bf16.mxu0 0
    %1269 = vmatpush1.bf16.msra.mxu0 %v952
    %1270 = vmatprep.subr.bf16.mxu0 0
    %1271 = vmatpush1.bf16.msra.mxu0 %v953
    %1272 = vmatprep.subr.bf16.mxu0 0
    %1273 = vmatpush1.bf16.msra.mxu0 %v954
    %1274 = vmatprep.subr.bf16.mxu0 0
    %1275 = vmatpush1.bf16.msra.mxu0 %v955
    %1276 = vmatprep.mubr.bf16.mxu0 %v326
    %1277 = vmatmul.mubr.bf16.gmra.mrb[0].mxu0 %v312
    %v1278 = vpop.f32.mrb[0].mxu0
    %v1279 = vadd.f32 %v1239, %v1278
    %v1280 = vpop.f32.mrb[0].mxu0
    %v1281 = vpop.f32.mrb[0].mxu0
    %v1282 = vpop.f32.mrb[0].mxu0
    %1283 = vdwg.mxu0
    %1284 = vmatprep.subr.bf16.mxu0 0
    %1285 = vmatpush1.bf16.msra.mxu0 %v956
    %1286 = vmatprep.subr.bf16.mxu0 0
    %1287 = vmatpush1.bf16.msra.mxu0 %v957
    %1288 = vmatprep.subr.bf16.mxu0 0
    %1289 = vmatpush1.bf16.msra.mxu0 %v958
    %1290 = vmatprep.subr.bf16.mxu0 0
    %1291 = vmatpush1.bf16.msra.mxu0 %v959
    %1292 = vmatprep.subr.bf16.mxu0 0
    %1293 = vmatpush1.bf16.msra.mxu0 %v960
    %1294 = vmatprep.subr.bf16.mxu0 0
    %1295 = vmatpush1.bf16.msra.mxu0 %v961
    %1296 = vmatprep.subr.bf16.mxu0 0
    %1297 = vmatpush1.bf16.msra.mxu0 %v962
    %1298 = vmatprep.subr.bf16.mxu0 0
    %1299 = vmatpush1.bf16.msra.mxu0 %v963
    %1300 = vmatprep.subr.bf16.mxu0 0
    %1301 = vmatpush1.bf16.msra.mxu0 %v964
    %1302 = vmatprep.subr.bf16.mxu0 0
    %1303 = vmatpush1.bf16.msra.mxu0 %v965
    %1304 = vmatprep.subr.bf16.mxu0 0
    %1305 = vmatpush1.bf16.msra.mxu0 %v966
    %1306 = vmatprep.subr.bf16.mxu0 0
    %1307 = vmatpush1.bf16.msra.mxu0 %v967
    %1308 = vmatprep.subr.bf16.mxu0 0
    %1309 = vmatpush1.bf16.msra.mxu0 %v968
    %1310 = vmatprep.subr.bf16.mxu0 0
    %1311 = vmatpush1.bf16.msra.mxu0 %v969
    %1312 = vmatprep.subr.bf16.mxu0 0
    %1313 = vmatpush1.bf16.msra.mxu0 %v970
    %1314 = vmatprep.subr.bf16.mxu0 0
    %1315 = vmatpush1.bf16.msra.mxu0 %v971
    %1316 = vmatprep.mubr.bf16.mxu0 %v330
    %1317 = vmatmul.mubr.bf16.gmra.mrb[0].mxu0 %v328
    %v1318 = vpop.f32.mrb[0].mxu0
    %v1319 = vadd.f32 %v1279, %v1318
    %v1320 = vpop.f32.mrb[0].mxu0
    %v1321 = vpop.f32.mrb[0].mxu0
    %v1322 = vpop.f32.mrb[0].mxu0
    %1323 = vdwg.mxu0
    %1324 = vmatprep.subr.bf16.mxu0 0
    %1325 = vmatpush1.bf16.msra.mxu0 %v972
    %1326 = vmatprep.subr.bf16.mxu0 0
    %1327 = vmatpush1.bf16.msra.mxu0 %v973
    %1328 = vmatprep.subr.bf16.mxu0 0
    %1329 = vmatpush1.bf16.msra.mxu0 %v974
    %1330 = vmatprep.subr.bf16.mxu0 0
    %1331 = vmatpush1.bf16.msra.mxu0 %v975
    %1332 = vmatprep.subr.bf16.mxu0 0
    %1333 = vmatpush1.bf16.msra.mxu0 %v976
    %1334 = vmatprep.subr.bf16.mxu0 0
    %1335 = vmatpush1.bf16.msra.mxu0 %v977
    %1336 = vmatprep.subr.bf16.mxu0 0
    %1337 = vmatpush1.bf16.msra.mxu0 %v978
    %1338 = vmatprep.subr.bf16.mxu0 0
    %1339 = vmatpush1.bf16.msra.mxu0 %v979
    %1340 = vmatprep.subr.bf16.mxu0 0
    %1341 = vmatpush1.bf16.msra.mxu0 %v980
    %1342 = vmatprep.subr.bf16.mxu0 0
    %1343 = vmatpush1.bf16.msra.mxu0 %v981
    %1344 = vmatprep.subr.bf16.mxu0 0
    %1345 = vmatpush1.bf16.msra.mxu0 %v982
    %1346 = vmatprep.subr.bf16.mxu0 0
    %1347 = vmatpush1.bf16.msra.mxu0 %v983
    %1348 = vmatprep.subr.bf16.mxu0 0
    %1349 = vmatpush1.bf16.msra.mxu0 %v984
    %1350 = vmatprep.subr.bf16.mxu0 0
    %1351 = vmatpush1.bf16.msra.mxu0 %v985
    %1352 = vmatprep.subr.bf16.mxu0 0
    %1353 = vmatpush1.bf16.msra.mxu0 %v986
    %1354 = vmatprep.subr.bf16.mxu0 0
    %1355 = vmatpush1.bf16.msra.mxu0 %v987
    %1356 = vmatprep.mubr.bf16.mxu0 %v368
    %1357 = vmatmul.mubr.bf16.gmra.mrb[0].mxu0 %v354
    %v1358 = vpop.f32.mrb[0].mxu0
    %v1359 = vadd.f32 %v1319, %v1358
    %v1360 = vpop.f32.mrb[0].mxu0
    %v1361 = vpop.f32.mrb[0].mxu0
    %v1362 = vpop.f32.mrb[0].mxu0
    %1363 = vdwg.mxu0
    %1364 = vmatprep.subr.bf16.mxu0 0
    %1365 = vmatpush1.bf16.msra.mxu0 %v988
    %1366 = vmatprep.subr.bf16.mxu0 0
    %1367 = vmatpush1.bf16.msra.mxu0 %v989
    %1368 = vmatprep.subr.bf16.mxu0 0
    %1369 = vmatpush1.bf16.msra.mxu0 %v990
    %1370 = vmatprep.subr.bf16.mxu0 0
    %1371 = vmatpush1.bf16.msra.mxu0 %v991
    %1372 = vmatprep.subr.bf16.mxu0 0
    %1373 = vmatpush1.bf16.msra.mxu0 %v992
    %1374 = vmatprep.subr.bf16.mxu0 0
    %1375 = vmatpush1.bf16.msra.mxu0 %v993
    %1376 = vmatprep.subr.bf16.mxu0 0
    %1377 = vmatpush1.bf16.msra.mxu0 %v994
    %1378 = vmatprep.subr.bf16.mxu0 0
    %1379 = vmatpush1.bf16.msra.mxu0 %v995
    %1380 = vmatprep.subr.bf16.mxu0 0
    %1381 = vmatpush1.bf16.msra.mxu0 %v996
    %1382 = vmatprep.subr.bf16.mxu0 0
    %1383 = vmatpush1.bf16.msra.mxu0 %v997
    %1384 = vmatprep.subr.bf16.mxu0 0
    %1385 = vmatpush1.bf16.msra.mxu0 %v998
    %1386 = vmatprep.subr.bf16.mxu0 0
    %1387 = vmatpush1.bf16.msra.mxu0 %v999
    %1388 = vmatprep.subr.bf16.mxu0 0
    %1389 = vmatpush1.bf16.msra.mxu0 %v1000
    %1390 = vmatprep.subr.bf16.mxu0 0
    %1391 = vmatpush1.bf16.msra.mxu0 %v1001
    %1392 = vmatprep.subr.bf16.mxu0 0
    %1393 = vmatpush1.bf16.msra.mxu0 %v1002
    %1394 = vmatprep.subr.bf16.mxu0 0
    %1395 = vmatpush1.bf16.msra.mxu0 %v1003
    %1396 = vmatprep.mubr.bf16.mxu0 %v378
    %1397 = vmatmul.mubr.bf16.gmra.mrb[0].mxu0 %v376
    %v1398 = vpop.f32.mrb[0].mxu0
    %v1399 = vadd.f32 %v1359, %v1398
    %v1400 = vpop.f32.mrb[0].mxu0
    %v1401 = vpop.f32.mrb[0].mxu0
    %v1402 = vpop.f32.mrb[0].mxu0
    %1403 = vdwg.mxu0
    %1404 = vmatprep.subr.bf16.mxu0 0
    %1405 = vmatpush1.bf16.msra.mxu0 %v1004
    %1406 = vmatprep.subr.bf16.mxu0 0
    %1407 = vmatpush1.bf16.msra.mxu0 %v1005
    %1408 = vmatprep.subr.bf16.mxu0 0
    %1409 = vmatpush1.bf16.msra.mxu0 %v1006
    %1410 = vmatprep.subr.bf16.mxu0 0
    %1411 = vmatpush1.bf16.msra.mxu0 %v1007
    %1412 = vmatprep.subr.bf16.mxu0 0
    %1413 = vmatpush1.bf16.msra.mxu0 %v1008
    %1414 = vmatprep.subr.bf16.mxu0 0
    %1415 = vmatpush1.bf16.msra.mxu0 %v1009
    %1416 = vmatprep.subr.bf16.mxu0 0
    %1417 = vmatpush1.bf16.msra.mxu0 %v1010
    %1418 = vmatprep.subr.bf16.mxu0 0
    %1419 = vmatpush1.bf16.msra.mxu0 %v1011
    %1420 = vmatprep.subr.bf16.mxu0 0
    %1421 = vmatpush1.bf16.msra.mxu0 %v1012
    %1422 = vmatprep.subr.bf16.mxu0 0
    %1423 = vmatpush1.bf16.msra.mxu0 %v1013
    %1424 = vmatprep.subr.bf16.mxu0 0
    %1425 = vmatpush1.bf16.msra.mxu0 %v1014
    %1426 = vmatprep.subr.bf16.mxu0 0
    %1427 = vmatpush1.bf16.msra.mxu0 %v1015
    %1428 = vmatprep.subr.bf16.mxu0 0
    %1429 = vmatpush1.bf16.msra.mxu0 %v1016
    %1430 = vmatprep.subr.bf16.mxu0 0
    %1431 = vmatpush1.bf16.msra.mxu0 %v1017
    %1432 = vmatprep.subr.bf16.mxu0 0
    %1433 = vmatpush1.bf16.msra.mxu0 %v1018
    %1434 = vmatprep.subr.bf16.mxu0 0
    %1435 = vmatpush1.bf16.msra.mxu0 %v1019
    %1436 = vmatprep.mubr.bf16.mxu0 %v375
    %1437 = vmatmul.mubr.bf16.gmra.mrb[0].mxu0 %v361
    %v1438 = vpop.f32.mrb[0].mxu0
    %v1439 = vadd.f32 %v1399, %v1438
    %v1440 = vpop.f32.mrb[0].mxu0
    %v1441 = vpop.f32.mrb[0].mxu0
    %v1442 = vpop.f32.mrb[0].mxu0
    %1443 = vdwg.mxu0
    %1444 = vmatprep.subr.bf16.mxu0 0
    %1445 = vmatpush1.bf16.msra.mxu0 %v1020
    %1446 = vmatprep.subr.bf16.mxu0 0
    %1447 = vmatpush1.bf16.msra.mxu0 %v1021
    %1448 = vmatprep.subr.bf16.mxu0 0
    %1449 = vmatpush1.bf16.msra.mxu0 %v1022
    %1450 = vmatprep.subr.bf16.mxu0 0
    %1451 = vmatpush1.bf16.msra.mxu0 %v1023
    %1452 = vmatprep.subr.bf16.mxu0 0
    %1453 = vmatpush1.bf16.msra.mxu0 %v1024
    %1454 = vmatprep.subr.bf16.mxu0 0
    %1455 = vmatpush1.bf16.msra.mxu0 %v1025
    %1456 = vmatprep.subr.bf16.mxu0 0
    %1457 = vmatpush1.bf16.msra.mxu0 %v1026
    %1458 = vmatprep.subr.bf16.mxu0 0
    %1459 = vmatpush1.bf16.msra.mxu0 %v1027
    %1460 = vmatprep.subr.bf16.mxu0 0
    %1461 = vmatpush1.bf16.msra.mxu0 %v1028
    %1462 = vmatprep.subr.bf16.mxu0 0
    %1463 = vmatpush1.bf16.msra.mxu0 %v1029
    %1464 = vmatprep.subr.bf16.mxu0 0
    %1465 = vmatpush1.bf16.msra.mxu0 %v1030
    %1466 = vmatprep.subr.bf16.mxu0 0
    %1467 = vmatpush1.bf16.msra.mxu0 %v1031
    %1468 = vmatprep.subr.bf16.mxu0 0
    %1469 = vmatpush1.bf16.msra.mxu0 %v1032
    %1470 = vmatprep.subr.bf16.mxu0 0
    %1471 = vmatpush1.bf16.msra.mxu0 %v1033
    %1472 = vmatprep.subr.bf16.mxu0 0
    %1473 = vmatpush1.bf16.msra.mxu0 %v1034
    %1474 = vmatprep.subr.bf16.mxu0 0
    %1475 = vmatpush1.bf16.msra.mxu0 %v1035
    %1476 = vmatprep.mubr.bf16.mxu0 %v379
    %1477 = vmatmul.mubr.bf16.gmra.mrb[0].mxu0 %v377
    %v1478 = vpop.f32.mrb[0].mxu0
    %v1479 = vadd.f32 %v1439, %v1478
    %v1480 = vpop.f32.mrb[0].mxu0
    %v1481 = vpop.f32.mrb[0].mxu0
    %v1482 = vpop.f32.mrb[0].mxu0
    %1483 = vdwg.mxu0
    %v1484 = vadd.f32 %v21, %v1479
    %1485 = vst [vmem:[#allocation2] sm:$0x3] %v1484
    // Predicated region
    $region18: #{cvae_forward.9} parent=1 // pred_check
      %p1486 = pneg %p16
    $region19: #{cvae_forward.9} parent=1 // pred_check_branch
      %1488 = sbr.rel (%p1486) target = $region21
    $region20: #{cvae_forward.9} parent=1 // pred_region
      %v1489 = vld [vmem:[#allocation2] sm:$0x3]
      %v1490 = vld [vmem:[%s2] sm:$0x1]
      %v1492 = vlaneseq
      %v1493 = vshrl.u32 %v1492, 7
      %v1494 = vsub.s32 0, %v1493
      %v1495 = vrot.slane %v1490, %v1494
      %v1497 = vadd.f32 %v1489, %v1495
      %v1498 = vtanh.pop %v1497
      %1499 = vst [vmem:[#allocation2] sm:$0x3] %v1498
    $region21: #{cvae_forward.9} parent=1 // pred_fallthru
      _
    // Predicated region
    $region22: #{cvae_forward.9} parent=1 // pred_check
      _
    $region23: #{cvae_forward.9} parent=1 // pred_check_branch
      %1501 = sbr.rel (0) target = $region25
    $region24: #{cvae_forward.9} parent=1 // pred_region
      %s1503 = ssub.s32 32, 32
      %1504 = vsyncadd [#allocation3], %s1503
      %s1506 = sshll.u32 [#allocation2], 4
      %s1507 = int_to_ptr.vmem [resolvable:$true] %s1506
      %1509 = dma.vmem_to_hbm [thread:$0]  %s1507, 32, %s3, [#allocation3]
    $region25: #{cvae_forward.9} parent=1 // pred_fallthru
      _
    // Predicated region
    $region26: #{cvae_forward.9} parent=1 // pred_check
      _
    $region27: #{cvae_forward.9} parent=1 // pred_check_branch
      %1511 = sbr.rel (0) target = $region29
    $region28: #{cvae_forward.9} parent=1 // pred_region
      %1512 = dma.done [#allocation3], 32
    $region29: #{cvae_forward.9} parent=1 // pred_fallthru
      _
    %1513 = vsyncpa [#allocation3], 1

</llo_original>
